<compile_context>
chip_gen: v7x
topology: tpu7x:2x2x1
jax: 0.10.0
libtpu: 0.0.40
codegen_flags: <defaults>
</compile_context>

<pallas_src>
import math
import functools
import numpy as np
import jax
import jax.numpy as jnp
from jax.experimental import pallas as pl
from jax.experimental.pallas import tpu as pltpu


# ------------------------------ fused kernel -------------------------------- #

def _decoder_layer_kernel(B, Sq, Sk, H, d_k, d_v,
                          dec_ref, enc_ref,
                          wqkv1_ref, wo1_ref, wq2_ref, wkv2_ref, wo2_ref,
                          w1_ref, w2_ref, vec_ref,
                          out_ref, sa_ref, ea_ref):
    f32 = jnp.float32
    bf16 = jnp.bfloat16
    D = dec_ref.shape[-1]
    d_ff = w1_ref.shape[-1]
    hk = H * d_k
    hv = H * d_v

    def vec(row, width):
        # static slice of the packed bias/LN table -> (1, width) f32, free
        return vec_ref[row:row + 1, :width]

    def layernorm(x, g, b, eps=1e-5):
        mu = jnp.mean(x, axis=-1, keepdims=True)
        var = jnp.mean((x - mu) ** 2, axis=-1, keepdims=True)   # biased, like PyTorch LN
        return (x - mu) * jax.lax.rsqrt(var + eps) * g + b

    def gelu(x):
        c = math.sqrt(2.0 / math.pi)
        return 0.5 * x * (1.0 + jnp.tanh(c * (x + 0.044715 * x * x * x)))

    def attend(qh, kh, vh):
        # qh (Sq,H,dk), kh (S,H,dk), vh (S,H,dv) — one batch element, all heads at once.
        # (q,h,k) order so the prob slab is a plain reshape afterwards.
        s = jnp.einsum('qhd,khd->qhk', qh.astype(bf16), kh.astype(bf16),
                       preferred_element_type=f32)
        m = jnp.max(s, axis=-1, keepdims=True)
        e = jnp.exp(s - m)
        p = e * pl.reciprocal(jnp.sum(e, axis=-1, keepdims=True), approx=True)
        c = jnp.einsum('qhk,khd->qhd', p.astype(bf16), vh.astype(bf16),
                       preferred_element_type=f32)
        return p, c

    xf = dec_ref[...].reshape(B * Sq, D)       # (B*Sq, D) f32 residual stream
    ef = enc_ref[...].reshape(B * Sk, D)

    # -------- self-attention: fused QKV projection (scale pre-folded into WQ/bQ) -------- #
    qkv = jnp.dot(xf.astype(bf16), wqkv1_ref[...],
                  preferred_element_type=f32) + vec(0, 2 * hk + hv)
    q1 = qkv[:, :hk].reshape(B, Sq, H, d_k)
    k1 = qkv[:, hk:2 * hk].reshape(B, Sq, H, d_k)
    v1 = qkv[:, 2 * hk:2 * hk + hv].reshape(B, Sq, H, d_v)

    ctx = []
    for b in range(B):  # B is tiny & static — unrolled inside the single grid step
        p, c = attend(q1[b], k1[b], v1[b])
        sa_ref[b] = p.reshape(Sq, H * Sq)      # lane-dense slab, no transpose
        ctx.append(c.reshape(Sq, hv))
    ctx = jnp.concatenate(ctx, axis=0)         # (B*Sq, H*dv)

    o1 = jnp.dot(ctx.astype(bf16), wo1_ref[...], preferred_element_type=f32) + vec(1, D)
    y1 = layernorm(o1 + xf, vec(2, D), vec(3, D))

    # -------- encoder-decoder attention: fused KV projection on enc ---------- #
    q2 = jnp.dot(y1.astype(bf16), wq2_ref[...], preferred_element_type=f32) + vec(4, hk)
    kv2 = jnp.dot(ef.astype(bf16), wkv2_ref[...], preferred_element_type=f32) + vec(5, hk + hv)
    q2h = q2.reshape(B, Sq, H, d_k)
    k2h = kv2[:, :hk].reshape(B, Sk, H, d_k)
    v2h = kv2[:, hk:hk + hv].reshape(B, Sk, H, d_v)

    ctx = []
    for b in range(B):
        p, c = attend(q2h[b], k2h[b], v2h[b])
        ea_ref[b] = p.reshape(Sq, H * Sk)
        ctx.append(c.reshape(Sq, hv))
    ctx = jnp.concatenate(ctx, axis=0)

    o2 = jnp.dot(ctx.astype(bf16), wo2_ref[...], preferred_element_type=f32) + vec(6, D)
    y2 = layernorm(o2 + y1, vec(7, D), vec(8, D))

    # -------- position-wise FFN ---------------------------------------------- #
    h = gelu(jnp.dot(y2.astype(bf16), w1_ref[...], preferred_element_type=f32) + vec(9, d_ff))
    o3 = jnp.dot(h.astype(bf16), w2_ref[...], preferred_element_type=f32) + vec(10, D)
    out_ref[...] = layernorm(o3 + y2, vec(11, D), vec(12, D)).reshape(B, Sq, D)


# ------------------------------ wrapper -------------------------------------- #

def _pack_params(params, d_k):
    """Fuse/cast weight matrices (bf16) and pack all small vectors into one (16,128) f32 table."""
    wq1, bq1, wk1, bk1, wv1, bv1, wo1, bo1, g1, be1 = params["self_attn"]
    wq2, bq2, wk2, bk2, wv2, bv2, wo2, bo2, g2, be2 = params["enc_attn"]
    w1, b1, w2, b2, gf, bef = params["ffn"]
    scale = 1.0 / np.sqrt(d_k)

    def bf(x):
        return jnp.asarray(x, jnp.bfloat16)

    wqkv1 = bf(jnp.concatenate([wq1 * scale, wk1, wv1], axis=1))   # (D, 3*H*dk)
    wkv2 = bf(jnp.concatenate([wk2, wv2], axis=1))                 # (D, 2*H*dk)
    mats = (wqkv1, bf(wo1), bf(wq2 * scale), wkv2, bf(wo2), bf(w1), bf(w2))

    rows = [
        jnp.concatenate([bq1[0] * scale, bk1[0], bv1[0]]),  # 0: fused qkv bias (self)
        bo1[0], g1[0], be1[0],                              # 1-3
        bq2[0] * scale,                                     # 4
        jnp.concatenate([bk2[0], bv2[0]]),                  # 5: fused kv bias (cross)
        bo2[0], g2[0], be2[0],                              # 6-8
        b1[0], b2[0], gf[0], bef[0],                        # 9-12
    ]
    lanes = 128
    rows = [jnp.pad(r.astype(jnp.float32), (0, lanes - r.shape[0])) for r in rows]
    rows += [jnp.zeros((lanes,), jnp.float32)] * (16 - len(rows))
    vecs = jnp.stack(rows, axis=0)                                  # (16, 128) f32
    return mats, vecs


def _full_block(shape):
    n = len(shape)
    return pl.BlockSpec(shape, lambda i: (0,) * n)


def decoder_layer(dec_inputs, enc_outputs, params, n_heads, d_k, d_v):
    B, Sq, D = dec_inputs.shape
    Sk = enc_outputs.shape[1]
    mats, vecs = _pack_params(params, d_k)

    kernel = functools.partial(_decoder_layer_kernel, B, Sq, Sk, n_heads, d_k, d_v)
    ins = (dec_inputs, enc_outputs) + mats + (vecs,)

    out_shapes = (
        jax.ShapeDtypeStruct((B, Sq, D), jnp.float32),
        jax.ShapeDtypeStruct((B, Sq, n_heads * Sq), jnp.float32),   # self-attn slab
        jax.ShapeDtypeStruct((B, Sq, n_heads * Sk), jnp.float32),   # enc-attn slab
    )

    dec_out, sa_slab, ea_slab = pl.pallas_call(
        kernel,
        out_shape=out_shapes,
        grid=(1,),                                      # whole layer in one step, B in the block
        in_specs=[_full_block(a.shape) for a in ins],
        out_specs=tuple(_full_block(s.shape) for s in out_shapes),
        compiler_params=pltpu.CompilerParams(dimension_semantics=("arbitrary",)),
    )(*ins)

    # un-flatten the lane-dense attention slabs to PyTorch layout (B, H, Sq, Sk)
    self_attn = sa_slab.reshape(B, Sq, n_heads, Sq).transpose(0, 2, 1, 3)
    enc_attn = ea_slab.reshape(B, Sq, n_heads, Sk).transpose(0, 2, 1, 3)
    return dec_out, self_attn, enc_attn


# --------------------------- pure-JAX f32 reference -------------------------- #

def _ref_layernorm(x, g, b, eps=1e-5):
    mu = jnp.mean(x, axis=-1, keepdims=True)
    var = jnp.mean((x - mu) ** 2, axis=-1, keepdims=True)
    return (x - mu) * jax.lax.rsqrt(var + eps) * g + b


def _ref_gelu(x):
    c = math.sqrt(2.0 / math.pi)
    return 0.5 * x * (1.0 + jnp.tanh(c * (x + 0.044715 * (x ** 3))))


def _ref_mha(q, k, v, params, n_heads, d_k, d_v):
    wq, bq, wk, bk, wv, bv, wo, bo, g, beta = params
    B, Sq, D = q.shape
    Sk = k.shape[1]
    qs = (q @ wq + bq).reshape(B, Sq, n_heads, d_k).transpose(0, 2, 1, 3)
    ks = (k @ wk + bk).reshape(B, Sk, n_heads, d_k).transpose(0, 2, 1, 3)
    vs = (v @ wv + bv).reshape(B, Sk, n_heads, d_v).transpose(0, 2, 1, 3)
    scores = jnp.einsum("bhqd,bhkd->bhqk", qs, ks) / np.sqrt(d_k)
    attn = jax.nn.softmax(scores, axis=-1)
    ctx = jnp.einsum("bhqk,bhkd->bhqd", attn, vs)
    ctx = ctx.transpose(0, 2, 1, 3).reshape(B, Sq, n_heads * d_v)
    out = ctx @ wo + bo
    return _ref_layernorm(out + q, g, beta), attn


def _ref_ffn(x, params):
    w1, b1, w2, b2, g, beta = params
    h = x @ w1 + b1
    o = _ref_gelu(h) @ w2 + b2
    return _ref_layernorm(o + x, g, beta)


def _ref_decoder(dec_inputs, enc_outputs, params, n_heads, d_k, d_v):
    d, sa = _ref_mha(dec_inputs, dec_inputs, dec_inputs, params["self_attn"], n_heads, d_k, d_v)
    d, ea = _ref_mha(d, enc_outputs, enc_outputs, params["enc_attn"], n_heads, d_k, d_v)
    d = _ref_ffn(d, params["ffn"])
    return d, sa, ea


# ------------------------------- params -------------------------------------- #

def _init_linear(key, d_in, d_out):
    k1, k2 = jax.random.split(key)
    w = jax.random.normal(k1, (d_in, d_out), jnp.float32) / np.sqrt(d_in)
    b = 0.01 * jax.random.normal(k2, (1, d_out), jnp.float32)
    return w, b


def _init_mha_params(key, d_model, d_k, d_v, n_heads):
    ks = jax.random.split(key, 6)
    wq, bq = _init_linear(ks[0], d_model, d_k * n_heads)
    wk, bk = _init_linear(ks[1], d_model, d_k * n_heads)
    wv, bv = _init_linear(ks[2], d_model, d_v * n_heads)
    wo, bo = _init_linear(ks[3], n_heads * d_v, d_model)
    g = 1.0 + 0.1 * jax.random.normal(ks[4], (1, d_model), jnp.float32)
    beta = 0.01 * jax.random.normal(ks[5], (1, d_model), jnp.float32)
    return (wq, bq, wk, bk, wv, bv, wo, bo, g, beta)


def _init_ffn_params(key, d_model, d_ff):
    ks = jax.random.split(key, 4)
    w1, b1 = _init_linear(ks[0], d_model, d_ff)
    w2, b2 = _init_linear(ks[1], d_ff, d_model)
    g = 1.0 + 0.1 * jax.random.normal(ks[2], (1, d_model), jnp.float32)
    beta = 0.01 * jax.random.normal(ks[3], (1, d_model), jnp.float32)
    return (w1, b1, w2, b2, g, beta)


# --------------------------------- main --------------------------------------- #

if __name__ == "__main__":
    B, Sq, Sk = 2, 8, 8
    d_model, d_ff, d_k, d_v, n_heads = 32, 64, 8, 8, 4

    root = jax.random.PRNGKey(0)
    k_in, k_enc, k_sa, k_ea, k_ff = jax.random.split(root, 5)

    dec_inputs = jax.random.normal(k_in, (B, Sq, d_model), jnp.float32)
    enc_outputs = jax.random.normal(k_enc, (B, Sk, d_model), jnp.float32)

    params = {
        "self_attn": _init_mha_params(k_sa, d_model, d_k, d_v, n_heads),
        "enc_attn": _init_mha_params(k_ea, d_model, d_k, d_v, n_heads),
        "ffn": _init_ffn_params(k_ff, d_model, d_ff),
    }

    dec_out, self_attn, enc_attn = decoder_layer(
        dec_inputs, enc_outputs, params, n_heads, d_k, d_v)
    jax.block_until_ready((dec_out, self_attn, enc_attn))

    # Sanity check vs. pure-f32 JAX reference.  Tolerance is sized for the bf16 MXU
    # matmuls + EUP approx reciprocal used inside the kernel.
    r_out, r_sa, r_ea = _ref_decoder(dec_inputs, enc_outputs, params, n_heads, d_k, d_v)
    np.testing.assert_allclose(np.asarray(dec_out), np.asarray(r_out), rtol=2e-2, atol=4e-2)
    np.testing.assert_allclose(np.asarray(self_attn), np.asarray(r_sa), rtol=2e-2, atol=4e-2)
    np.testing.assert_allclose(np.asarray(enc_attn), np.asarray(r_ea), rtol=2e-2, atol=4e-2)

    print("KERNEL_OK")
</pallas_src>

<mosaic_0001>
module attributes {stable_mosaic.version = 11 : i64} {
  func.func @_decoder_layer_kernel(%arg0: i32, %arg1: memref<2x8x32xf32, #tpu.memory_space<vmem>>, %arg2: memref<2x8x32xf32, #tpu.memory_space<vmem>>, %arg3: memref<32x96xbf16, #tpu.memory_space<vmem>>, %arg4: memref<32x32xbf16, #tpu.memory_space<vmem>>, %arg5: memref<32x32xbf16, #tpu.memory_space<vmem>>, %arg6: memref<32x64xbf16, #tpu.memory_space<vmem>>, %arg7: memref<32x32xbf16, #tpu.memory_space<vmem>>, %arg8: memref<32x64xbf16, #tpu.memory_space<vmem>>, %arg9: memref<64x32xbf16, #tpu.memory_space<vmem>>, %arg10: memref<16x128xf32, #tpu.memory_space<vmem>>, %arg11: memref<2x8x32xf32, #tpu.memory_space<vmem>>, %arg12: memref<2x8x32xf32, #tpu.memory_space<vmem>>, %arg13: memref<2x8x32xf32, #tpu.memory_space<vmem>>) attributes {dimension_semantics = [#tpu.dimension_semantics<arbitrary>], iteration_bounds = array<i64: 1>, scalar_prefetch = 0 : i64, scratch_operands = 0 : i64, tpu.core_type = #tpu.core_type<tc>, window_params = [{pipeline_mode = #tpu.pipeline_mode<synchronous>, transform_indices = @transform_0, window_bounds = array<i64: 2, 8, 32>}, {pipeline_mode = #tpu.pipeline_mode<synchronous>, transform_indices = @transform_1, window_bounds = array<i64: 2, 8, 32>}, {pipeline_mode = #tpu.pipeline_mode<synchronous>, transform_indices = @transform_2, window_bounds = array<i64: 32, 96>}, {pipeline_mode = #tpu.pipeline_mode<synchronous>, transform_indices = @transform_3, window_bounds = array<i64: 32, 32>}, {pipeline_mode = #tpu.pipeline_mode<synchronous>, transform_indices = @transform_4, window_bounds = array<i64: 32, 32>}, {pipeline_mode = #tpu.pipeline_mode<synchronous>, transform_indices = @transform_5, window_bounds = array<i64: 32, 64>}, {pipeline_mode = #tpu.pipeline_mode<synchronous>, transform_indices = @transform_6, window_bounds = array<i64: 32, 32>}, {pipeline_mode = #tpu.pipeline_mode<synchronous>, transform_indices = @transform_7, window_bounds = array<i64: 32, 64>}, {pipeline_mode = #tpu.pipeline_mode<synchronous>, transform_indices = @transform_8, window_bounds = array<i64: 64, 32>}, {pipeline_mode = #tpu.pipeline_mode<synchronous>, transform_indices = @transform_9, window_bounds = array<i64: 16, 128>}, {pipeline_mode = #tpu.pipeline_mode<synchronous>, transform_indices = @transform_10, window_bounds = array<i64: 2, 8, 32>}, {pipeline_mode = #tpu.pipeline_mode<synchronous>, transform_indices = @transform_11, window_bounds = array<i64: 2, 8, 32>}, {pipeline_mode = #tpu.pipeline_mode<synchronous>, transform_indices = @transform_12, window_bounds = array<i64: 2, 8, 32>}]} {
    %c0 = arith.constant 0 : index
    %c0_0 = arith.constant 0 : index
    %c0_1 = arith.constant 0 : index
    %0 = vector.load %arg1[%c0, %c0_0, %c0_1] : memref<2x8x32xf32, #tpu.memory_space<vmem>>, vector<2x8x32xf32>
    %1 = vector.shape_cast %0 : vector<2x8x32xf32> to vector<16x32xf32>
    %c0_2 = arith.constant 0 : index
    %c0_3 = arith.constant 0 : index
    %c0_4 = arith.constant 0 : index
    %2 = vector.load %arg2[%c0_2, %c0_3, %c0_4] : memref<2x8x32xf32, #tpu.memory_space<vmem>>, vector<2x8x32xf32>
    %3 = vector.shape_cast %2 : vector<2x8x32xf32> to vector<16x32xf32>
    %4 = arith.truncf %1 : vector<16x32xf32> to vector<16x32xbf16>
    %c0_5 = arith.constant 0 : index
    %c0_6 = arith.constant 0 : index
    %5 = vector.load %arg3[%c0_5, %c0_6] : memref<32x96xbf16, #tpu.memory_space<vmem>>, vector<32x96xbf16>
    %cst = arith.constant dense<0.000000e+00> : vector<16x96xf32>
    %6 = tpu.matmul %4, %5, %cst {dimension_numbers = #tpu.dot_dimension_numbers<[1], [0], [0], [1], [0, 0, 1, 1], [], []>} : vector<16x32xbf16>, vector<32x96xbf16>, vector<16x96xf32> -> vector<16x96xf32>
    %c0_7 = arith.constant 0 : index
    %c0_8 = arith.constant 0 : index
    %7 = vector.load %arg10[%c0_7, %c0_8] : memref<16x128xf32, #tpu.memory_space<vmem>>, vector<1x96xf32>
    %8 = vector.broadcast %7 : vector<1x96xf32> to vector<16x96xf32>
    %9 = arith.addf %6, %8 : vector<16x96xf32>
    %10 = vector.extract_strided_slice %9 {offsets = [0, 0], sizes = [16, 32], strides = [1, 1]} : vector<16x96xf32> to vector<16x32xf32>
    %11 = vector.shape_cast %10 : vector<16x32xf32> to vector<2x8x4x8xf32>
    %12 = vector.extract_strided_slice %9 {offsets = [0, 32], sizes = [16, 32], strides = [1, 1]} : vector<16x96xf32> to vector<16x32xf32>
    %13 = vector.shape_cast %12 : vector<16x32xf32> to vector<2x8x4x8xf32>
    %14 = vector.extract_strided_slice %9 {offsets = [0, 64], sizes = [16, 32], strides = [1, 1]} : vector<16x96xf32> to vector<16x32xf32>
    %15 = vector.shape_cast %14 : vector<16x32xf32> to vector<2x8x4x8xf32>
    %16 = vector.extract_strided_slice %11 {offsets = [0, 0, 0, 0], sizes = [1, 8, 4, 8], strides = [1, 1, 1, 1]} : vector<2x8x4x8xf32> to vector<1x8x4x8xf32>
    %17 = vector.shape_cast %16 : vector<1x8x4x8xf32> to vector<8x4x8xf32>
    %18 = vector.extract_strided_slice %13 {offsets = [0, 0, 0, 0], sizes = [1, 8, 4, 8], strides = [1, 1, 1, 1]} : vector<2x8x4x8xf32> to vector<1x8x4x8xf32>
    %19 = vector.shape_cast %18 : vector<1x8x4x8xf32> to vector<8x4x8xf32>
    %20 = vector.extract_strided_slice %15 {offsets = [0, 0, 0, 0], sizes = [1, 8, 4, 8], strides = [1, 1, 1, 1]} : vector<2x8x4x8xf32> to vector<1x8x4x8xf32>
    %21 = vector.shape_cast %20 : vector<1x8x4x8xf32> to vector<8x4x8xf32>
    %22 = arith.truncf %17 : vector<8x4x8xf32> to vector<8x4x8xbf16>
    %23 = arith.truncf %19 : vector<8x4x8xf32> to vector<8x4x8xbf16>
    "tpu.trace_start"() <{level = 10 : i32, message = "qhd,khd->qhk"}> : () -> ()
    %cst_9 = arith.constant dense<0.000000e+00> : vector<4x8x8xf32>
    %24 = tpu.matmul %23, %22, %cst_9 {dimension_numbers = #tpu.dot_dimension_numbers<[2], [2], [0], [0], [0, 1, 0, 0, 1, 0], [1], [1]>} : vector<8x4x8xbf16>, vector<8x4x8xbf16>, vector<4x8x8xf32> -> vector<4x8x8xf32>
    %25 = tpu.transpose %24, [2, 0, 1] : vector<4x8x8xf32> -> vector<8x4x8xf32>
    "tpu.trace_stop"() : () -> ()
    %cst_10 = arith.constant dense<0xFF800000> : vector<8x4xf32>
    %26 = vector.multi_reduction <maximumf>, %25, %cst_10 [2] : vector<8x4x8xf32> to vector<8x4xf32>
    %27 = vector.shape_cast %26 : vector<8x4xf32> to vector<8x4x1xf32>
    %28 = vector.broadcast %27 : vector<8x4x1xf32> to vector<8x4x8xf32>
    %29 = arith.subf %25, %28 : vector<8x4x8xf32>
    %30 = math.exp %29 : vector<8x4x8xf32>
    %cst_11 = arith.constant dense<0.000000e+00> : vector<8x4xf32>
    %31 = vector.multi_reduction <add>, %30, %cst_11 [2] : vector<8x4x8xf32> to vector<8x4xf32>
    %32 = vector.shape_cast %31 : vector<8x4xf32> to vector<8x4x1xf32>
    %33 = tpu.reciprocal %32 {approx = true} : vector<8x4x1xf32> -> vector<8x4x1xf32>
    %34 = vector.broadcast %33 : vector<8x4x1xf32> to vector<8x4x8xf32>
    %35 = arith.mulf %30, %34 : vector<8x4x8xf32>
    %36 = arith.truncf %35 : vector<8x4x8xf32> to vector<8x4x8xbf16>
    %37 = arith.truncf %21 : vector<8x4x8xf32> to vector<8x4x8xbf16>
    "tpu.trace_start"() <{level = 10 : i32, message = "qhk,khd->qhd"}> : () -> ()
    %cst_12 = arith.constant dense<0.000000e+00> : vector<4x8x8xf32>
    %38 = tpu.matmul %37, %36, %cst_12 {dimension_numbers = #tpu.dot_dimension_numbers<[0], [2], [2], [0], [0, 1, 0, 2, 1, 0], [1], [1]>} : vector<8x4x8xbf16>, vector<8x4x8xbf16>, vector<4x8x8xf32> -> vector<4x8x8xf32>
    %39 = tpu.transpose %38, [2, 0, 1] : vector<4x8x8xf32> -> vector<8x4x8xf32>
    "tpu.trace_stop"() : () -> ()
    %40 = vector.shape_cast %35 : vector<8x4x8xf32> to vector<8x32xf32>
    %c0_13 = arith.constant 0 : index
    %c0_14 = arith.constant 0 : index
    %c0_15 = arith.constant 0 : index
    %41 = vector.load %arg12[%c0_13, %c0_14, %c0_15] : memref<2x8x32xf32, #tpu.memory_space<vmem>>, vector<1x8x32xf32>
    %42 = vector.shape_cast %41 : vector<1x8x32xf32> to vector<8x32xf32>
    %43 = vector.shape_cast %40 : vector<8x32xf32> to vector<1x8x32xf32>
    tpu.vector_store %arg12[%c0_13, %c0_14, %c0_15], %43 {strides = array<i32>} : memref<2x8x32xf32, #tpu.memory_space<vmem>>, vector<1x8x32xf32>,
    %44 = vector.shape_cast %39 : vector<8x4x8xf32> to vector<8x32xf32>
    %45 = vector.extract_strided_slice %11 {offsets = [1, 0, 0, 0], sizes = [1, 8, 4, 8], strides = [1, 1, 1, 1]} : vector<2x8x4x8xf32> to vector<1x8x4x8xf32>
    %46 = vector.shape_cast %45 : vector<1x8x4x8xf32> to vector<8x4x8xf32>
    %47 = vector.extract_strided_slice %13 {offsets = [1, 0, 0, 0], sizes = [1, 8, 4, 8], strides = [1, 1, 1, 1]} : vector<2x8x4x8xf32> to vector<1x8x4x8xf32>
    %48 = vector.shape_cast %47 : vector<1x8x4x8xf32> to vector<8x4x8xf32>
    %49 = vector.extract_strided_slice %15 {offsets = [1, 0, 0, 0], sizes = [1, 8, 4, 8], strides = [1, 1, 1, 1]} : vector<2x8x4x8xf32> to vector<1x8x4x8xf32>
    %50 = vector.shape_cast %49 : vector<1x8x4x8xf32> to vector<8x4x8xf32>
    %51 = arith.truncf %46 : vector<8x4x8xf32> to vector<8x4x8xbf16>
    %52 = arith.truncf %48 : vector<8x4x8xf32> to vector<8x4x8xbf16>
    "tpu.trace_start"() <{level = 10 : i32, message = "qhd,khd->qhk"}> : () -> ()
    %cst_16 = arith.constant dense<0.000000e+00> : vector<4x8x8xf32>
    %53 = tpu.matmul %52, %51, %cst_16 {dimension_numbers = #tpu.dot_dimension_numbers<[2], [2], [0], [0], [0, 1, 0, 0, 1, 0], [1], [1]>} : vector<8x4x8xbf16>, vector<8x4x8xbf16>, vector<4x8x8xf32> -> vector<4x8x8xf32>
    %54 = tpu.transpose %53, [2, 0, 1] : vector<4x8x8xf32> -> vector<8x4x8xf32>
    "tpu.trace_stop"() : () -> ()
    %cst_17 = arith.constant dense<0xFF800000> : vector<8x4xf32>
    %55 = vector.multi_reduction <maximumf>, %54, %cst_17 [2] : vector<8x4x8xf32> to vector<8x4xf32>
    %56 = vector.shape_cast %55 : vector<8x4xf32> to vector<8x4x1xf32>
    %57 = vector.broadcast %56 : vector<8x4x1xf32> to vector<8x4x8xf32>
    %58 = arith.subf %54, %57 : vector<8x4x8xf32>
    %59 = math.exp %58 : vector<8x4x8xf32>
    %cst_18 = arith.constant dense<0.000000e+00> : vector<8x4xf32>
    %60 = vector.multi_reduction <add>, %59, %cst_18 [2] : vector<8x4x8xf32> to vector<8x4xf32>
    %61 = vector.shape_cast %60 : vector<8x4xf32> to vector<8x4x1xf32>
    %62 = tpu.reciprocal %61 {approx = true} : vector<8x4x1xf32> -> vector<8x4x1xf32>
    %63 = vector.broadcast %62 : vector<8x4x1xf32> to vector<8x4x8xf32>
    %64 = arith.mulf %59, %63 : vector<8x4x8xf32>
    %65 = arith.truncf %64 : vector<8x4x8xf32> to vector<8x4x8xbf16>
    %66 = arith.truncf %50 : vector<8x4x8xf32> to vector<8x4x8xbf16>
    "tpu.trace_start"() <{level = 10 : i32, message = "qhk,khd->qhd"}> : () -> ()
    %cst_19 = arith.constant dense<0.000000e+00> : vector<4x8x8xf32>
    %67 = tpu.matmul %66, %65, %cst_19 {dimension_numbers = #tpu.dot_dimension_numbers<[0], [2], [2], [0], [0, 1, 0, 2, 1, 0], [1], [1]>} : vector<8x4x8xbf16>, vector<8x4x8xbf16>, vector<4x8x8xf32> -> vector<4x8x8xf32>
    %68 = tpu.transpose %67, [2, 0, 1] : vector<4x8x8xf32> -> vector<8x4x8xf32>
    "tpu.trace_stop"() : () -> ()
    %69 = vector.shape_cast %64 : vector<8x4x8xf32> to vector<8x32xf32>
    %c1 = arith.constant 1 : index
    %c0_20 = arith.constant 0 : index
    %c0_21 = arith.constant 0 : index
    %70 = vector.load %arg12[%c1, %c0_20, %c0_21] : memref<2x8x32xf32, #tpu.memory_space<vmem>>, vector<1x8x32xf32>
    %71 = vector.shape_cast %70 : vector<1x8x32xf32> to vector<8x32xf32>
    %72 = vector.shape_cast %69 : vector<8x32xf32> to vector<1x8x32xf32>
    tpu.vector_store %arg12[%c1, %c0_20, %c0_21], %72 {strides = array<i32>} : memref<2x8x32xf32, #tpu.memory_space<vmem>>, vector<1x8x32xf32>,
    %73 = vector.shape_cast %68 : vector<8x4x8xf32> to vector<8x32xf32>
    %74 = tpu.concatenate %44, %73 in 0 : vector<8x32xf32>, vector<8x32xf32> -> vector<16x32xf32>
    %75 = arith.truncf %74 : vector<16x32xf32> to vector<16x32xbf16>
    %c0_22 = arith.constant 0 : index
    %c0_23 = arith.constant 0 : index
    %76 = vector.load %arg4[%c0_22, %c0_23] : memref<32x32xbf16, #tpu.memory_space<vmem>>, vector<32x32xbf16>
    %cst_24 = arith.constant dense<0.000000e+00> : vector<16x32xf32>
    %77 = tpu.matmul %75, %76, %cst_24 {dimension_numbers = #tpu.dot_dimension_numbers<[1], [0], [0], [1], [0, 0, 1, 1], [], []>} : vector<16x32xbf16>, vector<32x32xbf16>, vector<16x32xf32> -> vector<16x32xf32>
    %c1_25 = arith.constant 1 : index
    %c0_26 = arith.constant 0 : index
    %78 = vector.load %arg10[%c1_25, %c0_26] : memref<16x128xf32, #tpu.memory_space<vmem>>, vector<1x32xf32>
    %79 = vector.broadcast %78 : vector<1x32xf32> to vector<16x32xf32>
    %80 = arith.addf %77, %79 : vector<16x32xf32>
    %81 = arith.addf %80, %1 : vector<16x32xf32>
    %c2 = arith.constant 2 : index
    %c0_27 = arith.constant 0 : index
    %82 = vector.load %arg10[%c2, %c0_27] : memref<16x128xf32, #tpu.memory_space<vmem>>, vector<1x32xf32>
    %c3 = arith.constant 3 : index
    %c0_28 = arith.constant 0 : index
    %83 = vector.load %arg10[%c3, %c0_28] : memref<16x128xf32, #tpu.memory_space<vmem>>, vector<1x32xf32>
    %cst_29 = arith.constant dense<0.000000e+00> : vector<16xf32>
    %84 = vector.multi_reduction <add>, %81, %cst_29 [1] : vector<16x32xf32> to vector<16xf32>
    %85 = vector.shape_cast %84 : vector<16xf32> to vector<16x1xf32>
    %cst_30 = arith.constant 3.200000e+01 : f32
    %86 = vector.broadcast %cst_30 : f32 to vector<16x1xf32>
    %87 = arith.divf %85, %86 : vector<16x1xf32>
    %88 = vector.broadcast %87 : vector<16x1xf32> to vector<16x32xf32>
    %89 = arith.subf %81, %88 : vector<16x32xf32>
    %90 = arith.mulf %89, %89 : vector<16x32xf32>
    %cst_31 = arith.constant dense<0.000000e+00> : vector<16xf32>
    %91 = vector.multi_reduction <add>, %90, %cst_31 [1] : vector<16x32xf32> to vector<16xf32>
    %92 = vector.shape_cast %91 : vector<16xf32> to vector<16x1xf32>
    %cst_32 = arith.constant 3.200000e+01 : f32
    %93 = vector.broadcast %cst_32 : f32 to vector<16x1xf32>
    %94 = arith.divf %92, %93 : vector<16x1xf32>
    %95 = vector.broadcast %87 : vector<16x1xf32> to vector<16x32xf32>
    %96 = arith.subf %81, %95 : vector<16x32xf32>
    %cst_33 = arith.constant 9.99999974E-6 : f32
    %97 = vector.broadcast %cst_33 : f32 to vector<16x1xf32>
    %98 = arith.addf %94, %97 : vector<16x1xf32>
    %99 = math.rsqrt %98 : vector<16x1xf32>
    %100 = vector.broadcast %99 : vector<16x1xf32> to vector<16x32xf32>
    %101 = arith.mulf %96, %100 : vector<16x32xf32>
    %102 = vector.broadcast %82 : vector<1x32xf32> to vector<16x32xf32>
    %103 = arith.mulf %101, %102 : vector<16x32xf32>
    %104 = vector.broadcast %83 : vector<1x32xf32> to vector<16x32xf32>
    %105 = arith.addf %103, %104 : vector<16x32xf32>
    %106 = arith.truncf %105 : vector<16x32xf32> to vector<16x32xbf16>
    %c0_34 = arith.constant 0 : index
    %c0_35 = arith.constant 0 : index
    %107 = vector.load %arg5[%c0_34, %c0_35] : memref<32x32xbf16, #tpu.memory_space<vmem>>, vector<32x32xbf16>
    %cst_36 = arith.constant dense<0.000000e+00> : vector<16x32xf32>
    %108 = tpu.matmul %106, %107, %cst_36 {dimension_numbers = #tpu.dot_dimension_numbers<[1], [0], [0], [1], [0, 0, 1, 1], [], []>} : vector<16x32xbf16>, vector<32x32xbf16>, vector<16x32xf32> -> vector<16x32xf32>
    %c4 = arith.constant 4 : index
    %c0_37 = arith.constant 0 : index
    %109 = vector.load %arg10[%c4, %c0_37] : memref<16x128xf32, #tpu.memory_space<vmem>>, vector<1x32xf32>
    %110 = vector.broadcast %109 : vector<1x32xf32> to vector<16x32xf32>
    %111 = arith.addf %108, %110 : vector<16x32xf32>
    %112 = arith.truncf %3 : vector<16x32xf32> to vector<16x32xbf16>
    %c0_38 = arith.constant 0 : index
    %c0_39 = arith.constant 0 : index
    %113 = vector.load %arg6[%c0_38, %c0_39] : memref<32x64xbf16, #tpu.memory_space<vmem>>, vector<32x64xbf16>
    %cst_40 = arith.constant dense<0.000000e+00> : vector<16x64xf32>
    %114 = tpu.matmul %112, %113, %cst_40 {dimension_numbers = #tpu.dot_dimension_numbers<[1], [0], [0], [1], [0, 0, 1, 1], [], []>} : vector<16x32xbf16>, vector<32x64xbf16>, vector<16x64xf32> -> vector<16x64xf32>
    %c5 = arith.constant 5 : index
    %c0_41 = arith.constant 0 : index
    %115 = vector.load %arg10[%c5, %c0_41] : memref<16x128xf32, #tpu.memory_space<vmem>>, vector<1x64xf32>
    %116 = vector.broadcast %115 : vector<1x64xf32> to vector<16x64xf32>
    %117 = arith.addf %114, %116 : vector<16x64xf32>
    %118 = vector.shape_cast %111 : vector<16x32xf32> to vector<2x8x4x8xf32>
    %119 = vector.extract_strided_slice %117 {offsets = [0, 0], sizes = [16, 32], strides = [1, 1]} : vector<16x64xf32> to vector<16x32xf32>
    %120 = vector.shape_cast %119 : vector<16x32xf32> to vector<2x8x4x8xf32>
    %121 = vector.extract_strided_slice %117 {offsets = [0, 32], sizes = [16, 32], strides = [1, 1]} : vector<16x64xf32> to vector<16x32xf32>
    %122 = vector.shape_cast %121 : vector<16x32xf32> to vector<2x8x4x8xf32>
    %123 = vector.extract_strided_slice %118 {offsets = [0, 0, 0, 0], sizes = [1, 8, 4, 8], strides = [1, 1, 1, 1]} : vector<2x8x4x8xf32> to vector<1x8x4x8xf32>
    %124 = vector.shape_cast %123 : vector<1x8x4x8xf32> to vector<8x4x8xf32>
    %125 = vector.extract_strided_slice %120 {offsets = [0, 0, 0, 0], sizes = [1, 8, 4, 8], strides = [1, 1, 1, 1]} : vector<2x8x4x8xf32> to vector<1x8x4x8xf32>
    %126 = vector.shape_cast %125 : vector<1x8x4x8xf32> to vector<8x4x8xf32>
    %127 = vector.extract_strided_slice %122 {offsets = [0, 0, 0, 0], sizes = [1, 8, 4, 8], strides = [1, 1, 1, 1]} : vector<2x8x4x8xf32> to vector<1x8x4x8xf32>
    %128 = vector.shape_cast %127 : vector<1x8x4x8xf32> to vector<8x4x8xf32>
    %129 = arith.truncf %124 : vector<8x4x8xf32> to vector<8x4x8xbf16>
    %130 = arith.truncf %126 : vector<8x4x8xf32> to vector<8x4x8xbf16>
    "tpu.trace_start"() <{level = 10 : i32, message = "qhd,khd->qhk"}> : () -> ()
    %cst_42 = arith.constant dense<0.000000e+00> : vector<4x8x8xf32>
    %131 = tpu.matmul %130, %129, %cst_42 {dimension_numbers = #tpu.dot_dimension_numbers<[2], [2], [0], [0], [0, 1, 0, 0, 1, 0], [1], [1]>} : vector<8x4x8xbf16>, vector<8x4x8xbf16>, vector<4x8x8xf32> -> vector<4x8x8xf32>
    %132 = tpu.transpose %131, [2, 0, 1] : vector<4x8x8xf32> -> vector<8x4x8xf32>
    "tpu.trace_stop"() : () -> ()
    %cst_43 = arith.constant dense<0xFF800000> : vector<8x4xf32>
    %133 = vector.multi_reduction <maximumf>, %132, %cst_43 [2] : vector<8x4x8xf32> to vector<8x4xf32>
    %134 = vector.shape_cast %133 : vector<8x4xf32> to vector<8x4x1xf32>
    %135 = vector.broadcast %134 : vector<8x4x1xf32> to vector<8x4x8xf32>
    %136 = arith.subf %132, %135 : vector<8x4x8xf32>
    %137 = math.exp %136 : vector<8x4x8xf32>
    %cst_44 = arith.constant dense<0.000000e+00> : vector<8x4xf32>
    %138 = vector.multi_reduction <add>, %137, %cst_44 [2] : vector<8x4x8xf32> to vector<8x4xf32>
    %139 = vector.shape_cast %138 : vector<8x4xf32> to vector<8x4x1xf32>
    %140 = tpu.reciprocal %139 {approx = true} : vector<8x4x1xf32> -> vector<8x4x1xf32>
    %141 = vector.broadcast %140 : vector<8x4x1xf32> to vector<8x4x8xf32>
    %142 = arith.mulf %137, %141 : vector<8x4x8xf32>
    %143 = arith.truncf %142 : vector<8x4x8xf32> to vector<8x4x8xbf16>
    %144 = arith.truncf %128 : vector<8x4x8xf32> to vector<8x4x8xbf16>
    "tpu.trace_start"() <{level = 10 : i32, message = "qhk,khd->qhd"}> : () -> ()
    %cst_45 = arith.constant dense<0.000000e+00> : vector<4x8x8xf32>
    %145 = tpu.matmul %144, %143, %cst_45 {dimension_numbers = #tpu.dot_dimension_numbers<[0], [2], [2], [0], [0, 1, 0, 2, 1, 0], [1], [1]>} : vector<8x4x8xbf16>, vector<8x4x8xbf16>, vector<4x8x8xf32> -> vector<4x8x8xf32>
    %146 = tpu.transpose %145, [2, 0, 1] : vector<4x8x8xf32> -> vector<8x4x8xf32>
    "tpu.trace_stop"() : () -> ()
    %147 = vector.shape_cast %142 : vector<8x4x8xf32> to vector<8x32xf32>
    %c0_46 = arith.constant 0 : index
    %c0_47 = arith.constant 0 : index
    %c0_48 = arith.constant 0 : index
    %148 = vector.load %arg13[%c0_46, %c0_47, %c0_48] : memref<2x8x32xf32, #tpu.memory_space<vmem>>, vector<1x8x32xf32>
    %149 = vector.shape_cast %148 : vector<1x8x32xf32> to vector<8x32xf32>
    %150 = vector.shape_cast %147 : vector<8x32xf32> to vector<1x8x32xf32>
    tpu.vector_store %arg13[%c0_46, %c0_47, %c0_48], %150 {strides = array<i32>} : memref<2x8x32xf32, #tpu.memory_space<vmem>>, vector<1x8x32xf32>,
    %151 = vector.shape_cast %146 : vector<8x4x8xf32> to vector<8x32xf32>
    %152 = vector.extract_strided_slice %118 {offsets = [1, 0, 0, 0], sizes = [1, 8, 4, 8], strides = [1, 1, 1, 1]} : vector<2x8x4x8xf32> to vector<1x8x4x8xf32>
    %153 = vector.shape_cast %152 : vector<1x8x4x8xf32> to vector<8x4x8xf32>
    %154 = vector.extract_strided_slice %120 {offsets = [1, 0, 0, 0], sizes = [1, 8, 4, 8], strides = [1, 1, 1, 1]} : vector<2x8x4x8xf32> to vector<1x8x4x8xf32>
    %155 = vector.shape_cast %154 : vector<1x8x4x8xf32> to vector<8x4x8xf32>
    %156 = vector.extract_strided_slice %122 {offsets = [1, 0, 0, 0], sizes = [1, 8, 4, 8], strides = [1, 1, 1, 1]} : vector<2x8x4x8xf32> to vector<1x8x4x8xf32>
    %157 = vector.shape_cast %156 : vector<1x8x4x8xf32> to vector<8x4x8xf32>
    %158 = arith.truncf %153 : vector<8x4x8xf32> to vector<8x4x8xbf16>
    %159 = arith.truncf %155 : vector<8x4x8xf32> to vector<8x4x8xbf16>
    "tpu.trace_start"() <{level = 10 : i32, message = "qhd,khd->qhk"}> : () -> ()
    %cst_49 = arith.constant dense<0.000000e+00> : vector<4x8x8xf32>
    %160 = tpu.matmul %159, %158, %cst_49 {dimension_numbers = #tpu.dot_dimension_numbers<[2], [2], [0], [0], [0, 1, 0, 0, 1, 0], [1], [1]>} : vector<8x4x8xbf16>, vector<8x4x8xbf16>, vector<4x8x8xf32> -> vector<4x8x8xf32>
    %161 = tpu.transpose %160, [2, 0, 1] : vector<4x8x8xf32> -> vector<8x4x8xf32>
    "tpu.trace_stop"() : () -> ()
    %cst_50 = arith.constant dense<0xFF800000> : vector<8x4xf32>
    %162 = vector.multi_reduction <maximumf>, %161, %cst_50 [2] : vector<8x4x8xf32> to vector<8x4xf32>
    %163 = vector.shape_cast %162 : vector<8x4xf32> to vector<8x4x1xf32>
    %164 = vector.broadcast %163 : vector<8x4x1xf32> to vector<8x4x8xf32>
    %165 = arith.subf %161, %164 : vector<8x4x8xf32>
    %166 = math.exp %165 : vector<8x4x8xf32>
    %cst_51 = arith.constant dense<0.000000e+00> : vector<8x4xf32>
    %167 = vector.multi_reduction <add>, %166, %cst_51 [2] : vector<8x4x8xf32> to vector<8x4xf32>
    %168 = vector.shape_cast %167 : vector<8x4xf32> to vector<8x4x1xf32>
    %169 = tpu.reciprocal %168 {approx = true} : vector<8x4x1xf32> -> vector<8x4x1xf32>
    %170 = vector.broadcast %169 : vector<8x4x1xf32> to vector<8x4x8xf32>
    %171 = arith.mulf %166, %170 : vector<8x4x8xf32>
    %172 = arith.truncf %171 : vector<8x4x8xf32> to vector<8x4x8xbf16>
    %173 = arith.truncf %157 : vector<8x4x8xf32> to vector<8x4x8xbf16>
    "tpu.trace_start"() <{level = 10 : i32, message = "qhk,khd->qhd"}> : () -> ()
    %cst_52 = arith.constant dense<0.000000e+00> : vector<4x8x8xf32>
    %174 = tpu.matmul %173, %172, %cst_52 {dimension_numbers = #tpu.dot_dimension_numbers<[0], [2], [2], [0], [0, 1, 0, 2, 1, 0], [1], [1]>} : vector<8x4x8xbf16>, vector<8x4x8xbf16>, vector<4x8x8xf32> -> vector<4x8x8xf32>
    %175 = tpu.transpose %174, [2, 0, 1] : vector<4x8x8xf32> -> vector<8x4x8xf32>
    "tpu.trace_stop"() : () -> ()
    %176 = vector.shape_cast %171 : vector<8x4x8xf32> to vector<8x32xf32>
    %c1_53 = arith.constant 1 : index
    %c0_54 = arith.constant 0 : index
    %c0_55 = arith.constant 0 : index
    %177 = vector.load %arg13[%c1_53, %c0_54, %c0_55] : memref<2x8x32xf32, #tpu.memory_space<vmem>>, vector<1x8x32xf32>
    %178 = vector.shape_cast %177 : vector<1x8x32xf32> to vector<8x32xf32>
    %179 = vector.shape_cast %176 : vector<8x32xf32> to vector<1x8x32xf32>
    tpu.vector_store %arg13[%c1_53, %c0_54, %c0_55], %179 {strides = array<i32>} : memref<2x8x32xf32, #tpu.memory_space<vmem>>, vector<1x8x32xf32>,
    %180 = vector.shape_cast %175 : vector<8x4x8xf32> to vector<8x32xf32>
    %181 = tpu.concatenate %151, %180 in 0 : vector<8x32xf32>, vector<8x32xf32> -> vector<16x32xf32>
    %182 = arith.truncf %181 : vector<16x32xf32> to vector<16x32xbf16>
    %c0_56 = arith.constant 0 : index
    %c0_57 = arith.constant 0 : index
    %183 = vector.load %arg7[%c0_56, %c0_57] : memref<32x32xbf16, #tpu.memory_space<vmem>>, vector<32x32xbf16>
    %cst_58 = arith.constant dense<0.000000e+00> : vector<16x32xf32>
    %184 = tpu.matmul %182, %183, %cst_58 {dimension_numbers = #tpu.dot_dimension_numbers<[1], [0], [0], [1], [0, 0, 1, 1], [], []>} : vector<16x32xbf16>, vector<32x32xbf16>, vector<16x32xf32> -> vector<16x32xf32>
    %c6 = arith.constant 6 : index
    %c0_59 = arith.constant 0 : index
    %185 = vector.load %arg10[%c6, %c0_59] : memref<16x128xf32, #tpu.memory_space<vmem>>, vector<1x32xf32>
    %186 = vector.broadcast %185 : vector<1x32xf32> to vector<16x32xf32>
    %187 = arith.addf %184, %186 : vector<16x32xf32>
    %188 = arith.addf %187, %105 : vector<16x32xf32>
    %c7 = arith.constant 7 : index
    %c0_60 = arith.constant 0 : index
    %189 = vector.load %arg10[%c7, %c0_60] : memref<16x128xf32, #tpu.memory_space<vmem>>, vector<1x32xf32>
    %c8 = arith.constant 8 : index
    %c0_61 = arith.constant 0 : index
    %190 = vector.load %arg10[%c8, %c0_61] : memref<16x128xf32, #tpu.memory_space<vmem>>, vector<1x32xf32>
    %cst_62 = arith.constant dense<0.000000e+00> : vector<16xf32>
    %191 = vector.multi_reduction <add>, %188, %cst_62 [1] : vector<16x32xf32> to vector<16xf32>
    %192 = vector.shape_cast %191 : vector<16xf32> to vector<16x1xf32>
    %cst_63 = arith.constant 3.200000e+01 : f32
    %193 = vector.broadcast %cst_63 : f32 to vector<16x1xf32>
    %194 = arith.divf %192, %193 : vector<16x1xf32>
    %195 = vector.broadcast %194 : vector<16x1xf32> to vector<16x32xf32>
    %196 = arith.subf %188, %195 : vector<16x32xf32>
    %197 = arith.mulf %196, %196 : vector<16x32xf32>
    %cst_64 = arith.constant dense<0.000000e+00> : vector<16xf32>
    %198 = vector.multi_reduction <add>, %197, %cst_64 [1] : vector<16x32xf32> to vector<16xf32>
    %199 = vector.shape_cast %198 : vector<16xf32> to vector<16x1xf32>
    %cst_65 = arith.constant 3.200000e+01 : f32
    %200 = vector.broadcast %cst_65 : f32 to vector<16x1xf32>
    %201 = arith.divf %199, %200 : vector<16x1xf32>
    %202 = vector.broadcast %194 : vector<16x1xf32> to vector<16x32xf32>
    %203 = arith.subf %188, %202 : vector<16x32xf32>
    %cst_66 = arith.constant 9.99999974E-6 : f32
    %204 = vector.broadcast %cst_66 : f32 to vector<16x1xf32>
    %205 = arith.addf %201, %204 : vector<16x1xf32>
    %206 = math.rsqrt %205 : vector<16x1xf32>
    %207 = vector.broadcast %206 : vector<16x1xf32> to vector<16x32xf32>
    %208 = arith.mulf %203, %207 : vector<16x32xf32>
    %209 = vector.broadcast %189 : vector<1x32xf32> to vector<16x32xf32>
    %210 = arith.mulf %208, %209 : vector<16x32xf32>
    %211 = vector.broadcast %190 : vector<1x32xf32> to vector<16x32xf32>
    %212 = arith.addf %210, %211 : vector<16x32xf32>
    %213 = arith.truncf %212 : vector<16x32xf32> to vector<16x32xbf16>
    %c0_67 = arith.constant 0 : index
    %c0_68 = arith.constant 0 : index
    %214 = vector.load %arg8[%c0_67, %c0_68] : memref<32x64xbf16, #tpu.memory_space<vmem>>, vector<32x64xbf16>
    %cst_69 = arith.constant dense<0.000000e+00> : vector<16x64xf32>
    %215 = tpu.matmul %213, %214, %cst_69 {dimension_numbers = #tpu.dot_dimension_numbers<[1], [0], [0], [1], [0, 0, 1, 1], [], []>} : vector<16x32xbf16>, vector<32x64xbf16>, vector<16x64xf32> -> vector<16x64xf32>
    %c9 = arith.constant 9 : index
    %c0_70 = arith.constant 0 : index
    %216 = vector.load %arg10[%c9, %c0_70] : memref<16x128xf32, #tpu.memory_space<vmem>>, vector<1x64xf32>
    %217 = vector.broadcast %216 : vector<1x64xf32> to vector<16x64xf32>
    %218 = arith.addf %215, %217 : vector<16x64xf32>
    %cst_71 = arith.constant 5.000000e-01 : f32
    %219 = vector.broadcast %cst_71 : f32 to vector<16x64xf32>
    %220 = arith.mulf %219, %218 : vector<16x64xf32>
    %cst_72 = arith.constant 4.471500e-02 : f32
    %221 = vector.broadcast %cst_72 : f32 to vector<16x64xf32>
    %222 = arith.mulf %221, %218 : vector<16x64xf32>
    %223 = arith.mulf %222, %218 : vector<16x64xf32>
    %224 = arith.mulf %223, %218 : vector<16x64xf32>
    %225 = arith.addf %218, %224 : vector<16x64xf32>
    %cst_73 = arith.constant 0.797884583 : f32
    %226 = vector.broadcast %cst_73 : f32 to vector<16x64xf32>
    %227 = arith.mulf %226, %225 : vector<16x64xf32>
    %228 = math.tanh %227 : vector<16x64xf32>
    %cst_74 = arith.constant 1.000000e+00 : f32
    %229 = vector.broadcast %cst_74 : f32 to vector<16x64xf32>
    %230 = arith.addf %229, %228 : vector<16x64xf32>
    %231 = arith.mulf %220, %230 : vector<16x64xf32>
    %232 = arith.truncf %231 : vector<16x64xf32> to vector<16x64xbf16>
    %c0_75 = arith.constant 0 : index
    %c0_76 = arith.constant 0 : index
    %233 = vector.load %arg9[%c0_75, %c0_76] : memref<64x32xbf16, #tpu.memory_space<vmem>>, vector<64x32xbf16>
    %cst_77 = arith.constant dense<0.000000e+00> : vector<16x32xf32>
    %234 = tpu.matmul %232, %233, %cst_77 {dimension_numbers = #tpu.dot_dimension_numbers<[1], [0], [0], [1], [0, 0, 1, 1], [], []>} : vector<16x64xbf16>, vector<64x32xbf16>, vector<16x32xf32> -> vector<16x32xf32>
    %c10 = arith.constant 10 : index
    %c0_78 = arith.constant 0 : index
    %235 = vector.load %arg10[%c10, %c0_78] : memref<16x128xf32, #tpu.memory_space<vmem>>, vector<1x32xf32>
    %236 = vector.broadcast %235 : vector<1x32xf32> to vector<16x32xf32>
    %237 = arith.addf %234, %236 : vector<16x32xf32>
    %238 = arith.addf %237, %212 : vector<16x32xf32>
    %c11 = arith.constant 11 : index
    %c0_79 = arith.constant 0 : index
    %239 = vector.load %arg10[%c11, %c0_79] : memref<16x128xf32, #tpu.memory_space<vmem>>, vector<1x32xf32>
    %c12 = arith.constant 12 : index
    %c0_80 = arith.constant 0 : index
    %240 = vector.load %arg10[%c12, %c0_80] : memref<16x128xf32, #tpu.memory_space<vmem>>, vector<1x32xf32>
    %cst_81 = arith.constant dense<0.000000e+00> : vector<16xf32>
    %241 = vector.multi_reduction <add>, %238, %cst_81 [1] : vector<16x32xf32> to vector<16xf32>
    %242 = vector.shape_cast %241 : vector<16xf32> to vector<16x1xf32>
    %cst_82 = arith.constant 3.200000e+01 : f32
    %243 = vector.broadcast %cst_82 : f32 to vector<16x1xf32>
    %244 = arith.divf %242, %243 : vector<16x1xf32>
    %245 = vector.broadcast %244 : vector<16x1xf32> to vector<16x32xf32>
    %246 = arith.subf %238, %245 : vector<16x32xf32>
    %247 = arith.mulf %246, %246 : vector<16x32xf32>
    %cst_83 = arith.constant dense<0.000000e+00> : vector<16xf32>
    %248 = vector.multi_reduction <add>, %247, %cst_83 [1] : vector<16x32xf32> to vector<16xf32>
    %249 = vector.shape_cast %248 : vector<16xf32> to vector<16x1xf32>
    %cst_84 = arith.constant 3.200000e+01 : f32
    %250 = vector.broadcast %cst_84 : f32 to vector<16x1xf32>
    %251 = arith.divf %249, %250 : vector<16x1xf32>
    %252 = vector.broadcast %244 : vector<16x1xf32> to vector<16x32xf32>
    %253 = arith.subf %238, %252 : vector<16x32xf32>
    %cst_85 = arith.constant 9.99999974E-6 : f32
    %254 = vector.broadcast %cst_85 : f32 to vector<16x1xf32>
    %255 = arith.addf %251, %254 : vector<16x1xf32>
    %256 = math.rsqrt %255 : vector<16x1xf32>
    %257 = vector.broadcast %256 : vector<16x1xf32> to vector<16x32xf32>
    %258 = arith.mulf %253, %257 : vector<16x32xf32>
    %259 = vector.broadcast %239 : vector<1x32xf32> to vector<16x32xf32>
    %260 = arith.mulf %258, %259 : vector<16x32xf32>
    %261 = vector.broadcast %240 : vector<1x32xf32> to vector<16x32xf32>
    %262 = arith.addf %260, %261 : vector<16x32xf32>
    %263 = vector.shape_cast %262 : vector<16x32xf32> to vector<2x8x32xf32>
    %c0_86 = arith.constant 0 : index
    %c0_87 = arith.constant 0 : index
    %c0_88 = arith.constant 0 : index
    %264 = vector.load %arg11[%c0_86, %c0_87, %c0_88] : memref<2x8x32xf32, #tpu.memory_space<vmem>>, vector<2x8x32xf32>
    tpu.vector_store %arg11[%c0_86, %c0_87, %c0_88], %263 {strides = array<i32>} : memref<2x8x32xf32, #tpu.memory_space<vmem>>, vector<2x8x32xf32>,
    return
  }
  func.func @transform_0(%arg0: i32) -> (i32, i32, i32) {
    %c0_i32 = arith.constant 0 : i32
    %c0_i32_0 = arith.constant 0 : i32
    %c0_i32_1 = arith.constant 0 : i32
    %c0_i32_2 = arith.constant 0 : i32
    return %c0_i32, %c0_i32_0, %c0_i32_1 : i32, i32, i32
  }
  func.func @transform_1(%arg0: i32) -> (i32, i32, i32) {
    %c0_i32 = arith.constant 0 : i32
    %c0_i32_0 = arith.constant 0 : i32
    %c0_i32_1 = arith.constant 0 : i32
    %c0_i32_2 = arith.constant 0 : i32
    return %c0_i32, %c0_i32_0, %c0_i32_1 : i32, i32, i32
  }
  func.func @transform_2(%arg0: i32) -> (i32, i32) {
    %c0_i32 = arith.constant 0 : i32
    %c0_i32_0 = arith.constant 0 : i32
    %c0_i32_1 = arith.constant 0 : i32
    return %c0_i32, %c0_i32_0 : i32, i32
  }
  func.func @transform_3(%arg0: i32) -> (i32, i32) {
    %c0_i32 = arith.constant 0 : i32
    %c0_i32_0 = arith.constant 0 : i32
    %c0_i32_1 = arith.constant 0 : i32
    return %c0_i32, %c0_i32_0 : i32, i32
  }
  func.func @transform_4(%arg0: i32) -> (i32, i32) {
    %c0_i32 = arith.constant 0 : i32
    %c0_i32_0 = arith.constant 0 : i32
    %c0_i32_1 = arith.constant 0 : i32
    return %c0_i32, %c0_i32_0 : i32, i32
  }
  func.func @transform_5(%arg0: i32) -> (i32, i32) {
    %c0_i32 = arith.constant 0 : i32
    %c0_i32_0 = arith.constant 0 : i32
    %c0_i32_1 = arith.constant 0 : i32
    return %c0_i32, %c0_i32_0 : i32, i32
  }
  func.func @transform_6(%arg0: i32) -> (i32, i32) {
    %c0_i32 = arith.constant 0 : i32
    %c0_i32_0 = arith.constant 0 : i32
    %c0_i32_1 = arith.constant 0 : i32
    return %c0_i32, %c0_i32_0 : i32, i32
  }
  func.func @transform_7(%arg0: i32) -> (i32, i32) {
    %c0_i32 = arith.constant 0 : i32
    %c0_i32_0 = arith.constant 0 : i32
    %c0_i32_1 = arith.constant 0 : i32
    return %c0_i32, %c0_i32_0 : i32, i32
  }
  func.func @transform_8(%arg0: i32) -> (i32, i32) {
    %c0_i32 = arith.constant 0 : i32
    %c0_i32_0 = arith.constant 0 : i32
    %c0_i32_1 = arith.constant 0 : i32
    return %c0_i32, %c0_i32_0 : i32, i32
  }
  func.func @transform_9(%arg0: i32) -> (i32, i32) {
    %c0_i32 = arith.constant 0 : i32
    %c0_i32_0 = arith.constant 0 : i32
    %c0_i32_1 = arith.constant 0 : i32
    return %c0_i32, %c0_i32_0 : i32, i32
  }
  func.func @transform_10(%arg0: i32) -> (i32, i32, i32) {
    %c0_i32 = arith.constant 0 : i32
    %c0_i32_0 = arith.constant 0 : i32
    %c0_i32_1 = arith.constant 0 : i32
    %c0_i32_2 = arith.constant 0 : i32
    return %c0_i32, %c0_i32_0, %c0_i32_1 : i32, i32, i32
  }
  func.func @transform_11(%arg0: i32) -> (i32, i32, i32) {
    %c0_i32 = arith.constant 0 : i32
    %c0_i32_0 = arith.constant 0 : i32
    %c0_i32_1 = arith.constant 0 : i32
    %c0_i32_2 = arith.constant 0 : i32
    return %c0_i32, %c0_i32_0, %c0_i32_1 : i32, i32, i32
  }
  func.func @transform_12(%arg0: i32) -> (i32, i32, i32) {
    %c0_i32 = arith.constant 0 : i32
    %c0_i32_0 = arith.constant 0 : i32
    %c0_i32_1 = arith.constant 0 : i32
    %c0_i32_2 = arith.constant 0 : i32
    return %c0_i32, %c0_i32_0, %c0_i32_1 : i32, i32, i32
  }
}

</mosaic_0001>

<llo_original>
// kernel: tpu_custom_call.1
$region0: #{tpu_custom_call.1}
  #allocation0 [shape = 'u32[]', space=smem, size = 0x4, offset = 0x4, fixed_abs, tag = 'smem constant byte address 0x4 - core index']
  #allocation1 [shape = 'u32[144,128]{1,0:T(1,128)}', space=vmem, size = 0x12000, scoped, tag = 'internal scratch']
  %s0 = inlined_call_operand.vmem [shape: f32[2,8,32], index: 0, kind: input, shape index: {}]
  %s1 = inlined_call_operand.vmem [shape: f32[2,8,32], index: 1, kind: input, shape index: {}]
  %s2 = inlined_call_operand.vmem [shape: bf16[32,96], index: 2, kind: input, shape index: {}]
  %s3 = inlined_call_operand.hbm [shape: bf16[32,32], index: 3, kind: input, shape index: {}]
  %s4 = inlined_call_operand.hbm [shape: bf16[32,32], index: 4, kind: input, shape index: {}]
  %s5 = inlined_call_operand.hbm [shape: bf16[32,64], index: 5, kind: input, shape index: {}]
  %s6 = inlined_call_operand.hbm [shape: bf16[32,32], index: 6, kind: input, shape index: {}]
  %s7 = inlined_call_operand.hbm [shape: bf16[32,64], index: 7, kind: input, shape index: {}]
  %s8 = inlined_call_operand.vmem [shape: bf16[64,32], index: 8, kind: input, shape index: {}]
  %s9 = inlined_call_operand.vmem [shape: f32[16,128], index: 9, kind: input, shape index: {}]
  %s10 = inlined_call_operand.hbm [shape: f32[2,8,32], index: 10, kind: output, shape index: {0}]
  %s11 = inlined_call_operand.hbm [shape: f32[2,8,32], index: 11, kind: output, shape index: {1}]
  %s12 = inlined_call_operand.hbm [shape: f32[2,8,32], index: 12, kind: output, shape index: {2}]
  %13 = xla_tuple %s10, %s11, %s12
  %s14 = sld [smem:[#allocation0]]
  $region86: #{tpu_custom_call.1} parent=0
    _
  %s16 = ssub.s32 1, %s14
  %s17 = scalar_select 0, %s16, %s14
  $region1: #{tpu_custom_call.1} parent=0
    #allocation2 [shape = 'u8[8192]{0}', space=vmem, size = 0x2000, scoped, tag = 'input window, operand 3, single buffered']
    #allocation3 [shape = 's32[1]{0}', space=sflag, size = 0x4, scoped, tag = 'scoped memory for tpu_custom_call.1']
    #allocation4 [shape = 's32[1]{0}', space=sflag, size = 0x4, scoped, tag = 'scoped memory for tpu_custom_call.1']
    #allocation5 [shape = 'u8[8192]{0}', space=vmem, size = 0x2000, scoped, tag = 'input window, operand 4, single buffered']
    #allocation6 [shape = 's32[1]{0}', space=sflag, size = 0x4, scoped, tag = 'scoped memory for tpu_custom_call.1']
    #allocation7 [shape = 'u8[8192]{0}', space=vmem, size = 0x2000, scoped, tag = 'input window, operand 5, single buffered']
    #allocation8 [shape = 'u8[8192]{0}', space=vmem, size = 0x2000, scoped, tag = 'input window, operand 6, single buffered']
    #allocation9 [shape = 's32[1]{0}', space=sflag, size = 0x4, scoped, tag = 'scoped memory for tpu_custom_call.1']
    #allocation10 [shape = 'u8[8192]{0}', space=vmem, size = 0x2000, scoped, tag = 'input window, operand 7, single buffered']
    #allocation11 [shape = 'u8[8192]{0}', space=vmem, size = 0x2000, scoped, tag = 'output window, operand 0, single buffered']
    #allocation12 [shape = 'u8[8192]{0}', space=vmem, size = 0x2000, scoped, tag = 'output window, operand 1, single buffered']
    #allocation13 [shape = 's32[1]{0}', space=sflag, size = 0x4, scoped, tag = 'scoped memory for tpu_custom_call.1']
    #allocation14 [shape = 'u8[8192]{0}', space=vmem, size = 0x2000, scoped, tag = 'output window, operand 2, single buffered']
    %18 = vsyncpa [#allocation3], 0
    %19 = vsyncpa [#allocation6], 0
    %20 = vsyncpa [#allocation9], 0
    %21 = vsyncpa [#allocation4], 0
    %22 = vsyncpa [#allocation13], 0
    // Predicated region
    $region2: #{tpu_custom_call.1} parent=1 // pred_check
      _
    $region3: #{tpu_custom_call.1} parent=1 // pred_check_branch
      %24 = sbr.rel (0) target = $region5
    $region4: #{tpu_custom_call.1} parent=1 // pred_region
      _
    $region5: #{tpu_custom_call.1} parent=1 // pred_fallthru
      _
    // Predicated region
    $region6: #{tpu_custom_call.1} parent=1 // pred_check
      _
    $region7: #{tpu_custom_call.1} parent=1 // pred_check_branch
      %26 = sbr.rel (0) target = $region9
    $region8: #{tpu_custom_call.1} parent=1 // pred_region
      _
    $region9: #{tpu_custom_call.1} parent=1 // pred_fallthru
      _
    // Predicated region
    $region10: #{tpu_custom_call.1} parent=1 // pred_check
      _
    $region11: #{tpu_custom_call.1} parent=1 // pred_check_branch
      %28 = sbr.rel (0) target = $region13
    $region12: #{tpu_custom_call.1} parent=1 // pred_region
      _
    $region13: #{tpu_custom_call.1} parent=1 // pred_fallthru
      _
    // Predicated region
    $region14: #{tpu_custom_call.1} parent=1 // pred_check
      _
    $region15: #{tpu_custom_call.1} parent=1 // pred_check_branch
      %30 = sbr.rel (0) target = $region17
    $region16: #{tpu_custom_call.1} parent=1 // pred_region
      %s32 = ssub.s32 256, 256
      %33 = vsyncadd [#allocation3], %s32
      %s34 = sshll.u32 [#allocation2], 4
      %s35 = int_to_ptr.vmem [resolvable:$true] %s34
      %40 = dma.hbm_to_vmem [thread:$0]  %s3, 256, %s35, [#allocation3], 64, 64, 4
    $region17: #{tpu_custom_call.1} parent=1 // pred_fallthru
      _
    // Predicated region
    $region18: #{tpu_custom_call.1} parent=1 // pred_check
      _
    $region19: #{tpu_custom_call.1} parent=1 // pred_check_branch
      %42 = sbr.rel (0) target = $region21
    $region20: #{tpu_custom_call.1} parent=1 // pred_region
      %s44 = ssub.s32 256, 256
      %45 = vsyncadd [#allocation6], %s44
      %s46 = sshll.u32 [#allocation5], 4
      %s47 = int_to_ptr.vmem [resolvable:$true] %s46
      %52 = dma.hbm_to_vmem [thread:$0]  %s4, 256, %s47, [#allocation6], 64, 64, 4
    $region21: #{tpu_custom_call.1} parent=1 // pred_fallthru
      _
    // Predicated region
    $region22: #{tpu_custom_call.1} parent=1 // pred_check
      _
    $region23: #{tpu_custom_call.1} parent=1 // pred_check_branch
      %54 = sbr.rel (0) target = $region25
    $region24: #{tpu_custom_call.1} parent=1 // pred_region
      %s56 = ssub.s32 256, 256
      %57 = vsyncadd [#allocation6], %s56
      %s58 = sshll.u32 [#allocation7], 4
      %s59 = int_to_ptr.vmem [resolvable:$true] %s58
      %64 = dma.hbm_to_vmem [thread:$0]  %s5, 256, %s59, [#allocation6], 64, 64, 4
    $region25: #{tpu_custom_call.1} parent=1 // pred_fallthru
      _
    // Predicated region
    $region26: #{tpu_custom_call.1} parent=1 // pred_check
      _
    $region27: #{tpu_custom_call.1} parent=1 // pred_check_branch
      %66 = sbr.rel (0) target = $region29
    $region28: #{tpu_custom_call.1} parent=1 // pred_region
      %s68 = ssub.s32 256, 256
      %69 = vsyncadd [#allocation9], %s68
      %s70 = sshll.u32 [#allocation8], 4
      %s71 = int_to_ptr.vmem [resolvable:$true] %s70
      %76 = dma.hbm_to_vmem [thread:$0]  %s6, 256, %s71, [#allocation9], 64, 64, 4
    $region29: #{tpu_custom_call.1} parent=1 // pred_fallthru
      _
    // Predicated region
    $region30: #{tpu_custom_call.1} parent=1 // pred_check
      _
    $region31: #{tpu_custom_call.1} parent=1 // pred_check_branch
      %78 = sbr.rel (0) target = $region33
    $region32: #{tpu_custom_call.1} parent=1 // pred_region
      %s80 = ssub.s32 256, 256
      %81 = vsyncadd [#allocation9], %s80
      %s82 = sshll.u32 [#allocation10], 4
      %s83 = int_to_ptr.vmem [resolvable:$true] %s82
      %88 = dma.hbm_to_vmem [thread:$0]  %s7, 256, %s83, [#allocation9], 64, 64, 4
    $region33: #{tpu_custom_call.1} parent=1 // pred_fallthru
      _
    // Predicated region
    $region34: #{tpu_custom_call.1} parent=1 // pred_check
      _
    $region35: #{tpu_custom_call.1} parent=1 // pred_check_branch
      %90 = sbr.rel (0) target = $region37
    $region36: #{tpu_custom_call.1} parent=1 // pred_region
      _
    $region37: #{tpu_custom_call.1} parent=1 // pred_fallthru
      _
    // Predicated region
    $region38: #{tpu_custom_call.1} parent=1 // pred_check
      _
    $region39: #{tpu_custom_call.1} parent=1 // pred_check_branch
      %92 = sbr.rel (0) target = $region41
    $region40: #{tpu_custom_call.1} parent=1 // pred_region
      _
    $region41: #{tpu_custom_call.1} parent=1 // pred_fallthru
      _
    // Predicated region
    $region42: #{tpu_custom_call.1} parent=1 // pred_check
      _
    $region43: #{tpu_custom_call.1} parent=1 // pred_check_branch
      %94 = sbr.rel (0) target = $region45
    $region44: #{tpu_custom_call.1} parent=1 // pred_region
      %95 = dma.done [#allocation3], 256
    $region45: #{tpu_custom_call.1} parent=1 // pred_fallthru
      _
    // Predicated region
    $region46: #{tpu_custom_call.1} parent=1 // pred_check
      _
    $region47: #{tpu_custom_call.1} parent=1 // pred_check_branch
      %97 = sbr.rel (0) target = $region49
    $region48: #{tpu_custom_call.1} parent=1 // pred_region
      %98 = dma.done [#allocation6], 256
    $region49: #{tpu_custom_call.1} parent=1 // pred_fallthru
      _
    // Predicated region
    $region50: #{tpu_custom_call.1} parent=1 // pred_check
      _
    $region51: #{tpu_custom_call.1} parent=1 // pred_check_branch
      %100 = sbr.rel (0) target = $region53
    $region52: #{tpu_custom_call.1} parent=1 // pred_region
      %101 = dma.done [#allocation6], 256
    $region53: #{tpu_custom_call.1} parent=1 // pred_fallthru
      _
    // Predicated region
    $region54: #{tpu_custom_call.1} parent=1 // pred_check
      _
    $region55: #{tpu_custom_call.1} parent=1 // pred_check_branch
      %103 = sbr.rel (0) target = $region57
    $region56: #{tpu_custom_call.1} parent=1 // pred_region
      %104 = dma.done [#allocation9], 256
    $region57: #{tpu_custom_call.1} parent=1 // pred_fallthru
      _
    // Predicated region
    $region58: #{tpu_custom_call.1} parent=1 // pred_check
      _
    $region59: #{tpu_custom_call.1} parent=1 // pred_check_branch
      %106 = sbr.rel (0) target = $region61
    $region60: #{tpu_custom_call.1} parent=1 // pred_region
      %107 = dma.done [#allocation9], 256
    $region61: #{tpu_custom_call.1} parent=1 // pred_fallthru
      _
    %v109 = vld [vmem:[%s0] sm:$0xff]
    %v110 = vld [vmem:[%s0 + $0x8] sm:$0xff]
    %v111 = vld [vmem:[%s1] sm:$0xff]
    %v112 = vld [vmem:[%s1 + $0x8] sm:$0xff]
    %v113 = vpack.c.bf16 %v110, %v109
    %v114 = vld [vmem:[%s2] sm:$0xf]
    %v115 = vld [vmem:[%s2 + $0x4] sm:$0xf]
    %v116 = vld [vmem:[%s2 + $0x8] sm:$0xf]
    %v117 = vld [vmem:[%s2 + $0xc] sm:$0xf]
    %v118 = vld [vmem:[%s9] sm:$0x1]
    %v119 = vlaneseq
    %v120 = vshrl.u32 %v119, 7
    %v121 = vsub.s32 0, %v120
    %v122 = vrot.slane %v118, %v121
    %v127 = vunpack.c.l.b16 %v114
    %v128 = vunpack.c.l.b16 %v115
    %v129 = vunpack.c.l.b16 %v116
    %v130 = vunpack.c.l.b16 %v117
    %v131 = vpack.c.b16 %v128, %v127
    %v132 = vpack.c.b16 %v130, %v129
    %vm135 = vcmask 261120
    %v137 = vsel %vm135, %v113, 0
    %139 = vmatprep.subr.bf16.mxu0 0
    %140 = vmatpush1.bf16.msra.mxu0 %v131
    %141 = vmatprep.subr.bf16.mxu0 0
    %142 = vmatpush1.bf16.msra.mxu0 %v132
    %143 = vmatprep.subr.bf16.mxu0 0
    %144 = vmatpush1.bf16.msra.mxu0 0
    %145 = vmatprep.subr.bf16.mxu0 0
    %146 = vmatpush1.bf16.msra.mxu0 0
    %147 = vmatprep.subr.bf16.mxu0 0
    %148 = vmatpush1.bf16.msra.mxu0 0
    %149 = vmatprep.subr.bf16.mxu0 0
    %150 = vmatpush1.bf16.msra.mxu0 0
    %151 = vmatprep.subr.bf16.mxu0 0
    %152 = vmatpush1.bf16.msra.mxu0 0
    %153 = vmatprep.subr.bf16.mxu0 0
    %154 = vmatpush1.bf16.msra.mxu0 0
    %155 = vmatprep.subr.bf16.mxu0 0
    %156 = vmatpush1.bf16.msra.mxu0 0
    %157 = vmatprep.subr.bf16.mxu0 0
    %158 = vmatpush1.bf16.msra.mxu0 0
    %159 = vmatprep.subr.bf16.mxu0 0
    %160 = vmatpush1.bf16.msra.mxu0 0
    %161 = vmatprep.subr.bf16.mxu0 0
    %162 = vmatpush1.bf16.msra.mxu0 0
    %163 = vmatprep.subr.bf16.mxu0 0
    %164 = vmatpush1.bf16.msra.mxu0 0
    %165 = vmatprep.subr.bf16.mxu0 0
    %166 = vmatpush1.bf16.msra.mxu0 0
    %167 = vmatprep.subr.bf16.mxu0 0
    %168 = vmatpush1.bf16.msra.mxu0 0
    %169 = vmatprep.subr.bf16.mxu0 0
    %170 = vmatpush1.bf16.msra.mxu0 0
    %171 = vmatprep.mubr.bf16.mxu0 0
    %172 = vmatmul.mubr.bf16.gmra.mrb[0].mxu0 %v137
    %v173 = vpop.f32.mrb[0].mxu0
    %v174 = vadd.f32 %v122, %v173
    %v175 = vpop.f32.mrb[0].mxu0
    %v176 = vpop.f32.mrb[0].mxu0
    %v177 = vadd.f32 %v122, %v176
    %v178 = vpop.f32.mrb[0].mxu0
    %179 = vdwg.mxu0
    %182 = vrot.lane.b32.xlu0 %v174, 120
    %v183 = vpop.permute.xlu0 %182
    %184 = vrot.lane.b32.xlu0 %v177, 120
    %v185 = vpop.permute.xlu0 %184
    %188 = vrot.lane.b32.xlu0 %v174, 112
    %v189 = vpop.permute.xlu0 %188
    %190 = vrot.lane.b32.xlu0 %v177, 112
    %v191 = vpop.permute.xlu0 %190
    %194 = vrot.lane.b32.xlu0 %v174, 104
    %v195 = vpop.permute.xlu0 %194
    %196 = vrot.lane.b32.xlu0 %v177, 104
    %v197 = vpop.permute.xlu0 %196
    %v200 = vcombine.low %v174, %v189
    %v201 = vcombine.high %v174, %v189
    %v203 = vunpack.c.l.s4 1983009808
    %v204 = vunpack.c.0.s8 %v203
    %v205 = vlaneseq
    %v206 = vshrl.u32 %v205, 7
    %v207 = vsub.s32 %v204, %v206
    %v208 = vrot.slane %v200, %v207
    %v210 = vunpack.c.l.s4 1983009808
    %v211 = vunpack.c.0.s8 %v210
    %v212 = vlaneseq
    %v213 = vshrl.u32 %v212, 7
    %v214 = vsub.s32 %v211, %v213
    %v215 = vrot.slane %v201, %v214
    %v216 = vcombine.low %v183, %v195
    %v217 = vcombine.high %v183, %v195
    %v219 = vunpack.c.l.s4 1983009808
    %v220 = vunpack.c.0.s8 %v219
    %v221 = vlaneseq
    %v222 = vshrl.u32 %v221, 7
    %v223 = vsub.s32 %v220, %v222
    %v224 = vrot.slane %v216, %v223
    %v226 = vunpack.c.l.s4 1983009808
    %v227 = vunpack.c.0.s8 %v226
    %v228 = vlaneseq
    %v229 = vshrl.u32 %v228, 7
    %v230 = vsub.s32 %v227, %v229
    %v231 = vrot.slane %v217, %v230
    %v232 = vcombine.low %v208, %v224
    %v233 = vcombine.high %v208, %v224
    %v235 = vunpack.c.l.s4 1934713408
    %v236 = vunpack.c.0.s8 %v235
    %v237 = vlaneseq
    %v238 = vshrl.u32 %v237, 7
    %v239 = vsub.s32 %v236, %v238
    %v240 = vrot.slane %v232, %v239
    %v242 = vunpack.c.l.s4 1934713408
    %v243 = vunpack.c.0.s8 %v242
    %v244 = vlaneseq
    %v245 = vshrl.u32 %v244, 7
    %v246 = vsub.s32 %v243, %v245
    %v247 = vrot.slane %v233, %v246
    %v248 = vcombine.low %v215, %v231
    %v249 = vcombine.high %v215, %v231
    %v251 = vunpack.c.l.s4 1934713408
    %v252 = vunpack.c.0.s8 %v251
    %v253 = vlaneseq
    %v254 = vshrl.u32 %v253, 7
    %v255 = vsub.s32 %v252, %v254
    %v256 = vrot.slane %v248, %v255
    %v258 = vunpack.c.l.s4 1934713408
    %v259 = vunpack.c.0.s8 %v258
    %v260 = vlaneseq
    %v261 = vshrl.u32 %v260, 7
    %v262 = vsub.s32 %v259, %v261
    %v263 = vrot.slane %v249, %v262
    %v264 = vcombine.high %v240, 0.0
    %v265 = vcombine.high %v247, 0.0
    %v266 = vcombine.high %v256, 0.0
    %v267 = vcombine.high %v263, 0.0
    %v268 = vcombine.low %v177, %v191
    %v269 = vcombine.high %v177, %v191
    %v271 = vunpack.c.l.s4 1983009808
    %v272 = vunpack.c.0.s8 %v271
    %v273 = vlaneseq
    %v274 = vshrl.u32 %v273, 7
    %v275 = vsub.s32 %v272, %v274
    %v276 = vrot.slane %v268, %v275
    %v278 = vunpack.c.l.s4 1983009808
    %v279 = vunpack.c.0.s8 %v278
    %v280 = vlaneseq
    %v281 = vshrl.u32 %v280, 7
    %v282 = vsub.s32 %v279, %v281
    %v283 = vrot.slane %v269, %v282
    %v284 = vcombine.low %v185, %v197
    %v285 = vcombine.high %v185, %v197
    %v287 = vunpack.c.l.s4 1983009808
    %v288 = vunpack.c.0.s8 %v287
    %v289 = vlaneseq
    %v290 = vshrl.u32 %v289, 7
    %v291 = vsub.s32 %v288, %v290
    %v292 = vrot.slane %v284, %v291
    %v294 = vunpack.c.l.s4 1983009808
    %v295 = vunpack.c.0.s8 %v294
    %v296 = vlaneseq
    %v297 = vshrl.u32 %v296, 7
    %v298 = vsub.s32 %v295, %v297
    %v299 = vrot.slane %v285, %v298
    %v300 = vcombine.low %v276, %v292
    %v301 = vcombine.high %v276, %v292
    %v303 = vunpack.c.l.s4 1934713408
    %v304 = vunpack.c.0.s8 %v303
    %v305 = vlaneseq
    %v306 = vshrl.u32 %v305, 7
    %v307 = vsub.s32 %v304, %v306
    %v308 = vrot.slane %v300, %v307
    %v310 = vunpack.c.l.s4 1934713408
    %v311 = vunpack.c.0.s8 %v310
    %v312 = vlaneseq
    %v313 = vshrl.u32 %v312, 7
    %v314 = vsub.s32 %v311, %v313
    %v315 = vrot.slane %v301, %v314
    %v316 = vcombine.low %v283, %v299
    %v317 = vcombine.high %v283, %v299
    %v319 = vunpack.c.l.s4 1934713408
    %v320 = vunpack.c.0.s8 %v319
    %v321 = vlaneseq
    %v322 = vshrl.u32 %v321, 7
    %v323 = vsub.s32 %v320, %v322
    %v324 = vrot.slane %v316, %v323
    %v326 = vunpack.c.l.s4 1934713408
    %v327 = vunpack.c.0.s8 %v326
    %v328 = vlaneseq
    %v329 = vshrl.u32 %v328, 7
    %v330 = vsub.s32 %v327, %v329
    %v331 = vrot.slane %v317, %v330
    %v332 = vcombine.high %v308, 0.0
    %v333 = vcombine.high %v315, 0.0
    %v334 = vcombine.high %v324, 0.0
    %v335 = vcombine.high %v331, 0.0
    %336 = vrot.lane.b32.xlu0 %v174, 96
    %v337 = vpop.permute.xlu0 %336
    %338 = vrot.lane.b32.xlu0 %v177, 96
    %v339 = vpop.permute.xlu0 %338
    %340 = vrot.lane.b32.xlu0 %v183, 96
    %v341 = vpop.permute.xlu0 %340
    %342 = vrot.lane.b32.xlu0 %v185, 96
    %v343 = vpop.permute.xlu0 %342
    %344 = vrot.lane.b32.xlu0 %v189, 96
    %v345 = vpop.permute.xlu0 %344
    %346 = vrot.lane.b32.xlu0 %v191, 96
    %v347 = vpop.permute.xlu0 %346
    %348 = vrot.lane.b32.xlu0 %v195, 96
    %v349 = vpop.permute.xlu0 %348
    %350 = vrot.lane.b32.xlu0 %v197, 96
    %v351 = vpop.permute.xlu0 %350
    %v360 = vcombine.low %v337, %v345
    %v361 = vcombine.high %v337, %v345
    %v363 = vunpack.c.l.s4 1983009808
    %v364 = vunpack.c.0.s8 %v363
    %v365 = vlaneseq
    %v366 = vshrl.u32 %v365, 7
    %v367 = vsub.s32 %v364, %v366
    %v368 = vrot.slane %v360, %v367
    %v370 = vunpack.c.l.s4 1983009808
    %v371 = vunpack.c.0.s8 %v370
    %v372 = vlaneseq
    %v373 = vshrl.u32 %v372, 7
    %v374 = vsub.s32 %v371, %v373
    %v375 = vrot.slane %v361, %v374
    %v376 = vcombine.low %v341, %v349
    %v377 = vcombine.high %v341, %v349
    %v379 = vunpack.c.l.s4 1983009808
    %v380 = vunpack.c.0.s8 %v379
    %v381 = vlaneseq
    %v382 = vshrl.u32 %v381, 7
    %v383 = vsub.s32 %v380, %v382
    %v384 = vrot.slane %v376, %v383
    %v386 = vunpack.c.l.s4 1983009808
    %v387 = vunpack.c.0.s8 %v386
    %v388 = vlaneseq
    %v389 = vshrl.u32 %v388, 7
    %v390 = vsub.s32 %v387, %v389
    %v391 = vrot.slane %v377, %v390
    %v392 = vcombine.low %v368, %v384
    %v393 = vcombine.high %v368, %v384
    %v395 = vunpack.c.l.s4 1934713408
    %v396 = vunpack.c.0.s8 %v395
    %v397 = vlaneseq
    %v398 = vshrl.u32 %v397, 7
    %v399 = vsub.s32 %v396, %v398
    %v400 = vrot.slane %v392, %v399
    %v402 = vunpack.c.l.s4 1934713408
    %v403 = vunpack.c.0.s8 %v402
    %v404 = vlaneseq
    %v405 = vshrl.u32 %v404, 7
    %v406 = vsub.s32 %v403, %v405
    %v407 = vrot.slane %v393, %v406
    %v408 = vcombine.low %v375, %v391
    %v409 = vcombine.high %v375, %v391
    %v411 = vunpack.c.l.s4 1934713408
    %v412 = vunpack.c.0.s8 %v411
    %v413 = vlaneseq
    %v414 = vshrl.u32 %v413, 7
    %v415 = vsub.s32 %v412, %v414
    %v416 = vrot.slane %v408, %v415
    %v418 = vunpack.c.l.s4 1934713408
    %v419 = vunpack.c.0.s8 %v418
    %v420 = vlaneseq
    %v421 = vshrl.u32 %v420, 7
    %v422 = vsub.s32 %v419, %v421
    %v423 = vrot.slane %v409, %v422
    %v424 = vcombine.high %v400, 0.0
    %v425 = vcombine.high %v407, 0.0
    %v426 = vcombine.high %v416, 0.0
    %v427 = vcombine.high %v423, 0.0
    %v428 = vcombine.low %v339, %v347
    %v429 = vcombine.high %v339, %v347
    %v431 = vunpack.c.l.s4 1983009808
    %v432 = vunpack.c.0.s8 %v431
    %v433 = vlaneseq
    %v434 = vshrl.u32 %v433, 7
    %v435 = vsub.s32 %v432, %v434
    %v436 = vrot.slane %v428, %v435
    %v438 = vunpack.c.l.s4 1983009808
    %v439 = vunpack.c.0.s8 %v438
    %v440 = vlaneseq
    %v441 = vshrl.u32 %v440, 7
    %v442 = vsub.s32 %v439, %v441
    %v443 = vrot.slane %v429, %v442
    %v444 = vcombine.low %v343, %v351
    %v445 = vcombine.high %v343, %v351
    %v447 = vunpack.c.l.s4 1983009808
    %v448 = vunpack.c.0.s8 %v447
    %v449 = vlaneseq
    %v450 = vshrl.u32 %v449, 7
    %v451 = vsub.s32 %v448, %v450
    %v452 = vrot.slane %v444, %v451
    %v454 = vunpack.c.l.s4 1983009808
    %v455 = vunpack.c.0.s8 %v454
    %v456 = vlaneseq
    %v457 = vshrl.u32 %v456, 7
    %v458 = vsub.s32 %v455, %v457
    %v459 = vrot.slane %v445, %v458
    %v460 = vcombine.low %v436, %v452
    %v461 = vcombine.high %v436, %v452
    %v463 = vunpack.c.l.s4 1934713408
    %v464 = vunpack.c.0.s8 %v463
    %v465 = vlaneseq
    %v466 = vshrl.u32 %v465, 7
    %v467 = vsub.s32 %v464, %v466
    %v468 = vrot.slane %v460, %v467
    %v470 = vunpack.c.l.s4 1934713408
    %v471 = vunpack.c.0.s8 %v470
    %v472 = vlaneseq
    %v473 = vshrl.u32 %v472, 7
    %v474 = vsub.s32 %v471, %v473
    %v475 = vrot.slane %v461, %v474
    %v476 = vcombine.low %v443, %v459
    %v477 = vcombine.high %v443, %v459
    %v479 = vunpack.c.l.s4 1934713408
    %v480 = vunpack.c.0.s8 %v479
    %v481 = vlaneseq
    %v482 = vshrl.u32 %v481, 7
    %v483 = vsub.s32 %v480, %v482
    %v484 = vrot.slane %v476, %v483
    %v486 = vunpack.c.l.s4 1934713408
    %v487 = vunpack.c.0.s8 %v486
    %v488 = vlaneseq
    %v489 = vshrl.u32 %v488, 7
    %v490 = vsub.s32 %v487, %v489
    %v491 = vrot.slane %v477, %v490
    %v492 = vcombine.high %v468, 0.0
    %v493 = vcombine.high %v475, 0.0
    %v494 = vcombine.high %v484, 0.0
    %v495 = vcombine.high %v491, 0.0
    %496 = vrot.lane.b32.xlu0 %v174, 64
    %v497 = vpop.permute.xlu0 %496
    %498 = vrot.lane.b32.xlu0 %v177, 64
    %v499 = vpop.permute.xlu0 %498
    %500 = vrot.lane.b32.xlu0 %v183, 64
    %v501 = vpop.permute.xlu0 %500
    %502 = vrot.lane.b32.xlu0 %v185, 64
    %v503 = vpop.permute.xlu0 %502
    %504 = vrot.lane.b32.xlu0 %v189, 64
    %v505 = vpop.permute.xlu0 %504
    %506 = vrot.lane.b32.xlu0 %v191, 64
    %v507 = vpop.permute.xlu0 %506
    %508 = vrot.lane.b32.xlu0 %v195, 64
    %v509 = vpop.permute.xlu0 %508
    %510 = vrot.lane.b32.xlu0 %v197, 64
    %v511 = vpop.permute.xlu0 %510
    %v520 = vcombine.low %v497, %v505
    %v521 = vcombine.high %v497, %v505
    %v523 = vunpack.c.l.s4 1983009808
    %v524 = vunpack.c.0.s8 %v523
    %v525 = vlaneseq
    %v526 = vshrl.u32 %v525, 7
    %v527 = vsub.s32 %v524, %v526
    %v528 = vrot.slane %v520, %v527
    %v530 = vunpack.c.l.s4 1983009808
    %v531 = vunpack.c.0.s8 %v530
    %v532 = vlaneseq
    %v533 = vshrl.u32 %v532, 7
    %v534 = vsub.s32 %v531, %v533
    %v535 = vrot.slane %v521, %v534
    %v536 = vcombine.low %v501, %v509
    %v537 = vcombine.high %v501, %v509
    %v539 = vunpack.c.l.s4 1983009808
    %v540 = vunpack.c.0.s8 %v539
    %v541 = vlaneseq
    %v542 = vshrl.u32 %v541, 7
    %v543 = vsub.s32 %v540, %v542
    %v544 = vrot.slane %v536, %v543
    %v546 = vunpack.c.l.s4 1983009808
    %v547 = vunpack.c.0.s8 %v546
    %v548 = vlaneseq
    %v549 = vshrl.u32 %v548, 7
    %v550 = vsub.s32 %v547, %v549
    %v551 = vrot.slane %v537, %v550
    %v552 = vcombine.low %v528, %v544
    %v553 = vcombine.high %v528, %v544
    %v555 = vunpack.c.l.s4 1934713408
    %v556 = vunpack.c.0.s8 %v555
    %v557 = vlaneseq
    %v558 = vshrl.u32 %v557, 7
    %v559 = vsub.s32 %v556, %v558
    %v560 = vrot.slane %v552, %v559
    %v562 = vunpack.c.l.s4 1934713408
    %v563 = vunpack.c.0.s8 %v562
    %v564 = vlaneseq
    %v565 = vshrl.u32 %v564, 7
    %v566 = vsub.s32 %v563, %v565
    %v567 = vrot.slane %v553, %v566
    %v568 = vcombine.low %v535, %v551
    %v569 = vcombine.high %v535, %v551
    %v571 = vunpack.c.l.s4 1934713408
    %v572 = vunpack.c.0.s8 %v571
    %v573 = vlaneseq
    %v574 = vshrl.u32 %v573, 7
    %v575 = vsub.s32 %v572, %v574
    %v576 = vrot.slane %v568, %v575
    %v578 = vunpack.c.l.s4 1934713408
    %v579 = vunpack.c.0.s8 %v578
    %v580 = vlaneseq
    %v581 = vshrl.u32 %v580, 7
    %v582 = vsub.s32 %v579, %v581
    %v583 = vrot.slane %v569, %v582
    %v584 = vcombine.high %v560, 0.0
    %v585 = vcombine.high %v567, 0.0
    %v586 = vcombine.high %v576, 0.0
    %v587 = vcombine.high %v583, 0.0
    %v588 = vcombine.low %v499, %v507
    %v589 = vcombine.high %v499, %v507
    %v591 = vunpack.c.l.s4 1983009808
    %v592 = vunpack.c.0.s8 %v591
    %v593 = vlaneseq
    %v594 = vshrl.u32 %v593, 7
    %v595 = vsub.s32 %v592, %v594
    %v596 = vrot.slane %v588, %v595
    %v598 = vunpack.c.l.s4 1983009808
    %v599 = vunpack.c.0.s8 %v598
    %v600 = vlaneseq
    %v601 = vshrl.u32 %v600, 7
    %v602 = vsub.s32 %v599, %v601
    %v603 = vrot.slane %v589, %v602
    %v604 = vcombine.low %v503, %v511
    %v605 = vcombine.high %v503, %v511
    %v607 = vunpack.c.l.s4 1983009808
    %v608 = vunpack.c.0.s8 %v607
    %v609 = vlaneseq
    %v610 = vshrl.u32 %v609, 7
    %v611 = vsub.s32 %v608, %v610
    %v612 = vrot.slane %v604, %v611
    %v614 = vunpack.c.l.s4 1983009808
    %v615 = vunpack.c.0.s8 %v614
    %v616 = vlaneseq
    %v617 = vshrl.u32 %v616, 7
    %v618 = vsub.s32 %v615, %v617
    %v619 = vrot.slane %v605, %v618
    %v620 = vcombine.low %v596, %v612
    %v621 = vcombine.high %v596, %v612
    %v623 = vunpack.c.l.s4 1934713408
    %v624 = vunpack.c.0.s8 %v623
    %v625 = vlaneseq
    %v626 = vshrl.u32 %v625, 7
    %v627 = vsub.s32 %v624, %v626
    %v628 = vrot.slane %v620, %v627
    %v630 = vunpack.c.l.s4 1934713408
    %v631 = vunpack.c.0.s8 %v630
    %v632 = vlaneseq
    %v633 = vshrl.u32 %v632, 7
    %v634 = vsub.s32 %v631, %v633
    %v635 = vrot.slane %v621, %v634
    %v636 = vcombine.low %v603, %v619
    %v637 = vcombine.high %v603, %v619
    %v639 = vunpack.c.l.s4 1934713408
    %v640 = vunpack.c.0.s8 %v639
    %v641 = vlaneseq
    %v642 = vshrl.u32 %v641, 7
    %v643 = vsub.s32 %v640, %v642
    %v644 = vrot.slane %v636, %v643
    %v646 = vunpack.c.l.s4 1934713408
    %v647 = vunpack.c.0.s8 %v646
    %v648 = vlaneseq
    %v649 = vshrl.u32 %v648, 7
    %v650 = vsub.s32 %v647, %v649
    %v651 = vrot.slane %v637, %v650
    %v652 = vcombine.high %v628, 0.0
    %v653 = vcombine.high %v635, 0.0
    %v654 = vcombine.high %v644, 0.0
    %v655 = vcombine.high %v651, 0.0
    %v656 = vpack.c.bf16 %v240, %v240
    %v657 = vpack.c.bf16 %v264, %v264
    %v658 = vpack.c.bf16 %v247, %v247
    %v659 = vpack.c.bf16 %v265, %v265
    %v660 = vpack.c.bf16 %v256, %v256
    %v661 = vpack.c.bf16 %v266, %v266
    %v662 = vpack.c.bf16 %v263, %v263
    %v663 = vpack.c.bf16 %v267, %v267
    %v664 = vpack.c.bf16 %v400, %v400
    %v665 = vpack.c.bf16 %v424, %v424
    %v666 = vpack.c.bf16 %v407, %v407
    %v667 = vpack.c.bf16 %v425, %v425
    %v668 = vpack.c.bf16 %v416, %v416
    %v669 = vpack.c.bf16 %v426, %v426
    %v670 = vpack.c.bf16 %v423, %v423
    %v671 = vpack.c.bf16 %v427, %v427
    %v672 = vcombine.low %v664, %v668
    %v674 = vunpack.c.l.s4 1983009808
    %v675 = vunpack.c.0.s8 %v674
    %v676 = vlaneseq
    %v677 = vshrl.u32 %v676, 7
    %v678 = vsub.s32 %v675, %v677
    %v679 = vrot.slane %v672, %v678
    %v680 = vcombine.low %v666, %v670
    %v682 = vunpack.c.l.s4 1983009808
    %v683 = vunpack.c.0.s8 %v682
    %v684 = vlaneseq
    %v685 = vshrl.u32 %v684, 7
    %v686 = vsub.s32 %v683, %v685
    %v687 = vrot.slane %v680, %v686
    %v688 = vcombine.low %v679, %v687
    %v690 = vunpack.c.l.s4 1934713408
    %v691 = vunpack.c.0.s8 %v690
    %v692 = vlaneseq
    %v693 = vshrl.u32 %v692, 7
    %v694 = vsub.s32 %v691, %v693
    %v695 = vrot.slane %v688, %v694
    %v696 = vcombine.high %v695, 0
    %v697 = vcombine.low %v665, %v669
    %v699 = vunpack.c.l.s4 1983009808
    %v700 = vunpack.c.0.s8 %v699
    %v701 = vlaneseq
    %v702 = vshrl.u32 %v701, 7
    %v703 = vsub.s32 %v700, %v702
    %v704 = vrot.slane %v697, %v703
    %v705 = vcombine.low %v667, %v671
    %v707 = vunpack.c.l.s4 1983009808
    %v708 = vunpack.c.0.s8 %v707
    %v709 = vlaneseq
    %v710 = vshrl.u32 %v709, 7
    %v711 = vsub.s32 %v708, %v710
    %v712 = vrot.slane %v705, %v711
    %v713 = vcombine.low %v704, %v712
    %v715 = vunpack.c.l.s4 1934713408
    %v716 = vunpack.c.0.s8 %v715
    %v717 = vlaneseq
    %v718 = vshrl.u32 %v717, 7
    %v719 = vsub.s32 %v716, %v718
    %v720 = vrot.slane %v713, %v719
    %v721 = vcombine.high %v720, 0
    %v724 = vpack.i.b16 %v720, %v695
    %v725 = vshrl.u32 %v695, 16
    %v726 = vshrl.u32 %v720, 16
    %v727 = vpack.i.b16 %v726, %v725
    %v730 = vpack.i.b16 %v721, %v696
    %v731 = vshrl.u32 %v696, 16
    %v732 = vshrl.u32 %v721, 16
    %v733 = vpack.i.b16 %v732, %v731
    %734 = vxpose.xlu0.c.b16.start [1/8] %v656, 128
    %735 = vxpose.xlu0.c.b16.cont [2/8] 0, 128
    %736 = vxpose.xlu0.c.b16.cont [3/8] 0, 128
    %737 = vxpose.xlu0.c.b16.cont [4/8] 0, 128
    %738 = vxpose.xlu0.c.b16.cont [5/8] 0, 128
    %739 = vxpose.xlu0.c.b16.cont [6/8] 0, 128
    %740 = vxpose.xlu0.c.b16.cont [7/8] 0, 128
    %741 = vxpose.xlu0.c.b16.end [8/8] 0, 128
    %v742 = vpop.trf.xlu0
    %v743 = vpop.trf.xlu0
    %v744 = vpop.trf.xlu0
    %v745 = vpop.trf.xlu0
    %v746 = vpop.trf.xlu0
    %v747 = vpop.trf.xlu0
    %v748 = vpop.trf.xlu0
    %v749 = vpop.trf.xlu0
    %750 = vxpose.xlu0.c.b16.start [1/8] %v657, 128
    %751 = vxpose.xlu0.c.b16.cont [2/8] 0, 128
    %752 = vxpose.xlu0.c.b16.cont [3/8] 0, 128
    %753 = vxpose.xlu0.c.b16.cont [4/8] 0, 128
    %754 = vxpose.xlu0.c.b16.cont [5/8] 0, 128
    %755 = vxpose.xlu0.c.b16.cont [6/8] 0, 128
    %756 = vxpose.xlu0.c.b16.cont [7/8] 0, 128
    %757 = vxpose.xlu0.c.b16.end [8/8] 0, 128
    %v758 = vpop.trf.xlu0
    %v759 = vpop.trf.xlu0
    %v760 = vpop.trf.xlu0
    %v761 = vpop.trf.xlu0
    %v762 = vpop.trf.xlu0
    %v763 = vpop.trf.xlu0
    %v764 = vpop.trf.xlu0
    %v765 = vpop.trf.xlu0
    %766 = vxpose.xlu0.c.b16.start [1/8] %v658, 128
    %767 = vxpose.xlu0.c.b16.cont [2/8] 0, 128
    %768 = vxpose.xlu0.c.b16.cont [3/8] 0, 128
    %769 = vxpose.xlu0.c.b16.cont [4/8] 0, 128
    %770 = vxpose.xlu0.c.b16.cont [5/8] 0, 128
    %771 = vxpose.xlu0.c.b16.cont [6/8] 0, 128
    %772 = vxpose.xlu0.c.b16.cont [7/8] 0, 128
    %773 = vxpose.xlu0.c.b16.end [8/8] 0, 128
    %v774 = vpop.trf.xlu0
    %v775 = vpop.trf.xlu0
    %v776 = vpop.trf.xlu0
    %v777 = vpop.trf.xlu0
    %v778 = vpop.trf.xlu0
    %v779 = vpop.trf.xlu0
    %v780 = vpop.trf.xlu0
    %v781 = vpop.trf.xlu0
    %782 = vxpose.xlu0.c.b16.start [1/8] %v659, 128
    %783 = vxpose.xlu0.c.b16.cont [2/8] 0, 128
    %784 = vxpose.xlu0.c.b16.cont [3/8] 0, 128
    %785 = vxpose.xlu0.c.b16.cont [4/8] 0, 128
    %786 = vxpose.xlu0.c.b16.cont [5/8] 0, 128
    %787 = vxpose.xlu0.c.b16.cont [6/8] 0, 128
    %788 = vxpose.xlu0.c.b16.cont [7/8] 0, 128
    %789 = vxpose.xlu0.c.b16.end [8/8] 0, 128
    %v790 = vpop.trf.xlu0
    %v791 = vpop.trf.xlu0
    %v792 = vpop.trf.xlu0
    %v793 = vpop.trf.xlu0
    %v794 = vpop.trf.xlu0
    %v795 = vpop.trf.xlu0
    %v796 = vpop.trf.xlu0
    %v797 = vpop.trf.xlu0
    %798 = vxpose.xlu0.c.b16.start [1/8] %v660, 128
    %799 = vxpose.xlu0.c.b16.cont [2/8] 0, 128
    %800 = vxpose.xlu0.c.b16.cont [3/8] 0, 128
    %801 = vxpose.xlu0.c.b16.cont [4/8] 0, 128
    %802 = vxpose.xlu0.c.b16.cont [5/8] 0, 128
    %803 = vxpose.xlu0.c.b16.cont [6/8] 0, 128
    %804 = vxpose.xlu0.c.b16.cont [7/8] 0, 128
    %805 = vxpose.xlu0.c.b16.end [8/8] 0, 128
    %v806 = vpop.trf.xlu0
    %v807 = vpop.trf.xlu0
    %v808 = vpop.trf.xlu0
    %v809 = vpop.trf.xlu0
    %v810 = vpop.trf.xlu0
    %v811 = vpop.trf.xlu0
    %v812 = vpop.trf.xlu0
    %v813 = vpop.trf.xlu0
    %814 = vxpose.xlu0.c.b16.start [1/8] %v661, 128
    %815 = vxpose.xlu0.c.b16.cont [2/8] 0, 128
    %816 = vxpose.xlu0.c.b16.cont [3/8] 0, 128
    %817 = vxpose.xlu0.c.b16.cont [4/8] 0, 128
    %818 = vxpose.xlu0.c.b16.cont [5/8] 0, 128
    %819 = vxpose.xlu0.c.b16.cont [6/8] 0, 128
    %820 = vxpose.xlu0.c.b16.cont [7/8] 0, 128
    %821 = vxpose.xlu0.c.b16.end [8/8] 0, 128
    %v822 = vpop.trf.xlu0
    %v823 = vpop.trf.xlu0
    %v824 = vpop.trf.xlu0
    %v825 = vpop.trf.xlu0
    %v826 = vpop.trf.xlu0
    %v827 = vpop.trf.xlu0
    %v828 = vpop.trf.xlu0
    %v829 = vpop.trf.xlu0
    %830 = vxpose.xlu0.c.b16.start [1/8] %v662, 128
    %831 = vxpose.xlu0.c.b16.cont [2/8] 0, 128
    %832 = vxpose.xlu0.c.b16.cont [3/8] 0, 128
    %833 = vxpose.xlu0.c.b16.cont [4/8] 0, 128
    %834 = vxpose.xlu0.c.b16.cont [5/8] 0, 128
    %835 = vxpose.xlu0.c.b16.cont [6/8] 0, 128
    %836 = vxpose.xlu0.c.b16.cont [7/8] 0, 128
    %837 = vxpose.xlu0.c.b16.end [8/8] 0, 128
    %v838 = vpop.trf.xlu0
    %v839 = vpop.trf.xlu0
    %v840 = vpop.trf.xlu0
    %v841 = vpop.trf.xlu0
    %v842 = vpop.trf.xlu0
    %v843 = vpop.trf.xlu0
    %v844 = vpop.trf.xlu0
    %v845 = vpop.trf.xlu0
    %846 = vxpose.xlu0.c.b16.start [1/8] %v663, 128
    %847 = vxpose.xlu0.c.b16.cont [2/8] 0, 128
    %848 = vxpose.xlu0.c.b16.cont [3/8] 0, 128
    %849 = vxpose.xlu0.c.b16.cont [4/8] 0, 128
    %850 = vxpose.xlu0.c.b16.cont [5/8] 0, 128
    %851 = vxpose.xlu0.c.b16.cont [6/8] 0, 128
    %852 = vxpose.xlu0.c.b16.cont [7/8] 0, 128
    %853 = vxpose.xlu0.c.b16.end [8/8] 0, 128
    %v854 = vpop.trf.xlu0
    %v855 = vpop.trf.xlu0
    %v856 = vpop.trf.xlu0
    %v857 = vpop.trf.xlu0
    %v858 = vpop.trf.xlu0
    %v859 = vpop.trf.xlu0
    %v860 = vpop.trf.xlu0
    %v861 = vpop.trf.xlu0
    %v862 = vcombine.low %v742, %v806
    %v864 = vunpack.c.l.s4 1983009808
    %v865 = vunpack.c.0.s8 %v864
    %v866 = vlaneseq
    %v867 = vshrl.u32 %v866, 7
    %v868 = vsub.s32 %v865, %v867
    %v869 = vrot.slane %v862, %v868
    %v870 = vcombine.low %v774, %v838
    %v872 = vunpack.c.l.s4 1983009808
    %v873 = vunpack.c.0.s8 %v872
    %v874 = vlaneseq
    %v875 = vshrl.u32 %v874, 7
    %v876 = vsub.s32 %v873, %v875
    %v877 = vrot.slane %v870, %v876
    %v878 = vcombine.low %v869, %v877
    %v879 = vcombine.high %v869, %v877
    %v881 = vunpack.c.l.s4 1934713408
    %v882 = vunpack.c.0.s8 %v881
    %v883 = vlaneseq
    %v884 = vshrl.u32 %v883, 7
    %v885 = vsub.s32 %v882, %v884
    %v886 = vrot.slane %v878, %v885
    %v888 = vunpack.c.l.s4 1934713408
    %v889 = vunpack.c.0.s8 %v888
    %v890 = vlaneseq
    %v891 = vshrl.u32 %v890, 7
    %v892 = vsub.s32 %v889, %v891
    %v893 = vrot.slane %v879, %v892
    %v894 = vcombine.high %v886, 0
    %v895 = vcombine.high %v893, 0
    %v896 = vcombine.low %v758, %v822
    %v898 = vunpack.c.l.s4 1983009808
    %v899 = vunpack.c.0.s8 %v898
    %v900 = vlaneseq
    %v901 = vshrl.u32 %v900, 7
    %v902 = vsub.s32 %v899, %v901
    %v903 = vrot.slane %v896, %v902
    %v904 = vcombine.low %v790, %v854
    %v906 = vunpack.c.l.s4 1983009808
    %v907 = vunpack.c.0.s8 %v906
    %v908 = vlaneseq
    %v909 = vshrl.u32 %v908, 7
    %v910 = vsub.s32 %v907, %v909
    %v911 = vrot.slane %v904, %v910
    %v912 = vcombine.low %v903, %v911
    %v913 = vcombine.high %v903, %v911
    %v915 = vunpack.c.l.s4 1934713408
    %v916 = vunpack.c.0.s8 %v915
    %v917 = vlaneseq
    %v918 = vshrl.u32 %v917, 7
    %v919 = vsub.s32 %v916, %v918
    %v920 = vrot.slane %v912, %v919
    %v922 = vunpack.c.l.s4 1934713408
    %v923 = vunpack.c.0.s8 %v922
    %v924 = vlaneseq
    %v925 = vshrl.u32 %v924, 7
    %v926 = vsub.s32 %v923, %v925
    %v927 = vrot.slane %v913, %v926
    %v928 = vcombine.high %v920, 0
    %v929 = vcombine.high %v927, 0
    %v932 = vpack.i.b16 %v920, %v886
    %v934 = vshrl.u32 %v886, 16
    %v935 = vshrl.u32 %v920, 16
    %v936 = vpack.i.b16 %v935, %v934
    %v940 = vpack.i.b16 %v928, %v894
    %v942 = vshrl.u32 %v894, 16
    %v943 = vshrl.u32 %v928, 16
    %v944 = vpack.i.b16 %v943, %v942
    %v948 = vpack.i.b16 %v927, %v893
    %v950 = vshrl.u32 %v893, 16
    %v951 = vshrl.u32 %v927, 16
    %v952 = vpack.i.b16 %v951, %v950
    %v956 = vpack.i.b16 %v929, %v895
    %v958 = vshrl.u32 %v895, 16
    %v959 = vshrl.u32 %v929, 16
    %v960 = vpack.i.b16 %v959, %v958
    %962 = vxpose.xlu0.c.b16.start [1/8] %v932, 128
    %963 = vxpose.xlu0.c.b16.cont [2/8] 0, 128
    %964 = vxpose.xlu0.c.b16.cont [3/8] 0, 128
    %965 = vxpose.xlu0.c.b16.cont [4/8] 0, 128
    %966 = vxpose.xlu0.c.b16.cont [5/8] 0, 128
    %967 = vxpose.xlu0.c.b16.cont [6/8] 0, 128
    %968 = vxpose.xlu0.c.b16.cont [7/8] 0, 128
    %969 = vxpose.xlu0.c.b16.end [8/8] 0, 128
    %v970 = vpop.trf.xlu0
    %v971 = vpop.trf.xlu0
    %v972 = vpop.trf.xlu0
    %v973 = vpop.trf.xlu0
    %v974 = vpop.trf.xlu0
    %v975 = vpop.trf.xlu0
    %v976 = vpop.trf.xlu0
    %v977 = vpop.trf.xlu0
    %978 = vxpose.xlu0.c.b16.start [1/8] %v936, 128
    %979 = vxpose.xlu0.c.b16.cont [2/8] 0, 128
    %980 = vxpose.xlu0.c.b16.cont [3/8] 0, 128
    %981 = vxpose.xlu0.c.b16.cont [4/8] 0, 128
    %982 = vxpose.xlu0.c.b16.cont [5/8] 0, 128
    %983 = vxpose.xlu0.c.b16.cont [6/8] 0, 128
    %984 = vxpose.xlu0.c.b16.cont [7/8] 0, 128
    %985 = vxpose.xlu0.c.b16.end [8/8] 0, 128
    %v986 = vpop.trf.xlu0
    %v987 = vpop.trf.xlu0
    %v988 = vpop.trf.xlu0
    %v989 = vpop.trf.xlu0
    %v990 = vpop.trf.xlu0
    %v991 = vpop.trf.xlu0
    %v992 = vpop.trf.xlu0
    %v993 = vpop.trf.xlu0
    %994 = vxpose.xlu0.c.b16.start [1/8] %v940, 128
    %995 = vxpose.xlu0.c.b16.cont [2/8] 0, 128
    %996 = vxpose.xlu0.c.b16.cont [3/8] 0, 128
    %997 = vxpose.xlu0.c.b16.cont [4/8] 0, 128
    %998 = vxpose.xlu0.c.b16.cont [5/8] 0, 128
    %999 = vxpose.xlu0.c.b16.cont [6/8] 0, 128
    %1000 = vxpose.xlu0.c.b16.cont [7/8] 0, 128
    %1001 = vxpose.xlu0.c.b16.end [8/8] 0, 128
    %v1002 = vpop.trf.xlu0
    %v1003 = vpop.trf.xlu0
    %v1004 = vpop.trf.xlu0
    %v1005 = vpop.trf.xlu0
    %v1006 = vpop.trf.xlu0
    %v1007 = vpop.trf.xlu0
    %v1008 = vpop.trf.xlu0
    %v1009 = vpop.trf.xlu0
    %1010 = vxpose.xlu0.c.b16.start [1/8] %v944, 128
    %1011 = vxpose.xlu0.c.b16.cont [2/8] 0, 128
    %1012 = vxpose.xlu0.c.b16.cont [3/8] 0, 128
    %1013 = vxpose.xlu0.c.b16.cont [4/8] 0, 128
    %1014 = vxpose.xlu0.c.b16.cont [5/8] 0, 128
    %1015 = vxpose.xlu0.c.b16.cont [6/8] 0, 128
    %1016 = vxpose.xlu0.c.b16.cont [7/8] 0, 128
    %1017 = vxpose.xlu0.c.b16.end [8/8] 0, 128
    %v1018 = vpop.trf.xlu0
    %v1019 = vpop.trf.xlu0
    %v1020 = vpop.trf.xlu0
    %v1021 = vpop.trf.xlu0
    %v1022 = vpop.trf.xlu0
    %v1023 = vpop.trf.xlu0
    %v1024 = vpop.trf.xlu0
    %v1025 = vpop.trf.xlu0
    %1026 = vxpose.xlu0.c.b16.start [1/8] %v948, 128
    %1027 = vxpose.xlu0.c.b16.cont [2/8] 0, 128
    %1028 = vxpose.xlu0.c.b16.cont [3/8] 0, 128
    %1029 = vxpose.xlu0.c.b16.cont [4/8] 0, 128
    %1030 = vxpose.xlu0.c.b16.cont [5/8] 0, 128
    %1031 = vxpose.xlu0.c.b16.cont [6/8] 0, 128
    %1032 = vxpose.xlu0.c.b16.cont [7/8] 0, 128
    %1033 = vxpose.xlu0.c.b16.end [8/8] 0, 128
    %v1034 = vpop.trf.xlu0
    %v1035 = vpop.trf.xlu0
    %v1036 = vpop.trf.xlu0
    %v1037 = vpop.trf.xlu0
    %v1038 = vpop.trf.xlu0
    %v1039 = vpop.trf.xlu0
    %v1040 = vpop.trf.xlu0
    %v1041 = vpop.trf.xlu0
    %1042 = vxpose.xlu0.c.b16.start [1/8] %v952, 128
    %1043 = vxpose.xlu0.c.b16.cont [2/8] 0, 128
    %1044 = vxpose.xlu0.c.b16.cont [3/8] 0, 128
    %1045 = vxpose.xlu0.c.b16.cont [4/8] 0, 128
    %1046 = vxpose.xlu0.c.b16.cont [5/8] 0, 128
    %1047 = vxpose.xlu0.c.b16.cont [6/8] 0, 128
    %1048 = vxpose.xlu0.c.b16.cont [7/8] 0, 128
    %1049 = vxpose.xlu0.c.b16.end [8/8] 0, 128
    %v1050 = vpop.trf.xlu0
    %v1051 = vpop.trf.xlu0
    %v1052 = vpop.trf.xlu0
    %v1053 = vpop.trf.xlu0
    %v1054 = vpop.trf.xlu0
    %v1055 = vpop.trf.xlu0
    %v1056 = vpop.trf.xlu0
    %v1057 = vpop.trf.xlu0
    %1058 = vxpose.xlu0.c.b16.start [1/8] %v956, 128
    %1059 = vxpose.xlu0.c.b16.cont [2/8] 0, 128
    %1060 = vxpose.xlu0.c.b16.cont [3/8] 0, 128
    %1061 = vxpose.xlu0.c.b16.cont [4/8] 0, 128
    %1062 = vxpose.xlu0.c.b16.cont [5/8] 0, 128
    %1063 = vxpose.xlu0.c.b16.cont [6/8] 0, 128
    %1064 = vxpose.xlu0.c.b16.cont [7/8] 0, 128
    %1065 = vxpose.xlu0.c.b16.end [8/8] 0, 128
    %v1066 = vpop.trf.xlu0
    %v1067 = vpop.trf.xlu0
    %v1068 = vpop.trf.xlu0
    %v1069 = vpop.trf.xlu0
    %v1070 = vpop.trf.xlu0
    %v1071 = vpop.trf.xlu0
    %v1072 = vpop.trf.xlu0
    %v1073 = vpop.trf.xlu0
    %1074 = vxpose.xlu0.c.b16.start [1/8] %v960, 128
    %1075 = vxpose.xlu0.c.b16.cont [2/8] 0, 128
    %1076 = vxpose.xlu0.c.b16.cont [3/8] 0, 128
    %1077 = vxpose.xlu0.c.b16.cont [4/8] 0, 128
    %1078 = vxpose.xlu0.c.b16.cont [5/8] 0, 128
    %1079 = vxpose.xlu0.c.b16.cont [6/8] 0, 128
    %1080 = vxpose.xlu0.c.b16.cont [7/8] 0, 128
    %1081 = vxpose.xlu0.c.b16.end [8/8] 0, 128
    %v1082 = vpop.trf.xlu0
    %v1083 = vpop.trf.xlu0
    %v1084 = vpop.trf.xlu0
    %v1085 = vpop.trf.xlu0
    %v1086 = vpop.trf.xlu0
    %v1087 = vpop.trf.xlu0
    %v1088 = vpop.trf.xlu0
    %v1089 = vpop.trf.xlu0
    %v1090 = vcombine.low %v970, %v1034
    %v1092 = vunpack.c.l.s4 1983009808
    %v1093 = vunpack.c.0.s8 %v1092
    %v1094 = vlaneseq
    %v1095 = vshrl.u32 %v1094, 7
    %v1096 = vsub.s32 %v1093, %v1095
    %v1097 = vrot.slane %v1090, %v1096
    %v1098 = vcombine.low %v1002, %v1066
    %v1100 = vunpack.c.l.s4 1983009808
    %v1101 = vunpack.c.0.s8 %v1100
    %v1102 = vlaneseq
    %v1103 = vshrl.u32 %v1102, 7
    %v1104 = vsub.s32 %v1101, %v1103
    %v1105 = vrot.slane %v1098, %v1104
    %v1106 = vcombine.low %v1097, %v1105
    %v1108 = vunpack.c.l.s4 1934713408
    %v1109 = vunpack.c.0.s8 %v1108
    %v1110 = vlaneseq
    %v1111 = vshrl.u32 %v1110, 7
    %v1112 = vsub.s32 %v1109, %v1111
    %v1113 = vrot.slane %v1106, %v1112
    %v1114 = vcombine.high %v1113, 0
    %v1115 = vcombine.low %v986, %v1050
    %v1117 = vunpack.c.l.s4 1983009808
    %v1118 = vunpack.c.0.s8 %v1117
    %v1119 = vlaneseq
    %v1120 = vshrl.u32 %v1119, 7
    %v1121 = vsub.s32 %v1118, %v1120
    %v1122 = vrot.slane %v1115, %v1121
    %v1123 = vcombine.low %v1018, %v1082
    %v1125 = vunpack.c.l.s4 1983009808
    %v1126 = vunpack.c.0.s8 %v1125
    %v1127 = vlaneseq
    %v1128 = vshrl.u32 %v1127, 7
    %v1129 = vsub.s32 %v1126, %v1128
    %v1130 = vrot.slane %v1123, %v1129
    %v1131 = vcombine.low %v1122, %v1130
    %v1133 = vunpack.c.l.s4 1934713408
    %v1134 = vunpack.c.0.s8 %v1133
    %v1135 = vlaneseq
    %v1136 = vshrl.u32 %v1135, 7
    %v1137 = vsub.s32 %v1134, %v1136
    %v1138 = vrot.slane %v1131, %v1137
    %v1139 = vcombine.high %v1138, 0
    %v1142 = vpack.i.b16 %v1138, %v1113
    %v1143 = vshrl.u32 %v1113, 16
    %v1144 = vshrl.u32 %v1138, 16
    %v1145 = vpack.i.b16 %v1144, %v1143
    %v1148 = vpack.i.b16 %v1139, %v1114
    %v1149 = vshrl.u32 %v1114, 16
    %v1150 = vshrl.u32 %v1139, 16
    %v1151 = vpack.i.b16 %v1150, %v1149
    %vm1152 = vcmask 64512
    %v1154 = vsel %vm1152, %v724, 0
    %vm1156 = vcmask 1043456
    %v1158 = vsel %vm1156, %v1142, 0
    %1160 = vmatprep.subr.bf16.mxu0 0
    %1161 = vmatpush1.bf16.msra.mxu0 %v1158
    %1162 = vmatprep.subr.bf16.mxu0 0
    %1163 = vmatpush1.bf16.msra.mxu0 0
    %1164 = vmatprep.subr.bf16.mxu0 0
    %1165 = vmatpush1.bf16.msra.mxu0 0
    %1166 = vmatprep.subr.bf16.mxu0 0
    %1167 = vmatpush1.bf16.msra.mxu0 0
    %1168 = vmatprep.subr.bf16.mxu0 0
    %1169 = vmatpush1.bf16.msra.mxu0 0
    %1170 = vmatprep.subr.bf16.mxu0 0
    %1171 = vmatpush1.bf16.msra.mxu0 0
    %1172 = vmatprep.subr.bf16.mxu0 0
    %1173 = vmatpush1.bf16.msra.mxu0 0
    %1174 = vmatprep.subr.bf16.mxu0 0
    %1175 = vmatpush1.bf16.msra.mxu0 0
    %1176 = vmatprep.subr.bf16.mxu0 0
    %1177 = vmatpush1.bf16.msra.mxu0 0
    %1178 = vmatprep.subr.bf16.mxu0 0
    %1179 = vmatpush1.bf16.msra.mxu0 0
    %1180 = vmatprep.subr.bf16.mxu0 0
    %1181 = vmatpush1.bf16.msra.mxu0 0
    %1182 = vmatprep.subr.bf16.mxu0 0
    %1183 = vmatpush1.bf16.msra.mxu0 0
    %1184 = vmatprep.subr.bf16.mxu0 0
    %1185 = vmatpush1.bf16.msra.mxu0 0
    %1186 = vmatprep.subr.bf16.mxu0 0
    %1187 = vmatpush1.bf16.msra.mxu0 0
    %1188 = vmatprep.subr.bf16.mxu0 0
    %1189 = vmatpush1.bf16.msra.mxu0 0
    %1190 = vmatprep.subr.bf16.mxu0 0
    %1191 = vmatpush1.bf16.msra.mxu0 0
    %1192 = vmatprep.mubr.bf16.mxu0 0
    %1193 = vmatmul.mubr.bf16.gmra.mrb[0].mxu0 %v1154
    %v1194 = vpop.f32.mrb[0].mxu0
    %v1195 = vadd.f32 0.0, %v1194
    %v1196 = vpop.f32.mrb[0].mxu0
    %v1197 = vpop.f32.mrb[0].mxu0
    %v1198 = vpop.f32.mrb[0].mxu0
    %1199 = vdwg.mxu0
    %v1201 = vsel %vm1152, %v727, 0
    %v1204 = vsel %vm1156, %v1145, 0
    %1206 = vmatprep.subr.bf16.mxu0 0
    %1207 = vmatpush1.bf16.msra.mxu0 %v1204
    %1208 = vmatprep.subr.bf16.mxu0 0
    %1209 = vmatpush1.bf16.msra.mxu0 0
    %1210 = vmatprep.subr.bf16.mxu0 0
    %1211 = vmatpush1.bf16.msra.mxu0 0
    %1212 = vmatprep.subr.bf16.mxu0 0
    %1213 = vmatpush1.bf16.msra.mxu0 0
    %1214 = vmatprep.subr.bf16.mxu0 0
    %1215 = vmatpush1.bf16.msra.mxu0 0
    %1216 = vmatprep.subr.bf16.mxu0 0
    %1217 = vmatpush1.bf16.msra.mxu0 0
    %1218 = vmatprep.subr.bf16.mxu0 0
    %1219 = vmatpush1.bf16.msra.mxu0 0
    %1220 = vmatprep.subr.bf16.mxu0 0
    %1221 = vmatpush1.bf16.msra.mxu0 0
    %1222 = vmatprep.subr.bf16.mxu0 0
    %1223 = vmatpush1.bf16.msra.mxu0 0
    %1224 = vmatprep.subr.bf16.mxu0 0
    %1225 = vmatpush1.bf16.msra.mxu0 0
    %1226 = vmatprep.subr.bf16.mxu0 0
    %1227 = vmatpush1.bf16.msra.mxu0 0
    %1228 = vmatprep.subr.bf16.mxu0 0
    %1229 = vmatpush1.bf16.msra.mxu0 0
    %1230 = vmatprep.subr.bf16.mxu0 0
    %1231 = vmatpush1.bf16.msra.mxu0 0
    %1232 = vmatprep.subr.bf16.mxu0 0
    %1233 = vmatpush1.bf16.msra.mxu0 0
    %1234 = vmatprep.subr.bf16.mxu0 0
    %1235 = vmatpush1.bf16.msra.mxu0 0
    %1236 = vmatprep.subr.bf16.mxu0 0
    %1237 = vmatpush1.bf16.msra.mxu0 0
    %1238 = vmatprep.mubr.bf16.mxu0 0
    %1239 = vmatmul.mubr.bf16.gmra.mrb[0].mxu0 %v1201
    %v1240 = vpop.f32.mrb[0].mxu0
    %v1241 = vadd.f32 0.0, %v1240
    %v1242 = vpop.f32.mrb[0].mxu0
    %v1243 = vpop.f32.mrb[0].mxu0
    %v1244 = vpop.f32.mrb[0].mxu0
    %1245 = vdwg.mxu0
    %v1247 = vsel %vm1152, %v730, 0
    %v1250 = vsel %vm1156, %v1148, 0
    %1252 = vmatprep.subr.bf16.mxu0 0
    %1253 = vmatpush1.bf16.msra.mxu0 %v1250
    %1254 = vmatprep.subr.bf16.mxu0 0
    %1255 = vmatpush1.bf16.msra.mxu0 0
    %1256 = vmatprep.subr.bf16.mxu0 0
    %1257 = vmatpush1.bf16.msra.mxu0 0
    %1258 = vmatprep.subr.bf16.mxu0 0
    %1259 = vmatpush1.bf16.msra.mxu0 0
    %1260 = vmatprep.subr.bf16.mxu0 0
    %1261 = vmatpush1.bf16.msra.mxu0 0
    %1262 = vmatprep.subr.bf16.mxu0 0
    %1263 = vmatpush1.bf16.msra.mxu0 0
    %1264 = vmatprep.subr.bf16.mxu0 0
    %1265 = vmatpush1.bf16.msra.mxu0 0
    %1266 = vmatprep.subr.bf16.mxu0 0
    %1267 = vmatpush1.bf16.msra.mxu0 0
    %1268 = vmatprep.subr.bf16.mxu0 0
    %1269 = vmatpush1.bf16.msra.mxu0 0
    %1270 = vmatprep.subr.bf16.mxu0 0
    %1271 = vmatpush1.bf16.msra.mxu0 0
    %1272 = vmatprep.subr.bf16.mxu0 0
    %1273 = vmatpush1.bf16.msra.mxu0 0
    %1274 = vmatprep.subr.bf16.mxu0 0
    %1275 = vmatpush1.bf16.msra.mxu0 0
    %1276 = vmatprep.subr.bf16.mxu0 0
    %1277 = vmatpush1.bf16.msra.mxu0 0
    %1278 = vmatprep.subr.bf16.mxu0 0
    %1279 = vmatpush1.bf16.msra.mxu0 0
    %1280 = vmatprep.subr.bf16.mxu0 0
    %1281 = vmatpush1.bf16.msra.mxu0 0
    %1282 = vmatprep.subr.bf16.mxu0 0
    %1283 = vmatpush1.bf16.msra.mxu0 0
    %1284 = vmatprep.mubr.bf16.mxu0 0
    %1285 = vmatmul.mubr.bf16.gmra.mrb[0].mxu0 %v1247
    %v1286 = vpop.f32.mrb[0].mxu0
    %v1287 = vadd.f32 0.0, %v1286
    %v1288 = vpop.f32.mrb[0].mxu0
    %v1289 = vpop.f32.mrb[0].mxu0
    %v1290 = vpop.f32.mrb[0].mxu0
    %1291 = vdwg.mxu0
    %v1293 = vsel %vm1152, %v733, 0
    %v1296 = vsel %vm1156, %v1151, 0
    %1298 = vmatprep.subr.bf16.mxu0 0
    %1299 = vmatpush1.bf16.msra.mxu0 %v1296
    %1300 = vmatprep.subr.bf16.mxu0 0
    %1301 = vmatpush1.bf16.msra.mxu0 0
    %1302 = vmatprep.subr.bf16.mxu0 0
    %1303 = vmatpush1.bf16.msra.mxu0 0
    %1304 = vmatprep.subr.bf16.mxu0 0
    %1305 = vmatpush1.bf16.msra.mxu0 0
    %1306 = vmatprep.subr.bf16.mxu0 0
    %1307 = vmatpush1.bf16.msra.mxu0 0
    %1308 = vmatprep.subr.bf16.mxu0 0
    %1309 = vmatpush1.bf16.msra.mxu0 0
    %1310 = vmatprep.subr.bf16.mxu0 0
    %1311 = vmatpush1.bf16.msra.mxu0 0
    %1312 = vmatprep.subr.bf16.mxu0 0
    %1313 = vmatpush1.bf16.msra.mxu0 0
    %1314 = vmatprep.subr.bf16.mxu0 0
    %1315 = vmatpush1.bf16.msra.mxu0 0
    %1316 = vmatprep.subr.bf16.mxu0 0
    %1317 = vmatpush1.bf16.msra.mxu0 0
    %1318 = vmatprep.subr.bf16.mxu0 0
    %1319 = vmatpush1.bf16.msra.mxu0 0
    %1320 = vmatprep.subr.bf16.mxu0 0
    %1321 = vmatpush1.bf16.msra.mxu0 0
    %1322 = vmatprep.subr.bf16.mxu0 0
    %1323 = vmatpush1.bf16.msra.mxu0 0
    %1324 = vmatprep.subr.bf16.mxu0 0
    %1325 = vmatpush1.bf16.msra.mxu0 0
    %1326 = vmatprep.subr.bf16.mxu0 0
    %1327 = vmatpush1.bf16.msra.mxu0 0
    %1328 = vmatprep.subr.bf16.mxu0 0
    %1329 = vmatpush1.bf16.msra.mxu0 0
    %1330 = vmatprep.mubr.bf16.mxu0 0
    %1331 = vmatmul.mubr.bf16.gmra.mrb[0].mxu0 %v1293
    %v1332 = vpop.f32.mrb[0].mxu0
    %v1333 = vadd.f32 0.0, %v1332
    %v1334 = vpop.f32.mrb[0].mxu0
    %v1335 = vpop.f32.mrb[0].mxu0
    %v1336 = vpop.f32.mrb[0].mxu0
    %1337 = vdwg.mxu0
    %1338 = vxpose.xlu0.b32.start [1/16] %v1195, 128
    %1339 = vxpose.xlu0.b32.cont [2/16] 0.0, 128
    %1340 = vxpose.xlu0.b32.cont [3/16] 0.0, 128
    %1341 = vxpose.xlu0.b32.cont [4/16] 0.0, 128
    %1342 = vxpose.xlu0.b32.cont [5/16] 0.0, 128
    %1343 = vxpose.xlu0.b32.cont [6/16] 0.0, 128
    %1344 = vxpose.xlu0.b32.cont [7/16] 0.0, 128
    %1345 = vxpose.xlu0.b32.cont [8/16] 0.0, 128
    %1346 = vxpose.xlu0.b32.cont [9/16] 0.0, 128
    %1347 = vxpose.xlu0.b32.cont [10/16] 0.0, 128
    %1348 = vxpose.xlu0.b32.cont [11/16] 0.0, 128
    %1349 = vxpose.xlu0.b32.cont [12/16] 0.0, 128
    %1350 = vxpose.xlu0.b32.cont [13/16] 0.0, 128
    %1351 = vxpose.xlu0.b32.cont [14/16] 0.0, 128
    %1352 = vxpose.xlu0.b32.cont [15/16] 0.0, 128
    %1353 = vxpose.xlu0.b32.end [16/16] 0.0, 128
    %v1354 = vpop.trf.xlu0
    %v1355 = vpop.trf.xlu0
    %v1356 = vpop.trf.xlu0
    %v1357 = vpop.trf.xlu0
    %v1358 = vpop.trf.xlu0
    %v1359 = vpop.trf.xlu0
    %v1360 = vpop.trf.xlu0
    %v1361 = vpop.trf.xlu0
    %v1362 = vpop.trf.xlu0
    %v1363 = vpop.trf.xlu0
    %v1364 = vpop.trf.xlu0
    %v1365 = vpop.trf.xlu0
    %v1366 = vpop.trf.xlu0
    %v1367 = vpop.trf.xlu0
    %v1368 = vpop.trf.xlu0
    %v1369 = vpop.trf.xlu0
    %1370 = vxpose.xlu0.b32.start [1/16] %v1241, 128
    %1371 = vxpose.xlu0.b32.cont [2/16] 0.0, 128
    %1372 = vxpose.xlu0.b32.cont [3/16] 0.0, 128
    %1373 = vxpose.xlu0.b32.cont [4/16] 0.0, 128
    %1374 = vxpose.xlu0.b32.cont [5/16] 0.0, 128
    %1375 = vxpose.xlu0.b32.cont [6/16] 0.0, 128
    %1376 = vxpose.xlu0.b32.cont [7/16] 0.0, 128
    %1377 = vxpose.xlu0.b32.cont [8/16] 0.0, 128
    %1378 = vxpose.xlu0.b32.cont [9/16] 0.0, 128
    %1379 = vxpose.xlu0.b32.cont [10/16] 0.0, 128
    %1380 = vxpose.xlu0.b32.cont [11/16] 0.0, 128
    %1381 = vxpose.xlu0.b32.cont [12/16] 0.0, 128
    %1382 = vxpose.xlu0.b32.cont [13/16] 0.0, 128
    %1383 = vxpose.xlu0.b32.cont [14/16] 0.0, 128
    %1384 = vxpose.xlu0.b32.cont [15/16] 0.0, 128
    %1385 = vxpose.xlu0.b32.end [16/16] 0.0, 128
    %v1386 = vpop.trf.xlu0
    %v1387 = vpop.trf.xlu0
    %v1388 = vpop.trf.xlu0
    %v1389 = vpop.trf.xlu0
    %v1390 = vpop.trf.xlu0
    %v1391 = vpop.trf.xlu0
    %v1392 = vpop.trf.xlu0
    %v1393 = vpop.trf.xlu0
    %v1394 = vpop.trf.xlu0
    %v1395 = vpop.trf.xlu0
    %v1396 = vpop.trf.xlu0
    %v1397 = vpop.trf.xlu0
    %v1398 = vpop.trf.xlu0
    %v1399 = vpop.trf.xlu0
    %v1400 = vpop.trf.xlu0
    %v1401 = vpop.trf.xlu0
    %1402 = vxpose.xlu0.b32.start [1/16] %v1287, 128
    %1403 = vxpose.xlu0.b32.cont [2/16] 0.0, 128
    %1404 = vxpose.xlu0.b32.cont [3/16] 0.0, 128
    %1405 = vxpose.xlu0.b32.cont [4/16] 0.0, 128
    %1406 = vxpose.xlu0.b32.cont [5/16] 0.0, 128
    %1407 = vxpose.xlu0.b32.cont [6/16] 0.0, 128
    %1408 = vxpose.xlu0.b32.cont [7/16] 0.0, 128
    %1409 = vxpose.xlu0.b32.cont [8/16] 0.0, 128
    %1410 = vxpose.xlu0.b32.cont [9/16] 0.0, 128
    %1411 = vxpose.xlu0.b32.cont [10/16] 0.0, 128
    %1412 = vxpose.xlu0.b32.cont [11/16] 0.0, 128
    %1413 = vxpose.xlu0.b32.cont [12/16] 0.0, 128
    %1414 = vxpose.xlu0.b32.cont [13/16] 0.0, 128
    %1415 = vxpose.xlu0.b32.cont [14/16] 0.0, 128
    %1416 = vxpose.xlu0.b32.cont [15/16] 0.0, 128
    %1417 = vxpose.xlu0.b32.end [16/16] 0.0, 128
    %v1418 = vpop.trf.xlu0
    %v1419 = vpop.trf.xlu0
    %v1420 = vpop.trf.xlu0
    %v1421 = vpop.trf.xlu0
    %v1422 = vpop.trf.xlu0
    %v1423 = vpop.trf.xlu0
    %v1424 = vpop.trf.xlu0
    %v1425 = vpop.trf.xlu0
    %v1426 = vpop.trf.xlu0
    %v1427 = vpop.trf.xlu0
    %v1428 = vpop.trf.xlu0
    %v1429 = vpop.trf.xlu0
    %v1430 = vpop.trf.xlu0
    %v1431 = vpop.trf.xlu0
    %v1432 = vpop.trf.xlu0
    %v1433 = vpop.trf.xlu0
    %1434 = vxpose.xlu0.b32.start [1/16] %v1333, 128
    %1435 = vxpose.xlu0.b32.cont [2/16] 0.0, 128
    %1436 = vxpose.xlu0.b32.cont [3/16] 0.0, 128
    %1437 = vxpose.xlu0.b32.cont [4/16] 0.0, 128
    %1438 = vxpose.xlu0.b32.cont [5/16] 0.0, 128
    %1439 = vxpose.xlu0.b32.cont [6/16] 0.0, 128
    %1440 = vxpose.xlu0.b32.cont [7/16] 0.0, 128
    %1441 = vxpose.xlu0.b32.cont [8/16] 0.0, 128
    %1442 = vxpose.xlu0.b32.cont [9/16] 0.0, 128
    %1443 = vxpose.xlu0.b32.cont [10/16] 0.0, 128
    %1444 = vxpose.xlu0.b32.cont [11/16] 0.0, 128
    %1445 = vxpose.xlu0.b32.cont [12/16] 0.0, 128
    %1446 = vxpose.xlu0.b32.cont [13/16] 0.0, 128
    %1447 = vxpose.xlu0.b32.cont [14/16] 0.0, 128
    %1448 = vxpose.xlu0.b32.cont [15/16] 0.0, 128
    %1449 = vxpose.xlu0.b32.end [16/16] 0.0, 128
    %v1450 = vpop.trf.xlu0
    %v1451 = vpop.trf.xlu0
    %v1452 = vpop.trf.xlu0
    %v1453 = vpop.trf.xlu0
    %v1454 = vpop.trf.xlu0
    %v1455 = vpop.trf.xlu0
    %v1456 = vpop.trf.xlu0
    %v1457 = vpop.trf.xlu0
    %v1458 = vpop.trf.xlu0
    %v1459 = vpop.trf.xlu0
    %v1460 = vpop.trf.xlu0
    %v1461 = vpop.trf.xlu0
    %v1462 = vpop.trf.xlu0
    %v1463 = vpop.trf.xlu0
    %v1464 = vpop.trf.xlu0
    %v1465 = vpop.trf.xlu0
    %v1466 = vcombine.low %v1354, %v1418
    %v1467 = vcombine.high %v1354, %v1418
    %v1469 = vunpack.c.l.s4 1983009808
    %v1470 = vunpack.c.0.s8 %v1469
    %v1471 = vlaneseq
    %v1472 = vshrl.u32 %v1471, 7
    %v1473 = vsub.s32 %v1470, %v1472
    %v1474 = vrot.slane %v1466, %v1473
    %v1476 = vunpack.c.l.s4 1983009808
    %v1477 = vunpack.c.0.s8 %v1476
    %v1478 = vlaneseq
    %v1479 = vshrl.u32 %v1478, 7
    %v1480 = vsub.s32 %v1477, %v1479
    %v1481 = vrot.slane %v1467, %v1480
    %v1482 = vcombine.low %v1386, %v1450
    %v1483 = vcombine.high %v1386, %v1450
    %v1485 = vunpack.c.l.s4 1983009808
    %v1486 = vunpack.c.0.s8 %v1485
    %v1487 = vlaneseq
    %v1488 = vshrl.u32 %v1487, 7
    %v1489 = vsub.s32 %v1486, %v1488
    %v1490 = vrot.slane %v1482, %v1489
    %v1492 = vunpack.c.l.s4 1983009808
    %v1493 = vunpack.c.0.s8 %v1492
    %v1494 = vlaneseq
    %v1495 = vshrl.u32 %v1494, 7
    %v1496 = vsub.s32 %v1493, %v1495
    %v1497 = vrot.slane %v1483, %v1496
    %v1498 = vcombine.low %v1474, %v1490
    %v1499 = vcombine.high %v1474, %v1490
    %v1501 = vunpack.c.l.s4 1934713408
    %v1502 = vunpack.c.0.s8 %v1501
    %v1503 = vlaneseq
    %v1504 = vshrl.u32 %v1503, 7
    %v1505 = vsub.s32 %v1502, %v1504
    %v1506 = vrot.slane %v1498, %v1505
    %v1508 = vunpack.c.l.s4 1934713408
    %v1509 = vunpack.c.0.s8 %v1508
    %v1510 = vlaneseq
    %v1511 = vshrl.u32 %v1510, 7
    %v1512 = vsub.s32 %v1509, %v1511
    %v1513 = vrot.slane %v1499, %v1512
    %v1514 = vcombine.low %v1481, %v1497
    %v1515 = vcombine.high %v1481, %v1497
    %v1517 = vunpack.c.l.s4 1934713408
    %v1518 = vunpack.c.0.s8 %v1517
    %v1519 = vlaneseq
    %v1520 = vshrl.u32 %v1519, 7
    %v1521 = vsub.s32 %v1518, %v1520
    %v1522 = vrot.slane %v1514, %v1521
    %v1524 = vunpack.c.l.s4 1934713408
    %v1525 = vunpack.c.0.s8 %v1524
    %v1526 = vlaneseq
    %v1527 = vshrl.u32 %v1526, 7
    %v1528 = vsub.s32 %v1525, %v1527
    %v1529 = vrot.slane %v1515, %v1528
    %v1530 = vcombine.high %v1506, 0.0
    %v1531 = vcombine.high %v1513, 0.0
    %v1532 = vcombine.high %v1522, 0.0
    %v1533 = vcombine.high %v1529, 0.0
    %vm1534 = vcmask 60416
    %v1535 = vsel %vm1534, %v1506, -inf
    %1536 = vmax.xlane.f32.xlu0 %v1535
    %v1537 = vpop.xlane.xlu0 %1536
    %v1538 = vsel %vm1534, %v1530, -inf
    %1539 = vmax.xlane.f32.xlu0 %v1538
    %v1540 = vpop.xlane.xlu0 %1539
    %v1541 = vsel %vm1534, %v1513, -inf
    %1542 = vmax.xlane.f32.xlu0 %v1541
    %v1543 = vpop.xlane.xlu0 %1542
    %v1544 = vsel %vm1534, %v1531, -inf
    %1545 = vmax.xlane.f32.xlu0 %v1544
    %v1546 = vpop.xlane.xlu0 %1545
    %v1547 = vsel %vm1534, %v1522, -inf
    %1548 = vmax.xlane.f32.xlu0 %v1547
    %v1549 = vpop.xlane.xlu0 %1548
    %v1550 = vsel %vm1534, %v1532, -inf
    %1551 = vmax.xlane.f32.xlu0 %v1550
    %v1552 = vpop.xlane.xlu0 %1551
    %v1553 = vsel %vm1534, %v1529, -inf
    %1554 = vmax.xlane.f32.xlu0 %v1553
    %v1555 = vpop.xlane.xlu0 %1554
    %v1556 = vsel %vm1534, %v1533, -inf
    %1557 = vmax.xlane.f32.xlu0 %v1556
    %v1558 = vpop.xlane.xlu0 %1557
    %v1559 = vsub.f32 %v1506, %v1537
    %v1560 = vsub.f32 %v1530, %v1540
    %v1561 = vsub.f32 %v1513, %v1543
    %v1562 = vsub.f32 %v1531, %v1546
    %v1563 = vsub.f32 %v1522, %v1549
    %v1564 = vsub.f32 %v1532, %v1552
    %v1565 = vsub.f32 %v1529, %v1555
    %v1566 = vsub.f32 %v1533, %v1558
    %v1567 = vmul.f32 %v1559, 1.442695
    %v1568 = vpow.pop %v1567
    %v1569 = vmul.f32 %v1560, 1.442695
    %v1570 = vpow.pop %v1569
    %v1571 = vmul.f32 %v1561, 1.442695
    %v1572 = vpow.pop %v1571
    %v1573 = vmul.f32 %v1562, 1.442695
    %v1574 = vpow.pop %v1573
    %v1575 = vmul.f32 %v1563, 1.442695
    %v1576 = vpow.pop %v1575
    %v1577 = vmul.f32 %v1564, 1.442695
    %v1578 = vpow.pop %v1577
    %v1579 = vmul.f32 %v1565, 1.442695
    %v1580 = vpow.pop %v1579
    %v1581 = vmul.f32 %v1566, 1.442695
    %v1582 = vpow.pop %v1581
    %v1583 = vsel %vm1534, %v1568, 0.0
    %1584 = vadd.xlane.f32.xlu0 %v1583
    %v1585 = vpop.xlane.xlu0 %1584
    %v1586 = vsel %vm1534, %v1570, 0.0
    %1587 = vadd.xlane.f32.xlu0 %v1586
    %v1588 = vpop.xlane.xlu0 %1587
    %v1589 = vsel %vm1534, %v1572, 0.0
    %1590 = vadd.xlane.f32.xlu0 %v1589
    %v1591 = vpop.xlane.xlu0 %1590
    %v1592 = vsel %vm1534, %v1574, 0.0
    %1593 = vadd.xlane.f32.xlu0 %v1592
    %v1594 = vpop.xlane.xlu0 %1593
    %v1595 = vsel %vm1534, %v1576, 0.0
    %1596 = vadd.xlane.f32.xlu0 %v1595
    %v1597 = vpop.xlane.xlu0 %1596
    %v1598 = vsel %vm1534, %v1578, 0.0
    %1599 = vadd.xlane.f32.xlu0 %v1598
    %v1600 = vpop.xlane.xlu0 %1599
    %v1601 = vsel %vm1534, %v1580, 0.0
    %1602 = vadd.xlane.f32.xlu0 %v1601
    %v1603 = vpop.xlane.xlu0 %1602
    %v1604 = vsel %vm1534, %v1582, 0.0
    %1605 = vadd.xlane.f32.xlu0 %v1604
    %v1606 = vpop.xlane.xlu0 %1605
    %v1607 = vrcp.pop %v1585
    %v1608 = vrcp.pop %v1588
    %v1609 = vrcp.pop %v1591
    %v1610 = vrcp.pop %v1594
    %v1611 = vrcp.pop %v1597
    %v1612 = vrcp.pop %v1600
    %v1613 = vrcp.pop %v1603
    %v1614 = vrcp.pop %v1606
    %v1615 = vmul.f32 %v1568, %v1607
    %v1616 = vmul.f32 %v1570, %v1608
    %v1617 = vmul.f32 %v1572, %v1609
    %v1618 = vmul.f32 %v1574, %v1610
    %v1619 = vmul.f32 %v1576, %v1611
    %v1620 = vmul.f32 %v1578, %v1612
    %v1621 = vmul.f32 %v1580, %v1613
    %v1622 = vmul.f32 %v1582, %v1614
    %v1623 = vpack.c.bf16 %v1615, %v1615
    %v1624 = vpack.c.bf16 %v1616, %v1616
    %v1625 = vpack.c.bf16 %v1617, %v1617
    %v1626 = vpack.c.bf16 %v1618, %v1618
    %v1627 = vpack.c.bf16 %v1619, %v1619
    %v1628 = vpack.c.bf16 %v1620, %v1620
    %v1629 = vpack.c.bf16 %v1621, %v1621
    %v1630 = vpack.c.bf16 %v1622, %v1622
    %v1631 = vpack.c.bf16 %v560, %v560
    %v1632 = vpack.c.bf16 %v584, %v584
    %v1633 = vpack.c.bf16 %v567, %v567
    %v1634 = vpack.c.bf16 %v585, %v585
    %v1635 = vpack.c.bf16 %v576, %v576
    %v1636 = vpack.c.bf16 %v586, %v586
    %v1637 = vpack.c.bf16 %v583, %v583
    %v1638 = vpack.c.bf16 %v587, %v587
    %1639 = vxpose.xlu0.c.b16.start [1/8] %v1631, 128
    %1640 = vxpose.xlu0.c.b16.cont [2/8] 0, 128
    %1641 = vxpose.xlu0.c.b16.cont [3/8] 0, 128
    %1642 = vxpose.xlu0.c.b16.cont [4/8] 0, 128
    %1643 = vxpose.xlu0.c.b16.cont [5/8] 0, 128
    %1644 = vxpose.xlu0.c.b16.cont [6/8] 0, 128
    %1645 = vxpose.xlu0.c.b16.cont [7/8] 0, 128
    %1646 = vxpose.xlu0.c.b16.end [8/8] 0, 128
    %v1647 = vpop.trf.xlu0
    %v1648 = vpop.trf.xlu0
    %v1649 = vpop.trf.xlu0
    %v1650 = vpop.trf.xlu0
    %v1651 = vpop.trf.xlu0
    %v1652 = vpop.trf.xlu0
    %v1653 = vpop.trf.xlu0
    %v1654 = vpop.trf.xlu0
    %1655 = vxpose.xlu0.c.b16.start [1/8] %v1632, 128
    %1656 = vxpose.xlu0.c.b16.cont [2/8] 0, 128
    %1657 = vxpose.xlu0.c.b16.cont [3/8] 0, 128
    %1658 = vxpose.xlu0.c.b16.cont [4/8] 0, 128
    %1659 = vxpose.xlu0.c.b16.cont [5/8] 0, 128
    %1660 = vxpose.xlu0.c.b16.cont [6/8] 0, 128
    %1661 = vxpose.xlu0.c.b16.cont [7/8] 0, 128
    %1662 = vxpose.xlu0.c.b16.end [8/8] 0, 128
    %v1663 = vpop.trf.xlu0
    %v1664 = vpop.trf.xlu0
    %v1665 = vpop.trf.xlu0
    %v1666 = vpop.trf.xlu0
    %v1667 = vpop.trf.xlu0
    %v1668 = vpop.trf.xlu0
    %v1669 = vpop.trf.xlu0
    %v1670 = vpop.trf.xlu0
    %1671 = vxpose.xlu0.c.b16.start [1/8] %v1633, 128
    %1672 = vxpose.xlu0.c.b16.cont [2/8] 0, 128
    %1673 = vxpose.xlu0.c.b16.cont [3/8] 0, 128
    %1674 = vxpose.xlu0.c.b16.cont [4/8] 0, 128
    %1675 = vxpose.xlu0.c.b16.cont [5/8] 0, 128
    %1676 = vxpose.xlu0.c.b16.cont [6/8] 0, 128
    %1677 = vxpose.xlu0.c.b16.cont [7/8] 0, 128
    %1678 = vxpose.xlu0.c.b16.end [8/8] 0, 128
    %v1679 = vpop.trf.xlu0
    %v1680 = vpop.trf.xlu0
    %v1681 = vpop.trf.xlu0
    %v1682 = vpop.trf.xlu0
    %v1683 = vpop.trf.xlu0
    %v1684 = vpop.trf.xlu0
    %v1685 = vpop.trf.xlu0
    %v1686 = vpop.trf.xlu0
    %1687 = vxpose.xlu0.c.b16.start [1/8] %v1634, 128
    %1688 = vxpose.xlu0.c.b16.cont [2/8] 0, 128
    %1689 = vxpose.xlu0.c.b16.cont [3/8] 0, 128
    %1690 = vxpose.xlu0.c.b16.cont [4/8] 0, 128
    %1691 = vxpose.xlu0.c.b16.cont [5/8] 0, 128
    %1692 = vxpose.xlu0.c.b16.cont [6/8] 0, 128
    %1693 = vxpose.xlu0.c.b16.cont [7/8] 0, 128
    %1694 = vxpose.xlu0.c.b16.end [8/8] 0, 128
    %v1695 = vpop.trf.xlu0
    %v1696 = vpop.trf.xlu0
    %v1697 = vpop.trf.xlu0
    %v1698 = vpop.trf.xlu0
    %v1699 = vpop.trf.xlu0
    %v1700 = vpop.trf.xlu0
    %v1701 = vpop.trf.xlu0
    %v1702 = vpop.trf.xlu0
    %1703 = vxpose.xlu0.c.b16.start [1/8] %v1635, 128
    %1704 = vxpose.xlu0.c.b16.cont [2/8] 0, 128
    %1705 = vxpose.xlu0.c.b16.cont [3/8] 0, 128
    %1706 = vxpose.xlu0.c.b16.cont [4/8] 0, 128
    %1707 = vxpose.xlu0.c.b16.cont [5/8] 0, 128
    %1708 = vxpose.xlu0.c.b16.cont [6/8] 0, 128
    %1709 = vxpose.xlu0.c.b16.cont [7/8] 0, 128
    %1710 = vxpose.xlu0.c.b16.end [8/8] 0, 128
    %v1711 = vpop.trf.xlu0
    %v1712 = vpop.trf.xlu0
    %v1713 = vpop.trf.xlu0
    %v1714 = vpop.trf.xlu0
    %v1715 = vpop.trf.xlu0
    %v1716 = vpop.trf.xlu0
    %v1717 = vpop.trf.xlu0
    %v1718 = vpop.trf.xlu0
    %1719 = vxpose.xlu0.c.b16.start [1/8] %v1636, 128
    %1720 = vxpose.xlu0.c.b16.cont [2/8] 0, 128
    %1721 = vxpose.xlu0.c.b16.cont [3/8] 0, 128
    %1722 = vxpose.xlu0.c.b16.cont [4/8] 0, 128
    %1723 = vxpose.xlu0.c.b16.cont [5/8] 0, 128
    %1724 = vxpose.xlu0.c.b16.cont [6/8] 0, 128
    %1725 = vxpose.xlu0.c.b16.cont [7/8] 0, 128
    %1726 = vxpose.xlu0.c.b16.end [8/8] 0, 128
    %v1727 = vpop.trf.xlu0
    %v1728 = vpop.trf.xlu0
    %v1729 = vpop.trf.xlu0
    %v1730 = vpop.trf.xlu0
    %v1731 = vpop.trf.xlu0
    %v1732 = vpop.trf.xlu0
    %v1733 = vpop.trf.xlu0
    %v1734 = vpop.trf.xlu0
    %1735 = vxpose.xlu0.c.b16.start [1/8] %v1637, 128
    %1736 = vxpose.xlu0.c.b16.cont [2/8] 0, 128
    %1737 = vxpose.xlu0.c.b16.cont [3/8] 0, 128
    %1738 = vxpose.xlu0.c.b16.cont [4/8] 0, 128
    %1739 = vxpose.xlu0.c.b16.cont [5/8] 0, 128
    %1740 = vxpose.xlu0.c.b16.cont [6/8] 0, 128
    %1741 = vxpose.xlu0.c.b16.cont [7/8] 0, 128
    %1742 = vxpose.xlu0.c.b16.end [8/8] 0, 128
    %v1743 = vpop.trf.xlu0
    %v1744 = vpop.trf.xlu0
    %v1745 = vpop.trf.xlu0
    %v1746 = vpop.trf.xlu0
    %v1747 = vpop.trf.xlu0
    %v1748 = vpop.trf.xlu0
    %v1749 = vpop.trf.xlu0
    %v1750 = vpop.trf.xlu0
    %1751 = vxpose.xlu0.c.b16.start [1/8] %v1638, 128
    %1752 = vxpose.xlu0.c.b16.cont [2/8] 0, 128
    %1753 = vxpose.xlu0.c.b16.cont [3/8] 0, 128
    %1754 = vxpose.xlu0.c.b16.cont [4/8] 0, 128
    %1755 = vxpose.xlu0.c.b16.cont [5/8] 0, 128
    %1756 = vxpose.xlu0.c.b16.cont [6/8] 0, 128
    %1757 = vxpose.xlu0.c.b16.cont [7/8] 0, 128
    %1758 = vxpose.xlu0.c.b16.end [8/8] 0, 128
    %v1759 = vpop.trf.xlu0
    %v1760 = vpop.trf.xlu0
    %v1761 = vpop.trf.xlu0
    %v1762 = vpop.trf.xlu0
    %v1763 = vpop.trf.xlu0
    %v1764 = vpop.trf.xlu0
    %v1765 = vpop.trf.xlu0
    %v1766 = vpop.trf.xlu0
    %v1767 = vcombine.low %v1647, %v1711
    %v1769 = vunpack.c.l.s4 1983009808
    %v1770 = vunpack.c.0.s8 %v1769
    %v1771 = vlaneseq
    %v1772 = vshrl.u32 %v1771, 7
    %v1773 = vsub.s32 %v1770, %v1772
    %v1774 = vrot.slane %v1767, %v1773
    %v1775 = vcombine.low %v1679, %v1743
    %v1777 = vunpack.c.l.s4 1983009808
    %v1778 = vunpack.c.0.s8 %v1777
    %v1779 = vlaneseq
    %v1780 = vshrl.u32 %v1779, 7
    %v1781 = vsub.s32 %v1778, %v1780
    %v1782 = vrot.slane %v1775, %v1781
    %v1783 = vcombine.low %v1774, %v1782
    %v1784 = vcombine.high %v1774, %v1782
    %v1786 = vunpack.c.l.s4 1934713408
    %v1787 = vunpack.c.0.s8 %v1786
    %v1788 = vlaneseq
    %v1789 = vshrl.u32 %v1788, 7
    %v1790 = vsub.s32 %v1787, %v1789
    %v1791 = vrot.slane %v1783, %v1790
    %v1793 = vunpack.c.l.s4 1934713408
    %v1794 = vunpack.c.0.s8 %v1793
    %v1795 = vlaneseq
    %v1796 = vshrl.u32 %v1795, 7
    %v1797 = vsub.s32 %v1794, %v1796
    %v1798 = vrot.slane %v1784, %v1797
    %v1799 = vcombine.high %v1791, 0
    %v1800 = vcombine.high %v1798, 0
    %v1801 = vcombine.low %v1663, %v1727
    %v1803 = vunpack.c.l.s4 1983009808
    %v1804 = vunpack.c.0.s8 %v1803
    %v1805 = vlaneseq
    %v1806 = vshrl.u32 %v1805, 7
    %v1807 = vsub.s32 %v1804, %v1806
    %v1808 = vrot.slane %v1801, %v1807
    %v1809 = vcombine.low %v1695, %v1759
    %v1811 = vunpack.c.l.s4 1983009808
    %v1812 = vunpack.c.0.s8 %v1811
    %v1813 = vlaneseq
    %v1814 = vshrl.u32 %v1813, 7
    %v1815 = vsub.s32 %v1812, %v1814
    %v1816 = vrot.slane %v1809, %v1815
    %v1817 = vcombine.low %v1808, %v1816
    %v1818 = vcombine.high %v1808, %v1816
    %v1820 = vunpack.c.l.s4 1934713408
    %v1821 = vunpack.c.0.s8 %v1820
    %v1822 = vlaneseq
    %v1823 = vshrl.u32 %v1822, 7
    %v1824 = vsub.s32 %v1821, %v1823
    %v1825 = vrot.slane %v1817, %v1824
    %v1827 = vunpack.c.l.s4 1934713408
    %v1828 = vunpack.c.0.s8 %v1827
    %v1829 = vlaneseq
    %v1830 = vshrl.u32 %v1829, 7
    %v1831 = vsub.s32 %v1828, %v1830
    %v1832 = vrot.slane %v1818, %v1831
    %v1833 = vcombine.high %v1825, 0
    %v1834 = vcombine.high %v1832, 0
    %v1837 = vpack.i.b16 %v1825, %v1791
    %v1839 = vshrl.u32 %v1791, 16
    %v1840 = vshrl.u32 %v1825, 16
    %v1841 = vpack.i.b16 %v1840, %v1839
    %v1845 = vpack.i.b16 %v1833, %v1799
    %v1847 = vshrl.u32 %v1799, 16
    %v1848 = vshrl.u32 %v1833, 16
    %v1849 = vpack.i.b16 %v1848, %v1847
    %v1853 = vpack.i.b16 %v1832, %v1798
    %v1855 = vshrl.u32 %v1798, 16
    %v1856 = vshrl.u32 %v1832, 16
    %v1857 = vpack.i.b16 %v1856, %v1855
    %v1861 = vpack.i.b16 %v1834, %v1800
    %v1863 = vshrl.u32 %v1800, 16
    %v1864 = vshrl.u32 %v1834, 16
    %v1865 = vpack.i.b16 %v1864, %v1863
    %1867 = vxpose.xlu0.c.b16.start [1/8] %v1837, 128
    %1868 = vxpose.xlu0.c.b16.cont [2/8] 0, 128
    %1869 = vxpose.xlu0.c.b16.cont [3/8] 0, 128
    %1870 = vxpose.xlu0.c.b16.cont [4/8] 0, 128
    %1871 = vxpose.xlu0.c.b16.cont [5/8] 0, 128
    %1872 = vxpose.xlu0.c.b16.cont [6/8] 0, 128
    %1873 = vxpose.xlu0.c.b16.cont [7/8] 0, 128
    %1874 = vxpose.xlu0.c.b16.end [8/8] 0, 128
    %v1875 = vpop.trf.xlu0
    %v1876 = vpop.trf.xlu0
    %v1877 = vpop.trf.xlu0
    %v1878 = vpop.trf.xlu0
    %v1879 = vpop.trf.xlu0
    %v1880 = vpop.trf.xlu0
    %v1881 = vpop.trf.xlu0
    %v1882 = vpop.trf.xlu0
    %1883 = vxpose.xlu0.c.b16.start [1/8] %v1841, 128
    %1884 = vxpose.xlu0.c.b16.cont [2/8] 0, 128
    %1885 = vxpose.xlu0.c.b16.cont [3/8] 0, 128
    %1886 = vxpose.xlu0.c.b16.cont [4/8] 0, 128
    %1887 = vxpose.xlu0.c.b16.cont [5/8] 0, 128
    %1888 = vxpose.xlu0.c.b16.cont [6/8] 0, 128
    %1889 = vxpose.xlu0.c.b16.cont [7/8] 0, 128
    %1890 = vxpose.xlu0.c.b16.end [8/8] 0, 128
    %v1891 = vpop.trf.xlu0
    %v1892 = vpop.trf.xlu0
    %v1893 = vpop.trf.xlu0
    %v1894 = vpop.trf.xlu0
    %v1895 = vpop.trf.xlu0
    %v1896 = vpop.trf.xlu0
    %v1897 = vpop.trf.xlu0
    %v1898 = vpop.trf.xlu0
    %1899 = vxpose.xlu0.c.b16.start [1/8] %v1845, 128
    %1900 = vxpose.xlu0.c.b16.cont [2/8] 0, 128
    %1901 = vxpose.xlu0.c.b16.cont [3/8] 0, 128
    %1902 = vxpose.xlu0.c.b16.cont [4/8] 0, 128
    %1903 = vxpose.xlu0.c.b16.cont [5/8] 0, 128
    %1904 = vxpose.xlu0.c.b16.cont [6/8] 0, 128
    %1905 = vxpose.xlu0.c.b16.cont [7/8] 0, 128
    %1906 = vxpose.xlu0.c.b16.end [8/8] 0, 128
    %v1907 = vpop.trf.xlu0
    %v1908 = vpop.trf.xlu0
    %v1909 = vpop.trf.xlu0
    %v1910 = vpop.trf.xlu0
    %v1911 = vpop.trf.xlu0
    %v1912 = vpop.trf.xlu0
    %v1913 = vpop.trf.xlu0
    %v1914 = vpop.trf.xlu0
    %1915 = vxpose.xlu0.c.b16.start [1/8] %v1849, 128
    %1916 = vxpose.xlu0.c.b16.cont [2/8] 0, 128
    %1917 = vxpose.xlu0.c.b16.cont [3/8] 0, 128
    %1918 = vxpose.xlu0.c.b16.cont [4/8] 0, 128
    %1919 = vxpose.xlu0.c.b16.cont [5/8] 0, 128
    %1920 = vxpose.xlu0.c.b16.cont [6/8] 0, 128
    %1921 = vxpose.xlu0.c.b16.cont [7/8] 0, 128
    %1922 = vxpose.xlu0.c.b16.end [8/8] 0, 128
    %v1923 = vpop.trf.xlu0
    %v1924 = vpop.trf.xlu0
    %v1925 = vpop.trf.xlu0
    %v1926 = vpop.trf.xlu0
    %v1927 = vpop.trf.xlu0
    %v1928 = vpop.trf.xlu0
    %v1929 = vpop.trf.xlu0
    %v1930 = vpop.trf.xlu0
    %1931 = vxpose.xlu0.c.b16.start [1/8] %v1853, 128
    %1932 = vxpose.xlu0.c.b16.cont [2/8] 0, 128
    %1933 = vxpose.xlu0.c.b16.cont [3/8] 0, 128
    %1934 = vxpose.xlu0.c.b16.cont [4/8] 0, 128
    %1935 = vxpose.xlu0.c.b16.cont [5/8] 0, 128
    %1936 = vxpose.xlu0.c.b16.cont [6/8] 0, 128
    %1937 = vxpose.xlu0.c.b16.cont [7/8] 0, 128
    %1938 = vxpose.xlu0.c.b16.end [8/8] 0, 128
    %v1939 = vpop.trf.xlu0
    %v1940 = vpop.trf.xlu0
    %v1941 = vpop.trf.xlu0
    %v1942 = vpop.trf.xlu0
    %v1943 = vpop.trf.xlu0
    %v1944 = vpop.trf.xlu0
    %v1945 = vpop.trf.xlu0
    %v1946 = vpop.trf.xlu0
    %1947 = vxpose.xlu0.c.b16.start [1/8] %v1857, 128
    %1948 = vxpose.xlu0.c.b16.cont [2/8] 0, 128
    %1949 = vxpose.xlu0.c.b16.cont [3/8] 0, 128
    %1950 = vxpose.xlu0.c.b16.cont [4/8] 0, 128
    %1951 = vxpose.xlu0.c.b16.cont [5/8] 0, 128
    %1952 = vxpose.xlu0.c.b16.cont [6/8] 0, 128
    %1953 = vxpose.xlu0.c.b16.cont [7/8] 0, 128
    %1954 = vxpose.xlu0.c.b16.end [8/8] 0, 128
    %v1955 = vpop.trf.xlu0
    %v1956 = vpop.trf.xlu0
    %v1957 = vpop.trf.xlu0
    %v1958 = vpop.trf.xlu0
    %v1959 = vpop.trf.xlu0
    %v1960 = vpop.trf.xlu0
    %v1961 = vpop.trf.xlu0
    %v1962 = vpop.trf.xlu0
    %1963 = vxpose.xlu0.c.b16.start [1/8] %v1861, 128
    %1964 = vxpose.xlu0.c.b16.cont [2/8] 0, 128
    %1965 = vxpose.xlu0.c.b16.cont [3/8] 0, 128
    %1966 = vxpose.xlu0.c.b16.cont [4/8] 0, 128
    %1967 = vxpose.xlu0.c.b16.cont [5/8] 0, 128
    %1968 = vxpose.xlu0.c.b16.cont [6/8] 0, 128
    %1969 = vxpose.xlu0.c.b16.cont [7/8] 0, 128
    %1970 = vxpose.xlu0.c.b16.end [8/8] 0, 128
    %v1971 = vpop.trf.xlu0
    %v1972 = vpop.trf.xlu0
    %v1973 = vpop.trf.xlu0
    %v1974 = vpop.trf.xlu0
    %v1975 = vpop.trf.xlu0
    %v1976 = vpop.trf.xlu0
    %v1977 = vpop.trf.xlu0
    %v1978 = vpop.trf.xlu0
    %1979 = vxpose.xlu0.c.b16.start [1/8] %v1865, 128
    %1980 = vxpose.xlu0.c.b16.cont [2/8] 0, 128
    %1981 = vxpose.xlu0.c.b16.cont [3/8] 0, 128
    %1982 = vxpose.xlu0.c.b16.cont [4/8] 0, 128
    %1983 = vxpose.xlu0.c.b16.cont [5/8] 0, 128
    %1984 = vxpose.xlu0.c.b16.cont [6/8] 0, 128
    %1985 = vxpose.xlu0.c.b16.cont [7/8] 0, 128
    %1986 = vxpose.xlu0.c.b16.end [8/8] 0, 128
    %v1987 = vpop.trf.xlu0
    %v1988 = vpop.trf.xlu0
    %v1989 = vpop.trf.xlu0
    %v1990 = vpop.trf.xlu0
    %v1991 = vpop.trf.xlu0
    %v1992 = vpop.trf.xlu0
    %v1993 = vpop.trf.xlu0
    %v1994 = vpop.trf.xlu0
    %v1995 = vcombine.low %v1875, %v1939
    %v1997 = vunpack.c.l.s4 1983009808
    %v1998 = vunpack.c.0.s8 %v1997
    %v1999 = vlaneseq
    %v2000 = vshrl.u32 %v1999, 7
    %v2001 = vsub.s32 %v1998, %v2000
    %v2002 = vrot.slane %v1995, %v2001
    %v2003 = vcombine.low %v1907, %v1971
    %v2005 = vunpack.c.l.s4 1983009808
    %v2006 = vunpack.c.0.s8 %v2005
    %v2007 = vlaneseq
    %v2008 = vshrl.u32 %v2007, 7
    %v2009 = vsub.s32 %v2006, %v2008
    %v2010 = vrot.slane %v2003, %v2009
    %v2011 = vcombine.low %v2002, %v2010
    %v2013 = vunpack.c.l.s4 1934713408
    %v2014 = vunpack.c.0.s8 %v2013
    %v2015 = vlaneseq
    %v2016 = vshrl.u32 %v2015, 7
    %v2017 = vsub.s32 %v2014, %v2016
    %v2018 = vrot.slane %v2011, %v2017
    %v2019 = vcombine.high %v2018, 0
    %v2020 = vcombine.low %v1891, %v1955
    %v2022 = vunpack.c.l.s4 1983009808
    %v2023 = vunpack.c.0.s8 %v2022
    %v2024 = vlaneseq
    %v2025 = vshrl.u32 %v2024, 7
    %v2026 = vsub.s32 %v2023, %v2025
    %v2027 = vrot.slane %v2020, %v2026
    %v2028 = vcombine.low %v1923, %v1987
    %v2030 = vunpack.c.l.s4 1983009808
    %v2031 = vunpack.c.0.s8 %v2030
    %v2032 = vlaneseq
    %v2033 = vshrl.u32 %v2032, 7
    %v2034 = vsub.s32 %v2031, %v2033
    %v2035 = vrot.slane %v2028, %v2034
    %v2036 = vcombine.low %v2027, %v2035
    %v2038 = vunpack.c.l.s4 1934713408
    %v2039 = vunpack.c.0.s8 %v2038
    %v2040 = vlaneseq
    %v2041 = vshrl.u32 %v2040, 7
    %v2042 = vsub.s32 %v2039, %v2041
    %v2043 = vrot.slane %v2036, %v2042
    %v2044 = vcombine.high %v2043, 0
    %v2047 = vpack.i.b16 %v2043, %v2018
    %v2048 = vshrl.u32 %v2018, 16
    %v2049 = vshrl.u32 %v2043, 16
    %v2050 = vpack.i.b16 %v2049, %v2048
    %v2053 = vpack.i.b16 %v2044, %v2019
    %v2054 = vshrl.u32 %v2019, 16
    %v2055 = vshrl.u32 %v2044, 16
    %v2056 = vpack.i.b16 %v2055, %v2054
    %2057 = vxpose.xlu0.c.b16.start [1/8] %v1623, 128
    %2058 = vxpose.xlu0.c.b16.cont [2/8] 0, 128
    %2059 = vxpose.xlu0.c.b16.cont [3/8] 0, 128
    %2060 = vxpose.xlu0.c.b16.cont [4/8] 0, 128
    %2061 = vxpose.xlu0.c.b16.cont [5/8] 0, 128
    %2062 = vxpose.xlu0.c.b16.cont [6/8] 0, 128
    %2063 = vxpose.xlu0.c.b16.cont [7/8] 0, 128
    %2064 = vxpose.xlu0.c.b16.end [8/8] 0, 128
    %v2065 = vpop.trf.xlu0
    %v2066 = vpop.trf.xlu0
    %v2067 = vpop.trf.xlu0
    %v2068 = vpop.trf.xlu0
    %v2069 = vpop.trf.xlu0
    %v2070 = vpop.trf.xlu0
    %v2071 = vpop.trf.xlu0
    %v2072 = vpop.trf.xlu0
    %2073 = vxpose.xlu0.c.b16.start [1/8] %v1624, 128
    %2074 = vxpose.xlu0.c.b16.cont [2/8] 0, 128
    %2075 = vxpose.xlu0.c.b16.cont [3/8] 0, 128
    %2076 = vxpose.xlu0.c.b16.cont [4/8] 0, 128
    %2077 = vxpose.xlu0.c.b16.cont [5/8] 0, 128
    %2078 = vxpose.xlu0.c.b16.cont [6/8] 0, 128
    %2079 = vxpose.xlu0.c.b16.cont [7/8] 0, 128
    %2080 = vxpose.xlu0.c.b16.end [8/8] 0, 128
    %v2081 = vpop.trf.xlu0
    %v2082 = vpop.trf.xlu0
    %v2083 = vpop.trf.xlu0
    %v2084 = vpop.trf.xlu0
    %v2085 = vpop.trf.xlu0
    %v2086 = vpop.trf.xlu0
    %v2087 = vpop.trf.xlu0
    %v2088 = vpop.trf.xlu0
    %2089 = vxpose.xlu0.c.b16.start [1/8] %v1625, 128
    %2090 = vxpose.xlu0.c.b16.cont [2/8] 0, 128
    %2091 = vxpose.xlu0.c.b16.cont [3/8] 0, 128
    %2092 = vxpose.xlu0.c.b16.cont [4/8] 0, 128
    %2093 = vxpose.xlu0.c.b16.cont [5/8] 0, 128
    %2094 = vxpose.xlu0.c.b16.cont [6/8] 0, 128
    %2095 = vxpose.xlu0.c.b16.cont [7/8] 0, 128
    %2096 = vxpose.xlu0.c.b16.end [8/8] 0, 128
    %v2097 = vpop.trf.xlu0
    %v2098 = vpop.trf.xlu0
    %v2099 = vpop.trf.xlu0
    %v2100 = vpop.trf.xlu0
    %v2101 = vpop.trf.xlu0
    %v2102 = vpop.trf.xlu0
    %v2103 = vpop.trf.xlu0
    %v2104 = vpop.trf.xlu0
    %2105 = vxpose.xlu0.c.b16.start [1/8] %v1626, 128
    %2106 = vxpose.xlu0.c.b16.cont [2/8] 0, 128
    %2107 = vxpose.xlu0.c.b16.cont [3/8] 0, 128
    %2108 = vxpose.xlu0.c.b16.cont [4/8] 0, 128
    %2109 = vxpose.xlu0.c.b16.cont [5/8] 0, 128
    %2110 = vxpose.xlu0.c.b16.cont [6/8] 0, 128
    %2111 = vxpose.xlu0.c.b16.cont [7/8] 0, 128
    %2112 = vxpose.xlu0.c.b16.end [8/8] 0, 128
    %v2113 = vpop.trf.xlu0
    %v2114 = vpop.trf.xlu0
    %v2115 = vpop.trf.xlu0
    %v2116 = vpop.trf.xlu0
    %v2117 = vpop.trf.xlu0
    %v2118 = vpop.trf.xlu0
    %v2119 = vpop.trf.xlu0
    %v2120 = vpop.trf.xlu0
    %2121 = vxpose.xlu0.c.b16.start [1/8] %v1627, 128
    %2122 = vxpose.xlu0.c.b16.cont [2/8] 0, 128
    %2123 = vxpose.xlu0.c.b16.cont [3/8] 0, 128
    %2124 = vxpose.xlu0.c.b16.cont [4/8] 0, 128
    %2125 = vxpose.xlu0.c.b16.cont [5/8] 0, 128
    %2126 = vxpose.xlu0.c.b16.cont [6/8] 0, 128
    %2127 = vxpose.xlu0.c.b16.cont [7/8] 0, 128
    %2128 = vxpose.xlu0.c.b16.end [8/8] 0, 128
    %v2129 = vpop.trf.xlu0
    %v2130 = vpop.trf.xlu0
    %v2131 = vpop.trf.xlu0
    %v2132 = vpop.trf.xlu0
    %v2133 = vpop.trf.xlu0
    %v2134 = vpop.trf.xlu0
    %v2135 = vpop.trf.xlu0
    %v2136 = vpop.trf.xlu0
    %2137 = vxpose.xlu0.c.b16.start [1/8] %v1628, 128
    %2138 = vxpose.xlu0.c.b16.cont [2/8] 0, 128
    %2139 = vxpose.xlu0.c.b16.cont [3/8] 0, 128
    %2140 = vxpose.xlu0.c.b16.cont [4/8] 0, 128
    %2141 = vxpose.xlu0.c.b16.cont [5/8] 0, 128
    %2142 = vxpose.xlu0.c.b16.cont [6/8] 0, 128
    %2143 = vxpose.xlu0.c.b16.cont [7/8] 0, 128
    %2144 = vxpose.xlu0.c.b16.end [8/8] 0, 128
    %v2145 = vpop.trf.xlu0
    %v2146 = vpop.trf.xlu0
    %v2147 = vpop.trf.xlu0
    %v2148 = vpop.trf.xlu0
    %v2149 = vpop.trf.xlu0
    %v2150 = vpop.trf.xlu0
    %v2151 = vpop.trf.xlu0
    %v2152 = vpop.trf.xlu0
    %2153 = vxpose.xlu0.c.b16.start [1/8] %v1629, 128
    %2154 = vxpose.xlu0.c.b16.cont [2/8] 0, 128
    %2155 = vxpose.xlu0.c.b16.cont [3/8] 0, 128
    %2156 = vxpose.xlu0.c.b16.cont [4/8] 0, 128
    %2157 = vxpose.xlu0.c.b16.cont [5/8] 0, 128
    %2158 = vxpose.xlu0.c.b16.cont [6/8] 0, 128
    %2159 = vxpose.xlu0.c.b16.cont [7/8] 0, 128
    %2160 = vxpose.xlu0.c.b16.end [8/8] 0, 128
    %v2161 = vpop.trf.xlu0
    %v2162 = vpop.trf.xlu0
    %v2163 = vpop.trf.xlu0
    %v2164 = vpop.trf.xlu0
    %v2165 = vpop.trf.xlu0
    %v2166 = vpop.trf.xlu0
    %v2167 = vpop.trf.xlu0
    %v2168 = vpop.trf.xlu0
    %2169 = vxpose.xlu0.c.b16.start [1/8] %v1630, 128
    %2170 = vxpose.xlu0.c.b16.cont [2/8] 0, 128
    %2171 = vxpose.xlu0.c.b16.cont [3/8] 0, 128
    %2172 = vxpose.xlu0.c.b16.cont [4/8] 0, 128
    %2173 = vxpose.xlu0.c.b16.cont [5/8] 0, 128
    %2174 = vxpose.xlu0.c.b16.cont [6/8] 0, 128
    %2175 = vxpose.xlu0.c.b16.cont [7/8] 0, 128
    %2176 = vxpose.xlu0.c.b16.end [8/8] 0, 128
    %v2177 = vpop.trf.xlu0
    %v2178 = vpop.trf.xlu0
    %v2179 = vpop.trf.xlu0
    %v2180 = vpop.trf.xlu0
    %v2181 = vpop.trf.xlu0
    %v2182 = vpop.trf.xlu0
    %v2183 = vpop.trf.xlu0
    %v2184 = vpop.trf.xlu0
    %v2185 = vcombine.low %v2065, %v2129
    %v2187 = vunpack.c.l.s4 1983009808
    %v2188 = vunpack.c.0.s8 %v2187
    %v2189 = vlaneseq
    %v2190 = vshrl.u32 %v2189, 7
    %v2191 = vsub.s32 %v2188, %v2190
    %v2192 = vrot.slane %v2185, %v2191
    %v2193 = vcombine.low %v2097, %v2161
    %v2195 = vunpack.c.l.s4 1983009808
    %v2196 = vunpack.c.0.s8 %v2195
    %v2197 = vlaneseq
    %v2198 = vshrl.u32 %v2197, 7
    %v2199 = vsub.s32 %v2196, %v2198
    %v2200 = vrot.slane %v2193, %v2199
    %v2201 = vcombine.low %v2192, %v2200
    %v2202 = vcombine.high %v2192, %v2200
    %v2204 = vunpack.c.l.s4 1934713408
    %v2205 = vunpack.c.0.s8 %v2204
    %v2206 = vlaneseq
    %v2207 = vshrl.u32 %v2206, 7
    %v2208 = vsub.s32 %v2205, %v2207
    %v2209 = vrot.slane %v2201, %v2208
    %v2211 = vunpack.c.l.s4 1934713408
    %v2212 = vunpack.c.0.s8 %v2211
    %v2213 = vlaneseq
    %v2214 = vshrl.u32 %v2213, 7
    %v2215 = vsub.s32 %v2212, %v2214
    %v2216 = vrot.slane %v2202, %v2215
    %v2217 = vcombine.high %v2209, 0
    %v2218 = vcombine.high %v2216, 0
    %v2219 = vcombine.low %v2081, %v2145
    %v2221 = vunpack.c.l.s4 1983009808
    %v2222 = vunpack.c.0.s8 %v2221
    %v2223 = vlaneseq
    %v2224 = vshrl.u32 %v2223, 7
    %v2225 = vsub.s32 %v2222, %v2224
    %v2226 = vrot.slane %v2219, %v2225
    %v2227 = vcombine.low %v2113, %v2177
    %v2229 = vunpack.c.l.s4 1983009808
    %v2230 = vunpack.c.0.s8 %v2229
    %v2231 = vlaneseq
    %v2232 = vshrl.u32 %v2231, 7
    %v2233 = vsub.s32 %v2230, %v2232
    %v2234 = vrot.slane %v2227, %v2233
    %v2235 = vcombine.low %v2226, %v2234
    %v2236 = vcombine.high %v2226, %v2234
    %v2238 = vunpack.c.l.s4 1934713408
    %v2239 = vunpack.c.0.s8 %v2238
    %v2240 = vlaneseq
    %v2241 = vshrl.u32 %v2240, 7
    %v2242 = vsub.s32 %v2239, %v2241
    %v2243 = vrot.slane %v2235, %v2242
    %v2245 = vunpack.c.l.s4 1934713408
    %v2246 = vunpack.c.0.s8 %v2245
    %v2247 = vlaneseq
    %v2248 = vshrl.u32 %v2247, 7
    %v2249 = vsub.s32 %v2246, %v2248
    %v2250 = vrot.slane %v2236, %v2249
    %v2251 = vcombine.high %v2243, 0
    %v2252 = vcombine.high %v2250, 0
    %v2255 = vpack.i.b16 %v2243, %v2209
    %v2257 = vshrl.u32 %v2209, 16
    %v2258 = vshrl.u32 %v2243, 16
    %v2259 = vpack.i.b16 %v2258, %v2257
    %v2263 = vpack.i.b16 %v2251, %v2217
    %v2265 = vshrl.u32 %v2217, 16
    %v2266 = vshrl.u32 %v2251, 16
    %v2267 = vpack.i.b16 %v2266, %v2265
    %v2271 = vpack.i.b16 %v2250, %v2216
    %v2273 = vshrl.u32 %v2216, 16
    %v2274 = vshrl.u32 %v2250, 16
    %v2275 = vpack.i.b16 %v2274, %v2273
    %v2279 = vpack.i.b16 %v2252, %v2218
    %v2281 = vshrl.u32 %v2218, 16
    %v2282 = vshrl.u32 %v2252, 16
    %v2283 = vpack.i.b16 %v2282, %v2281
    %2285 = vxpose.xlu0.c.b16.start [1/8] %v2255, 128
    %2286 = vxpose.xlu0.c.b16.cont [2/8] 0, 128
    %2287 = vxpose.xlu0.c.b16.cont [3/8] 0, 128
    %2288 = vxpose.xlu0.c.b16.cont [4/8] 0, 128
    %2289 = vxpose.xlu0.c.b16.cont [5/8] 0, 128
    %2290 = vxpose.xlu0.c.b16.cont [6/8] 0, 128
    %2291 = vxpose.xlu0.c.b16.cont [7/8] 0, 128
    %2292 = vxpose.xlu0.c.b16.end [8/8] 0, 128
    %v2293 = vpop.trf.xlu0
    %v2294 = vpop.trf.xlu0
    %v2295 = vpop.trf.xlu0
    %v2296 = vpop.trf.xlu0
    %v2297 = vpop.trf.xlu0
    %v2298 = vpop.trf.xlu0
    %v2299 = vpop.trf.xlu0
    %v2300 = vpop.trf.xlu0
    %2301 = vxpose.xlu0.c.b16.start [1/8] %v2259, 128
    %2302 = vxpose.xlu0.c.b16.cont [2/8] 0, 128
    %2303 = vxpose.xlu0.c.b16.cont [3/8] 0, 128
    %2304 = vxpose.xlu0.c.b16.cont [4/8] 0, 128
    %2305 = vxpose.xlu0.c.b16.cont [5/8] 0, 128
    %2306 = vxpose.xlu0.c.b16.cont [6/8] 0, 128
    %2307 = vxpose.xlu0.c.b16.cont [7/8] 0, 128
    %2308 = vxpose.xlu0.c.b16.end [8/8] 0, 128
    %v2309 = vpop.trf.xlu0
    %v2310 = vpop.trf.xlu0
    %v2311 = vpop.trf.xlu0
    %v2312 = vpop.trf.xlu0
    %v2313 = vpop.trf.xlu0
    %v2314 = vpop.trf.xlu0
    %v2315 = vpop.trf.xlu0
    %v2316 = vpop.trf.xlu0
    %2317 = vxpose.xlu0.c.b16.start [1/8] %v2263, 128
    %2318 = vxpose.xlu0.c.b16.cont [2/8] 0, 128
    %2319 = vxpose.xlu0.c.b16.cont [3/8] 0, 128
    %2320 = vxpose.xlu0.c.b16.cont [4/8] 0, 128
    %2321 = vxpose.xlu0.c.b16.cont [5/8] 0, 128
    %2322 = vxpose.xlu0.c.b16.cont [6/8] 0, 128
    %2323 = vxpose.xlu0.c.b16.cont [7/8] 0, 128
    %2324 = vxpose.xlu0.c.b16.end [8/8] 0, 128
    %v2325 = vpop.trf.xlu0
    %v2326 = vpop.trf.xlu0
    %v2327 = vpop.trf.xlu0
    %v2328 = vpop.trf.xlu0
    %v2329 = vpop.trf.xlu0
    %v2330 = vpop.trf.xlu0
    %v2331 = vpop.trf.xlu0
    %v2332 = vpop.trf.xlu0
    %2333 = vxpose.xlu0.c.b16.start [1/8] %v2267, 128
    %2334 = vxpose.xlu0.c.b16.cont [2/8] 0, 128
    %2335 = vxpose.xlu0.c.b16.cont [3/8] 0, 128
    %2336 = vxpose.xlu0.c.b16.cont [4/8] 0, 128
    %2337 = vxpose.xlu0.c.b16.cont [5/8] 0, 128
    %2338 = vxpose.xlu0.c.b16.cont [6/8] 0, 128
    %2339 = vxpose.xlu0.c.b16.cont [7/8] 0, 128
    %2340 = vxpose.xlu0.c.b16.end [8/8] 0, 128
    %v2341 = vpop.trf.xlu0
    %v2342 = vpop.trf.xlu0
    %v2343 = vpop.trf.xlu0
    %v2344 = vpop.trf.xlu0
    %v2345 = vpop.trf.xlu0
    %v2346 = vpop.trf.xlu0
    %v2347 = vpop.trf.xlu0
    %v2348 = vpop.trf.xlu0
    %2349 = vxpose.xlu0.c.b16.start [1/8] %v2271, 128
    %2350 = vxpose.xlu0.c.b16.cont [2/8] 0, 128
    %2351 = vxpose.xlu0.c.b16.cont [3/8] 0, 128
    %2352 = vxpose.xlu0.c.b16.cont [4/8] 0, 128
    %2353 = vxpose.xlu0.c.b16.cont [5/8] 0, 128
    %2354 = vxpose.xlu0.c.b16.cont [6/8] 0, 128
    %2355 = vxpose.xlu0.c.b16.cont [7/8] 0, 128
    %2356 = vxpose.xlu0.c.b16.end [8/8] 0, 128
    %v2357 = vpop.trf.xlu0
    %v2358 = vpop.trf.xlu0
    %v2359 = vpop.trf.xlu0
    %v2360 = vpop.trf.xlu0
    %v2361 = vpop.trf.xlu0
    %v2362 = vpop.trf.xlu0
    %v2363 = vpop.trf.xlu0
    %v2364 = vpop.trf.xlu0
    %2365 = vxpose.xlu0.c.b16.start [1/8] %v2275, 128
    %2366 = vxpose.xlu0.c.b16.cont [2/8] 0, 128
    %2367 = vxpose.xlu0.c.b16.cont [3/8] 0, 128
    %2368 = vxpose.xlu0.c.b16.cont [4/8] 0, 128
    %2369 = vxpose.xlu0.c.b16.cont [5/8] 0, 128
    %2370 = vxpose.xlu0.c.b16.cont [6/8] 0, 128
    %2371 = vxpose.xlu0.c.b16.cont [7/8] 0, 128
    %2372 = vxpose.xlu0.c.b16.end [8/8] 0, 128
    %v2373 = vpop.trf.xlu0
    %v2374 = vpop.trf.xlu0
    %v2375 = vpop.trf.xlu0
    %v2376 = vpop.trf.xlu0
    %v2377 = vpop.trf.xlu0
    %v2378 = vpop.trf.xlu0
    %v2379 = vpop.trf.xlu0
    %v2380 = vpop.trf.xlu0
    %2381 = vxpose.xlu0.c.b16.start [1/8] %v2279, 128
    %2382 = vxpose.xlu0.c.b16.cont [2/8] 0, 128
    %2383 = vxpose.xlu0.c.b16.cont [3/8] 0, 128
    %2384 = vxpose.xlu0.c.b16.cont [4/8] 0, 128
    %2385 = vxpose.xlu0.c.b16.cont [5/8] 0, 128
    %2386 = vxpose.xlu0.c.b16.cont [6/8] 0, 128
    %2387 = vxpose.xlu0.c.b16.cont [7/8] 0, 128
    %2388 = vxpose.xlu0.c.b16.end [8/8] 0, 128
    %v2389 = vpop.trf.xlu0
    %v2390 = vpop.trf.xlu0
    %v2391 = vpop.trf.xlu0
    %v2392 = vpop.trf.xlu0
    %v2393 = vpop.trf.xlu0
    %v2394 = vpop.trf.xlu0
    %v2395 = vpop.trf.xlu0
    %v2396 = vpop.trf.xlu0
    %2397 = vxpose.xlu0.c.b16.start [1/8] %v2283, 128
    %2398 = vxpose.xlu0.c.b16.cont [2/8] 0, 128
    %2399 = vxpose.xlu0.c.b16.cont [3/8] 0, 128
    %2400 = vxpose.xlu0.c.b16.cont [4/8] 0, 128
    %2401 = vxpose.xlu0.c.b16.cont [5/8] 0, 128
    %2402 = vxpose.xlu0.c.b16.cont [6/8] 0, 128
    %2403 = vxpose.xlu0.c.b16.cont [7/8] 0, 128
    %2404 = vxpose.xlu0.c.b16.end [8/8] 0, 128
    %v2405 = vpop.trf.xlu0
    %v2406 = vpop.trf.xlu0
    %v2407 = vpop.trf.xlu0
    %v2408 = vpop.trf.xlu0
    %v2409 = vpop.trf.xlu0
    %v2410 = vpop.trf.xlu0
    %v2411 = vpop.trf.xlu0
    %v2412 = vpop.trf.xlu0
    %v2413 = vcombine.low %v2293, %v2357
    %v2415 = vunpack.c.l.s4 1983009808
    %v2416 = vunpack.c.0.s8 %v2415
    %v2417 = vlaneseq
    %v2418 = vshrl.u32 %v2417, 7
    %v2419 = vsub.s32 %v2416, %v2418
    %v2420 = vrot.slane %v2413, %v2419
    %v2421 = vcombine.low %v2325, %v2389
    %v2423 = vunpack.c.l.s4 1983009808
    %v2424 = vunpack.c.0.s8 %v2423
    %v2425 = vlaneseq
    %v2426 = vshrl.u32 %v2425, 7
    %v2427 = vsub.s32 %v2424, %v2426
    %v2428 = vrot.slane %v2421, %v2427
    %v2429 = vcombine.low %v2420, %v2428
    %v2431 = vunpack.c.l.s4 1934713408
    %v2432 = vunpack.c.0.s8 %v2431
    %v2433 = vlaneseq
    %v2434 = vshrl.u32 %v2433, 7
    %v2435 = vsub.s32 %v2432, %v2434
    %v2436 = vrot.slane %v2429, %v2435
    %v2437 = vcombine.high %v2436, 0
    %v2438 = vcombine.low %v2309, %v2373
    %v2440 = vunpack.c.l.s4 1983009808
    %v2441 = vunpack.c.0.s8 %v2440
    %v2442 = vlaneseq
    %v2443 = vshrl.u32 %v2442, 7
    %v2444 = vsub.s32 %v2441, %v2443
    %v2445 = vrot.slane %v2438, %v2444
    %v2446 = vcombine.low %v2341, %v2405
    %v2448 = vunpack.c.l.s4 1983009808
    %v2449 = vunpack.c.0.s8 %v2448
    %v2450 = vlaneseq
    %v2451 = vshrl.u32 %v2450, 7
    %v2452 = vsub.s32 %v2449, %v2451
    %v2453 = vrot.slane %v2446, %v2452
    %v2454 = vcombine.low %v2445, %v2453
    %v2456 = vunpack.c.l.s4 1934713408
    %v2457 = vunpack.c.0.s8 %v2456
    %v2458 = vlaneseq
    %v2459 = vshrl.u32 %v2458, 7
    %v2460 = vsub.s32 %v2457, %v2459
    %v2461 = vrot.slane %v2454, %v2460
    %v2462 = vcombine.high %v2461, 0
    %v2465 = vpack.i.b16 %v2461, %v2436
    %v2466 = vshrl.u32 %v2436, 16
    %v2467 = vshrl.u32 %v2461, 16
    %v2468 = vpack.i.b16 %v2467, %v2466
    %v2471 = vpack.i.b16 %v2462, %v2437
    %v2472 = vshrl.u32 %v2437, 16
    %v2473 = vshrl.u32 %v2462, 16
    %v2474 = vpack.i.b16 %v2473, %v2472
    %v2476 = vsel %vm1152, %v2047, 0
    %v2479 = vsel %vm1156, %v2465, 0
    %2481 = vmatprep.subr.bf16.mxu0 0
    %2482 = vmatpush1.bf16.msra.mxu0 %v2479
    %2483 = vmatprep.subr.bf16.mxu0 0
    %2484 = vmatpush1.bf16.msra.mxu0 0
    %2485 = vmatprep.subr.bf16.mxu0 0
    %2486 = vmatpush1.bf16.msra.mxu0 0
    %2487 = vmatprep.subr.bf16.mxu0 0
    %2488 = vmatpush1.bf16.msra.mxu0 0
    %2489 = vmatprep.subr.bf16.mxu0 0
    %2490 = vmatpush1.bf16.msra.mxu0 0
    %2491 = vmatprep.subr.bf16.mxu0 0
    %2492 = vmatpush1.bf16.msra.mxu0 0
    %2493 = vmatprep.subr.bf16.mxu0 0
    %2494 = vmatpush1.bf16.msra.mxu0 0
    %2495 = vmatprep.subr.bf16.mxu0 0
    %2496 = vmatpush1.bf16.msra.mxu0 0
    %2497 = vmatprep.subr.bf16.mxu0 0
    %2498 = vmatpush1.bf16.msra.mxu0 0
    %2499 = vmatprep.subr.bf16.mxu0 0
    %2500 = vmatpush1.bf16.msra.mxu0 0
    %2501 = vmatprep.subr.bf16.mxu0 0
    %2502 = vmatpush1.bf16.msra.mxu0 0
    %2503 = vmatprep.subr.bf16.mxu0 0
    %2504 = vmatpush1.bf16.msra.mxu0 0
    %2505 = vmatprep.subr.bf16.mxu0 0
    %2506 = vmatpush1.bf16.msra.mxu0 0
    %2507 = vmatprep.subr.bf16.mxu0 0
    %2508 = vmatpush1.bf16.msra.mxu0 0
    %2509 = vmatprep.subr.bf16.mxu0 0
    %2510 = vmatpush1.bf16.msra.mxu0 0
    %2511 = vmatprep.subr.bf16.mxu0 0
    %2512 = vmatpush1.bf16.msra.mxu0 0
    %2513 = vmatprep.mubr.bf16.mxu0 0
    %2514 = vmatmul.mubr.bf16.gmra.mrb[0].mxu0 %v2476
    %v2515 = vpop.f32.mrb[0].mxu0
    %v2516 = vadd.f32 0.0, %v2515
    %v2517 = vpop.f32.mrb[0].mxu0
    %v2518 = vpop.f32.mrb[0].mxu0
    %v2519 = vpop.f32.mrb[0].mxu0
    %2520 = vdwg.mxu0
    %v2522 = vsel %vm1152, %v2050, 0
    %v2525 = vsel %vm1156, %v2468, 0
    %2527 = vmatprep.subr.bf16.mxu0 0
    %2528 = vmatpush1.bf16.msra.mxu0 %v2525
    %2529 = vmatprep.subr.bf16.mxu0 0
    %2530 = vmatpush1.bf16.msra.mxu0 0
    %2531 = vmatprep.subr.bf16.mxu0 0
    %2532 = vmatpush1.bf16.msra.mxu0 0
    %2533 = vmatprep.subr.bf16.mxu0 0
    %2534 = vmatpush1.bf16.msra.mxu0 0
    %2535 = vmatprep.subr.bf16.mxu0 0
    %2536 = vmatpush1.bf16.msra.mxu0 0
    %2537 = vmatprep.subr.bf16.mxu0 0
    %2538 = vmatpush1.bf16.msra.mxu0 0
    %2539 = vmatprep.subr.bf16.mxu0 0
    %2540 = vmatpush1.bf16.msra.mxu0 0
    %2541 = vmatprep.subr.bf16.mxu0 0
    %2542 = vmatpush1.bf16.msra.mxu0 0
    %2543 = vmatprep.subr.bf16.mxu0 0
    %2544 = vmatpush1.bf16.msra.mxu0 0
    %2545 = vmatprep.subr.bf16.mxu0 0
    %2546 = vmatpush1.bf16.msra.mxu0 0
    %2547 = vmatprep.subr.bf16.mxu0 0
    %2548 = vmatpush1.bf16.msra.mxu0 0
    %2549 = vmatprep.subr.bf16.mxu0 0
    %2550 = vmatpush1.bf16.msra.mxu0 0
    %2551 = vmatprep.subr.bf16.mxu0 0
    %2552 = vmatpush1.bf16.msra.mxu0 0
    %2553 = vmatprep.subr.bf16.mxu0 0
    %2554 = vmatpush1.bf16.msra.mxu0 0
    %2555 = vmatprep.subr.bf16.mxu0 0
    %2556 = vmatpush1.bf16.msra.mxu0 0
    %2557 = vmatprep.subr.bf16.mxu0 0
    %2558 = vmatpush1.bf16.msra.mxu0 0
    %2559 = vmatprep.mubr.bf16.mxu0 0
    %2560 = vmatmul.mubr.bf16.gmra.mrb[0].mxu0 %v2522
    %v2561 = vpop.f32.mrb[0].mxu0
    %v2562 = vadd.f32 0.0, %v2561
    %v2563 = vpop.f32.mrb[0].mxu0
    %v2564 = vpop.f32.mrb[0].mxu0
    %v2565 = vpop.f32.mrb[0].mxu0
    %2566 = vdwg.mxu0
    %v2568 = vsel %vm1152, %v2053, 0
    %v2571 = vsel %vm1156, %v2471, 0
    %2573 = vmatprep.subr.bf16.mxu0 0
    %2574 = vmatpush1.bf16.msra.mxu0 %v2571
    %2575 = vmatprep.subr.bf16.mxu0 0
    %2576 = vmatpush1.bf16.msra.mxu0 0
    %2577 = vmatprep.subr.bf16.mxu0 0
    %2578 = vmatpush1.bf16.msra.mxu0 0
    %2579 = vmatprep.subr.bf16.mxu0 0
    %2580 = vmatpush1.bf16.msra.mxu0 0
    %2581 = vmatprep.subr.bf16.mxu0 0
    %2582 = vmatpush1.bf16.msra.mxu0 0
    %2583 = vmatprep.subr.bf16.mxu0 0
    %2584 = vmatpush1.bf16.msra.mxu0 0
    %2585 = vmatprep.subr.bf16.mxu0 0
    %2586 = vmatpush1.bf16.msra.mxu0 0
    %2587 = vmatprep.subr.bf16.mxu0 0
    %2588 = vmatpush1.bf16.msra.mxu0 0
    %2589 = vmatprep.subr.bf16.mxu0 0
    %2590 = vmatpush1.bf16.msra.mxu0 0
    %2591 = vmatprep.subr.bf16.mxu0 0
    %2592 = vmatpush1.bf16.msra.mxu0 0
    %2593 = vmatprep.subr.bf16.mxu0 0
    %2594 = vmatpush1.bf16.msra.mxu0 0
    %2595 = vmatprep.subr.bf16.mxu0 0
    %2596 = vmatpush1.bf16.msra.mxu0 0
    %2597 = vmatprep.subr.bf16.mxu0 0
    %2598 = vmatpush1.bf16.msra.mxu0 0
    %2599 = vmatprep.subr.bf16.mxu0 0
    %2600 = vmatpush1.bf16.msra.mxu0 0
    %2601 = vmatprep.subr.bf16.mxu0 0
    %2602 = vmatpush1.bf16.msra.mxu0 0
    %2603 = vmatprep.subr.bf16.mxu0 0
    %2604 = vmatpush1.bf16.msra.mxu0 0
    %2605 = vmatprep.mubr.bf16.mxu0 0
    %2606 = vmatmul.mubr.bf16.gmra.mrb[0].mxu0 %v2568
    %v2607 = vpop.f32.mrb[0].mxu0
    %v2608 = vadd.f32 0.0, %v2607
    %v2609 = vpop.f32.mrb[0].mxu0
    %v2610 = vpop.f32.mrb[0].mxu0
    %v2611 = vpop.f32.mrb[0].mxu0
    %2612 = vdwg.mxu0
    %v2614 = vsel %vm1152, %v2056, 0
    %v2617 = vsel %vm1156, %v2474, 0
    %2619 = vmatprep.subr.bf16.mxu0 0
    %2620 = vmatpush1.bf16.msra.mxu0 %v2617
    %2621 = vmatprep.subr.bf16.mxu0 0
    %2622 = vmatpush1.bf16.msra.mxu0 0
    %2623 = vmatprep.subr.bf16.mxu0 0
    %2624 = vmatpush1.bf16.msra.mxu0 0
    %2625 = vmatprep.subr.bf16.mxu0 0
    %2626 = vmatpush1.bf16.msra.mxu0 0
    %2627 = vmatprep.subr.bf16.mxu0 0
    %2628 = vmatpush1.bf16.msra.mxu0 0
    %2629 = vmatprep.subr.bf16.mxu0 0
    %2630 = vmatpush1.bf16.msra.mxu0 0
    %2631 = vmatprep.subr.bf16.mxu0 0
    %2632 = vmatpush1.bf16.msra.mxu0 0
    %2633 = vmatprep.subr.bf16.mxu0 0
    %2634 = vmatpush1.bf16.msra.mxu0 0
    %2635 = vmatprep.subr.bf16.mxu0 0
    %2636 = vmatpush1.bf16.msra.mxu0 0
    %2637 = vmatprep.subr.bf16.mxu0 0
    %2638 = vmatpush1.bf16.msra.mxu0 0
    %2639 = vmatprep.subr.bf16.mxu0 0
    %2640 = vmatpush1.bf16.msra.mxu0 0
    %2641 = vmatprep.subr.bf16.mxu0 0
    %2642 = vmatpush1.bf16.msra.mxu0 0
    %2643 = vmatprep.subr.bf16.mxu0 0
    %2644 = vmatpush1.bf16.msra.mxu0 0
    %2645 = vmatprep.subr.bf16.mxu0 0
    %2646 = vmatpush1.bf16.msra.mxu0 0
    %2647 = vmatprep.subr.bf16.mxu0 0
    %2648 = vmatpush1.bf16.msra.mxu0 0
    %2649 = vmatprep.subr.bf16.mxu0 0
    %2650 = vmatpush1.bf16.msra.mxu0 0
    %2651 = vmatprep.mubr.bf16.mxu0 0
    %2652 = vmatmul.mubr.bf16.gmra.mrb[0].mxu0 %v2614
    %v2653 = vpop.f32.mrb[0].mxu0
    %v2654 = vadd.f32 0.0, %v2653
    %v2655 = vpop.f32.mrb[0].mxu0
    %v2656 = vpop.f32.mrb[0].mxu0
    %v2657 = vpop.f32.mrb[0].mxu0
    %2658 = vdwg.mxu0
    %2659 = vxpose.xlu0.b32.start [1/16] %v2516, 128
    %2660 = vxpose.xlu0.b32.cont [2/16] 0.0, 128
    %2661 = vxpose.xlu0.b32.cont [3/16] 0.0, 128
    %2662 = vxpose.xlu0.b32.cont [4/16] 0.0, 128
    %2663 = vxpose.xlu0.b32.cont [5/16] 0.0, 128
    %2664 = vxpose.xlu0.b32.cont [6/16] 0.0, 128
    %2665 = vxpose.xlu0.b32.cont [7/16] 0.0, 128
    %2666 = vxpose.xlu0.b32.cont [8/16] 0.0, 128
    %2667 = vxpose.xlu0.b32.cont [9/16] 0.0, 128
    %2668 = vxpose.xlu0.b32.cont [10/16] 0.0, 128
    %2669 = vxpose.xlu0.b32.cont [11/16] 0.0, 128
    %2670 = vxpose.xlu0.b32.cont [12/16] 0.0, 128
    %2671 = vxpose.xlu0.b32.cont [13/16] 0.0, 128
    %2672 = vxpose.xlu0.b32.cont [14/16] 0.0, 128
    %2673 = vxpose.xlu0.b32.cont [15/16] 0.0, 128
    %2674 = vxpose.xlu0.b32.end [16/16] 0.0, 128
    %v2675 = vpop.trf.xlu0
    %v2676 = vpop.trf.xlu0
    %v2677 = vpop.trf.xlu0
    %v2678 = vpop.trf.xlu0
    %v2679 = vpop.trf.xlu0
    %v2680 = vpop.trf.xlu0
    %v2681 = vpop.trf.xlu0
    %v2682 = vpop.trf.xlu0
    %v2683 = vpop.trf.xlu0
    %v2684 = vpop.trf.xlu0
    %v2685 = vpop.trf.xlu0
    %v2686 = vpop.trf.xlu0
    %v2687 = vpop.trf.xlu0
    %v2688 = vpop.trf.xlu0
    %v2689 = vpop.trf.xlu0
    %v2690 = vpop.trf.xlu0
    %2691 = vxpose.xlu0.b32.start [1/16] %v2562, 128
    %2692 = vxpose.xlu0.b32.cont [2/16] 0.0, 128
    %2693 = vxpose.xlu0.b32.cont [3/16] 0.0, 128
    %2694 = vxpose.xlu0.b32.cont [4/16] 0.0, 128
    %2695 = vxpose.xlu0.b32.cont [5/16] 0.0, 128
    %2696 = vxpose.xlu0.b32.cont [6/16] 0.0, 128
    %2697 = vxpose.xlu0.b32.cont [7/16] 0.0, 128
    %2698 = vxpose.xlu0.b32.cont [8/16] 0.0, 128
    %2699 = vxpose.xlu0.b32.cont [9/16] 0.0, 128
    %2700 = vxpose.xlu0.b32.cont [10/16] 0.0, 128
    %2701 = vxpose.xlu0.b32.cont [11/16] 0.0, 128
    %2702 = vxpose.xlu0.b32.cont [12/16] 0.0, 128
    %2703 = vxpose.xlu0.b32.cont [13/16] 0.0, 128
    %2704 = vxpose.xlu0.b32.cont [14/16] 0.0, 128
    %2705 = vxpose.xlu0.b32.cont [15/16] 0.0, 128
    %2706 = vxpose.xlu0.b32.end [16/16] 0.0, 128
    %v2707 = vpop.trf.xlu0
    %v2708 = vpop.trf.xlu0
    %v2709 = vpop.trf.xlu0
    %v2710 = vpop.trf.xlu0
    %v2711 = vpop.trf.xlu0
    %v2712 = vpop.trf.xlu0
    %v2713 = vpop.trf.xlu0
    %v2714 = vpop.trf.xlu0
    %v2715 = vpop.trf.xlu0
    %v2716 = vpop.trf.xlu0
    %v2717 = vpop.trf.xlu0
    %v2718 = vpop.trf.xlu0
    %v2719 = vpop.trf.xlu0
    %v2720 = vpop.trf.xlu0
    %v2721 = vpop.trf.xlu0
    %v2722 = vpop.trf.xlu0
    %2723 = vxpose.xlu0.b32.start [1/16] %v2608, 128
    %2724 = vxpose.xlu0.b32.cont [2/16] 0.0, 128
    %2725 = vxpose.xlu0.b32.cont [3/16] 0.0, 128
    %2726 = vxpose.xlu0.b32.cont [4/16] 0.0, 128
    %2727 = vxpose.xlu0.b32.cont [5/16] 0.0, 128
    %2728 = vxpose.xlu0.b32.cont [6/16] 0.0, 128
    %2729 = vxpose.xlu0.b32.cont [7/16] 0.0, 128
    %2730 = vxpose.xlu0.b32.cont [8/16] 0.0, 128
    %2731 = vxpose.xlu0.b32.cont [9/16] 0.0, 128
    %2732 = vxpose.xlu0.b32.cont [10/16] 0.0, 128
    %2733 = vxpose.xlu0.b32.cont [11/16] 0.0, 128
    %2734 = vxpose.xlu0.b32.cont [12/16] 0.0, 128
    %2735 = vxpose.xlu0.b32.cont [13/16] 0.0, 128
    %2736 = vxpose.xlu0.b32.cont [14/16] 0.0, 128
    %2737 = vxpose.xlu0.b32.cont [15/16] 0.0, 128
    %2738 = vxpose.xlu0.b32.end [16/16] 0.0, 128
    %v2739 = vpop.trf.xlu0
    %v2740 = vpop.trf.xlu0
    %v2741 = vpop.trf.xlu0
    %v2742 = vpop.trf.xlu0
    %v2743 = vpop.trf.xlu0
    %v2744 = vpop.trf.xlu0
    %v2745 = vpop.trf.xlu0
    %v2746 = vpop.trf.xlu0
    %v2747 = vpop.trf.xlu0
    %v2748 = vpop.trf.xlu0
    %v2749 = vpop.trf.xlu0
    %v2750 = vpop.trf.xlu0
    %v2751 = vpop.trf.xlu0
    %v2752 = vpop.trf.xlu0
    %v2753 = vpop.trf.xlu0
    %v2754 = vpop.trf.xlu0
    %2755 = vxpose.xlu0.b32.start [1/16] %v2654, 128
    %2756 = vxpose.xlu0.b32.cont [2/16] 0.0, 128
    %2757 = vxpose.xlu0.b32.cont [3/16] 0.0, 128
    %2758 = vxpose.xlu0.b32.cont [4/16] 0.0, 128
    %2759 = vxpose.xlu0.b32.cont [5/16] 0.0, 128
    %2760 = vxpose.xlu0.b32.cont [6/16] 0.0, 128
    %2761 = vxpose.xlu0.b32.cont [7/16] 0.0, 128
    %2762 = vxpose.xlu0.b32.cont [8/16] 0.0, 128
    %2763 = vxpose.xlu0.b32.cont [9/16] 0.0, 128
    %2764 = vxpose.xlu0.b32.cont [10/16] 0.0, 128
    %2765 = vxpose.xlu0.b32.cont [11/16] 0.0, 128
    %2766 = vxpose.xlu0.b32.cont [12/16] 0.0, 128
    %2767 = vxpose.xlu0.b32.cont [13/16] 0.0, 128
    %2768 = vxpose.xlu0.b32.cont [14/16] 0.0, 128
    %2769 = vxpose.xlu0.b32.cont [15/16] 0.0, 128
    %2770 = vxpose.xlu0.b32.end [16/16] 0.0, 128
    %v2771 = vpop.trf.xlu0
    %v2772 = vpop.trf.xlu0
    %v2773 = vpop.trf.xlu0
    %v2774 = vpop.trf.xlu0
    %v2775 = vpop.trf.xlu0
    %v2776 = vpop.trf.xlu0
    %v2777 = vpop.trf.xlu0
    %v2778 = vpop.trf.xlu0
    %v2779 = vpop.trf.xlu0
    %v2780 = vpop.trf.xlu0
    %v2781 = vpop.trf.xlu0
    %v2782 = vpop.trf.xlu0
    %v2783 = vpop.trf.xlu0
    %v2784 = vpop.trf.xlu0
    %v2785 = vpop.trf.xlu0
    %v2786 = vpop.trf.xlu0
    %v2787 = vcombine.low %v2675, %v2739
    %v2788 = vcombine.high %v2675, %v2739
    %v2790 = vunpack.c.l.s4 1983009808
    %v2791 = vunpack.c.0.s8 %v2790
    %v2792 = vlaneseq
    %v2793 = vshrl.u32 %v2792, 7
    %v2794 = vsub.s32 %v2791, %v2793
    %v2795 = vrot.slane %v2787, %v2794
    %v2797 = vunpack.c.l.s4 1983009808
    %v2798 = vunpack.c.0.s8 %v2797
    %v2799 = vlaneseq
    %v2800 = vshrl.u32 %v2799, 7
    %v2801 = vsub.s32 %v2798, %v2800
    %v2802 = vrot.slane %v2788, %v2801
    %v2803 = vcombine.low %v2707, %v2771
    %v2804 = vcombine.high %v2707, %v2771
    %v2806 = vunpack.c.l.s4 1983009808
    %v2807 = vunpack.c.0.s8 %v2806
    %v2808 = vlaneseq
    %v2809 = vshrl.u32 %v2808, 7
    %v2810 = vsub.s32 %v2807, %v2809
    %v2811 = vrot.slane %v2803, %v2810
    %v2813 = vunpack.c.l.s4 1983009808
    %v2814 = vunpack.c.0.s8 %v2813
    %v2815 = vlaneseq
    %v2816 = vshrl.u32 %v2815, 7
    %v2817 = vsub.s32 %v2814, %v2816
    %v2818 = vrot.slane %v2804, %v2817
    %v2819 = vcombine.low %v2795, %v2811
    %v2820 = vcombine.high %v2795, %v2811
    %v2822 = vunpack.c.l.s4 1934713408
    %v2823 = vunpack.c.0.s8 %v2822
    %v2824 = vlaneseq
    %v2825 = vshrl.u32 %v2824, 7
    %v2826 = vsub.s32 %v2823, %v2825
    %v2827 = vrot.slane %v2819, %v2826
    %v2829 = vunpack.c.l.s4 1934713408
    %v2830 = vunpack.c.0.s8 %v2829
    %v2831 = vlaneseq
    %v2832 = vshrl.u32 %v2831, 7
    %v2833 = vsub.s32 %v2830, %v2832
    %v2834 = vrot.slane %v2820, %v2833
    %v2835 = vcombine.low %v2802, %v2818
    %v2836 = vcombine.high %v2802, %v2818
    %v2838 = vunpack.c.l.s4 1934713408
    %v2839 = vunpack.c.0.s8 %v2838
    %v2840 = vlaneseq
    %v2841 = vshrl.u32 %v2840, 7
    %v2842 = vsub.s32 %v2839, %v2841
    %v2843 = vrot.slane %v2835, %v2842
    %v2845 = vunpack.c.l.s4 1934713408
    %v2846 = vunpack.c.0.s8 %v2845
    %v2847 = vlaneseq
    %v2848 = vshrl.u32 %v2847, 7
    %v2849 = vsub.s32 %v2846, %v2848
    %v2850 = vrot.slane %v2836, %v2849
    %v2851 = vcombine.high %v2827, 0.0
    %v2852 = vcombine.high %v2834, 0.0
    %v2853 = vcombine.high %v2843, 0.0
    %v2854 = vcombine.high %v2850, 0.0
    %v2855 = vcombine.low %v1615, %v1617
    %v2857 = vunpack.c.l.s4 1983009808
    %v2858 = vunpack.c.0.s8 %v2857
    %v2859 = vlaneseq
    %v2860 = vshrl.u32 %v2859, 7
    %v2861 = vsub.s32 %v2858, %v2860
    %v2862 = vrot.slane %v2855, %v2861
    %v2863 = vcombine.low %v1616, %v1618
    %v2865 = vunpack.c.l.s4 1983009808
    %v2866 = vunpack.c.0.s8 %v2865
    %v2867 = vlaneseq
    %v2868 = vshrl.u32 %v2867, 7
    %v2869 = vsub.s32 %v2866, %v2868
    %v2870 = vrot.slane %v2863, %v2869
    %v2871 = vcombine.low %v1619, %v1621
    %v2873 = vunpack.c.l.s4 1983009808
    %v2874 = vunpack.c.0.s8 %v2873
    %v2875 = vlaneseq
    %v2876 = vshrl.u32 %v2875, 7
    %v2877 = vsub.s32 %v2874, %v2876
    %v2878 = vrot.slane %v2871, %v2877
    %v2879 = vcombine.low %v1620, %v1622
    %v2881 = vunpack.c.l.s4 1983009808
    %v2882 = vunpack.c.0.s8 %v2881
    %v2883 = vlaneseq
    %v2884 = vshrl.u32 %v2883, 7
    %v2885 = vsub.s32 %v2882, %v2884
    %v2886 = vrot.slane %v2879, %v2885
    %v2887 = vcombine.low %v2862, %v2870
    %v2888 = vcombine.high %v2862, %v2870
    %v2890 = vunpack.c.l.s4 1934713408
    %v2891 = vunpack.c.0.s8 %v2890
    %v2892 = vlaneseq
    %v2893 = vshrl.u32 %v2892, 7
    %v2894 = vsub.s32 %v2891, %v2893
    %v2895 = vrot.slane %v2887, %v2894
    %v2897 = vunpack.c.l.s4 1934713408
    %v2898 = vunpack.c.0.s8 %v2897
    %v2899 = vlaneseq
    %v2900 = vshrl.u32 %v2899, 7
    %v2901 = vsub.s32 %v2898, %v2900
    %v2902 = vrot.slane %v2888, %v2901
    %v2903 = vcombine.low %v2878, %v2886
    %v2904 = vcombine.high %v2878, %v2886
    %v2906 = vunpack.c.l.s4 1934713408
    %v2907 = vunpack.c.0.s8 %v2906
    %v2908 = vlaneseq
    %v2909 = vshrl.u32 %v2908, 7
    %v2910 = vsub.s32 %v2907, %v2909
    %v2911 = vrot.slane %v2903, %v2910
    %v2913 = vunpack.c.l.s4 1934713408
    %v2914 = vunpack.c.0.s8 %v2913
    %v2915 = vlaneseq
    %v2916 = vshrl.u32 %v2915, 7
    %v2917 = vsub.s32 %v2914, %v2916
    %v2918 = vrot.slane %v2904, %v2917
    %v2919 = vcombine.low %v2895, %v2911
    %v2920 = vcombine.high %v2895, %v2911
    %v2921 = vcombine.low %v2902, %v2918
    %v2922 = vcombine.high %v2902, %v2918
    %2924 = vrot.lane.b32.xlu0 %v2920, 8
    %v2925 = vpop.permute.xlu0 %2924
    %2928 = vrot.lane.b32.xlu0 %v2921, 16
    %v2929 = vpop.permute.xlu0 %2928
    %2932 = vrot.lane.b32.xlu0 %v2922, 24
    %v2933 = vpop.permute.xlu0 %2932
    %v2935 = vsel %vm1152, %v2919, %v2925
    %vm2936 = vcmask 130048
    %v2937 = vsel %vm2936, %v2935, %v2929
    %vm2938 = vcmask 195584
    %v2939 = vsel %vm2938, %v2937, %v2933
    %2940 = vst.msk [vmem:[#allocation12] sm:$0xff] %vm135, %v2939
    %v2941 = vcombine.low %v2827, %v2834
    %v2943 = vunpack.c.l.s4 1983009808
    %v2944 = vunpack.c.0.s8 %v2943
    %v2945 = vlaneseq
    %v2946 = vshrl.u32 %v2945, 7
    %v2947 = vsub.s32 %v2944, %v2946
    %v2948 = vrot.slane %v2941, %v2947
    %v2949 = vcombine.low %v2851, %v2852
    %v2951 = vunpack.c.l.s4 1983009808
    %v2952 = vunpack.c.0.s8 %v2951
    %v2953 = vlaneseq
    %v2954 = vshrl.u32 %v2953, 7
    %v2955 = vsub.s32 %v2952, %v2954
    %v2956 = vrot.slane %v2949, %v2955
    %v2957 = vcombine.low %v2843, %v2850
    %v2959 = vunpack.c.l.s4 1983009808
    %v2960 = vunpack.c.0.s8 %v2959
    %v2961 = vlaneseq
    %v2962 = vshrl.u32 %v2961, 7
    %v2963 = vsub.s32 %v2960, %v2962
    %v2964 = vrot.slane %v2957, %v2963
    %v2965 = vcombine.low %v2853, %v2854
    %v2967 = vunpack.c.l.s4 1983009808
    %v2968 = vunpack.c.0.s8 %v2967
    %v2969 = vlaneseq
    %v2970 = vshrl.u32 %v2969, 7
    %v2971 = vsub.s32 %v2968, %v2970
    %v2972 = vrot.slane %v2965, %v2971
    %v2973 = vcombine.low %v2948, %v2956
    %v2974 = vcombine.high %v2948, %v2956
    %v2976 = vunpack.c.l.s4 1934713408
    %v2977 = vunpack.c.0.s8 %v2976
    %v2978 = vlaneseq
    %v2979 = vshrl.u32 %v2978, 7
    %v2980 = vsub.s32 %v2977, %v2979
    %v2981 = vrot.slane %v2973, %v2980
    %v2983 = vunpack.c.l.s4 1934713408
    %v2984 = vunpack.c.0.s8 %v2983
    %v2985 = vlaneseq
    %v2986 = vshrl.u32 %v2985, 7
    %v2987 = vsub.s32 %v2984, %v2986
    %v2988 = vrot.slane %v2974, %v2987
    %v2989 = vcombine.low %v2964, %v2972
    %v2990 = vcombine.high %v2964, %v2972
    %v2992 = vunpack.c.l.s4 1934713408
    %v2993 = vunpack.c.0.s8 %v2992
    %v2994 = vlaneseq
    %v2995 = vshrl.u32 %v2994, 7
    %v2996 = vsub.s32 %v2993, %v2995
    %v2997 = vrot.slane %v2989, %v2996
    %v2999 = vunpack.c.l.s4 1934713408
    %v3000 = vunpack.c.0.s8 %v2999
    %v3001 = vlaneseq
    %v3002 = vshrl.u32 %v3001, 7
    %v3003 = vsub.s32 %v3000, %v3002
    %v3004 = vrot.slane %v2990, %v3003
    %v3005 = vcombine.low %v2981, %v2997
    %v3006 = vcombine.high %v2981, %v2997
    %v3007 = vcombine.low %v2988, %v3004
    %v3008 = vcombine.high %v2988, %v3004
    %3010 = vrot.lane.b32.xlu0 %v3006, 8
    %v3011 = vpop.permute.xlu0 %3010
    %3014 = vrot.lane.b32.xlu0 %v3007, 16
    %v3015 = vpop.permute.xlu0 %3014
    %3018 = vrot.lane.b32.xlu0 %v3008, 24
    %v3019 = vpop.permute.xlu0 %3018
    %v3021 = vsel %vm1152, %v3005, %v3011
    %v3022 = vsel %vm2936, %v3021, %v3015
    %v3023 = vsel %vm2938, %v3022, %v3019
    %v3024 = vpack.c.bf16 %v308, %v308
    %v3025 = vpack.c.bf16 %v332, %v332
    %v3026 = vpack.c.bf16 %v315, %v315
    %v3027 = vpack.c.bf16 %v333, %v333
    %v3028 = vpack.c.bf16 %v324, %v324
    %v3029 = vpack.c.bf16 %v334, %v334
    %v3030 = vpack.c.bf16 %v331, %v331
    %v3031 = vpack.c.bf16 %v335, %v335
    %v3032 = vpack.c.bf16 %v468, %v468
    %v3033 = vpack.c.bf16 %v492, %v492
    %v3034 = vpack.c.bf16 %v475, %v475
    %v3035 = vpack.c.bf16 %v493, %v493
    %v3036 = vpack.c.bf16 %v484, %v484
    %v3037 = vpack.c.bf16 %v494, %v494
    %v3038 = vpack.c.bf16 %v491, %v491
    %v3039 = vpack.c.bf16 %v495, %v495
    %v3040 = vcombine.low %v3032, %v3036
    %v3042 = vunpack.c.l.s4 1983009808
    %v3043 = vunpack.c.0.s8 %v3042
    %v3044 = vlaneseq
    %v3045 = vshrl.u32 %v3044, 7
    %v3046 = vsub.s32 %v3043, %v3045
    %v3047 = vrot.slane %v3040, %v3046
    %v3048 = vcombine.low %v3034, %v3038
    %v3050 = vunpack.c.l.s4 1983009808
    %v3051 = vunpack.c.0.s8 %v3050
    %v3052 = vlaneseq
    %v3053 = vshrl.u32 %v3052, 7
    %v3054 = vsub.s32 %v3051, %v3053
    %v3055 = vrot.slane %v3048, %v3054
    %v3056 = vcombine.low %v3047, %v3055
    %v3058 = vunpack.c.l.s4 1934713408
    %v3059 = vunpack.c.0.s8 %v3058
    %v3060 = vlaneseq
    %v3061 = vshrl.u32 %v3060, 7
    %v3062 = vsub.s32 %v3059, %v3061
    %v3063 = vrot.slane %v3056, %v3062
    %v3064 = vcombine.high %v3063, 0
    %v3065 = vcombine.low %v3033, %v3037
    %v3067 = vunpack.c.l.s4 1983009808
    %v3068 = vunpack.c.0.s8 %v3067
    %v3069 = vlaneseq
    %v3070 = vshrl.u32 %v3069, 7
    %v3071 = vsub.s32 %v3068, %v3070
    %v3072 = vrot.slane %v3065, %v3071
    %v3073 = vcombine.low %v3035, %v3039
    %v3075 = vunpack.c.l.s4 1983009808
    %v3076 = vunpack.c.0.s8 %v3075
    %v3077 = vlaneseq
    %v3078 = vshrl.u32 %v3077, 7
    %v3079 = vsub.s32 %v3076, %v3078
    %v3080 = vrot.slane %v3073, %v3079
    %v3081 = vcombine.low %v3072, %v3080
    %v3083 = vunpack.c.l.s4 1934713408
    %v3084 = vunpack.c.0.s8 %v3083
    %v3085 = vlaneseq
    %v3086 = vshrl.u32 %v3085, 7
    %v3087 = vsub.s32 %v3084, %v3086
    %v3088 = vrot.slane %v3081, %v3087
    %v3089 = vcombine.high %v3088, 0
    %v3092 = vpack.i.b16 %v3088, %v3063
    %v3093 = vshrl.u32 %v3063, 16
    %v3094 = vshrl.u32 %v3088, 16
    %v3095 = vpack.i.b16 %v3094, %v3093
    %v3098 = vpack.i.b16 %v3089, %v3064
    %v3099 = vshrl.u32 %v3064, 16
    %v3100 = vshrl.u32 %v3089, 16
    %v3101 = vpack.i.b16 %v3100, %v3099
    %3102 = vxpose.xlu0.c.b16.start [1/8] %v3024, 128
    %3103 = vxpose.xlu0.c.b16.cont [2/8] 0, 128
    %3104 = vxpose.xlu0.c.b16.cont [3/8] 0, 128
    %3105 = vxpose.xlu0.c.b16.cont [4/8] 0, 128
    %3106 = vxpose.xlu0.c.b16.cont [5/8] 0, 128
    %3107 = vxpose.xlu0.c.b16.cont [6/8] 0, 128
    %3108 = vxpose.xlu0.c.b16.cont [7/8] 0, 128
    %3109 = vxpose.xlu0.c.b16.end [8/8] 0, 128
    %v3110 = vpop.trf.xlu0
    %v3111 = vpop.trf.xlu0
    %v3112 = vpop.trf.xlu0
    %v3113 = vpop.trf.xlu0
    %v3114 = vpop.trf.xlu0
    %v3115 = vpop.trf.xlu0
    %v3116 = vpop.trf.xlu0
    %v3117 = vpop.trf.xlu0
    %3118 = vxpose.xlu0.c.b16.start [1/8] %v3025, 128
    %3119 = vxpose.xlu0.c.b16.cont [2/8] 0, 128
    %3120 = vxpose.xlu0.c.b16.cont [3/8] 0, 128
    %3121 = vxpose.xlu0.c.b16.cont [4/8] 0, 128
    %3122 = vxpose.xlu0.c.b16.cont [5/8] 0, 128
    %3123 = vxpose.xlu0.c.b16.cont [6/8] 0, 128
    %3124 = vxpose.xlu0.c.b16.cont [7/8] 0, 128
    %3125 = vxpose.xlu0.c.b16.end [8/8] 0, 128
    %v3126 = vpop.trf.xlu0
    %v3127 = vpop.trf.xlu0
    %v3128 = vpop.trf.xlu0
    %v3129 = vpop.trf.xlu0
    %v3130 = vpop.trf.xlu0
    %v3131 = vpop.trf.xlu0
    %v3132 = vpop.trf.xlu0
    %v3133 = vpop.trf.xlu0
    %3134 = vxpose.xlu0.c.b16.start [1/8] %v3026, 128
    %3135 = vxpose.xlu0.c.b16.cont [2/8] 0, 128
    %3136 = vxpose.xlu0.c.b16.cont [3/8] 0, 128
    %3137 = vxpose.xlu0.c.b16.cont [4/8] 0, 128
    %3138 = vxpose.xlu0.c.b16.cont [5/8] 0, 128
    %3139 = vxpose.xlu0.c.b16.cont [6/8] 0, 128
    %3140 = vxpose.xlu0.c.b16.cont [7/8] 0, 128
    %3141 = vxpose.xlu0.c.b16.end [8/8] 0, 128
    %v3142 = vpop.trf.xlu0
    %v3143 = vpop.trf.xlu0
    %v3144 = vpop.trf.xlu0
    %v3145 = vpop.trf.xlu0
    %v3146 = vpop.trf.xlu0
    %v3147 = vpop.trf.xlu0
    %v3148 = vpop.trf.xlu0
    %v3149 = vpop.trf.xlu0
    %3150 = vxpose.xlu0.c.b16.start [1/8] %v3027, 128
    %3151 = vxpose.xlu0.c.b16.cont [2/8] 0, 128
    %3152 = vxpose.xlu0.c.b16.cont [3/8] 0, 128
    %3153 = vxpose.xlu0.c.b16.cont [4/8] 0, 128
    %3154 = vxpose.xlu0.c.b16.cont [5/8] 0, 128
    %3155 = vxpose.xlu0.c.b16.cont [6/8] 0, 128
    %3156 = vxpose.xlu0.c.b16.cont [7/8] 0, 128
    %3157 = vxpose.xlu0.c.b16.end [8/8] 0, 128
    %v3158 = vpop.trf.xlu0
    %v3159 = vpop.trf.xlu0
    %v3160 = vpop.trf.xlu0
    %v3161 = vpop.trf.xlu0
    %v3162 = vpop.trf.xlu0
    %v3163 = vpop.trf.xlu0
    %v3164 = vpop.trf.xlu0
    %v3165 = vpop.trf.xlu0
    %3166 = vxpose.xlu0.c.b16.start [1/8] %v3028, 128
    %3167 = vxpose.xlu0.c.b16.cont [2/8] 0, 128
    %3168 = vxpose.xlu0.c.b16.cont [3/8] 0, 128
    %3169 = vxpose.xlu0.c.b16.cont [4/8] 0, 128
    %3170 = vxpose.xlu0.c.b16.cont [5/8] 0, 128
    %3171 = vxpose.xlu0.c.b16.cont [6/8] 0, 128
    %3172 = vxpose.xlu0.c.b16.cont [7/8] 0, 128
    %3173 = vxpose.xlu0.c.b16.end [8/8] 0, 128
    %v3174 = vpop.trf.xlu0
    %v3175 = vpop.trf.xlu0
    %v3176 = vpop.trf.xlu0
    %v3177 = vpop.trf.xlu0
    %v3178 = vpop.trf.xlu0
    %v3179 = vpop.trf.xlu0
    %v3180 = vpop.trf.xlu0
    %v3181 = vpop.trf.xlu0
    %3182 = vxpose.xlu0.c.b16.start [1/8] %v3029, 128
    %3183 = vxpose.xlu0.c.b16.cont [2/8] 0, 128
    %3184 = vxpose.xlu0.c.b16.cont [3/8] 0, 128
    %3185 = vxpose.xlu0.c.b16.cont [4/8] 0, 128
    %3186 = vxpose.xlu0.c.b16.cont [5/8] 0, 128
    %3187 = vxpose.xlu0.c.b16.cont [6/8] 0, 128
    %3188 = vxpose.xlu0.c.b16.cont [7/8] 0, 128
    %3189 = vxpose.xlu0.c.b16.end [8/8] 0, 128
    %v3190 = vpop.trf.xlu0
    %v3191 = vpop.trf.xlu0
    %v3192 = vpop.trf.xlu0
    %v3193 = vpop.trf.xlu0
    %v3194 = vpop.trf.xlu0
    %v3195 = vpop.trf.xlu0
    %v3196 = vpop.trf.xlu0
    %v3197 = vpop.trf.xlu0
    %3198 = vxpose.xlu0.c.b16.start [1/8] %v3030, 128
    %3199 = vxpose.xlu0.c.b16.cont [2/8] 0, 128
    %3200 = vxpose.xlu0.c.b16.cont [3/8] 0, 128
    %3201 = vxpose.xlu0.c.b16.cont [4/8] 0, 128
    %3202 = vxpose.xlu0.c.b16.cont [5/8] 0, 128
    %3203 = vxpose.xlu0.c.b16.cont [6/8] 0, 128
    %3204 = vxpose.xlu0.c.b16.cont [7/8] 0, 128
    %3205 = vxpose.xlu0.c.b16.end [8/8] 0, 128
    %v3206 = vpop.trf.xlu0
    %v3207 = vpop.trf.xlu0
    %v3208 = vpop.trf.xlu0
    %v3209 = vpop.trf.xlu0
    %v3210 = vpop.trf.xlu0
    %v3211 = vpop.trf.xlu0
    %v3212 = vpop.trf.xlu0
    %v3213 = vpop.trf.xlu0
    %3214 = vxpose.xlu0.c.b16.start [1/8] %v3031, 128
    %3215 = vxpose.xlu0.c.b16.cont [2/8] 0, 128
    %3216 = vxpose.xlu0.c.b16.cont [3/8] 0, 128
    %3217 = vxpose.xlu0.c.b16.cont [4/8] 0, 128
    %3218 = vxpose.xlu0.c.b16.cont [5/8] 0, 128
    %3219 = vxpose.xlu0.c.b16.cont [6/8] 0, 128
    %3220 = vxpose.xlu0.c.b16.cont [7/8] 0, 128
    %3221 = vxpose.xlu0.c.b16.end [8/8] 0, 128
    %v3222 = vpop.trf.xlu0
    %v3223 = vpop.trf.xlu0
    %v3224 = vpop.trf.xlu0
    %v3225 = vpop.trf.xlu0
    %v3226 = vpop.trf.xlu0
    %v3227 = vpop.trf.xlu0
    %v3228 = vpop.trf.xlu0
    %v3229 = vpop.trf.xlu0
    %v3230 = vcombine.low %v3110, %v3174
    %v3232 = vunpack.c.l.s4 1983009808
    %v3233 = vunpack.c.0.s8 %v3232
    %v3234 = vlaneseq
    %v3235 = vshrl.u32 %v3234, 7
    %v3236 = vsub.s32 %v3233, %v3235
    %v3237 = vrot.slane %v3230, %v3236
    %v3238 = vcombine.low %v3142, %v3206
    %v3240 = vunpack.c.l.s4 1983009808
    %v3241 = vunpack.c.0.s8 %v3240
    %v3242 = vlaneseq
    %v3243 = vshrl.u32 %v3242, 7
    %v3244 = vsub.s32 %v3241, %v3243
    %v3245 = vrot.slane %v3238, %v3244
    %v3246 = vcombine.low %v3237, %v3245
    %v3247 = vcombine.high %v3237, %v3245
    %v3249 = vunpack.c.l.s4 1934713408
    %v3250 = vunpack.c.0.s8 %v3249
    %v3251 = vlaneseq
    %v3252 = vshrl.u32 %v3251, 7
    %v3253 = vsub.s32 %v3250, %v3252
    %v3254 = vrot.slane %v3246, %v3253
    %v3256 = vunpack.c.l.s4 1934713408
    %v3257 = vunpack.c.0.s8 %v3256
    %v3258 = vlaneseq
    %v3259 = vshrl.u32 %v3258, 7
    %v3260 = vsub.s32 %v3257, %v3259
    %v3261 = vrot.slane %v3247, %v3260
    %v3262 = vcombine.high %v3254, 0
    %v3263 = vcombine.high %v3261, 0
    %v3264 = vcombine.low %v3126, %v3190
    %v3266 = vunpack.c.l.s4 1983009808
    %v3267 = vunpack.c.0.s8 %v3266
    %v3268 = vlaneseq
    %v3269 = vshrl.u32 %v3268, 7
    %v3270 = vsub.s32 %v3267, %v3269
    %v3271 = vrot.slane %v3264, %v3270
    %v3272 = vcombine.low %v3158, %v3222
    %v3274 = vunpack.c.l.s4 1983009808
    %v3275 = vunpack.c.0.s8 %v3274
    %v3276 = vlaneseq
    %v3277 = vshrl.u32 %v3276, 7
    %v3278 = vsub.s32 %v3275, %v3277
    %v3279 = vrot.slane %v3272, %v3278
    %v3280 = vcombine.low %v3271, %v3279
    %v3281 = vcombine.high %v3271, %v3279
    %v3283 = vunpack.c.l.s4 1934713408
    %v3284 = vunpack.c.0.s8 %v3283
    %v3285 = vlaneseq
    %v3286 = vshrl.u32 %v3285, 7
    %v3287 = vsub.s32 %v3284, %v3286
    %v3288 = vrot.slane %v3280, %v3287
    %v3290 = vunpack.c.l.s4 1934713408
    %v3291 = vunpack.c.0.s8 %v3290
    %v3292 = vlaneseq
    %v3293 = vshrl.u32 %v3292, 7
    %v3294 = vsub.s32 %v3291, %v3293
    %v3295 = vrot.slane %v3281, %v3294
    %v3296 = vcombine.high %v3288, 0
    %v3297 = vcombine.high %v3295, 0
    %v3300 = vpack.i.b16 %v3288, %v3254
    %v3302 = vshrl.u32 %v3254, 16
    %v3303 = vshrl.u32 %v3288, 16
    %v3304 = vpack.i.b16 %v3303, %v3302
    %v3308 = vpack.i.b16 %v3296, %v3262
    %v3310 = vshrl.u32 %v3262, 16
    %v3311 = vshrl.u32 %v3296, 16
    %v3312 = vpack.i.b16 %v3311, %v3310
    %v3316 = vpack.i.b16 %v3295, %v3261
    %v3318 = vshrl.u32 %v3261, 16
    %v3319 = vshrl.u32 %v3295, 16
    %v3320 = vpack.i.b16 %v3319, %v3318
    %v3324 = vpack.i.b16 %v3297, %v3263
    %v3326 = vshrl.u32 %v3263, 16
    %v3327 = vshrl.u32 %v3297, 16
    %v3328 = vpack.i.b16 %v3327, %v3326
    %3330 = vxpose.xlu0.c.b16.start [1/8] %v3300, 128
    %3331 = vxpose.xlu0.c.b16.cont [2/8] 0, 128
    %3332 = vxpose.xlu0.c.b16.cont [3/8] 0, 128
    %3333 = vxpose.xlu0.c.b16.cont [4/8] 0, 128
    %3334 = vxpose.xlu0.c.b16.cont [5/8] 0, 128
    %3335 = vxpose.xlu0.c.b16.cont [6/8] 0, 128
    %3336 = vxpose.xlu0.c.b16.cont [7/8] 0, 128
    %3337 = vxpose.xlu0.c.b16.end [8/8] 0, 128
    %v3338 = vpop.trf.xlu0
    %v3339 = vpop.trf.xlu0
    %v3340 = vpop.trf.xlu0
    %v3341 = vpop.trf.xlu0
    %v3342 = vpop.trf.xlu0
    %v3343 = vpop.trf.xlu0
    %v3344 = vpop.trf.xlu0
    %v3345 = vpop.trf.xlu0
    %3346 = vxpose.xlu0.c.b16.start [1/8] %v3304, 128
    %3347 = vxpose.xlu0.c.b16.cont [2/8] 0, 128
    %3348 = vxpose.xlu0.c.b16.cont [3/8] 0, 128
    %3349 = vxpose.xlu0.c.b16.cont [4/8] 0, 128
    %3350 = vxpose.xlu0.c.b16.cont [5/8] 0, 128
    %3351 = vxpose.xlu0.c.b16.cont [6/8] 0, 128
    %3352 = vxpose.xlu0.c.b16.cont [7/8] 0, 128
    %3353 = vxpose.xlu0.c.b16.end [8/8] 0, 128
    %v3354 = vpop.trf.xlu0
    %v3355 = vpop.trf.xlu0
    %v3356 = vpop.trf.xlu0
    %v3357 = vpop.trf.xlu0
    %v3358 = vpop.trf.xlu0
    %v3359 = vpop.trf.xlu0
    %v3360 = vpop.trf.xlu0
    %v3361 = vpop.trf.xlu0
    %3362 = vxpose.xlu0.c.b16.start [1/8] %v3308, 128
    %3363 = vxpose.xlu0.c.b16.cont [2/8] 0, 128
    %3364 = vxpose.xlu0.c.b16.cont [3/8] 0, 128
    %3365 = vxpose.xlu0.c.b16.cont [4/8] 0, 128
    %3366 = vxpose.xlu0.c.b16.cont [5/8] 0, 128
    %3367 = vxpose.xlu0.c.b16.cont [6/8] 0, 128
    %3368 = vxpose.xlu0.c.b16.cont [7/8] 0, 128
    %3369 = vxpose.xlu0.c.b16.end [8/8] 0, 128
    %v3370 = vpop.trf.xlu0
    %v3371 = vpop.trf.xlu0
    %v3372 = vpop.trf.xlu0
    %v3373 = vpop.trf.xlu0
    %v3374 = vpop.trf.xlu0
    %v3375 = vpop.trf.xlu0
    %v3376 = vpop.trf.xlu0
    %v3377 = vpop.trf.xlu0
    %3378 = vxpose.xlu0.c.b16.start [1/8] %v3312, 128
    %3379 = vxpose.xlu0.c.b16.cont [2/8] 0, 128
    %3380 = vxpose.xlu0.c.b16.cont [3/8] 0, 128
    %3381 = vxpose.xlu0.c.b16.cont [4/8] 0, 128
    %3382 = vxpose.xlu0.c.b16.cont [5/8] 0, 128
    %3383 = vxpose.xlu0.c.b16.cont [6/8] 0, 128
    %3384 = vxpose.xlu0.c.b16.cont [7/8] 0, 128
    %3385 = vxpose.xlu0.c.b16.end [8/8] 0, 128
    %v3386 = vpop.trf.xlu0
    %v3387 = vpop.trf.xlu0
    %v3388 = vpop.trf.xlu0
    %v3389 = vpop.trf.xlu0
    %v3390 = vpop.trf.xlu0
    %v3391 = vpop.trf.xlu0
    %v3392 = vpop.trf.xlu0
    %v3393 = vpop.trf.xlu0
    %3394 = vxpose.xlu0.c.b16.start [1/8] %v3316, 128
    %3395 = vxpose.xlu0.c.b16.cont [2/8] 0, 128
    %3396 = vxpose.xlu0.c.b16.cont [3/8] 0, 128
    %3397 = vxpose.xlu0.c.b16.cont [4/8] 0, 128
    %3398 = vxpose.xlu0.c.b16.cont [5/8] 0, 128
    %3399 = vxpose.xlu0.c.b16.cont [6/8] 0, 128
    %3400 = vxpose.xlu0.c.b16.cont [7/8] 0, 128
    %3401 = vxpose.xlu0.c.b16.end [8/8] 0, 128
    %v3402 = vpop.trf.xlu0
    %v3403 = vpop.trf.xlu0
    %v3404 = vpop.trf.xlu0
    %v3405 = vpop.trf.xlu0
    %v3406 = vpop.trf.xlu0
    %v3407 = vpop.trf.xlu0
    %v3408 = vpop.trf.xlu0
    %v3409 = vpop.trf.xlu0
    %3410 = vxpose.xlu0.c.b16.start [1/8] %v3320, 128
    %3411 = vxpose.xlu0.c.b16.cont [2/8] 0, 128
    %3412 = vxpose.xlu0.c.b16.cont [3/8] 0, 128
    %3413 = vxpose.xlu0.c.b16.cont [4/8] 0, 128
    %3414 = vxpose.xlu0.c.b16.cont [5/8] 0, 128
    %3415 = vxpose.xlu0.c.b16.cont [6/8] 0, 128
    %3416 = vxpose.xlu0.c.b16.cont [7/8] 0, 128
    %3417 = vxpose.xlu0.c.b16.end [8/8] 0, 128
    %v3418 = vpop.trf.xlu0
    %v3419 = vpop.trf.xlu0
    %v3420 = vpop.trf.xlu0
    %v3421 = vpop.trf.xlu0
    %v3422 = vpop.trf.xlu0
    %v3423 = vpop.trf.xlu0
    %v3424 = vpop.trf.xlu0
    %v3425 = vpop.trf.xlu0
    %3426 = vxpose.xlu0.c.b16.start [1/8] %v3324, 128
    %3427 = vxpose.xlu0.c.b16.cont [2/8] 0, 128
    %3428 = vxpose.xlu0.c.b16.cont [3/8] 0, 128
    %3429 = vxpose.xlu0.c.b16.cont [4/8] 0, 128
    %3430 = vxpose.xlu0.c.b16.cont [5/8] 0, 128
    %3431 = vxpose.xlu0.c.b16.cont [6/8] 0, 128
    %3432 = vxpose.xlu0.c.b16.cont [7/8] 0, 128
    %3433 = vxpose.xlu0.c.b16.end [8/8] 0, 128
    %v3434 = vpop.trf.xlu0
    %v3435 = vpop.trf.xlu0
    %v3436 = vpop.trf.xlu0
    %v3437 = vpop.trf.xlu0
    %v3438 = vpop.trf.xlu0
    %v3439 = vpop.trf.xlu0
    %v3440 = vpop.trf.xlu0
    %v3441 = vpop.trf.xlu0
    %3442 = vxpose.xlu0.c.b16.start [1/8] %v3328, 128
    %3443 = vxpose.xlu0.c.b16.cont [2/8] 0, 128
    %3444 = vxpose.xlu0.c.b16.cont [3/8] 0, 128
    %3445 = vxpose.xlu0.c.b16.cont [4/8] 0, 128
    %3446 = vxpose.xlu0.c.b16.cont [5/8] 0, 128
    %3447 = vxpose.xlu0.c.b16.cont [6/8] 0, 128
    %3448 = vxpose.xlu0.c.b16.cont [7/8] 0, 128
    %3449 = vxpose.xlu0.c.b16.end [8/8] 0, 128
    %v3450 = vpop.trf.xlu0
    %v3451 = vpop.trf.xlu0
    %v3452 = vpop.trf.xlu0
    %v3453 = vpop.trf.xlu0
    %v3454 = vpop.trf.xlu0
    %v3455 = vpop.trf.xlu0
    %v3456 = vpop.trf.xlu0
    %v3457 = vpop.trf.xlu0
    %v3458 = vcombine.low %v3338, %v3402
    %v3460 = vunpack.c.l.s4 1983009808
    %v3461 = vunpack.c.0.s8 %v3460
    %v3462 = vlaneseq
    %v3463 = vshrl.u32 %v3462, 7
    %v3464 = vsub.s32 %v3461, %v3463
    %v3465 = vrot.slane %v3458, %v3464
    %v3466 = vcombine.low %v3370, %v3434
    %v3468 = vunpack.c.l.s4 1983009808
    %v3469 = vunpack.c.0.s8 %v3468
    %v3470 = vlaneseq
    %v3471 = vshrl.u32 %v3470, 7
    %v3472 = vsub.s32 %v3469, %v3471
    %v3473 = vrot.slane %v3466, %v3472
    %v3474 = vcombine.low %v3465, %v3473
    %v3476 = vunpack.c.l.s4 1934713408
    %v3477 = vunpack.c.0.s8 %v3476
    %v3478 = vlaneseq
    %v3479 = vshrl.u32 %v3478, 7
    %v3480 = vsub.s32 %v3477, %v3479
    %v3481 = vrot.slane %v3474, %v3480
    %v3482 = vcombine.high %v3481, 0
    %v3483 = vcombine.low %v3354, %v3418
    %v3485 = vunpack.c.l.s4 1983009808
    %v3486 = vunpack.c.0.s8 %v3485
    %v3487 = vlaneseq
    %v3488 = vshrl.u32 %v3487, 7
    %v3489 = vsub.s32 %v3486, %v3488
    %v3490 = vrot.slane %v3483, %v3489
    %v3491 = vcombine.low %v3386, %v3450
    %v3493 = vunpack.c.l.s4 1983009808
    %v3494 = vunpack.c.0.s8 %v3493
    %v3495 = vlaneseq
    %v3496 = vshrl.u32 %v3495, 7
    %v3497 = vsub.s32 %v3494, %v3496
    %v3498 = vrot.slane %v3491, %v3497
    %v3499 = vcombine.low %v3490, %v3498
    %v3501 = vunpack.c.l.s4 1934713408
    %v3502 = vunpack.c.0.s8 %v3501
    %v3503 = vlaneseq
    %v3504 = vshrl.u32 %v3503, 7
    %v3505 = vsub.s32 %v3502, %v3504
    %v3506 = vrot.slane %v3499, %v3505
    %v3507 = vcombine.high %v3506, 0
    %v3510 = vpack.i.b16 %v3506, %v3481
    %v3511 = vshrl.u32 %v3481, 16
    %v3512 = vshrl.u32 %v3506, 16
    %v3513 = vpack.i.b16 %v3512, %v3511
    %v3516 = vpack.i.b16 %v3507, %v3482
    %v3517 = vshrl.u32 %v3482, 16
    %v3518 = vshrl.u32 %v3507, 16
    %v3519 = vpack.i.b16 %v3518, %v3517
    %v3521 = vsel %vm1152, %v3092, 0
    %v3524 = vsel %vm1156, %v3510, 0
    %3526 = vmatprep.subr.bf16.mxu0 0
    %3527 = vmatpush1.bf16.msra.mxu0 %v3524
    %3528 = vmatprep.subr.bf16.mxu0 0
    %3529 = vmatpush1.bf16.msra.mxu0 0
    %3530 = vmatprep.subr.bf16.mxu0 0
    %3531 = vmatpush1.bf16.msra.mxu0 0
    %3532 = vmatprep.subr.bf16.mxu0 0
    %3533 = vmatpush1.bf16.msra.mxu0 0
    %3534 = vmatprep.subr.bf16.mxu0 0
    %3535 = vmatpush1.bf16.msra.mxu0 0
    %3536 = vmatprep.subr.bf16.mxu0 0
    %3537 = vmatpush1.bf16.msra.mxu0 0
    %3538 = vmatprep.subr.bf16.mxu0 0
    %3539 = vmatpush1.bf16.msra.mxu0 0
    %3540 = vmatprep.subr.bf16.mxu0 0
    %3541 = vmatpush1.bf16.msra.mxu0 0
    %3542 = vmatprep.subr.bf16.mxu0 0
    %3543 = vmatpush1.bf16.msra.mxu0 0
    %3544 = vmatprep.subr.bf16.mxu0 0
    %3545 = vmatpush1.bf16.msra.mxu0 0
    %3546 = vmatprep.subr.bf16.mxu0 0
    %3547 = vmatpush1.bf16.msra.mxu0 0
    %3548 = vmatprep.subr.bf16.mxu0 0
    %3549 = vmatpush1.bf16.msra.mxu0 0
    %3550 = vmatprep.subr.bf16.mxu0 0
    %3551 = vmatpush1.bf16.msra.mxu0 0
    %3552 = vmatprep.subr.bf16.mxu0 0
    %3553 = vmatpush1.bf16.msra.mxu0 0
    %3554 = vmatprep.subr.bf16.mxu0 0
    %3555 = vmatpush1.bf16.msra.mxu0 0
    %3556 = vmatprep.subr.bf16.mxu0 0
    %3557 = vmatpush1.bf16.msra.mxu0 0
    %3558 = vmatprep.mubr.bf16.mxu0 0
    %3559 = vmatmul.mubr.bf16.gmra.mrb[0].mxu0 %v3521
    %v3560 = vpop.f32.mrb[0].mxu0
    %v3561 = vadd.f32 0.0, %v3560
    %v3562 = vpop.f32.mrb[0].mxu0
    %v3563 = vpop.f32.mrb[0].mxu0
    %v3564 = vpop.f32.mrb[0].mxu0
    %3565 = vdwg.mxu0
    %v3567 = vsel %vm1152, %v3095, 0
    %v3570 = vsel %vm1156, %v3513, 0
    %3572 = vmatprep.subr.bf16.mxu0 0
    %3573 = vmatpush1.bf16.msra.mxu0 %v3570
    %3574 = vmatprep.subr.bf16.mxu0 0
    %3575 = vmatpush1.bf16.msra.mxu0 0
    %3576 = vmatprep.subr.bf16.mxu0 0
    %3577 = vmatpush1.bf16.msra.mxu0 0
    %3578 = vmatprep.subr.bf16.mxu0 0
    %3579 = vmatpush1.bf16.msra.mxu0 0
    %3580 = vmatprep.subr.bf16.mxu0 0
    %3581 = vmatpush1.bf16.msra.mxu0 0
    %3582 = vmatprep.subr.bf16.mxu0 0
    %3583 = vmatpush1.bf16.msra.mxu0 0
    %3584 = vmatprep.subr.bf16.mxu0 0
    %3585 = vmatpush1.bf16.msra.mxu0 0
    %3586 = vmatprep.subr.bf16.mxu0 0
    %3587 = vmatpush1.bf16.msra.mxu0 0
    %3588 = vmatprep.subr.bf16.mxu0 0
    %3589 = vmatpush1.bf16.msra.mxu0 0
    %3590 = vmatprep.subr.bf16.mxu0 0
    %3591 = vmatpush1.bf16.msra.mxu0 0
    %3592 = vmatprep.subr.bf16.mxu0 0
    %3593 = vmatpush1.bf16.msra.mxu0 0
    %3594 = vmatprep.subr.bf16.mxu0 0
    %3595 = vmatpush1.bf16.msra.mxu0 0
    %3596 = vmatprep.subr.bf16.mxu0 0
    %3597 = vmatpush1.bf16.msra.mxu0 0
    %3598 = vmatprep.subr.bf16.mxu0 0
    %3599 = vmatpush1.bf16.msra.mxu0 0
    %3600 = vmatprep.subr.bf16.mxu0 0
    %3601 = vmatpush1.bf16.msra.mxu0 0
    %3602 = vmatprep.subr.bf16.mxu0 0
    %3603 = vmatpush1.bf16.msra.mxu0 0
    %3604 = vmatprep.mubr.bf16.mxu0 0
    %3605 = vmatmul.mubr.bf16.gmra.mrb[0].mxu0 %v3567
    %v3606 = vpop.f32.mrb[0].mxu0
    %v3607 = vadd.f32 0.0, %v3606
    %v3608 = vpop.f32.mrb[0].mxu0
    %v3609 = vpop.f32.mrb[0].mxu0
    %v3610 = vpop.f32.mrb[0].mxu0
    %3611 = vdwg.mxu0
    %v3613 = vsel %vm1152, %v3098, 0
    %v3616 = vsel %vm1156, %v3516, 0
    %3618 = vmatprep.subr.bf16.mxu0 0
    %3619 = vmatpush1.bf16.msra.mxu0 %v3616
    %3620 = vmatprep.subr.bf16.mxu0 0
    %3621 = vmatpush1.bf16.msra.mxu0 0
    %3622 = vmatprep.subr.bf16.mxu0 0
    %3623 = vmatpush1.bf16.msra.mxu0 0
    %3624 = vmatprep.subr.bf16.mxu0 0
    %3625 = vmatpush1.bf16.msra.mxu0 0
    %3626 = vmatprep.subr.bf16.mxu0 0
    %3627 = vmatpush1.bf16.msra.mxu0 0
    %3628 = vmatprep.subr.bf16.mxu0 0
    %3629 = vmatpush1.bf16.msra.mxu0 0
    %3630 = vmatprep.subr.bf16.mxu0 0
    %3631 = vmatpush1.bf16.msra.mxu0 0
    %3632 = vmatprep.subr.bf16.mxu0 0
    %3633 = vmatpush1.bf16.msra.mxu0 0
    %3634 = vmatprep.subr.bf16.mxu0 0
    %3635 = vmatpush1.bf16.msra.mxu0 0
    %3636 = vmatprep.subr.bf16.mxu0 0
    %3637 = vmatpush1.bf16.msra.mxu0 0
    %3638 = vmatprep.subr.bf16.mxu0 0
    %3639 = vmatpush1.bf16.msra.mxu0 0
    %3640 = vmatprep.subr.bf16.mxu0 0
    %3641 = vmatpush1.bf16.msra.mxu0 0
    %3642 = vmatprep.subr.bf16.mxu0 0
    %3643 = vmatpush1.bf16.msra.mxu0 0
    %3644 = vmatprep.subr.bf16.mxu0 0
    %3645 = vmatpush1.bf16.msra.mxu0 0
    %3646 = vmatprep.subr.bf16.mxu0 0
    %3647 = vmatpush1.bf16.msra.mxu0 0
    %3648 = vmatprep.subr.bf16.mxu0 0
    %3649 = vmatpush1.bf16.msra.mxu0 0
    %3650 = vmatprep.mubr.bf16.mxu0 0
    %3651 = vmatmul.mubr.bf16.gmra.mrb[0].mxu0 %v3613
    %v3652 = vpop.f32.mrb[0].mxu0
    %v3653 = vadd.f32 0.0, %v3652
    %v3654 = vpop.f32.mrb[0].mxu0
    %v3655 = vpop.f32.mrb[0].mxu0
    %v3656 = vpop.f32.mrb[0].mxu0
    %3657 = vdwg.mxu0
    %v3659 = vsel %vm1152, %v3101, 0
    %v3662 = vsel %vm1156, %v3519, 0
    %3664 = vmatprep.subr.bf16.mxu0 0
    %3665 = vmatpush1.bf16.msra.mxu0 %v3662
    %3666 = vmatprep.subr.bf16.mxu0 0
    %3667 = vmatpush1.bf16.msra.mxu0 0
    %3668 = vmatprep.subr.bf16.mxu0 0
    %3669 = vmatpush1.bf16.msra.mxu0 0
    %3670 = vmatprep.subr.bf16.mxu0 0
    %3671 = vmatpush1.bf16.msra.mxu0 0
    %3672 = vmatprep.subr.bf16.mxu0 0
    %3673 = vmatpush1.bf16.msra.mxu0 0
    %3674 = vmatprep.subr.bf16.mxu0 0
    %3675 = vmatpush1.bf16.msra.mxu0 0
    %3676 = vmatprep.subr.bf16.mxu0 0
    %3677 = vmatpush1.bf16.msra.mxu0 0
    %3678 = vmatprep.subr.bf16.mxu0 0
    %3679 = vmatpush1.bf16.msra.mxu0 0
    %3680 = vmatprep.subr.bf16.mxu0 0
    %3681 = vmatpush1.bf16.msra.mxu0 0
    %3682 = vmatprep.subr.bf16.mxu0 0
    %3683 = vmatpush1.bf16.msra.mxu0 0
    %3684 = vmatprep.subr.bf16.mxu0 0
    %3685 = vmatpush1.bf16.msra.mxu0 0
    %3686 = vmatprep.subr.bf16.mxu0 0
    %3687 = vmatpush1.bf16.msra.mxu0 0
    %3688 = vmatprep.subr.bf16.mxu0 0
    %3689 = vmatpush1.bf16.msra.mxu0 0
    %3690 = vmatprep.subr.bf16.mxu0 0
    %3691 = vmatpush1.bf16.msra.mxu0 0
    %3692 = vmatprep.subr.bf16.mxu0 0
    %3693 = vmatpush1.bf16.msra.mxu0 0
    %3694 = vmatprep.subr.bf16.mxu0 0
    %3695 = vmatpush1.bf16.msra.mxu0 0
    %3696 = vmatprep.mubr.bf16.mxu0 0
    %3697 = vmatmul.mubr.bf16.gmra.mrb[0].mxu0 %v3659
    %v3698 = vpop.f32.mrb[0].mxu0
    %v3699 = vadd.f32 0.0, %v3698
    %v3700 = vpop.f32.mrb[0].mxu0
    %v3701 = vpop.f32.mrb[0].mxu0
    %v3702 = vpop.f32.mrb[0].mxu0
    %3703 = vdwg.mxu0
    %3704 = vxpose.xlu0.b32.start [1/16] %v3561, 128
    %3705 = vxpose.xlu0.b32.cont [2/16] 0.0, 128
    %3706 = vxpose.xlu0.b32.cont [3/16] 0.0, 128
    %3707 = vxpose.xlu0.b32.cont [4/16] 0.0, 128
    %3708 = vxpose.xlu0.b32.cont [5/16] 0.0, 128
    %3709 = vxpose.xlu0.b32.cont [6/16] 0.0, 128
    %3710 = vxpose.xlu0.b32.cont [7/16] 0.0, 128
    %3711 = vxpose.xlu0.b32.cont [8/16] 0.0, 128
    %3712 = vxpose.xlu0.b32.cont [9/16] 0.0, 128
    %3713 = vxpose.xlu0.b32.cont [10/16] 0.0, 128
    %3714 = vxpose.xlu0.b32.cont [11/16] 0.0, 128
    %3715 = vxpose.xlu0.b32.cont [12/16] 0.0, 128
    %3716 = vxpose.xlu0.b32.cont [13/16] 0.0, 128
    %3717 = vxpose.xlu0.b32.cont [14/16] 0.0, 128
    %3718 = vxpose.xlu0.b32.cont [15/16] 0.0, 128
    %3719 = vxpose.xlu0.b32.end [16/16] 0.0, 128
    %v3720 = vpop.trf.xlu0
    %v3721 = vpop.trf.xlu0
    %v3722 = vpop.trf.xlu0
    %v3723 = vpop.trf.xlu0
    %v3724 = vpop.trf.xlu0
    %v3725 = vpop.trf.xlu0
    %v3726 = vpop.trf.xlu0
    %v3727 = vpop.trf.xlu0
    %v3728 = vpop.trf.xlu0
    %v3729 = vpop.trf.xlu0
    %v3730 = vpop.trf.xlu0
    %v3731 = vpop.trf.xlu0
    %v3732 = vpop.trf.xlu0
    %v3733 = vpop.trf.xlu0
    %v3734 = vpop.trf.xlu0
    %v3735 = vpop.trf.xlu0
    %3736 = vxpose.xlu0.b32.start [1/16] %v3607, 128
    %3737 = vxpose.xlu0.b32.cont [2/16] 0.0, 128
    %3738 = vxpose.xlu0.b32.cont [3/16] 0.0, 128
    %3739 = vxpose.xlu0.b32.cont [4/16] 0.0, 128
    %3740 = vxpose.xlu0.b32.cont [5/16] 0.0, 128
    %3741 = vxpose.xlu0.b32.cont [6/16] 0.0, 128
    %3742 = vxpose.xlu0.b32.cont [7/16] 0.0, 128
    %3743 = vxpose.xlu0.b32.cont [8/16] 0.0, 128
    %3744 = vxpose.xlu0.b32.cont [9/16] 0.0, 128
    %3745 = vxpose.xlu0.b32.cont [10/16] 0.0, 128
    %3746 = vxpose.xlu0.b32.cont [11/16] 0.0, 128
    %3747 = vxpose.xlu0.b32.cont [12/16] 0.0, 128
    %3748 = vxpose.xlu0.b32.cont [13/16] 0.0, 128
    %3749 = vxpose.xlu0.b32.cont [14/16] 0.0, 128
    %3750 = vxpose.xlu0.b32.cont [15/16] 0.0, 128
    %3751 = vxpose.xlu0.b32.end [16/16] 0.0, 128
    %v3752 = vpop.trf.xlu0
    %v3753 = vpop.trf.xlu0
    %v3754 = vpop.trf.xlu0
    %v3755 = vpop.trf.xlu0
    %v3756 = vpop.trf.xlu0
    %v3757 = vpop.trf.xlu0
    %v3758 = vpop.trf.xlu0
    %v3759 = vpop.trf.xlu0
    %v3760 = vpop.trf.xlu0
    %v3761 = vpop.trf.xlu0
    %v3762 = vpop.trf.xlu0
    %v3763 = vpop.trf.xlu0
    %v3764 = vpop.trf.xlu0
    %v3765 = vpop.trf.xlu0
    %v3766 = vpop.trf.xlu0
    %v3767 = vpop.trf.xlu0
    %3768 = vxpose.xlu0.b32.start [1/16] %v3653, 128
    %3769 = vxpose.xlu0.b32.cont [2/16] 0.0, 128
    %3770 = vxpose.xlu0.b32.cont [3/16] 0.0, 128
    %3771 = vxpose.xlu0.b32.cont [4/16] 0.0, 128
    %3772 = vxpose.xlu0.b32.cont [5/16] 0.0, 128
    %3773 = vxpose.xlu0.b32.cont [6/16] 0.0, 128
    %3774 = vxpose.xlu0.b32.cont [7/16] 0.0, 128
    %3775 = vxpose.xlu0.b32.cont [8/16] 0.0, 128
    %3776 = vxpose.xlu0.b32.cont [9/16] 0.0, 128
    %3777 = vxpose.xlu0.b32.cont [10/16] 0.0, 128
    %3778 = vxpose.xlu0.b32.cont [11/16] 0.0, 128
    %3779 = vxpose.xlu0.b32.cont [12/16] 0.0, 128
    %3780 = vxpose.xlu0.b32.cont [13/16] 0.0, 128
    %3781 = vxpose.xlu0.b32.cont [14/16] 0.0, 128
    %3782 = vxpose.xlu0.b32.cont [15/16] 0.0, 128
    %3783 = vxpose.xlu0.b32.end [16/16] 0.0, 128
    %v3784 = vpop.trf.xlu0
    %v3785 = vpop.trf.xlu0
    %v3786 = vpop.trf.xlu0
    %v3787 = vpop.trf.xlu0
    %v3788 = vpop.trf.xlu0
    %v3789 = vpop.trf.xlu0
    %v3790 = vpop.trf.xlu0
    %v3791 = vpop.trf.xlu0
    %v3792 = vpop.trf.xlu0
    %v3793 = vpop.trf.xlu0
    %v3794 = vpop.trf.xlu0
    %v3795 = vpop.trf.xlu0
    %v3796 = vpop.trf.xlu0
    %v3797 = vpop.trf.xlu0
    %v3798 = vpop.trf.xlu0
    %v3799 = vpop.trf.xlu0
    %3800 = vxpose.xlu0.b32.start [1/16] %v3699, 128
    %3801 = vxpose.xlu0.b32.cont [2/16] 0.0, 128
    %3802 = vxpose.xlu0.b32.cont [3/16] 0.0, 128
    %3803 = vxpose.xlu0.b32.cont [4/16] 0.0, 128
    %3804 = vxpose.xlu0.b32.cont [5/16] 0.0, 128
    %3805 = vxpose.xlu0.b32.cont [6/16] 0.0, 128
    %3806 = vxpose.xlu0.b32.cont [7/16] 0.0, 128
    %3807 = vxpose.xlu0.b32.cont [8/16] 0.0, 128
    %3808 = vxpose.xlu0.b32.cont [9/16] 0.0, 128
    %3809 = vxpose.xlu0.b32.cont [10/16] 0.0, 128
    %3810 = vxpose.xlu0.b32.cont [11/16] 0.0, 128
    %3811 = vxpose.xlu0.b32.cont [12/16] 0.0, 128
    %3812 = vxpose.xlu0.b32.cont [13/16] 0.0, 128
    %3813 = vxpose.xlu0.b32.cont [14/16] 0.0, 128
    %3814 = vxpose.xlu0.b32.cont [15/16] 0.0, 128
    %3815 = vxpose.xlu0.b32.end [16/16] 0.0, 128
    %v3816 = vpop.trf.xlu0
    %v3817 = vpop.trf.xlu0
    %v3818 = vpop.trf.xlu0
    %v3819 = vpop.trf.xlu0
    %v3820 = vpop.trf.xlu0
    %v3821 = vpop.trf.xlu0
    %v3822 = vpop.trf.xlu0
    %v3823 = vpop.trf.xlu0
    %v3824 = vpop.trf.xlu0
    %v3825 = vpop.trf.xlu0
    %v3826 = vpop.trf.xlu0
    %v3827 = vpop.trf.xlu0
    %v3828 = vpop.trf.xlu0
    %v3829 = vpop.trf.xlu0
    %v3830 = vpop.trf.xlu0
    %v3831 = vpop.trf.xlu0
    %v3832 = vcombine.low %v3720, %v3784
    %v3833 = vcombine.high %v3720, %v3784
    %v3835 = vunpack.c.l.s4 1983009808
    %v3836 = vunpack.c.0.s8 %v3835
    %v3837 = vlaneseq
    %v3838 = vshrl.u32 %v3837, 7
    %v3839 = vsub.s32 %v3836, %v3838
    %v3840 = vrot.slane %v3832, %v3839
    %v3842 = vunpack.c.l.s4 1983009808
    %v3843 = vunpack.c.0.s8 %v3842
    %v3844 = vlaneseq
    %v3845 = vshrl.u32 %v3844, 7
    %v3846 = vsub.s32 %v3843, %v3845
    %v3847 = vrot.slane %v3833, %v3846
    %v3848 = vcombine.low %v3752, %v3816
    %v3849 = vcombine.high %v3752, %v3816
    %v3851 = vunpack.c.l.s4 1983009808
    %v3852 = vunpack.c.0.s8 %v3851
    %v3853 = vlaneseq
    %v3854 = vshrl.u32 %v3853, 7
    %v3855 = vsub.s32 %v3852, %v3854
    %v3856 = vrot.slane %v3848, %v3855
    %v3858 = vunpack.c.l.s4 1983009808
    %v3859 = vunpack.c.0.s8 %v3858
    %v3860 = vlaneseq
    %v3861 = vshrl.u32 %v3860, 7
    %v3862 = vsub.s32 %v3859, %v3861
    %v3863 = vrot.slane %v3849, %v3862
    %v3864 = vcombine.low %v3840, %v3856
    %v3865 = vcombine.high %v3840, %v3856
    %v3867 = vunpack.c.l.s4 1934713408
    %v3868 = vunpack.c.0.s8 %v3867
    %v3869 = vlaneseq
    %v3870 = vshrl.u32 %v3869, 7
    %v3871 = vsub.s32 %v3868, %v3870
    %v3872 = vrot.slane %v3864, %v3871
    %v3874 = vunpack.c.l.s4 1934713408
    %v3875 = vunpack.c.0.s8 %v3874
    %v3876 = vlaneseq
    %v3877 = vshrl.u32 %v3876, 7
    %v3878 = vsub.s32 %v3875, %v3877
    %v3879 = vrot.slane %v3865, %v3878
    %v3880 = vcombine.low %v3847, %v3863
    %v3881 = vcombine.high %v3847, %v3863
    %v3883 = vunpack.c.l.s4 1934713408
    %v3884 = vunpack.c.0.s8 %v3883
    %v3885 = vlaneseq
    %v3886 = vshrl.u32 %v3885, 7
    %v3887 = vsub.s32 %v3884, %v3886
    %v3888 = vrot.slane %v3880, %v3887
    %v3890 = vunpack.c.l.s4 1934713408
    %v3891 = vunpack.c.0.s8 %v3890
    %v3892 = vlaneseq
    %v3893 = vshrl.u32 %v3892, 7
    %v3894 = vsub.s32 %v3891, %v3893
    %v3895 = vrot.slane %v3881, %v3894
    %v3896 = vcombine.high %v3872, 0.0
    %v3897 = vcombine.high %v3879, 0.0
    %v3898 = vcombine.high %v3888, 0.0
    %v3899 = vcombine.high %v3895, 0.0
    %v3900 = vsel %vm1534, %v3872, -inf
    %3901 = vmax.xlane.f32.xlu0 %v3900
    %v3902 = vpop.xlane.xlu0 %3901
    %v3903 = vsel %vm1534, %v3896, -inf
    %3904 = vmax.xlane.f32.xlu0 %v3903
    %v3905 = vpop.xlane.xlu0 %3904
    %v3906 = vsel %vm1534, %v3879, -inf
    %3907 = vmax.xlane.f32.xlu0 %v3906
    %v3908 = vpop.xlane.xlu0 %3907
    %v3909 = vsel %vm1534, %v3897, -inf
    %3910 = vmax.xlane.f32.xlu0 %v3909
    %v3911 = vpop.xlane.xlu0 %3910
    %v3912 = vsel %vm1534, %v3888, -inf
    %3913 = vmax.xlane.f32.xlu0 %v3912
    %v3914 = vpop.xlane.xlu0 %3913
    %v3915 = vsel %vm1534, %v3898, -inf
    %3916 = vmax.xlane.f32.xlu0 %v3915
    %v3917 = vpop.xlane.xlu0 %3916
    %v3918 = vsel %vm1534, %v3895, -inf
    %3919 = vmax.xlane.f32.xlu0 %v3918
    %v3920 = vpop.xlane.xlu0 %3919
    %v3921 = vsel %vm1534, %v3899, -inf
    %3922 = vmax.xlane.f32.xlu0 %v3921
    %v3923 = vpop.xlane.xlu0 %3922
    %v3924 = vsub.f32 %v3872, %v3902
    %v3925 = vsub.f32 %v3896, %v3905
    %v3926 = vsub.f32 %v3879, %v3908
    %v3927 = vsub.f32 %v3897, %v3911
    %v3928 = vsub.f32 %v3888, %v3914
    %v3929 = vsub.f32 %v3898, %v3917
    %v3930 = vsub.f32 %v3895, %v3920
    %v3931 = vsub.f32 %v3899, %v3923
    %v3932 = vmul.f32 %v3924, 1.442695
    %v3933 = vpow.pop %v3932
    %v3934 = vmul.f32 %v3925, 1.442695
    %v3935 = vpow.pop %v3934
    %v3936 = vmul.f32 %v3926, 1.442695
    %v3937 = vpow.pop %v3936
    %v3938 = vmul.f32 %v3927, 1.442695
    %v3939 = vpow.pop %v3938
    %v3940 = vmul.f32 %v3928, 1.442695
    %v3941 = vpow.pop %v3940
    %v3942 = vmul.f32 %v3929, 1.442695
    %v3943 = vpow.pop %v3942
    %v3944 = vmul.f32 %v3930, 1.442695
    %v3945 = vpow.pop %v3944
    %v3946 = vmul.f32 %v3931, 1.442695
    %v3947 = vpow.pop %v3946
    %v3948 = vsel %vm1534, %v3933, 0.0
    %3949 = vadd.xlane.f32.xlu0 %v3948
    %v3950 = vpop.xlane.xlu0 %3949
    %v3951 = vsel %vm1534, %v3935, 0.0
    %3952 = vadd.xlane.f32.xlu0 %v3951
    %v3953 = vpop.xlane.xlu0 %3952
    %v3954 = vsel %vm1534, %v3937, 0.0
    %3955 = vadd.xlane.f32.xlu0 %v3954
    %v3956 = vpop.xlane.xlu0 %3955
    %v3957 = vsel %vm1534, %v3939, 0.0
    %3958 = vadd.xlane.f32.xlu0 %v3957
    %v3959 = vpop.xlane.xlu0 %3958
    %v3960 = vsel %vm1534, %v3941, 0.0
    %3961 = vadd.xlane.f32.xlu0 %v3960
    %v3962 = vpop.xlane.xlu0 %3961
    %v3963 = vsel %vm1534, %v3943, 0.0
    %3964 = vadd.xlane.f32.xlu0 %v3963
    %v3965 = vpop.xlane.xlu0 %3964
    %v3966 = vsel %vm1534, %v3945, 0.0
    %3967 = vadd.xlane.f32.xlu0 %v3966
    %v3968 = vpop.xlane.xlu0 %3967
    %v3969 = vsel %vm1534, %v3947, 0.0
    %3970 = vadd.xlane.f32.xlu0 %v3969
    %v3971 = vpop.xlane.xlu0 %3970
    %v3972 = vrcp.pop %v3950
    %v3973 = vrcp.pop %v3953
    %v3974 = vrcp.pop %v3956
    %v3975 = vrcp.pop %v3959
    %v3976 = vrcp.pop %v3962
    %v3977 = vrcp.pop %v3965
    %v3978 = vrcp.pop %v3968
    %v3979 = vrcp.pop %v3971
    %v3980 = vmul.f32 %v3933, %v3972
    %v3981 = vmul.f32 %v3935, %v3973
    %v3982 = vmul.f32 %v3937, %v3974
    %v3983 = vmul.f32 %v3939, %v3975
    %v3984 = vmul.f32 %v3941, %v3976
    %v3985 = vmul.f32 %v3943, %v3977
    %v3986 = vmul.f32 %v3945, %v3978
    %v3987 = vmul.f32 %v3947, %v3979
    %v3988 = vpack.c.bf16 %v3980, %v3980
    %v3989 = vpack.c.bf16 %v3981, %v3981
    %v3990 = vpack.c.bf16 %v3982, %v3982
    %v3991 = vpack.c.bf16 %v3983, %v3983
    %v3992 = vpack.c.bf16 %v3984, %v3984
    %v3993 = vpack.c.bf16 %v3985, %v3985
    %v3994 = vpack.c.bf16 %v3986, %v3986
    %v3995 = vpack.c.bf16 %v3987, %v3987
    %v3996 = vpack.c.bf16 %v628, %v628
    %v3997 = vpack.c.bf16 %v652, %v652
    %v3998 = vpack.c.bf16 %v635, %v635
    %v3999 = vpack.c.bf16 %v653, %v653
    %v4000 = vpack.c.bf16 %v644, %v644
    %v4001 = vpack.c.bf16 %v654, %v654
    %v4002 = vpack.c.bf16 %v651, %v651
    %v4003 = vpack.c.bf16 %v655, %v655
    %4004 = vxpose.xlu0.c.b16.start [1/8] %v3996, 128
    %4005 = vxpose.xlu0.c.b16.cont [2/8] 0, 128
    %4006 = vxpose.xlu0.c.b16.cont [3/8] 0, 128
    %4007 = vxpose.xlu0.c.b16.cont [4/8] 0, 128
    %4008 = vxpose.xlu0.c.b16.cont [5/8] 0, 128
    %4009 = vxpose.xlu0.c.b16.cont [6/8] 0, 128
    %4010 = vxpose.xlu0.c.b16.cont [7/8] 0, 128
    %4011 = vxpose.xlu0.c.b16.end [8/8] 0, 128
    %v4012 = vpop.trf.xlu0
    %v4013 = vpop.trf.xlu0
    %v4014 = vpop.trf.xlu0
    %v4015 = vpop.trf.xlu0
    %v4016 = vpop.trf.xlu0
    %v4017 = vpop.trf.xlu0
    %v4018 = vpop.trf.xlu0
    %v4019 = vpop.trf.xlu0
    %4020 = vxpose.xlu0.c.b16.start [1/8] %v3997, 128
    %4021 = vxpose.xlu0.c.b16.cont [2/8] 0, 128
    %4022 = vxpose.xlu0.c.b16.cont [3/8] 0, 128
    %4023 = vxpose.xlu0.c.b16.cont [4/8] 0, 128
    %4024 = vxpose.xlu0.c.b16.cont [5/8] 0, 128
    %4025 = vxpose.xlu0.c.b16.cont [6/8] 0, 128
    %4026 = vxpose.xlu0.c.b16.cont [7/8] 0, 128
    %4027 = vxpose.xlu0.c.b16.end [8/8] 0, 128
    %v4028 = vpop.trf.xlu0
    %v4029 = vpop.trf.xlu0
    %v4030 = vpop.trf.xlu0
    %v4031 = vpop.trf.xlu0
    %v4032 = vpop.trf.xlu0
    %v4033 = vpop.trf.xlu0
    %v4034 = vpop.trf.xlu0
    %v4035 = vpop.trf.xlu0
    %4036 = vxpose.xlu0.c.b16.start [1/8] %v3998, 128
    %4037 = vxpose.xlu0.c.b16.cont [2/8] 0, 128
    %4038 = vxpose.xlu0.c.b16.cont [3/8] 0, 128
    %4039 = vxpose.xlu0.c.b16.cont [4/8] 0, 128
    %4040 = vxpose.xlu0.c.b16.cont [5/8] 0, 128
    %4041 = vxpose.xlu0.c.b16.cont [6/8] 0, 128
    %4042 = vxpose.xlu0.c.b16.cont [7/8] 0, 128
    %4043 = vxpose.xlu0.c.b16.end [8/8] 0, 128
    %v4044 = vpop.trf.xlu0
    %v4045 = vpop.trf.xlu0
    %v4046 = vpop.trf.xlu0
    %v4047 = vpop.trf.xlu0
    %v4048 = vpop.trf.xlu0
    %v4049 = vpop.trf.xlu0
    %v4050 = vpop.trf.xlu0
    %v4051 = vpop.trf.xlu0
    %4052 = vxpose.xlu0.c.b16.start [1/8] %v3999, 128
    %4053 = vxpose.xlu0.c.b16.cont [2/8] 0, 128
    %4054 = vxpose.xlu0.c.b16.cont [3/8] 0, 128
    %4055 = vxpose.xlu0.c.b16.cont [4/8] 0, 128
    %4056 = vxpose.xlu0.c.b16.cont [5/8] 0, 128
    %4057 = vxpose.xlu0.c.b16.cont [6/8] 0, 128
    %4058 = vxpose.xlu0.c.b16.cont [7/8] 0, 128
    %4059 = vxpose.xlu0.c.b16.end [8/8] 0, 128
    %v4060 = vpop.trf.xlu0
    %v4061 = vpop.trf.xlu0
    %v4062 = vpop.trf.xlu0
    %v4063 = vpop.trf.xlu0
    %v4064 = vpop.trf.xlu0
    %v4065 = vpop.trf.xlu0
    %v4066 = vpop.trf.xlu0
    %v4067 = vpop.trf.xlu0
    %4068 = vxpose.xlu0.c.b16.start [1/8] %v4000, 128
    %4069 = vxpose.xlu0.c.b16.cont [2/8] 0, 128
    %4070 = vxpose.xlu0.c.b16.cont [3/8] 0, 128
    %4071 = vxpose.xlu0.c.b16.cont [4/8] 0, 128
    %4072 = vxpose.xlu0.c.b16.cont [5/8] 0, 128
    %4073 = vxpose.xlu0.c.b16.cont [6/8] 0, 128
    %4074 = vxpose.xlu0.c.b16.cont [7/8] 0, 128
    %4075 = vxpose.xlu0.c.b16.end [8/8] 0, 128
    %v4076 = vpop.trf.xlu0
    %v4077 = vpop.trf.xlu0
    %v4078 = vpop.trf.xlu0
    %v4079 = vpop.trf.xlu0
    %v4080 = vpop.trf.xlu0
    %v4081 = vpop.trf.xlu0
    %v4082 = vpop.trf.xlu0
    %v4083 = vpop.trf.xlu0
    %4084 = vxpose.xlu0.c.b16.start [1/8] %v4001, 128
    %4085 = vxpose.xlu0.c.b16.cont [2/8] 0, 128
    %4086 = vxpose.xlu0.c.b16.cont [3/8] 0, 128
    %4087 = vxpose.xlu0.c.b16.cont [4/8] 0, 128
    %4088 = vxpose.xlu0.c.b16.cont [5/8] 0, 128
    %4089 = vxpose.xlu0.c.b16.cont [6/8] 0, 128
    %4090 = vxpose.xlu0.c.b16.cont [7/8] 0, 128
    %4091 = vxpose.xlu0.c.b16.end [8/8] 0, 128
    %v4092 = vpop.trf.xlu0
    %v4093 = vpop.trf.xlu0
    %v4094 = vpop.trf.xlu0
    %v4095 = vpop.trf.xlu0
    %v4096 = vpop.trf.xlu0
    %v4097 = vpop.trf.xlu0
    %v4098 = vpop.trf.xlu0
    %v4099 = vpop.trf.xlu0
    %4100 = vxpose.xlu0.c.b16.start [1/8] %v4002, 128
    %4101 = vxpose.xlu0.c.b16.cont [2/8] 0, 128
    %4102 = vxpose.xlu0.c.b16.cont [3/8] 0, 128
    %4103 = vxpose.xlu0.c.b16.cont [4/8] 0, 128
    %4104 = vxpose.xlu0.c.b16.cont [5/8] 0, 128
    %4105 = vxpose.xlu0.c.b16.cont [6/8] 0, 128
    %4106 = vxpose.xlu0.c.b16.cont [7/8] 0, 128
    %4107 = vxpose.xlu0.c.b16.end [8/8] 0, 128
    %v4108 = vpop.trf.xlu0
    %v4109 = vpop.trf.xlu0
    %v4110 = vpop.trf.xlu0
    %v4111 = vpop.trf.xlu0
    %v4112 = vpop.trf.xlu0
    %v4113 = vpop.trf.xlu0
    %v4114 = vpop.trf.xlu0
    %v4115 = vpop.trf.xlu0
    %4116 = vxpose.xlu0.c.b16.start [1/8] %v4003, 128
    %4117 = vxpose.xlu0.c.b16.cont [2/8] 0, 128
    %4118 = vxpose.xlu0.c.b16.cont [3/8] 0, 128
    %4119 = vxpose.xlu0.c.b16.cont [4/8] 0, 128
    %4120 = vxpose.xlu0.c.b16.cont [5/8] 0, 128
    %4121 = vxpose.xlu0.c.b16.cont [6/8] 0, 128
    %4122 = vxpose.xlu0.c.b16.cont [7/8] 0, 128
    %4123 = vxpose.xlu0.c.b16.end [8/8] 0, 128
    %v4124 = vpop.trf.xlu0
    %v4125 = vpop.trf.xlu0
    %v4126 = vpop.trf.xlu0
    %v4127 = vpop.trf.xlu0
    %v4128 = vpop.trf.xlu0
    %v4129 = vpop.trf.xlu0
    %v4130 = vpop.trf.xlu0
    %v4131 = vpop.trf.xlu0
    %v4132 = vcombine.low %v4012, %v4076
    %v4134 = vunpack.c.l.s4 1983009808
    %v4135 = vunpack.c.0.s8 %v4134
    %v4136 = vlaneseq
    %v4137 = vshrl.u32 %v4136, 7
    %v4138 = vsub.s32 %v4135, %v4137
    %v4139 = vrot.slane %v4132, %v4138
    %v4140 = vcombine.low %v4044, %v4108
    %v4142 = vunpack.c.l.s4 1983009808
    %v4143 = vunpack.c.0.s8 %v4142
    %v4144 = vlaneseq
    %v4145 = vshrl.u32 %v4144, 7
    %v4146 = vsub.s32 %v4143, %v4145
    %v4147 = vrot.slane %v4140, %v4146
    %v4148 = vcombine.low %v4139, %v4147
    %v4149 = vcombine.high %v4139, %v4147
    %v4151 = vunpack.c.l.s4 1934713408
    %v4152 = vunpack.c.0.s8 %v4151
    %v4153 = vlaneseq
    %v4154 = vshrl.u32 %v4153, 7
    %v4155 = vsub.s32 %v4152, %v4154
    %v4156 = vrot.slane %v4148, %v4155
    %v4158 = vunpack.c.l.s4 1934713408
    %v4159 = vunpack.c.0.s8 %v4158
    %v4160 = vlaneseq
    %v4161 = vshrl.u32 %v4160, 7
    %v4162 = vsub.s32 %v4159, %v4161
    %v4163 = vrot.slane %v4149, %v4162
    %v4164 = vcombine.high %v4156, 0
    %v4165 = vcombine.high %v4163, 0
    %v4166 = vcombine.low %v4028, %v4092
    %v4168 = vunpack.c.l.s4 1983009808
    %v4169 = vunpack.c.0.s8 %v4168
    %v4170 = vlaneseq
    %v4171 = vshrl.u32 %v4170, 7
    %v4172 = vsub.s32 %v4169, %v4171
    %v4173 = vrot.slane %v4166, %v4172
    %v4174 = vcombine.low %v4060, %v4124
    %v4176 = vunpack.c.l.s4 1983009808
    %v4177 = vunpack.c.0.s8 %v4176
    %v4178 = vlaneseq
    %v4179 = vshrl.u32 %v4178, 7
    %v4180 = vsub.s32 %v4177, %v4179
    %v4181 = vrot.slane %v4174, %v4180
    %v4182 = vcombine.low %v4173, %v4181
    %v4183 = vcombine.high %v4173, %v4181
    %v4185 = vunpack.c.l.s4 1934713408
    %v4186 = vunpack.c.0.s8 %v4185
    %v4187 = vlaneseq
    %v4188 = vshrl.u32 %v4187, 7
    %v4189 = vsub.s32 %v4186, %v4188
    %v4190 = vrot.slane %v4182, %v4189
    %v4192 = vunpack.c.l.s4 1934713408
    %v4193 = vunpack.c.0.s8 %v4192
    %v4194 = vlaneseq
    %v4195 = vshrl.u32 %v4194, 7
    %v4196 = vsub.s32 %v4193, %v4195
    %v4197 = vrot.slane %v4183, %v4196
    %v4198 = vcombine.high %v4190, 0
    %v4199 = vcombine.high %v4197, 0
    %v4202 = vpack.i.b16 %v4190, %v4156
    %v4204 = vshrl.u32 %v4156, 16
    %v4205 = vshrl.u32 %v4190, 16
    %v4206 = vpack.i.b16 %v4205, %v4204
    %v4210 = vpack.i.b16 %v4198, %v4164
    %v4212 = vshrl.u32 %v4164, 16
    %v4213 = vshrl.u32 %v4198, 16
    %v4214 = vpack.i.b16 %v4213, %v4212
    %v4218 = vpack.i.b16 %v4197, %v4163
    %v4220 = vshrl.u32 %v4163, 16
    %v4221 = vshrl.u32 %v4197, 16
    %v4222 = vpack.i.b16 %v4221, %v4220
    %v4226 = vpack.i.b16 %v4199, %v4165
    %v4228 = vshrl.u32 %v4165, 16
    %v4229 = vshrl.u32 %v4199, 16
    %v4230 = vpack.i.b16 %v4229, %v4228
    %4232 = vxpose.xlu0.c.b16.start [1/8] %v4202, 128
    %4233 = vxpose.xlu0.c.b16.cont [2/8] 0, 128
    %4234 = vxpose.xlu0.c.b16.cont [3/8] 0, 128
    %4235 = vxpose.xlu0.c.b16.cont [4/8] 0, 128
    %4236 = vxpose.xlu0.c.b16.cont [5/8] 0, 128
    %4237 = vxpose.xlu0.c.b16.cont [6/8] 0, 128
    %4238 = vxpose.xlu0.c.b16.cont [7/8] 0, 128
    %4239 = vxpose.xlu0.c.b16.end [8/8] 0, 128
    %v4240 = vpop.trf.xlu0
    %v4241 = vpop.trf.xlu0
    %v4242 = vpop.trf.xlu0
    %v4243 = vpop.trf.xlu0
    %v4244 = vpop.trf.xlu0
    %v4245 = vpop.trf.xlu0
    %v4246 = vpop.trf.xlu0
    %v4247 = vpop.trf.xlu0
    %4248 = vxpose.xlu0.c.b16.start [1/8] %v4206, 128
    %4249 = vxpose.xlu0.c.b16.cont [2/8] 0, 128
    %4250 = vxpose.xlu0.c.b16.cont [3/8] 0, 128
    %4251 = vxpose.xlu0.c.b16.cont [4/8] 0, 128
    %4252 = vxpose.xlu0.c.b16.cont [5/8] 0, 128
    %4253 = vxpose.xlu0.c.b16.cont [6/8] 0, 128
    %4254 = vxpose.xlu0.c.b16.cont [7/8] 0, 128
    %4255 = vxpose.xlu0.c.b16.end [8/8] 0, 128
    %v4256 = vpop.trf.xlu0
    %v4257 = vpop.trf.xlu0
    %v4258 = vpop.trf.xlu0
    %v4259 = vpop.trf.xlu0
    %v4260 = vpop.trf.xlu0
    %v4261 = vpop.trf.xlu0
    %v4262 = vpop.trf.xlu0
    %v4263 = vpop.trf.xlu0
    %4264 = vxpose.xlu0.c.b16.start [1/8] %v4210, 128
    %4265 = vxpose.xlu0.c.b16.cont [2/8] 0, 128
    %4266 = vxpose.xlu0.c.b16.cont [3/8] 0, 128
    %4267 = vxpose.xlu0.c.b16.cont [4/8] 0, 128
    %4268 = vxpose.xlu0.c.b16.cont [5/8] 0, 128
    %4269 = vxpose.xlu0.c.b16.cont [6/8] 0, 128
    %4270 = vxpose.xlu0.c.b16.cont [7/8] 0, 128
    %4271 = vxpose.xlu0.c.b16.end [8/8] 0, 128
    %v4272 = vpop.trf.xlu0
    %v4273 = vpop.trf.xlu0
    %v4274 = vpop.trf.xlu0
    %v4275 = vpop.trf.xlu0
    %v4276 = vpop.trf.xlu0
    %v4277 = vpop.trf.xlu0
    %v4278 = vpop.trf.xlu0
    %v4279 = vpop.trf.xlu0
    %4280 = vxpose.xlu0.c.b16.start [1/8] %v4214, 128
    %4281 = vxpose.xlu0.c.b16.cont [2/8] 0, 128
    %4282 = vxpose.xlu0.c.b16.cont [3/8] 0, 128
    %4283 = vxpose.xlu0.c.b16.cont [4/8] 0, 128
    %4284 = vxpose.xlu0.c.b16.cont [5/8] 0, 128
    %4285 = vxpose.xlu0.c.b16.cont [6/8] 0, 128
    %4286 = vxpose.xlu0.c.b16.cont [7/8] 0, 128
    %4287 = vxpose.xlu0.c.b16.end [8/8] 0, 128
    %v4288 = vpop.trf.xlu0
    %v4289 = vpop.trf.xlu0
    %v4290 = vpop.trf.xlu0
    %v4291 = vpop.trf.xlu0
    %v4292 = vpop.trf.xlu0
    %v4293 = vpop.trf.xlu0
    %v4294 = vpop.trf.xlu0
    %v4295 = vpop.trf.xlu0
    %4296 = vxpose.xlu0.c.b16.start [1/8] %v4218, 128
    %4297 = vxpose.xlu0.c.b16.cont [2/8] 0, 128
    %4298 = vxpose.xlu0.c.b16.cont [3/8] 0, 128
    %4299 = vxpose.xlu0.c.b16.cont [4/8] 0, 128
    %4300 = vxpose.xlu0.c.b16.cont [5/8] 0, 128
    %4301 = vxpose.xlu0.c.b16.cont [6/8] 0, 128
    %4302 = vxpose.xlu0.c.b16.cont [7/8] 0, 128
    %4303 = vxpose.xlu0.c.b16.end [8/8] 0, 128
    %v4304 = vpop.trf.xlu0
    %v4305 = vpop.trf.xlu0
    %v4306 = vpop.trf.xlu0
    %v4307 = vpop.trf.xlu0
    %v4308 = vpop.trf.xlu0
    %v4309 = vpop.trf.xlu0
    %v4310 = vpop.trf.xlu0
    %v4311 = vpop.trf.xlu0
    %4312 = vxpose.xlu0.c.b16.start [1/8] %v4222, 128
    %4313 = vxpose.xlu0.c.b16.cont [2/8] 0, 128
    %4314 = vxpose.xlu0.c.b16.cont [3/8] 0, 128
    %4315 = vxpose.xlu0.c.b16.cont [4/8] 0, 128
    %4316 = vxpose.xlu0.c.b16.cont [5/8] 0, 128
    %4317 = vxpose.xlu0.c.b16.cont [6/8] 0, 128
    %4318 = vxpose.xlu0.c.b16.cont [7/8] 0, 128
    %4319 = vxpose.xlu0.c.b16.end [8/8] 0, 128
    %v4320 = vpop.trf.xlu0
    %v4321 = vpop.trf.xlu0
    %v4322 = vpop.trf.xlu0
    %v4323 = vpop.trf.xlu0
    %v4324 = vpop.trf.xlu0
    %v4325 = vpop.trf.xlu0
    %v4326 = vpop.trf.xlu0
    %v4327 = vpop.trf.xlu0
    %4328 = vxpose.xlu0.c.b16.start [1/8] %v4226, 128
    %4329 = vxpose.xlu0.c.b16.cont [2/8] 0, 128
    %4330 = vxpose.xlu0.c.b16.cont [3/8] 0, 128
    %4331 = vxpose.xlu0.c.b16.cont [4/8] 0, 128
    %4332 = vxpose.xlu0.c.b16.cont [5/8] 0, 128
    %4333 = vxpose.xlu0.c.b16.cont [6/8] 0, 128
    %4334 = vxpose.xlu0.c.b16.cont [7/8] 0, 128
    %4335 = vxpose.xlu0.c.b16.end [8/8] 0, 128
    %v4336 = vpop.trf.xlu0
    %v4337 = vpop.trf.xlu0
    %v4338 = vpop.trf.xlu0
    %v4339 = vpop.trf.xlu0
    %v4340 = vpop.trf.xlu0
    %v4341 = vpop.trf.xlu0
    %v4342 = vpop.trf.xlu0
    %v4343 = vpop.trf.xlu0
    %4344 = vxpose.xlu0.c.b16.start [1/8] %v4230, 128
    %4345 = vxpose.xlu0.c.b16.cont [2/8] 0, 128
    %4346 = vxpose.xlu0.c.b16.cont [3/8] 0, 128
    %4347 = vxpose.xlu0.c.b16.cont [4/8] 0, 128
    %4348 = vxpose.xlu0.c.b16.cont [5/8] 0, 128
    %4349 = vxpose.xlu0.c.b16.cont [6/8] 0, 128
    %4350 = vxpose.xlu0.c.b16.cont [7/8] 0, 128
    %4351 = vxpose.xlu0.c.b16.end [8/8] 0, 128
    %v4352 = vpop.trf.xlu0
    %v4353 = vpop.trf.xlu0
    %v4354 = vpop.trf.xlu0
    %v4355 = vpop.trf.xlu0
    %v4356 = vpop.trf.xlu0
    %v4357 = vpop.trf.xlu0
    %v4358 = vpop.trf.xlu0
    %v4359 = vpop.trf.xlu0
    %v4360 = vcombine.low %v4240, %v4304
    %v4362 = vunpack.c.l.s4 1983009808
    %v4363 = vunpack.c.0.s8 %v4362
    %v4364 = vlaneseq
    %v4365 = vshrl.u32 %v4364, 7
    %v4366 = vsub.s32 %v4363, %v4365
    %v4367 = vrot.slane %v4360, %v4366
    %v4368 = vcombine.low %v4272, %v4336
    %v4370 = vunpack.c.l.s4 1983009808
    %v4371 = vunpack.c.0.s8 %v4370
    %v4372 = vlaneseq
    %v4373 = vshrl.u32 %v4372, 7
    %v4374 = vsub.s32 %v4371, %v4373
    %v4375 = vrot.slane %v4368, %v4374
    %v4376 = vcombine.low %v4367, %v4375
    %v4378 = vunpack.c.l.s4 1934713408
    %v4379 = vunpack.c.0.s8 %v4378
    %v4380 = vlaneseq
    %v4381 = vshrl.u32 %v4380, 7
    %v4382 = vsub.s32 %v4379, %v4381
    %v4383 = vrot.slane %v4376, %v4382
    %v4384 = vcombine.high %v4383, 0
    %v4385 = vcombine.low %v4256, %v4320
    %v4387 = vunpack.c.l.s4 1983009808
    %v4388 = vunpack.c.0.s8 %v4387
    %v4389 = vlaneseq
    %v4390 = vshrl.u32 %v4389, 7
    %v4391 = vsub.s32 %v4388, %v4390
    %v4392 = vrot.slane %v4385, %v4391
    %v4393 = vcombine.low %v4288, %v4352
    %v4395 = vunpack.c.l.s4 1983009808
    %v4396 = vunpack.c.0.s8 %v4395
    %v4397 = vlaneseq
    %v4398 = vshrl.u32 %v4397, 7
    %v4399 = vsub.s32 %v4396, %v4398
    %v4400 = vrot.slane %v4393, %v4399
    %v4401 = vcombine.low %v4392, %v4400
    %v4403 = vunpack.c.l.s4 1934713408
    %v4404 = vunpack.c.0.s8 %v4403
    %v4405 = vlaneseq
    %v4406 = vshrl.u32 %v4405, 7
    %v4407 = vsub.s32 %v4404, %v4406
    %v4408 = vrot.slane %v4401, %v4407
    %v4409 = vcombine.high %v4408, 0
    %v4412 = vpack.i.b16 %v4408, %v4383
    %v4413 = vshrl.u32 %v4383, 16
    %v4414 = vshrl.u32 %v4408, 16
    %v4415 = vpack.i.b16 %v4414, %v4413
    %v4418 = vpack.i.b16 %v4409, %v4384
    %v4419 = vshrl.u32 %v4384, 16
    %v4420 = vshrl.u32 %v4409, 16
    %v4421 = vpack.i.b16 %v4420, %v4419
    %4422 = vxpose.xlu0.c.b16.start [1/8] %v3988, 128
    %4423 = vxpose.xlu0.c.b16.cont [2/8] 0, 128
    %4424 = vxpose.xlu0.c.b16.cont [3/8] 0, 128
    %4425 = vxpose.xlu0.c.b16.cont [4/8] 0, 128
    %4426 = vxpose.xlu0.c.b16.cont [5/8] 0, 128
    %4427 = vxpose.xlu0.c.b16.cont [6/8] 0, 128
    %4428 = vxpose.xlu0.c.b16.cont [7/8] 0, 128
    %4429 = vxpose.xlu0.c.b16.end [8/8] 0, 128
    %v4430 = vpop.trf.xlu0
    %v4431 = vpop.trf.xlu0
    %v4432 = vpop.trf.xlu0
    %v4433 = vpop.trf.xlu0
    %v4434 = vpop.trf.xlu0
    %v4435 = vpop.trf.xlu0
    %v4436 = vpop.trf.xlu0
    %v4437 = vpop.trf.xlu0
    %4438 = vxpose.xlu0.c.b16.start [1/8] %v3989, 128
    %4439 = vxpose.xlu0.c.b16.cont [2/8] 0, 128
    %4440 = vxpose.xlu0.c.b16.cont [3/8] 0, 128
    %4441 = vxpose.xlu0.c.b16.cont [4/8] 0, 128
    %4442 = vxpose.xlu0.c.b16.cont [5/8] 0, 128
    %4443 = vxpose.xlu0.c.b16.cont [6/8] 0, 128
    %4444 = vxpose.xlu0.c.b16.cont [7/8] 0, 128
    %4445 = vxpose.xlu0.c.b16.end [8/8] 0, 128
    %v4446 = vpop.trf.xlu0
    %v4447 = vpop.trf.xlu0
    %v4448 = vpop.trf.xlu0
    %v4449 = vpop.trf.xlu0
    %v4450 = vpop.trf.xlu0
    %v4451 = vpop.trf.xlu0
    %v4452 = vpop.trf.xlu0
    %v4453 = vpop.trf.xlu0
    %4454 = vxpose.xlu0.c.b16.start [1/8] %v3990, 128
    %4455 = vxpose.xlu0.c.b16.cont [2/8] 0, 128
    %4456 = vxpose.xlu0.c.b16.cont [3/8] 0, 128
    %4457 = vxpose.xlu0.c.b16.cont [4/8] 0, 128
    %4458 = vxpose.xlu0.c.b16.cont [5/8] 0, 128
    %4459 = vxpose.xlu0.c.b16.cont [6/8] 0, 128
    %4460 = vxpose.xlu0.c.b16.cont [7/8] 0, 128
    %4461 = vxpose.xlu0.c.b16.end [8/8] 0, 128
    %v4462 = vpop.trf.xlu0
    %v4463 = vpop.trf.xlu0
    %v4464 = vpop.trf.xlu0
    %v4465 = vpop.trf.xlu0
    %v4466 = vpop.trf.xlu0
    %v4467 = vpop.trf.xlu0
    %v4468 = vpop.trf.xlu0
    %v4469 = vpop.trf.xlu0
    %4470 = vxpose.xlu0.c.b16.start [1/8] %v3991, 128
    %4471 = vxpose.xlu0.c.b16.cont [2/8] 0, 128
    %4472 = vxpose.xlu0.c.b16.cont [3/8] 0, 128
    %4473 = vxpose.xlu0.c.b16.cont [4/8] 0, 128
    %4474 = vxpose.xlu0.c.b16.cont [5/8] 0, 128
    %4475 = vxpose.xlu0.c.b16.cont [6/8] 0, 128
    %4476 = vxpose.xlu0.c.b16.cont [7/8] 0, 128
    %4477 = vxpose.xlu0.c.b16.end [8/8] 0, 128
    %v4478 = vpop.trf.xlu0
    %v4479 = vpop.trf.xlu0
    %v4480 = vpop.trf.xlu0
    %v4481 = vpop.trf.xlu0
    %v4482 = vpop.trf.xlu0
    %v4483 = vpop.trf.xlu0
    %v4484 = vpop.trf.xlu0
    %v4485 = vpop.trf.xlu0
    %4486 = vxpose.xlu0.c.b16.start [1/8] %v3992, 128
    %4487 = vxpose.xlu0.c.b16.cont [2/8] 0, 128
    %4488 = vxpose.xlu0.c.b16.cont [3/8] 0, 128
    %4489 = vxpose.xlu0.c.b16.cont [4/8] 0, 128
    %4490 = vxpose.xlu0.c.b16.cont [5/8] 0, 128
    %4491 = vxpose.xlu0.c.b16.cont [6/8] 0, 128
    %4492 = vxpose.xlu0.c.b16.cont [7/8] 0, 128
    %4493 = vxpose.xlu0.c.b16.end [8/8] 0, 128
    %v4494 = vpop.trf.xlu0
    %v4495 = vpop.trf.xlu0
    %v4496 = vpop.trf.xlu0
    %v4497 = vpop.trf.xlu0
    %v4498 = vpop.trf.xlu0
    %v4499 = vpop.trf.xlu0
    %v4500 = vpop.trf.xlu0
    %v4501 = vpop.trf.xlu0
    %4502 = vxpose.xlu0.c.b16.start [1/8] %v3993, 128
    %4503 = vxpose.xlu0.c.b16.cont [2/8] 0, 128
    %4504 = vxpose.xlu0.c.b16.cont [3/8] 0, 128
    %4505 = vxpose.xlu0.c.b16.cont [4/8] 0, 128
    %4506 = vxpose.xlu0.c.b16.cont [5/8] 0, 128
    %4507 = vxpose.xlu0.c.b16.cont [6/8] 0, 128
    %4508 = vxpose.xlu0.c.b16.cont [7/8] 0, 128
    %4509 = vxpose.xlu0.c.b16.end [8/8] 0, 128
    %v4510 = vpop.trf.xlu0
    %v4511 = vpop.trf.xlu0
    %v4512 = vpop.trf.xlu0
    %v4513 = vpop.trf.xlu0
    %v4514 = vpop.trf.xlu0
    %v4515 = vpop.trf.xlu0
    %v4516 = vpop.trf.xlu0
    %v4517 = vpop.trf.xlu0
    %4518 = vxpose.xlu0.c.b16.start [1/8] %v3994, 128
    %4519 = vxpose.xlu0.c.b16.cont [2/8] 0, 128
    %4520 = vxpose.xlu0.c.b16.cont [3/8] 0, 128
    %4521 = vxpose.xlu0.c.b16.cont [4/8] 0, 128
    %4522 = vxpose.xlu0.c.b16.cont [5/8] 0, 128
    %4523 = vxpose.xlu0.c.b16.cont [6/8] 0, 128
    %4524 = vxpose.xlu0.c.b16.cont [7/8] 0, 128
    %4525 = vxpose.xlu0.c.b16.end [8/8] 0, 128
    %v4526 = vpop.trf.xlu0
    %v4527 = vpop.trf.xlu0
    %v4528 = vpop.trf.xlu0
    %v4529 = vpop.trf.xlu0
    %v4530 = vpop.trf.xlu0
    %v4531 = vpop.trf.xlu0
    %v4532 = vpop.trf.xlu0
    %v4533 = vpop.trf.xlu0
    %4534 = vxpose.xlu0.c.b16.start [1/8] %v3995, 128
    %4535 = vxpose.xlu0.c.b16.cont [2/8] 0, 128
    %4536 = vxpose.xlu0.c.b16.cont [3/8] 0, 128
    %4537 = vxpose.xlu0.c.b16.cont [4/8] 0, 128
    %4538 = vxpose.xlu0.c.b16.cont [5/8] 0, 128
    %4539 = vxpose.xlu0.c.b16.cont [6/8] 0, 128
    %4540 = vxpose.xlu0.c.b16.cont [7/8] 0, 128
    %4541 = vxpose.xlu0.c.b16.end [8/8] 0, 128
    %v4542 = vpop.trf.xlu0
    %v4543 = vpop.trf.xlu0
    %v4544 = vpop.trf.xlu0
    %v4545 = vpop.trf.xlu0
    %v4546 = vpop.trf.xlu0
    %v4547 = vpop.trf.xlu0
    %v4548 = vpop.trf.xlu0
    %v4549 = vpop.trf.xlu0
    %v4550 = vcombine.low %v4430, %v4494
    %v4552 = vunpack.c.l.s4 1983009808
    %v4553 = vunpack.c.0.s8 %v4552
    %v4554 = vlaneseq
    %v4555 = vshrl.u32 %v4554, 7
    %v4556 = vsub.s32 %v4553, %v4555
    %v4557 = vrot.slane %v4550, %v4556
    %v4558 = vcombine.low %v4462, %v4526
    %v4560 = vunpack.c.l.s4 1983009808
    %v4561 = vunpack.c.0.s8 %v4560
    %v4562 = vlaneseq
    %v4563 = vshrl.u32 %v4562, 7
    %v4564 = vsub.s32 %v4561, %v4563
    %v4565 = vrot.slane %v4558, %v4564
    %v4566 = vcombine.low %v4557, %v4565
    %v4567 = vcombine.high %v4557, %v4565
    %v4569 = vunpack.c.l.s4 1934713408
    %v4570 = vunpack.c.0.s8 %v4569
    %v4571 = vlaneseq
    %v4572 = vshrl.u32 %v4571, 7
    %v4573 = vsub.s32 %v4570, %v4572
    %v4574 = vrot.slane %v4566, %v4573
    %v4576 = vunpack.c.l.s4 1934713408
    %v4577 = vunpack.c.0.s8 %v4576
    %v4578 = vlaneseq
    %v4579 = vshrl.u32 %v4578, 7
    %v4580 = vsub.s32 %v4577, %v4579
    %v4581 = vrot.slane %v4567, %v4580
    %v4582 = vcombine.high %v4574, 0
    %v4583 = vcombine.high %v4581, 0
    %v4584 = vcombine.low %v4446, %v4510
    %v4586 = vunpack.c.l.s4 1983009808
    %v4587 = vunpack.c.0.s8 %v4586
    %v4588 = vlaneseq
    %v4589 = vshrl.u32 %v4588, 7
    %v4590 = vsub.s32 %v4587, %v4589
    %v4591 = vrot.slane %v4584, %v4590
    %v4592 = vcombine.low %v4478, %v4542
    %v4594 = vunpack.c.l.s4 1983009808
    %v4595 = vunpack.c.0.s8 %v4594
    %v4596 = vlaneseq
    %v4597 = vshrl.u32 %v4596, 7
    %v4598 = vsub.s32 %v4595, %v4597
    %v4599 = vrot.slane %v4592, %v4598
    %v4600 = vcombine.low %v4591, %v4599
    %v4601 = vcombine.high %v4591, %v4599
    %v4603 = vunpack.c.l.s4 1934713408
    %v4604 = vunpack.c.0.s8 %v4603
    %v4605 = vlaneseq
    %v4606 = vshrl.u32 %v4605, 7
    %v4607 = vsub.s32 %v4604, %v4606
    %v4608 = vrot.slane %v4600, %v4607
    %v4610 = vunpack.c.l.s4 1934713408
    %v4611 = vunpack.c.0.s8 %v4610
    %v4612 = vlaneseq
    %v4613 = vshrl.u32 %v4612, 7
    %v4614 = vsub.s32 %v4611, %v4613
    %v4615 = vrot.slane %v4601, %v4614
    %v4616 = vcombine.high %v4608, 0
    %v4617 = vcombine.high %v4615, 0
    %v4620 = vpack.i.b16 %v4608, %v4574
    %v4622 = vshrl.u32 %v4574, 16
    %v4623 = vshrl.u32 %v4608, 16
    %v4624 = vpack.i.b16 %v4623, %v4622
    %v4628 = vpack.i.b16 %v4616, %v4582
    %v4630 = vshrl.u32 %v4582, 16
    %v4631 = vshrl.u32 %v4616, 16
    %v4632 = vpack.i.b16 %v4631, %v4630
    %v4636 = vpack.i.b16 %v4615, %v4581
    %v4638 = vshrl.u32 %v4581, 16
    %v4639 = vshrl.u32 %v4615, 16
    %v4640 = vpack.i.b16 %v4639, %v4638
    %v4644 = vpack.i.b16 %v4617, %v4583
    %v4646 = vshrl.u32 %v4583, 16
    %v4647 = vshrl.u32 %v4617, 16
    %v4648 = vpack.i.b16 %v4647, %v4646
    %4650 = vxpose.xlu0.c.b16.start [1/8] %v4620, 128
    %4651 = vxpose.xlu0.c.b16.cont [2/8] 0, 128
    %4652 = vxpose.xlu0.c.b16.cont [3/8] 0, 128
    %4653 = vxpose.xlu0.c.b16.cont [4/8] 0, 128
    %4654 = vxpose.xlu0.c.b16.cont [5/8] 0, 128
    %4655 = vxpose.xlu0.c.b16.cont [6/8] 0, 128
    %4656 = vxpose.xlu0.c.b16.cont [7/8] 0, 128
    %4657 = vxpose.xlu0.c.b16.end [8/8] 0, 128
    %v4658 = vpop.trf.xlu0
    %v4659 = vpop.trf.xlu0
    %v4660 = vpop.trf.xlu0
    %v4661 = vpop.trf.xlu0
    %v4662 = vpop.trf.xlu0
    %v4663 = vpop.trf.xlu0
    %v4664 = vpop.trf.xlu0
    %v4665 = vpop.trf.xlu0
    %4666 = vxpose.xlu0.c.b16.start [1/8] %v4624, 128
    %4667 = vxpose.xlu0.c.b16.cont [2/8] 0, 128
    %4668 = vxpose.xlu0.c.b16.cont [3/8] 0, 128
    %4669 = vxpose.xlu0.c.b16.cont [4/8] 0, 128
    %4670 = vxpose.xlu0.c.b16.cont [5/8] 0, 128
    %4671 = vxpose.xlu0.c.b16.cont [6/8] 0, 128
    %4672 = vxpose.xlu0.c.b16.cont [7/8] 0, 128
    %4673 = vxpose.xlu0.c.b16.end [8/8] 0, 128
    %v4674 = vpop.trf.xlu0
    %v4675 = vpop.trf.xlu0
    %v4676 = vpop.trf.xlu0
    %v4677 = vpop.trf.xlu0
    %v4678 = vpop.trf.xlu0
    %v4679 = vpop.trf.xlu0
    %v4680 = vpop.trf.xlu0
    %v4681 = vpop.trf.xlu0
    %4682 = vxpose.xlu0.c.b16.start [1/8] %v4628, 128
    %4683 = vxpose.xlu0.c.b16.cont [2/8] 0, 128
    %4684 = vxpose.xlu0.c.b16.cont [3/8] 0, 128
    %4685 = vxpose.xlu0.c.b16.cont [4/8] 0, 128
    %4686 = vxpose.xlu0.c.b16.cont [5/8] 0, 128
    %4687 = vxpose.xlu0.c.b16.cont [6/8] 0, 128
    %4688 = vxpose.xlu0.c.b16.cont [7/8] 0, 128
    %4689 = vxpose.xlu0.c.b16.end [8/8] 0, 128
    %v4690 = vpop.trf.xlu0
    %v4691 = vpop.trf.xlu0
    %v4692 = vpop.trf.xlu0
    %v4693 = vpop.trf.xlu0
    %v4694 = vpop.trf.xlu0
    %v4695 = vpop.trf.xlu0
    %v4696 = vpop.trf.xlu0
    %v4697 = vpop.trf.xlu0
    %4698 = vxpose.xlu0.c.b16.start [1/8] %v4632, 128
    %4699 = vxpose.xlu0.c.b16.cont [2/8] 0, 128
    %4700 = vxpose.xlu0.c.b16.cont [3/8] 0, 128
    %4701 = vxpose.xlu0.c.b16.cont [4/8] 0, 128
    %4702 = vxpose.xlu0.c.b16.cont [5/8] 0, 128
    %4703 = vxpose.xlu0.c.b16.cont [6/8] 0, 128
    %4704 = vxpose.xlu0.c.b16.cont [7/8] 0, 128
    %4705 = vxpose.xlu0.c.b16.end [8/8] 0, 128
    %v4706 = vpop.trf.xlu0
    %v4707 = vpop.trf.xlu0
    %v4708 = vpop.trf.xlu0
    %v4709 = vpop.trf.xlu0
    %v4710 = vpop.trf.xlu0
    %v4711 = vpop.trf.xlu0
    %v4712 = vpop.trf.xlu0
    %v4713 = vpop.trf.xlu0
    %4714 = vxpose.xlu0.c.b16.start [1/8] %v4636, 128
    %4715 = vxpose.xlu0.c.b16.cont [2/8] 0, 128
    %4716 = vxpose.xlu0.c.b16.cont [3/8] 0, 128
    %4717 = vxpose.xlu0.c.b16.cont [4/8] 0, 128
    %4718 = vxpose.xlu0.c.b16.cont [5/8] 0, 128
    %4719 = vxpose.xlu0.c.b16.cont [6/8] 0, 128
    %4720 = vxpose.xlu0.c.b16.cont [7/8] 0, 128
    %4721 = vxpose.xlu0.c.b16.end [8/8] 0, 128
    %v4722 = vpop.trf.xlu0
    %v4723 = vpop.trf.xlu0
    %v4724 = vpop.trf.xlu0
    %v4725 = vpop.trf.xlu0
    %v4726 = vpop.trf.xlu0
    %v4727 = vpop.trf.xlu0
    %v4728 = vpop.trf.xlu0
    %v4729 = vpop.trf.xlu0
    %4730 = vxpose.xlu0.c.b16.start [1/8] %v4640, 128
    %4731 = vxpose.xlu0.c.b16.cont [2/8] 0, 128
    %4732 = vxpose.xlu0.c.b16.cont [3/8] 0, 128
    %4733 = vxpose.xlu0.c.b16.cont [4/8] 0, 128
    %4734 = vxpose.xlu0.c.b16.cont [5/8] 0, 128
    %4735 = vxpose.xlu0.c.b16.cont [6/8] 0, 128
    %4736 = vxpose.xlu0.c.b16.cont [7/8] 0, 128
    %4737 = vxpose.xlu0.c.b16.end [8/8] 0, 128
    %v4738 = vpop.trf.xlu0
    %v4739 = vpop.trf.xlu0
    %v4740 = vpop.trf.xlu0
    %v4741 = vpop.trf.xlu0
    %v4742 = vpop.trf.xlu0
    %v4743 = vpop.trf.xlu0
    %v4744 = vpop.trf.xlu0
    %v4745 = vpop.trf.xlu0
    %4746 = vxpose.xlu0.c.b16.start [1/8] %v4644, 128
    %4747 = vxpose.xlu0.c.b16.cont [2/8] 0, 128
    %4748 = vxpose.xlu0.c.b16.cont [3/8] 0, 128
    %4749 = vxpose.xlu0.c.b16.cont [4/8] 0, 128
    %4750 = vxpose.xlu0.c.b16.cont [5/8] 0, 128
    %4751 = vxpose.xlu0.c.b16.cont [6/8] 0, 128
    %4752 = vxpose.xlu0.c.b16.cont [7/8] 0, 128
    %4753 = vxpose.xlu0.c.b16.end [8/8] 0, 128
    %v4754 = vpop.trf.xlu0
    %v4755 = vpop.trf.xlu0
    %v4756 = vpop.trf.xlu0
    %v4757 = vpop.trf.xlu0
    %v4758 = vpop.trf.xlu0
    %v4759 = vpop.trf.xlu0
    %v4760 = vpop.trf.xlu0
    %v4761 = vpop.trf.xlu0
    %4762 = vxpose.xlu0.c.b16.start [1/8] %v4648, 128
    %4763 = vxpose.xlu0.c.b16.cont [2/8] 0, 128
    %4764 = vxpose.xlu0.c.b16.cont [3/8] 0, 128
    %4765 = vxpose.xlu0.c.b16.cont [4/8] 0, 128
    %4766 = vxpose.xlu0.c.b16.cont [5/8] 0, 128
    %4767 = vxpose.xlu0.c.b16.cont [6/8] 0, 128
    %4768 = vxpose.xlu0.c.b16.cont [7/8] 0, 128
    %4769 = vxpose.xlu0.c.b16.end [8/8] 0, 128
    %v4770 = vpop.trf.xlu0
    %v4771 = vpop.trf.xlu0
    %v4772 = vpop.trf.xlu0
    %v4773 = vpop.trf.xlu0
    %v4774 = vpop.trf.xlu0
    %v4775 = vpop.trf.xlu0
    %v4776 = vpop.trf.xlu0
    %v4777 = vpop.trf.xlu0
    %v4778 = vcombine.low %v4658, %v4722
    %v4780 = vunpack.c.l.s4 1983009808
    %v4781 = vunpack.c.0.s8 %v4780
    %v4782 = vlaneseq
    %v4783 = vshrl.u32 %v4782, 7
    %v4784 = vsub.s32 %v4781, %v4783
    %v4785 = vrot.slane %v4778, %v4784
    %v4786 = vcombine.low %v4690, %v4754
    %v4788 = vunpack.c.l.s4 1983009808
    %v4789 = vunpack.c.0.s8 %v4788
    %v4790 = vlaneseq
    %v4791 = vshrl.u32 %v4790, 7
    %v4792 = vsub.s32 %v4789, %v4791
    %v4793 = vrot.slane %v4786, %v4792
    %v4794 = vcombine.low %v4785, %v4793
    %v4796 = vunpack.c.l.s4 1934713408
    %v4797 = vunpack.c.0.s8 %v4796
    %v4798 = vlaneseq
    %v4799 = vshrl.u32 %v4798, 7
    %v4800 = vsub.s32 %v4797, %v4799
    %v4801 = vrot.slane %v4794, %v4800
    %v4802 = vcombine.high %v4801, 0
    %v4803 = vcombine.low %v4674, %v4738
    %v4805 = vunpack.c.l.s4 1983009808
    %v4806 = vunpack.c.0.s8 %v4805
    %v4807 = vlaneseq
    %v4808 = vshrl.u32 %v4807, 7
    %v4809 = vsub.s32 %v4806, %v4808
    %v4810 = vrot.slane %v4803, %v4809
    %v4811 = vcombine.low %v4706, %v4770
    %v4813 = vunpack.c.l.s4 1983009808
    %v4814 = vunpack.c.0.s8 %v4813
    %v4815 = vlaneseq
    %v4816 = vshrl.u32 %v4815, 7
    %v4817 = vsub.s32 %v4814, %v4816
    %v4818 = vrot.slane %v4811, %v4817
    %v4819 = vcombine.low %v4810, %v4818
    %v4821 = vunpack.c.l.s4 1934713408
    %v4822 = vunpack.c.0.s8 %v4821
    %v4823 = vlaneseq
    %v4824 = vshrl.u32 %v4823, 7
    %v4825 = vsub.s32 %v4822, %v4824
    %v4826 = vrot.slane %v4819, %v4825
    %v4827 = vcombine.high %v4826, 0
    %v4830 = vpack.i.b16 %v4826, %v4801
    %v4831 = vshrl.u32 %v4801, 16
    %v4832 = vshrl.u32 %v4826, 16
    %v4833 = vpack.i.b16 %v4832, %v4831
    %v4836 = vpack.i.b16 %v4827, %v4802
    %v4837 = vshrl.u32 %v4802, 16
    %v4838 = vshrl.u32 %v4827, 16
    %v4839 = vpack.i.b16 %v4838, %v4837
    %v4841 = vsel %vm1152, %v4412, 0
    %v4844 = vsel %vm1156, %v4830, 0
    %4846 = vmatprep.subr.bf16.mxu0 0
    %4847 = vmatpush1.bf16.msra.mxu0 %v4844
    %4848 = vmatprep.subr.bf16.mxu0 0
    %4849 = vmatpush1.bf16.msra.mxu0 0
    %4850 = vmatprep.subr.bf16.mxu0 0
    %4851 = vmatpush1.bf16.msra.mxu0 0
    %4852 = vmatprep.subr.bf16.mxu0 0
    %4853 = vmatpush1.bf16.msra.mxu0 0
    %4854 = vmatprep.subr.bf16.mxu0 0
    %4855 = vmatpush1.bf16.msra.mxu0 0
    %4856 = vmatprep.subr.bf16.mxu0 0
    %4857 = vmatpush1.bf16.msra.mxu0 0
    %4858 = vmatprep.subr.bf16.mxu0 0
    %4859 = vmatpush1.bf16.msra.mxu0 0
    %4860 = vmatprep.subr.bf16.mxu0 0
    %4861 = vmatpush1.bf16.msra.mxu0 0
    %4862 = vmatprep.subr.bf16.mxu0 0
    %4863 = vmatpush1.bf16.msra.mxu0 0
    %4864 = vmatprep.subr.bf16.mxu0 0
    %4865 = vmatpush1.bf16.msra.mxu0 0
    %4866 = vmatprep.subr.bf16.mxu0 0
    %4867 = vmatpush1.bf16.msra.mxu0 0
    %4868 = vmatprep.subr.bf16.mxu0 0
    %4869 = vmatpush1.bf16.msra.mxu0 0
    %4870 = vmatprep.subr.bf16.mxu0 0
    %4871 = vmatpush1.bf16.msra.mxu0 0
    %4872 = vmatprep.subr.bf16.mxu0 0
    %4873 = vmatpush1.bf16.msra.mxu0 0
    %4874 = vmatprep.subr.bf16.mxu0 0
    %4875 = vmatpush1.bf16.msra.mxu0 0
    %4876 = vmatprep.subr.bf16.mxu0 0
    %4877 = vmatpush1.bf16.msra.mxu0 0
    %4878 = vmatprep.mubr.bf16.mxu0 0
    %4879 = vmatmul.mubr.bf16.gmra.mrb[0].mxu0 %v4841
    %v4880 = vpop.f32.mrb[0].mxu0
    %v4881 = vadd.f32 0.0, %v4880
    %v4882 = vpop.f32.mrb[0].mxu0
    %v4883 = vpop.f32.mrb[0].mxu0
    %v4884 = vpop.f32.mrb[0].mxu0
    %4885 = vdwg.mxu0
    %v4887 = vsel %vm1152, %v4415, 0
    %v4890 = vsel %vm1156, %v4833, 0
    %4892 = vmatprep.subr.bf16.mxu0 0
    %4893 = vmatpush1.bf16.msra.mxu0 %v4890
    %4894 = vmatprep.subr.bf16.mxu0 0
    %4895 = vmatpush1.bf16.msra.mxu0 0
    %4896 = vmatprep.subr.bf16.mxu0 0
    %4897 = vmatpush1.bf16.msra.mxu0 0
    %4898 = vmatprep.subr.bf16.mxu0 0
    %4899 = vmatpush1.bf16.msra.mxu0 0
    %4900 = vmatprep.subr.bf16.mxu0 0
    %4901 = vmatpush1.bf16.msra.mxu0 0
    %4902 = vmatprep.subr.bf16.mxu0 0
    %4903 = vmatpush1.bf16.msra.mxu0 0
    %4904 = vmatprep.subr.bf16.mxu0 0
    %4905 = vmatpush1.bf16.msra.mxu0 0
    %4906 = vmatprep.subr.bf16.mxu0 0
    %4907 = vmatpush1.bf16.msra.mxu0 0
    %4908 = vmatprep.subr.bf16.mxu0 0
    %4909 = vmatpush1.bf16.msra.mxu0 0
    %4910 = vmatprep.subr.bf16.mxu0 0
    %4911 = vmatpush1.bf16.msra.mxu0 0
    %4912 = vmatprep.subr.bf16.mxu0 0
    %4913 = vmatpush1.bf16.msra.mxu0 0
    %4914 = vmatprep.subr.bf16.mxu0 0
    %4915 = vmatpush1.bf16.msra.mxu0 0
    %4916 = vmatprep.subr.bf16.mxu0 0
    %4917 = vmatpush1.bf16.msra.mxu0 0
    %4918 = vmatprep.subr.bf16.mxu0 0
    %4919 = vmatpush1.bf16.msra.mxu0 0
    %4920 = vmatprep.subr.bf16.mxu0 0
    %4921 = vmatpush1.bf16.msra.mxu0 0
    %4922 = vmatprep.subr.bf16.mxu0 0
    %4923 = vmatpush1.bf16.msra.mxu0 0
    %4924 = vmatprep.mubr.bf16.mxu0 0
    %4925 = vmatmul.mubr.bf16.gmra.mrb[0].mxu0 %v4887
    %v4926 = vpop.f32.mrb[0].mxu0
    %v4927 = vadd.f32 0.0, %v4926
    %v4928 = vpop.f32.mrb[0].mxu0
    %v4929 = vpop.f32.mrb[0].mxu0
    %v4930 = vpop.f32.mrb[0].mxu0
    %4931 = vdwg.mxu0
    %v4933 = vsel %vm1152, %v4418, 0
    %v4936 = vsel %vm1156, %v4836, 0
    %4938 = vmatprep.subr.bf16.mxu0 0
    %4939 = vmatpush1.bf16.msra.mxu0 %v4936
    %4940 = vmatprep.subr.bf16.mxu0 0
    %4941 = vmatpush1.bf16.msra.mxu0 0
    %4942 = vmatprep.subr.bf16.mxu0 0
    %4943 = vmatpush1.bf16.msra.mxu0 0
    %4944 = vmatprep.subr.bf16.mxu0 0
    %4945 = vmatpush1.bf16.msra.mxu0 0
    %4946 = vmatprep.subr.bf16.mxu0 0
    %4947 = vmatpush1.bf16.msra.mxu0 0
    %4948 = vmatprep.subr.bf16.mxu0 0
    %4949 = vmatpush1.bf16.msra.mxu0 0
    %4950 = vmatprep.subr.bf16.mxu0 0
    %4951 = vmatpush1.bf16.msra.mxu0 0
    %4952 = vmatprep.subr.bf16.mxu0 0
    %4953 = vmatpush1.bf16.msra.mxu0 0
    %4954 = vmatprep.subr.bf16.mxu0 0
    %4955 = vmatpush1.bf16.msra.mxu0 0
    %4956 = vmatprep.subr.bf16.mxu0 0
    %4957 = vmatpush1.bf16.msra.mxu0 0
    %4958 = vmatprep.subr.bf16.mxu0 0
    %4959 = vmatpush1.bf16.msra.mxu0 0
    %4960 = vmatprep.subr.bf16.mxu0 0
    %4961 = vmatpush1.bf16.msra.mxu0 0
    %4962 = vmatprep.subr.bf16.mxu0 0
    %4963 = vmatpush1.bf16.msra.mxu0 0
    %4964 = vmatprep.subr.bf16.mxu0 0
    %4965 = vmatpush1.bf16.msra.mxu0 0
    %4966 = vmatprep.subr.bf16.mxu0 0
    %4967 = vmatpush1.bf16.msra.mxu0 0
    %4968 = vmatprep.subr.bf16.mxu0 0
    %4969 = vmatpush1.bf16.msra.mxu0 0
    %4970 = vmatprep.mubr.bf16.mxu0 0
    %4971 = vmatmul.mubr.bf16.gmra.mrb[0].mxu0 %v4933
    %v4972 = vpop.f32.mrb[0].mxu0
    %v4973 = vadd.f32 0.0, %v4972
    %v4974 = vpop.f32.mrb[0].mxu0
    %v4975 = vpop.f32.mrb[0].mxu0
    %v4976 = vpop.f32.mrb[0].mxu0
    %4977 = vdwg.mxu0
    %v4979 = vsel %vm1152, %v4421, 0
    %v4982 = vsel %vm1156, %v4839, 0
    %4984 = vmatprep.subr.bf16.mxu0 0
    %4985 = vmatpush1.bf16.msra.mxu0 %v4982
    %4986 = vmatprep.subr.bf16.mxu0 0
    %4987 = vmatpush1.bf16.msra.mxu0 0
    %4988 = vmatprep.subr.bf16.mxu0 0
    %4989 = vmatpush1.bf16.msra.mxu0 0
    %4990 = vmatprep.subr.bf16.mxu0 0
    %4991 = vmatpush1.bf16.msra.mxu0 0
    %4992 = vmatprep.subr.bf16.mxu0 0
    %4993 = vmatpush1.bf16.msra.mxu0 0
    %4994 = vmatprep.subr.bf16.mxu0 0
    %4995 = vmatpush1.bf16.msra.mxu0 0
    %4996 = vmatprep.subr.bf16.mxu0 0
    %4997 = vmatpush1.bf16.msra.mxu0 0
    %4998 = vmatprep.subr.bf16.mxu0 0
    %4999 = vmatpush1.bf16.msra.mxu0 0
    %5000 = vmatprep.subr.bf16.mxu0 0
    %5001 = vmatpush1.bf16.msra.mxu0 0
    %5002 = vmatprep.subr.bf16.mxu0 0
    %5003 = vmatpush1.bf16.msra.mxu0 0
    %5004 = vmatprep.subr.bf16.mxu0 0
    %5005 = vmatpush1.bf16.msra.mxu0 0
    %5006 = vmatprep.subr.bf16.mxu0 0
    %5007 = vmatpush1.bf16.msra.mxu0 0
    %5008 = vmatprep.subr.bf16.mxu0 0
    %5009 = vmatpush1.bf16.msra.mxu0 0
    %5010 = vmatprep.subr.bf16.mxu0 0
    %5011 = vmatpush1.bf16.msra.mxu0 0
    %5012 = vmatprep.subr.bf16.mxu0 0
    %5013 = vmatpush1.bf16.msra.mxu0 0
    %5014 = vmatprep.subr.bf16.mxu0 0
    %5015 = vmatpush1.bf16.msra.mxu0 0
    %5016 = vmatprep.mubr.bf16.mxu0 0
    %5017 = vmatmul.mubr.bf16.gmra.mrb[0].mxu0 %v4979
    %v5018 = vpop.f32.mrb[0].mxu0
    %v5019 = vadd.f32 0.0, %v5018
    %v5020 = vpop.f32.mrb[0].mxu0
    %v5021 = vpop.f32.mrb[0].mxu0
    %v5022 = vpop.f32.mrb[0].mxu0
    %5023 = vdwg.mxu0
    %5024 = vxpose.xlu0.b32.start [1/16] %v4881, 128
    %5025 = vxpose.xlu0.b32.cont [2/16] 0.0, 128
    %5026 = vxpose.xlu0.b32.cont [3/16] 0.0, 128
    %5027 = vxpose.xlu0.b32.cont [4/16] 0.0, 128
    %5028 = vxpose.xlu0.b32.cont [5/16] 0.0, 128
    %5029 = vxpose.xlu0.b32.cont [6/16] 0.0, 128
    %5030 = vxpose.xlu0.b32.cont [7/16] 0.0, 128
    %5031 = vxpose.xlu0.b32.cont [8/16] 0.0, 128
    %5032 = vxpose.xlu0.b32.cont [9/16] 0.0, 128
    %5033 = vxpose.xlu0.b32.cont [10/16] 0.0, 128
    %5034 = vxpose.xlu0.b32.cont [11/16] 0.0, 128
    %5035 = vxpose.xlu0.b32.cont [12/16] 0.0, 128
    %5036 = vxpose.xlu0.b32.cont [13/16] 0.0, 128
    %5037 = vxpose.xlu0.b32.cont [14/16] 0.0, 128
    %5038 = vxpose.xlu0.b32.cont [15/16] 0.0, 128
    %5039 = vxpose.xlu0.b32.end [16/16] 0.0, 128
    %v5040 = vpop.trf.xlu0
    %v5041 = vpop.trf.xlu0
    %v5042 = vpop.trf.xlu0
    %v5043 = vpop.trf.xlu0
    %v5044 = vpop.trf.xlu0
    %v5045 = vpop.trf.xlu0
    %v5046 = vpop.trf.xlu0
    %v5047 = vpop.trf.xlu0
    %v5048 = vpop.trf.xlu0
    %v5049 = vpop.trf.xlu0
    %v5050 = vpop.trf.xlu0
    %v5051 = vpop.trf.xlu0
    %v5052 = vpop.trf.xlu0
    %v5053 = vpop.trf.xlu0
    %v5054 = vpop.trf.xlu0
    %v5055 = vpop.trf.xlu0
    %5056 = vxpose.xlu0.b32.start [1/16] %v4927, 128
    %5057 = vxpose.xlu0.b32.cont [2/16] 0.0, 128
    %5058 = vxpose.xlu0.b32.cont [3/16] 0.0, 128
    %5059 = vxpose.xlu0.b32.cont [4/16] 0.0, 128
    %5060 = vxpose.xlu0.b32.cont [5/16] 0.0, 128
    %5061 = vxpose.xlu0.b32.cont [6/16] 0.0, 128
    %5062 = vxpose.xlu0.b32.cont [7/16] 0.0, 128
    %5063 = vxpose.xlu0.b32.cont [8/16] 0.0, 128
    %5064 = vxpose.xlu0.b32.cont [9/16] 0.0, 128
    %5065 = vxpose.xlu0.b32.cont [10/16] 0.0, 128
    %5066 = vxpose.xlu0.b32.cont [11/16] 0.0, 128
    %5067 = vxpose.xlu0.b32.cont [12/16] 0.0, 128
    %5068 = vxpose.xlu0.b32.cont [13/16] 0.0, 128
    %5069 = vxpose.xlu0.b32.cont [14/16] 0.0, 128
    %5070 = vxpose.xlu0.b32.cont [15/16] 0.0, 128
    %5071 = vxpose.xlu0.b32.end [16/16] 0.0, 128
    %v5072 = vpop.trf.xlu0
    %v5073 = vpop.trf.xlu0
    %v5074 = vpop.trf.xlu0
    %v5075 = vpop.trf.xlu0
    %v5076 = vpop.trf.xlu0
    %v5077 = vpop.trf.xlu0
    %v5078 = vpop.trf.xlu0
    %v5079 = vpop.trf.xlu0
    %v5080 = vpop.trf.xlu0
    %v5081 = vpop.trf.xlu0
    %v5082 = vpop.trf.xlu0
    %v5083 = vpop.trf.xlu0
    %v5084 = vpop.trf.xlu0
    %v5085 = vpop.trf.xlu0
    %v5086 = vpop.trf.xlu0
    %v5087 = vpop.trf.xlu0
    %5088 = vxpose.xlu0.b32.start [1/16] %v4973, 128
    %5089 = vxpose.xlu0.b32.cont [2/16] 0.0, 128
    %5090 = vxpose.xlu0.b32.cont [3/16] 0.0, 128
    %5091 = vxpose.xlu0.b32.cont [4/16] 0.0, 128
    %5092 = vxpose.xlu0.b32.cont [5/16] 0.0, 128
    %5093 = vxpose.xlu0.b32.cont [6/16] 0.0, 128
    %5094 = vxpose.xlu0.b32.cont [7/16] 0.0, 128
    %5095 = vxpose.xlu0.b32.cont [8/16] 0.0, 128
    %5096 = vxpose.xlu0.b32.cont [9/16] 0.0, 128
    %5097 = vxpose.xlu0.b32.cont [10/16] 0.0, 128
    %5098 = vxpose.xlu0.b32.cont [11/16] 0.0, 128
    %5099 = vxpose.xlu0.b32.cont [12/16] 0.0, 128
    %5100 = vxpose.xlu0.b32.cont [13/16] 0.0, 128
    %5101 = vxpose.xlu0.b32.cont [14/16] 0.0, 128
    %5102 = vxpose.xlu0.b32.cont [15/16] 0.0, 128
    %5103 = vxpose.xlu0.b32.end [16/16] 0.0, 128
    %v5104 = vpop.trf.xlu0
    %v5105 = vpop.trf.xlu0
    %v5106 = vpop.trf.xlu0
    %v5107 = vpop.trf.xlu0
    %v5108 = vpop.trf.xlu0
    %v5109 = vpop.trf.xlu0
    %v5110 = vpop.trf.xlu0
    %v5111 = vpop.trf.xlu0
    %v5112 = vpop.trf.xlu0
    %v5113 = vpop.trf.xlu0
    %v5114 = vpop.trf.xlu0
    %v5115 = vpop.trf.xlu0
    %v5116 = vpop.trf.xlu0
    %v5117 = vpop.trf.xlu0
    %v5118 = vpop.trf.xlu0
    %v5119 = vpop.trf.xlu0
    %5120 = vxpose.xlu0.b32.start [1/16] %v5019, 128
    %5121 = vxpose.xlu0.b32.cont [2/16] 0.0, 128
    %5122 = vxpose.xlu0.b32.cont [3/16] 0.0, 128
    %5123 = vxpose.xlu0.b32.cont [4/16] 0.0, 128
    %5124 = vxpose.xlu0.b32.cont [5/16] 0.0, 128
    %5125 = vxpose.xlu0.b32.cont [6/16] 0.0, 128
    %5126 = vxpose.xlu0.b32.cont [7/16] 0.0, 128
    %5127 = vxpose.xlu0.b32.cont [8/16] 0.0, 128
    %5128 = vxpose.xlu0.b32.cont [9/16] 0.0, 128
    %5129 = vxpose.xlu0.b32.cont [10/16] 0.0, 128
    %5130 = vxpose.xlu0.b32.cont [11/16] 0.0, 128
    %5131 = vxpose.xlu0.b32.cont [12/16] 0.0, 128
    %5132 = vxpose.xlu0.b32.cont [13/16] 0.0, 128
    %5133 = vxpose.xlu0.b32.cont [14/16] 0.0, 128
    %5134 = vxpose.xlu0.b32.cont [15/16] 0.0, 128
    %5135 = vxpose.xlu0.b32.end [16/16] 0.0, 128
    %v5136 = vpop.trf.xlu0
    %v5137 = vpop.trf.xlu0
    %v5138 = vpop.trf.xlu0
    %v5139 = vpop.trf.xlu0
    %v5140 = vpop.trf.xlu0
    %v5141 = vpop.trf.xlu0
    %v5142 = vpop.trf.xlu0
    %v5143 = vpop.trf.xlu0
    %v5144 = vpop.trf.xlu0
    %v5145 = vpop.trf.xlu0
    %v5146 = vpop.trf.xlu0
    %v5147 = vpop.trf.xlu0
    %v5148 = vpop.trf.xlu0
    %v5149 = vpop.trf.xlu0
    %v5150 = vpop.trf.xlu0
    %v5151 = vpop.trf.xlu0
    %v5152 = vcombine.low %v5040, %v5104
    %v5153 = vcombine.high %v5040, %v5104
    %v5155 = vunpack.c.l.s4 1983009808
    %v5156 = vunpack.c.0.s8 %v5155
    %v5157 = vlaneseq
    %v5158 = vshrl.u32 %v5157, 7
    %v5159 = vsub.s32 %v5156, %v5158
    %v5160 = vrot.slane %v5152, %v5159
    %v5162 = vunpack.c.l.s4 1983009808
    %v5163 = vunpack.c.0.s8 %v5162
    %v5164 = vlaneseq
    %v5165 = vshrl.u32 %v5164, 7
    %v5166 = vsub.s32 %v5163, %v5165
    %v5167 = vrot.slane %v5153, %v5166
    %v5168 = vcombine.low %v5072, %v5136
    %v5169 = vcombine.high %v5072, %v5136
    %v5171 = vunpack.c.l.s4 1983009808
    %v5172 = vunpack.c.0.s8 %v5171
    %v5173 = vlaneseq
    %v5174 = vshrl.u32 %v5173, 7
    %v5175 = vsub.s32 %v5172, %v5174
    %v5176 = vrot.slane %v5168, %v5175
    %v5178 = vunpack.c.l.s4 1983009808
    %v5179 = vunpack.c.0.s8 %v5178
    %v5180 = vlaneseq
    %v5181 = vshrl.u32 %v5180, 7
    %v5182 = vsub.s32 %v5179, %v5181
    %v5183 = vrot.slane %v5169, %v5182
    %v5184 = vcombine.low %v5160, %v5176
    %v5185 = vcombine.high %v5160, %v5176
    %v5187 = vunpack.c.l.s4 1934713408
    %v5188 = vunpack.c.0.s8 %v5187
    %v5189 = vlaneseq
    %v5190 = vshrl.u32 %v5189, 7
    %v5191 = vsub.s32 %v5188, %v5190
    %v5192 = vrot.slane %v5184, %v5191
    %v5194 = vunpack.c.l.s4 1934713408
    %v5195 = vunpack.c.0.s8 %v5194
    %v5196 = vlaneseq
    %v5197 = vshrl.u32 %v5196, 7
    %v5198 = vsub.s32 %v5195, %v5197
    %v5199 = vrot.slane %v5185, %v5198
    %v5200 = vcombine.low %v5167, %v5183
    %v5201 = vcombine.high %v5167, %v5183
    %v5203 = vunpack.c.l.s4 1934713408
    %v5204 = vunpack.c.0.s8 %v5203
    %v5205 = vlaneseq
    %v5206 = vshrl.u32 %v5205, 7
    %v5207 = vsub.s32 %v5204, %v5206
    %v5208 = vrot.slane %v5200, %v5207
    %v5210 = vunpack.c.l.s4 1934713408
    %v5211 = vunpack.c.0.s8 %v5210
    %v5212 = vlaneseq
    %v5213 = vshrl.u32 %v5212, 7
    %v5214 = vsub.s32 %v5211, %v5213
    %v5215 = vrot.slane %v5201, %v5214
    %v5216 = vcombine.high %v5192, 0.0
    %v5217 = vcombine.high %v5199, 0.0
    %v5218 = vcombine.high %v5208, 0.0
    %v5219 = vcombine.high %v5215, 0.0
    %v5220 = vcombine.low %v3980, %v3982
    %v5222 = vunpack.c.l.s4 1983009808
    %v5223 = vunpack.c.0.s8 %v5222
    %v5224 = vlaneseq
    %v5225 = vshrl.u32 %v5224, 7
    %v5226 = vsub.s32 %v5223, %v5225
    %v5227 = vrot.slane %v5220, %v5226
    %v5228 = vcombine.low %v3981, %v3983
    %v5230 = vunpack.c.l.s4 1983009808
    %v5231 = vunpack.c.0.s8 %v5230
    %v5232 = vlaneseq
    %v5233 = vshrl.u32 %v5232, 7
    %v5234 = vsub.s32 %v5231, %v5233
    %v5235 = vrot.slane %v5228, %v5234
    %v5236 = vcombine.low %v3984, %v3986
    %v5238 = vunpack.c.l.s4 1983009808
    %v5239 = vunpack.c.0.s8 %v5238
    %v5240 = vlaneseq
    %v5241 = vshrl.u32 %v5240, 7
    %v5242 = vsub.s32 %v5239, %v5241
    %v5243 = vrot.slane %v5236, %v5242
    %v5244 = vcombine.low %v3985, %v3987
    %v5246 = vunpack.c.l.s4 1983009808
    %v5247 = vunpack.c.0.s8 %v5246
    %v5248 = vlaneseq
    %v5249 = vshrl.u32 %v5248, 7
    %v5250 = vsub.s32 %v5247, %v5249
    %v5251 = vrot.slane %v5244, %v5250
    %v5252 = vcombine.low %v5227, %v5235
    %v5253 = vcombine.high %v5227, %v5235
    %v5255 = vunpack.c.l.s4 1934713408
    %v5256 = vunpack.c.0.s8 %v5255
    %v5257 = vlaneseq
    %v5258 = vshrl.u32 %v5257, 7
    %v5259 = vsub.s32 %v5256, %v5258
    %v5260 = vrot.slane %v5252, %v5259
    %v5262 = vunpack.c.l.s4 1934713408
    %v5263 = vunpack.c.0.s8 %v5262
    %v5264 = vlaneseq
    %v5265 = vshrl.u32 %v5264, 7
    %v5266 = vsub.s32 %v5263, %v5265
    %v5267 = vrot.slane %v5253, %v5266
    %v5268 = vcombine.low %v5243, %v5251
    %v5269 = vcombine.high %v5243, %v5251
    %v5271 = vunpack.c.l.s4 1934713408
    %v5272 = vunpack.c.0.s8 %v5271
    %v5273 = vlaneseq
    %v5274 = vshrl.u32 %v5273, 7
    %v5275 = vsub.s32 %v5272, %v5274
    %v5276 = vrot.slane %v5268, %v5275
    %v5278 = vunpack.c.l.s4 1934713408
    %v5279 = vunpack.c.0.s8 %v5278
    %v5280 = vlaneseq
    %v5281 = vshrl.u32 %v5280, 7
    %v5282 = vsub.s32 %v5279, %v5281
    %v5283 = vrot.slane %v5269, %v5282
    %v5284 = vcombine.low %v5260, %v5276
    %v5285 = vcombine.high %v5260, %v5276
    %v5286 = vcombine.low %v5267, %v5283
    %v5287 = vcombine.high %v5267, %v5283
    %5289 = vrot.lane.b32.xlu0 %v5285, 8
    %v5290 = vpop.permute.xlu0 %5289
    %5293 = vrot.lane.b32.xlu0 %v5286, 16
    %v5294 = vpop.permute.xlu0 %5293
    %5297 = vrot.lane.b32.xlu0 %v5287, 24
    %v5298 = vpop.permute.xlu0 %5297
    %v5300 = vsel %vm1152, %v5284, %v5290
    %v5301 = vsel %vm2936, %v5300, %v5294
    %v5302 = vsel %vm2938, %v5301, %v5298
    %s5303 = scalar_lea.vmem [#allocation12], 8
    %5304 = vst.msk [vmem:[%s5303] sm:$0xff] %vm135, %v5302
    %v5305 = vcombine.low %v5192, %v5199
    %v5307 = vunpack.c.l.s4 1983009808
    %v5308 = vunpack.c.0.s8 %v5307
    %v5309 = vlaneseq
    %v5310 = vshrl.u32 %v5309, 7
    %v5311 = vsub.s32 %v5308, %v5310
    %v5312 = vrot.slane %v5305, %v5311
    %v5313 = vcombine.low %v5216, %v5217
    %v5315 = vunpack.c.l.s4 1983009808
    %v5316 = vunpack.c.0.s8 %v5315
    %v5317 = vlaneseq
    %v5318 = vshrl.u32 %v5317, 7
    %v5319 = vsub.s32 %v5316, %v5318
    %v5320 = vrot.slane %v5313, %v5319
    %v5321 = vcombine.low %v5208, %v5215
    %v5323 = vunpack.c.l.s4 1983009808
    %v5324 = vunpack.c.0.s8 %v5323
    %v5325 = vlaneseq
    %v5326 = vshrl.u32 %v5325, 7
    %v5327 = vsub.s32 %v5324, %v5326
    %v5328 = vrot.slane %v5321, %v5327
    %v5329 = vcombine.low %v5218, %v5219
    %v5331 = vunpack.c.l.s4 1983009808
    %v5332 = vunpack.c.0.s8 %v5331
    %v5333 = vlaneseq
    %v5334 = vshrl.u32 %v5333, 7
    %v5335 = vsub.s32 %v5332, %v5334
    %v5336 = vrot.slane %v5329, %v5335
    %v5337 = vcombine.low %v5312, %v5320
    %v5338 = vcombine.high %v5312, %v5320
    %v5340 = vunpack.c.l.s4 1934713408
    %v5341 = vunpack.c.0.s8 %v5340
    %v5342 = vlaneseq
    %v5343 = vshrl.u32 %v5342, 7
    %v5344 = vsub.s32 %v5341, %v5343
    %v5345 = vrot.slane %v5337, %v5344
    %v5347 = vunpack.c.l.s4 1934713408
    %v5348 = vunpack.c.0.s8 %v5347
    %v5349 = vlaneseq
    %v5350 = vshrl.u32 %v5349, 7
    %v5351 = vsub.s32 %v5348, %v5350
    %v5352 = vrot.slane %v5338, %v5351
    %v5353 = vcombine.low %v5328, %v5336
    %v5354 = vcombine.high %v5328, %v5336
    %v5356 = vunpack.c.l.s4 1934713408
    %v5357 = vunpack.c.0.s8 %v5356
    %v5358 = vlaneseq
    %v5359 = vshrl.u32 %v5358, 7
    %v5360 = vsub.s32 %v5357, %v5359
    %v5361 = vrot.slane %v5353, %v5360
    %v5363 = vunpack.c.l.s4 1934713408
    %v5364 = vunpack.c.0.s8 %v5363
    %v5365 = vlaneseq
    %v5366 = vshrl.u32 %v5365, 7
    %v5367 = vsub.s32 %v5364, %v5366
    %v5368 = vrot.slane %v5354, %v5367
    %v5369 = vcombine.low %v5345, %v5361
    %v5370 = vcombine.high %v5345, %v5361
    %v5371 = vcombine.low %v5352, %v5368
    %v5372 = vcombine.high %v5352, %v5368
    %5374 = vrot.lane.b32.xlu0 %v5370, 8
    %v5375 = vpop.permute.xlu0 %5374
    %5378 = vrot.lane.b32.xlu0 %v5371, 16
    %v5379 = vpop.permute.xlu0 %5378
    %5382 = vrot.lane.b32.xlu0 %v5372, 24
    %v5383 = vpop.permute.xlu0 %5382
    %v5385 = vsel %vm1152, %v5369, %v5375
    %v5386 = vsel %vm2936, %v5385, %v5379
    %v5387 = vsel %vm2938, %v5386, %v5383
    %v5388 = vpack.c.bf16 %v5387, %v3023
    %v5389 = vld [vmem:[#allocation2] sm:$0xf]
    %v5390 = vld [vmem:[#allocation2 + $0x4] sm:$0xf]
    %v5391 = vld [vmem:[#allocation2 + $0x8] sm:$0xf]
    %v5392 = vld [vmem:[#allocation2 + $0xc] sm:$0xf]
    %v5393 = vld [vmem:[%s9 + $0x1] sm:$0x1]
    %v5394 = vlaneseq
    %v5395 = vshrl.u32 %v5394, 7
    %v5396 = vsub.s32 0, %v5395
    %v5397 = vrot.slane %v5393, %v5396
    %v5402 = vunpack.c.l.b16 %v5389
    %v5403 = vunpack.c.l.b16 %v5390
    %v5404 = vunpack.c.l.b16 %v5391
    %v5405 = vunpack.c.l.b16 %v5392
    %v5406 = vpack.c.b16 %v5403, %v5402
    %v5407 = vpack.c.b16 %v5405, %v5404
    %v5411 = vsel %vm135, %v5388, 0
    %5413 = vmatprep.subr.bf16.mxu0 0
    %5414 = vmatpush1.bf16.msra.mxu0 %v5406
    %5415 = vmatprep.subr.bf16.mxu0 0
    %5416 = vmatpush1.bf16.msra.mxu0 %v5407
    %5417 = vmatprep.subr.bf16.mxu0 0
    %5418 = vmatpush1.bf16.msra.mxu0 0
    %5419 = vmatprep.subr.bf16.mxu0 0
    %5420 = vmatpush1.bf16.msra.mxu0 0
    %5421 = vmatprep.subr.bf16.mxu0 0
    %5422 = vmatpush1.bf16.msra.mxu0 0
    %5423 = vmatprep.subr.bf16.mxu0 0
    %5424 = vmatpush1.bf16.msra.mxu0 0
    %5425 = vmatprep.subr.bf16.mxu0 0
    %5426 = vmatpush1.bf16.msra.mxu0 0
    %5427 = vmatprep.subr.bf16.mxu0 0
    %5428 = vmatpush1.bf16.msra.mxu0 0
    %5429 = vmatprep.subr.bf16.mxu0 0
    %5430 = vmatpush1.bf16.msra.mxu0 0
    %5431 = vmatprep.subr.bf16.mxu0 0
    %5432 = vmatpush1.bf16.msra.mxu0 0
    %5433 = vmatprep.subr.bf16.mxu0 0
    %5434 = vmatpush1.bf16.msra.mxu0 0
    %5435 = vmatprep.subr.bf16.mxu0 0
    %5436 = vmatpush1.bf16.msra.mxu0 0
    %5437 = vmatprep.subr.bf16.mxu0 0
    %5438 = vmatpush1.bf16.msra.mxu0 0
    %5439 = vmatprep.subr.bf16.mxu0 0
    %5440 = vmatpush1.bf16.msra.mxu0 0
    %5441 = vmatprep.subr.bf16.mxu0 0
    %5442 = vmatpush1.bf16.msra.mxu0 0
    %5443 = vmatprep.subr.bf16.mxu0 0
    %5444 = vmatpush1.bf16.msra.mxu0 0
    %5445 = vmatprep.mubr.bf16.mxu0 0
    %5446 = vmatmul.mubr.bf16.gmra.mrb[0].mxu0 %v5411
    %v5447 = vpop.f32.mrb[0].mxu0
    %v5448 = vadd.f32 %v5397, %v5447
    %v5449 = vpop.f32.mrb[0].mxu0
    %v5450 = vpop.f32.mrb[0].mxu0
    %v5451 = vadd.f32 %v5397, %v5450
    %v5452 = vpop.f32.mrb[0].mxu0
    %5453 = vdwg.mxu0
    %v5454 = vadd.f32 %v5448, %v109
    %v5455 = vadd.f32 %v5451, %v110
    %v5456 = vld [vmem:[%s9 + $0x2] sm:$0x1]
    %v5457 = vld [vmem:[%s9 + $0x3] sm:$0x1]
    %v5458 = vsel %vm135, %v5454, 0.0
    %5459 = vadd.xlane.f32.xlu0 %v5458
    %v5460 = vpop.xlane.xlu0 %5459
    %v5461 = vsel %vm135, %v5455, 0.0
    %5462 = vadd.xlane.f32.xlu0 %v5461
    %v5463 = vpop.xlane.xlu0 %5462
    %v5464 = vrcp.pop 32.0
    %v5465 = vmul.f32 %v5460, %v5464
    %v5466 = vmul.f32 %v5463, %v5464
    %v5467 = vsub.f32 %v5454, %v5465
    %v5468 = vsub.f32 %v5455, %v5466
    %v5469 = vmul.f32 %v5467, %v5467
    %v5470 = vmul.f32 %v5468, %v5468
    %v5471 = vsel %vm135, %v5469, 0.0
    %5472 = vadd.xlane.f32.xlu0 %v5471
    %v5473 = vpop.xlane.xlu0 %5472
    %v5474 = vsel %vm135, %v5470, 0.0
    %5475 = vadd.xlane.f32.xlu0 %v5474
    %v5476 = vpop.xlane.xlu0 %5475
    %v5477 = vmul.f32 %v5473, %v5464
    %v5478 = vmul.f32 %v5476, %v5464
    %v5479 = vadd.f32 %v5477, 1e-05
    %v5480 = vadd.f32 %v5478, 1e-05
    %v5481 = vrsqrt.pop %v5479
    %v5482 = vrsqrt.pop %v5480
    %v5483 = vmul.f32 %v5467, %v5481
    %v5484 = vmul.f32 %v5468, %v5482
    %v5485 = vlaneseq
    %v5486 = vshrl.u32 %v5485, 7
    %v5487 = vsub.s32 0, %v5486
    %v5488 = vrot.slane %v5456, %v5487
    %v5489 = vmul.f32 %v5483, %v5488
    %v5490 = vmul.f32 %v5484, %v5488
    %v5491 = vlaneseq
    %v5492 = vshrl.u32 %v5491, 7
    %v5493 = vsub.s32 0, %v5492
    %v5494 = vrot.slane %v5457, %v5493
    %v5495 = vadd.f32 %v5489, %v5494
    %v5496 = vadd.f32 %v5490, %v5494
    %v5497 = vpack.c.bf16 %v5496, %v5495
    %v5498 = vld [vmem:[#allocation5] sm:$0xf]
    %v5499 = vld [vmem:[#allocation5 + $0x4] sm:$0xf]
    %v5500 = vld [vmem:[#allocation5 + $0x8] sm:$0xf]
    %v5501 = vld [vmem:[#allocation5 + $0xc] sm:$0xf]
    %v5502 = vld [vmem:[%s9 + $0x4] sm:$0x1]
    %v5503 = vlaneseq
    %v5504 = vshrl.u32 %v5503, 7
    %v5505 = vsub.s32 0, %v5504
    %v5506 = vrot.slane %v5502, %v5505
    %v5511 = vunpack.c.l.b16 %v5498
    %v5512 = vunpack.c.l.b16 %v5499
    %v5513 = vunpack.c.l.b16 %v5500
    %v5514 = vunpack.c.l.b16 %v5501
    %v5515 = vpack.c.b16 %v5512, %v5511
    %v5516 = vpack.c.b16 %v5514, %v5513
    %v5520 = vsel %vm135, %v5497, 0
    %5522 = vmatprep.subr.bf16.mxu0 0
    %5523 = vmatpush1.bf16.msra.mxu0 %v5515
    %5524 = vmatprep.subr.bf16.mxu0 0
    %5525 = vmatpush1.bf16.msra.mxu0 %v5516
    %5526 = vmatprep.subr.bf16.mxu0 0
    %5527 = vmatpush1.bf16.msra.mxu0 0
    %5528 = vmatprep.subr.bf16.mxu0 0
    %5529 = vmatpush1.bf16.msra.mxu0 0
    %5530 = vmatprep.subr.bf16.mxu0 0
    %5531 = vmatpush1.bf16.msra.mxu0 0
    %5532 = vmatprep.subr.bf16.mxu0 0
    %5533 = vmatpush1.bf16.msra.mxu0 0
    %5534 = vmatprep.subr.bf16.mxu0 0
    %5535 = vmatpush1.bf16.msra.mxu0 0
    %5536 = vmatprep.subr.bf16.mxu0 0
    %5537 = vmatpush1.bf16.msra.mxu0 0
    %5538 = vmatprep.subr.bf16.mxu0 0
    %5539 = vmatpush1.bf16.msra.mxu0 0
    %5540 = vmatprep.subr.bf16.mxu0 0
    %5541 = vmatpush1.bf16.msra.mxu0 0
    %5542 = vmatprep.subr.bf16.mxu0 0
    %5543 = vmatpush1.bf16.msra.mxu0 0
    %5544 = vmatprep.subr.bf16.mxu0 0
    %5545 = vmatpush1.bf16.msra.mxu0 0
    %5546 = vmatprep.subr.bf16.mxu0 0
    %5547 = vmatpush1.bf16.msra.mxu0 0
    %5548 = vmatprep.subr.bf16.mxu0 0
    %5549 = vmatpush1.bf16.msra.mxu0 0
    %5550 = vmatprep.subr.bf16.mxu0 0
    %5551 = vmatpush1.bf16.msra.mxu0 0
    %5552 = vmatprep.subr.bf16.mxu0 0
    %5553 = vmatpush1.bf16.msra.mxu0 0
    %5554 = vmatprep.mubr.bf16.mxu0 0
    %5555 = vmatmul.mubr.bf16.gmra.mrb[0].mxu0 %v5520
    %v5556 = vpop.f32.mrb[0].mxu0
    %v5557 = vadd.f32 %v5506, %v5556
    %v5558 = vpop.f32.mrb[0].mxu0
    %v5559 = vpop.f32.mrb[0].mxu0
    %v5560 = vadd.f32 %v5506, %v5559
    %v5561 = vpop.f32.mrb[0].mxu0
    %5562 = vdwg.mxu0
    %v5563 = vpack.c.bf16 %v112, %v111
    %v5564 = vld [vmem:[#allocation7] sm:$0xf]
    %v5565 = vld [vmem:[#allocation7 + $0x4] sm:$0xf]
    %v5566 = vld [vmem:[#allocation7 + $0x8] sm:$0xf]
    %v5567 = vld [vmem:[#allocation7 + $0xc] sm:$0xf]
    %v5568 = vld [vmem:[%s9 + $0x5] sm:$0x1]
    %v5569 = vlaneseq
    %v5570 = vshrl.u32 %v5569, 7
    %v5571 = vsub.s32 0, %v5570
    %v5572 = vrot.slane %v5568, %v5571
    %v5577 = vunpack.c.l.b16 %v5564
    %v5578 = vunpack.c.l.b16 %v5565
    %v5579 = vunpack.c.l.b16 %v5566
    %v5580 = vunpack.c.l.b16 %v5567
    %v5581 = vpack.c.b16 %v5578, %v5577
    %v5582 = vpack.c.b16 %v5580, %v5579
    %v5586 = vsel %vm135, %v5563, 0
    %5588 = vmatprep.subr.bf16.mxu0 0
    %5589 = vmatpush1.bf16.msra.mxu0 %v5581
    %5590 = vmatprep.subr.bf16.mxu0 0
    %5591 = vmatpush1.bf16.msra.mxu0 %v5582
    %5592 = vmatprep.subr.bf16.mxu0 0
    %5593 = vmatpush1.bf16.msra.mxu0 0
    %5594 = vmatprep.subr.bf16.mxu0 0
    %5595 = vmatpush1.bf16.msra.mxu0 0
    %5596 = vmatprep.subr.bf16.mxu0 0
    %5597 = vmatpush1.bf16.msra.mxu0 0
    %5598 = vmatprep.subr.bf16.mxu0 0
    %5599 = vmatpush1.bf16.msra.mxu0 0
    %5600 = vmatprep.subr.bf16.mxu0 0
    %5601 = vmatpush1.bf16.msra.mxu0 0
    %5602 = vmatprep.subr.bf16.mxu0 0
    %5603 = vmatpush1.bf16.msra.mxu0 0
    %5604 = vmatprep.subr.bf16.mxu0 0
    %5605 = vmatpush1.bf16.msra.mxu0 0
    %5606 = vmatprep.subr.bf16.mxu0 0
    %5607 = vmatpush1.bf16.msra.mxu0 0
    %5608 = vmatprep.subr.bf16.mxu0 0
    %5609 = vmatpush1.bf16.msra.mxu0 0
    %5610 = vmatprep.subr.bf16.mxu0 0
    %5611 = vmatpush1.bf16.msra.mxu0 0
    %5612 = vmatprep.subr.bf16.mxu0 0
    %5613 = vmatpush1.bf16.msra.mxu0 0
    %5614 = vmatprep.subr.bf16.mxu0 0
    %5615 = vmatpush1.bf16.msra.mxu0 0
    %5616 = vmatprep.subr.bf16.mxu0 0
    %5617 = vmatpush1.bf16.msra.mxu0 0
    %5618 = vmatprep.subr.bf16.mxu0 0
    %5619 = vmatpush1.bf16.msra.mxu0 0
    %5620 = vmatprep.mubr.bf16.mxu0 0
    %5621 = vmatmul.mubr.bf16.gmra.mrb[0].mxu0 %v5586
    %v5622 = vpop.f32.mrb[0].mxu0
    %v5623 = vadd.f32 %v5572, %v5622
    %v5624 = vpop.f32.mrb[0].mxu0
    %v5625 = vpop.f32.mrb[0].mxu0
    %v5626 = vadd.f32 %v5572, %v5625
    %v5627 = vpop.f32.mrb[0].mxu0
    %5628 = vdwg.mxu0
    %5631 = vrot.lane.b32.xlu0 %v5557, 120
    %v5632 = vpop.permute.xlu0 %5631
    %5633 = vrot.lane.b32.xlu0 %v5560, 120
    %v5634 = vpop.permute.xlu0 %5633
    %5637 = vrot.lane.b32.xlu0 %v5557, 112
    %v5638 = vpop.permute.xlu0 %5637
    %5639 = vrot.lane.b32.xlu0 %v5560, 112
    %v5640 = vpop.permute.xlu0 %5639
    %5643 = vrot.lane.b32.xlu0 %v5557, 104
    %v5644 = vpop.permute.xlu0 %5643
    %5645 = vrot.lane.b32.xlu0 %v5560, 104
    %v5646 = vpop.permute.xlu0 %5645
    %v5649 = vcombine.low %v5557, %v5638
    %v5650 = vcombine.high %v5557, %v5638
    %v5652 = vunpack.c.l.s4 1983009808
    %v5653 = vunpack.c.0.s8 %v5652
    %v5654 = vlaneseq
    %v5655 = vshrl.u32 %v5654, 7
    %v5656 = vsub.s32 %v5653, %v5655
    %v5657 = vrot.slane %v5649, %v5656
    %v5659 = vunpack.c.l.s4 1983009808
    %v5660 = vunpack.c.0.s8 %v5659
    %v5661 = vlaneseq
    %v5662 = vshrl.u32 %v5661, 7
    %v5663 = vsub.s32 %v5660, %v5662
    %v5664 = vrot.slane %v5650, %v5663
    %v5665 = vcombine.low %v5632, %v5644
    %v5666 = vcombine.high %v5632, %v5644
    %v5668 = vunpack.c.l.s4 1983009808
    %v5669 = vunpack.c.0.s8 %v5668
    %v5670 = vlaneseq
    %v5671 = vshrl.u32 %v5670, 7
    %v5672 = vsub.s32 %v5669, %v5671
    %v5673 = vrot.slane %v5665, %v5672
    %v5675 = vunpack.c.l.s4 1983009808
    %v5676 = vunpack.c.0.s8 %v5675
    %v5677 = vlaneseq
    %v5678 = vshrl.u32 %v5677, 7
    %v5679 = vsub.s32 %v5676, %v5678
    %v5680 = vrot.slane %v5666, %v5679
    %v5681 = vcombine.low %v5657, %v5673
    %v5682 = vcombine.high %v5657, %v5673
    %v5684 = vunpack.c.l.s4 1934713408
    %v5685 = vunpack.c.0.s8 %v5684
    %v5686 = vlaneseq
    %v5687 = vshrl.u32 %v5686, 7
    %v5688 = vsub.s32 %v5685, %v5687
    %v5689 = vrot.slane %v5681, %v5688
    %v5691 = vunpack.c.l.s4 1934713408
    %v5692 = vunpack.c.0.s8 %v5691
    %v5693 = vlaneseq
    %v5694 = vshrl.u32 %v5693, 7
    %v5695 = vsub.s32 %v5692, %v5694
    %v5696 = vrot.slane %v5682, %v5695
    %v5697 = vcombine.low %v5664, %v5680
    %v5698 = vcombine.high %v5664, %v5680
    %v5700 = vunpack.c.l.s4 1934713408
    %v5701 = vunpack.c.0.s8 %v5700
    %v5702 = vlaneseq
    %v5703 = vshrl.u32 %v5702, 7
    %v5704 = vsub.s32 %v5701, %v5703
    %v5705 = vrot.slane %v5697, %v5704
    %v5707 = vunpack.c.l.s4 1934713408
    %v5708 = vunpack.c.0.s8 %v5707
    %v5709 = vlaneseq
    %v5710 = vshrl.u32 %v5709, 7
    %v5711 = vsub.s32 %v5708, %v5710
    %v5712 = vrot.slane %v5698, %v5711
    %v5713 = vcombine.high %v5689, 0.0
    %v5714 = vcombine.high %v5696, 0.0
    %v5715 = vcombine.high %v5705, 0.0
    %v5716 = vcombine.high %v5712, 0.0
    %v5717 = vcombine.low %v5560, %v5640
    %v5718 = vcombine.high %v5560, %v5640
    %v5720 = vunpack.c.l.s4 1983009808
    %v5721 = vunpack.c.0.s8 %v5720
    %v5722 = vlaneseq
    %v5723 = vshrl.u32 %v5722, 7
    %v5724 = vsub.s32 %v5721, %v5723
    %v5725 = vrot.slane %v5717, %v5724
    %v5727 = vunpack.c.l.s4 1983009808
    %v5728 = vunpack.c.0.s8 %v5727
    %v5729 = vlaneseq
    %v5730 = vshrl.u32 %v5729, 7
    %v5731 = vsub.s32 %v5728, %v5730
    %v5732 = vrot.slane %v5718, %v5731
    %v5733 = vcombine.low %v5634, %v5646
    %v5734 = vcombine.high %v5634, %v5646
    %v5736 = vunpack.c.l.s4 1983009808
    %v5737 = vunpack.c.0.s8 %v5736
    %v5738 = vlaneseq
    %v5739 = vshrl.u32 %v5738, 7
    %v5740 = vsub.s32 %v5737, %v5739
    %v5741 = vrot.slane %v5733, %v5740
    %v5743 = vunpack.c.l.s4 1983009808
    %v5744 = vunpack.c.0.s8 %v5743
    %v5745 = vlaneseq
    %v5746 = vshrl.u32 %v5745, 7
    %v5747 = vsub.s32 %v5744, %v5746
    %v5748 = vrot.slane %v5734, %v5747
    %v5749 = vcombine.low %v5725, %v5741
    %v5750 = vcombine.high %v5725, %v5741
    %v5752 = vunpack.c.l.s4 1934713408
    %v5753 = vunpack.c.0.s8 %v5752
    %v5754 = vlaneseq
    %v5755 = vshrl.u32 %v5754, 7
    %v5756 = vsub.s32 %v5753, %v5755
    %v5757 = vrot.slane %v5749, %v5756
    %v5759 = vunpack.c.l.s4 1934713408
    %v5760 = vunpack.c.0.s8 %v5759
    %v5761 = vlaneseq
    %v5762 = vshrl.u32 %v5761, 7
    %v5763 = vsub.s32 %v5760, %v5762
    %v5764 = vrot.slane %v5750, %v5763
    %v5765 = vcombine.low %v5732, %v5748
    %v5766 = vcombine.high %v5732, %v5748
    %v5768 = vunpack.c.l.s4 1934713408
    %v5769 = vunpack.c.0.s8 %v5768
    %v5770 = vlaneseq
    %v5771 = vshrl.u32 %v5770, 7
    %v5772 = vsub.s32 %v5769, %v5771
    %v5773 = vrot.slane %v5765, %v5772
    %v5775 = vunpack.c.l.s4 1934713408
    %v5776 = vunpack.c.0.s8 %v5775
    %v5777 = vlaneseq
    %v5778 = vshrl.u32 %v5777, 7
    %v5779 = vsub.s32 %v5776, %v5778
    %v5780 = vrot.slane %v5766, %v5779
    %v5781 = vcombine.high %v5757, 0.0
    %v5782 = vcombine.high %v5764, 0.0
    %v5783 = vcombine.high %v5773, 0.0
    %v5784 = vcombine.high %v5780, 0.0
    %5787 = vrot.lane.b32.xlu0 %v5623, 120
    %v5788 = vpop.permute.xlu0 %5787
    %5789 = vrot.lane.b32.xlu0 %v5626, 120
    %v5790 = vpop.permute.xlu0 %5789
    %5793 = vrot.lane.b32.xlu0 %v5623, 112
    %v5794 = vpop.permute.xlu0 %5793
    %5795 = vrot.lane.b32.xlu0 %v5626, 112
    %v5796 = vpop.permute.xlu0 %5795
    %5799 = vrot.lane.b32.xlu0 %v5623, 104
    %v5800 = vpop.permute.xlu0 %5799
    %5801 = vrot.lane.b32.xlu0 %v5626, 104
    %v5802 = vpop.permute.xlu0 %5801
    %v5805 = vcombine.low %v5623, %v5794
    %v5806 = vcombine.high %v5623, %v5794
    %v5808 = vunpack.c.l.s4 1983009808
    %v5809 = vunpack.c.0.s8 %v5808
    %v5810 = vlaneseq
    %v5811 = vshrl.u32 %v5810, 7
    %v5812 = vsub.s32 %v5809, %v5811
    %v5813 = vrot.slane %v5805, %v5812
    %v5815 = vunpack.c.l.s4 1983009808
    %v5816 = vunpack.c.0.s8 %v5815
    %v5817 = vlaneseq
    %v5818 = vshrl.u32 %v5817, 7
    %v5819 = vsub.s32 %v5816, %v5818
    %v5820 = vrot.slane %v5806, %v5819
    %v5821 = vcombine.low %v5788, %v5800
    %v5822 = vcombine.high %v5788, %v5800
    %v5824 = vunpack.c.l.s4 1983009808
    %v5825 = vunpack.c.0.s8 %v5824
    %v5826 = vlaneseq
    %v5827 = vshrl.u32 %v5826, 7
    %v5828 = vsub.s32 %v5825, %v5827
    %v5829 = vrot.slane %v5821, %v5828
    %v5831 = vunpack.c.l.s4 1983009808
    %v5832 = vunpack.c.0.s8 %v5831
    %v5833 = vlaneseq
    %v5834 = vshrl.u32 %v5833, 7
    %v5835 = vsub.s32 %v5832, %v5834
    %v5836 = vrot.slane %v5822, %v5835
    %v5837 = vcombine.low %v5813, %v5829
    %v5838 = vcombine.high %v5813, %v5829
    %v5840 = vunpack.c.l.s4 1934713408
    %v5841 = vunpack.c.0.s8 %v5840
    %v5842 = vlaneseq
    %v5843 = vshrl.u32 %v5842, 7
    %v5844 = vsub.s32 %v5841, %v5843
    %v5845 = vrot.slane %v5837, %v5844
    %v5847 = vunpack.c.l.s4 1934713408
    %v5848 = vunpack.c.0.s8 %v5847
    %v5849 = vlaneseq
    %v5850 = vshrl.u32 %v5849, 7
    %v5851 = vsub.s32 %v5848, %v5850
    %v5852 = vrot.slane %v5838, %v5851
    %v5853 = vcombine.low %v5820, %v5836
    %v5854 = vcombine.high %v5820, %v5836
    %v5856 = vunpack.c.l.s4 1934713408
    %v5857 = vunpack.c.0.s8 %v5856
    %v5858 = vlaneseq
    %v5859 = vshrl.u32 %v5858, 7
    %v5860 = vsub.s32 %v5857, %v5859
    %v5861 = vrot.slane %v5853, %v5860
    %v5863 = vunpack.c.l.s4 1934713408
    %v5864 = vunpack.c.0.s8 %v5863
    %v5865 = vlaneseq
    %v5866 = vshrl.u32 %v5865, 7
    %v5867 = vsub.s32 %v5864, %v5866
    %v5868 = vrot.slane %v5854, %v5867
    %v5869 = vcombine.high %v5845, 0.0
    %v5870 = vcombine.high %v5852, 0.0
    %v5871 = vcombine.high %v5861, 0.0
    %v5872 = vcombine.high %v5868, 0.0
    %v5873 = vcombine.low %v5626, %v5796
    %v5874 = vcombine.high %v5626, %v5796
    %v5876 = vunpack.c.l.s4 1983009808
    %v5877 = vunpack.c.0.s8 %v5876
    %v5878 = vlaneseq
    %v5879 = vshrl.u32 %v5878, 7
    %v5880 = vsub.s32 %v5877, %v5879
    %v5881 = vrot.slane %v5873, %v5880
    %v5883 = vunpack.c.l.s4 1983009808
    %v5884 = vunpack.c.0.s8 %v5883
    %v5885 = vlaneseq
    %v5886 = vshrl.u32 %v5885, 7
    %v5887 = vsub.s32 %v5884, %v5886
    %v5888 = vrot.slane %v5874, %v5887
    %v5889 = vcombine.low %v5790, %v5802
    %v5890 = vcombine.high %v5790, %v5802
    %v5892 = vunpack.c.l.s4 1983009808
    %v5893 = vunpack.c.0.s8 %v5892
    %v5894 = vlaneseq
    %v5895 = vshrl.u32 %v5894, 7
    %v5896 = vsub.s32 %v5893, %v5895
    %v5897 = vrot.slane %v5889, %v5896
    %v5899 = vunpack.c.l.s4 1983009808
    %v5900 = vunpack.c.0.s8 %v5899
    %v5901 = vlaneseq
    %v5902 = vshrl.u32 %v5901, 7
    %v5903 = vsub.s32 %v5900, %v5902
    %v5904 = vrot.slane %v5890, %v5903
    %v5905 = vcombine.low %v5881, %v5897
    %v5906 = vcombine.high %v5881, %v5897
    %v5908 = vunpack.c.l.s4 1934713408
    %v5909 = vunpack.c.0.s8 %v5908
    %v5910 = vlaneseq
    %v5911 = vshrl.u32 %v5910, 7
    %v5912 = vsub.s32 %v5909, %v5911
    %v5913 = vrot.slane %v5905, %v5912
    %v5915 = vunpack.c.l.s4 1934713408
    %v5916 = vunpack.c.0.s8 %v5915
    %v5917 = vlaneseq
    %v5918 = vshrl.u32 %v5917, 7
    %v5919 = vsub.s32 %v5916, %v5918
    %v5920 = vrot.slane %v5906, %v5919
    %v5921 = vcombine.low %v5888, %v5904
    %v5922 = vcombine.high %v5888, %v5904
    %v5924 = vunpack.c.l.s4 1934713408
    %v5925 = vunpack.c.0.s8 %v5924
    %v5926 = vlaneseq
    %v5927 = vshrl.u32 %v5926, 7
    %v5928 = vsub.s32 %v5925, %v5927
    %v5929 = vrot.slane %v5921, %v5928
    %v5931 = vunpack.c.l.s4 1934713408
    %v5932 = vunpack.c.0.s8 %v5931
    %v5933 = vlaneseq
    %v5934 = vshrl.u32 %v5933, 7
    %v5935 = vsub.s32 %v5932, %v5934
    %v5936 = vrot.slane %v5922, %v5935
    %v5937 = vcombine.high %v5913, 0.0
    %v5938 = vcombine.high %v5920, 0.0
    %v5939 = vcombine.high %v5929, 0.0
    %v5940 = vcombine.high %v5936, 0.0
    %5941 = vrot.lane.b32.xlu0 %v5623, 96
    %v5942 = vpop.permute.xlu0 %5941
    %5943 = vrot.lane.b32.xlu0 %v5626, 96
    %v5944 = vpop.permute.xlu0 %5943
    %5945 = vrot.lane.b32.xlu0 %v5788, 96
    %v5946 = vpop.permute.xlu0 %5945
    %5947 = vrot.lane.b32.xlu0 %v5790, 96
    %v5948 = vpop.permute.xlu0 %5947
    %5949 = vrot.lane.b32.xlu0 %v5794, 96
    %v5950 = vpop.permute.xlu0 %5949
    %5951 = vrot.lane.b32.xlu0 %v5796, 96
    %v5952 = vpop.permute.xlu0 %5951
    %5953 = vrot.lane.b32.xlu0 %v5800, 96
    %v5954 = vpop.permute.xlu0 %5953
    %5955 = vrot.lane.b32.xlu0 %v5802, 96
    %v5956 = vpop.permute.xlu0 %5955
    %v5965 = vcombine.low %v5942, %v5950
    %v5966 = vcombine.high %v5942, %v5950
    %v5968 = vunpack.c.l.s4 1983009808
    %v5969 = vunpack.c.0.s8 %v5968
    %v5970 = vlaneseq
    %v5971 = vshrl.u32 %v5970, 7
    %v5972 = vsub.s32 %v5969, %v5971
    %v5973 = vrot.slane %v5965, %v5972
    %v5975 = vunpack.c.l.s4 1983009808
    %v5976 = vunpack.c.0.s8 %v5975
    %v5977 = vlaneseq
    %v5978 = vshrl.u32 %v5977, 7
    %v5979 = vsub.s32 %v5976, %v5978
    %v5980 = vrot.slane %v5966, %v5979
    %v5981 = vcombine.low %v5946, %v5954
    %v5982 = vcombine.high %v5946, %v5954
    %v5984 = vunpack.c.l.s4 1983009808
    %v5985 = vunpack.c.0.s8 %v5984
    %v5986 = vlaneseq
    %v5987 = vshrl.u32 %v5986, 7
    %v5988 = vsub.s32 %v5985, %v5987
    %v5989 = vrot.slane %v5981, %v5988
    %v5991 = vunpack.c.l.s4 1983009808
    %v5992 = vunpack.c.0.s8 %v5991
    %v5993 = vlaneseq
    %v5994 = vshrl.u32 %v5993, 7
    %v5995 = vsub.s32 %v5992, %v5994
    %v5996 = vrot.slane %v5982, %v5995
    %v5997 = vcombine.low %v5973, %v5989
    %v5998 = vcombine.high %v5973, %v5989
    %v6000 = vunpack.c.l.s4 1934713408
    %v6001 = vunpack.c.0.s8 %v6000
    %v6002 = vlaneseq
    %v6003 = vshrl.u32 %v6002, 7
    %v6004 = vsub.s32 %v6001, %v6003
    %v6005 = vrot.slane %v5997, %v6004
    %v6007 = vunpack.c.l.s4 1934713408
    %v6008 = vunpack.c.0.s8 %v6007
    %v6009 = vlaneseq
    %v6010 = vshrl.u32 %v6009, 7
    %v6011 = vsub.s32 %v6008, %v6010
    %v6012 = vrot.slane %v5998, %v6011
    %v6013 = vcombine.low %v5980, %v5996
    %v6014 = vcombine.high %v5980, %v5996
    %v6016 = vunpack.c.l.s4 1934713408
    %v6017 = vunpack.c.0.s8 %v6016
    %v6018 = vlaneseq
    %v6019 = vshrl.u32 %v6018, 7
    %v6020 = vsub.s32 %v6017, %v6019
    %v6021 = vrot.slane %v6013, %v6020
    %v6023 = vunpack.c.l.s4 1934713408
    %v6024 = vunpack.c.0.s8 %v6023
    %v6025 = vlaneseq
    %v6026 = vshrl.u32 %v6025, 7
    %v6027 = vsub.s32 %v6024, %v6026
    %v6028 = vrot.slane %v6014, %v6027
    %v6029 = vcombine.high %v6005, 0.0
    %v6030 = vcombine.high %v6012, 0.0
    %v6031 = vcombine.high %v6021, 0.0
    %v6032 = vcombine.high %v6028, 0.0
    %v6033 = vcombine.low %v5944, %v5952
    %v6034 = vcombine.high %v5944, %v5952
    %v6036 = vunpack.c.l.s4 1983009808
    %v6037 = vunpack.c.0.s8 %v6036
    %v6038 = vlaneseq
    %v6039 = vshrl.u32 %v6038, 7
    %v6040 = vsub.s32 %v6037, %v6039
    %v6041 = vrot.slane %v6033, %v6040
    %v6043 = vunpack.c.l.s4 1983009808
    %v6044 = vunpack.c.0.s8 %v6043
    %v6045 = vlaneseq
    %v6046 = vshrl.u32 %v6045, 7
    %v6047 = vsub.s32 %v6044, %v6046
    %v6048 = vrot.slane %v6034, %v6047
    %v6049 = vcombine.low %v5948, %v5956
    %v6050 = vcombine.high %v5948, %v5956
    %v6052 = vunpack.c.l.s4 1983009808
    %v6053 = vunpack.c.0.s8 %v6052
    %v6054 = vlaneseq
    %v6055 = vshrl.u32 %v6054, 7
    %v6056 = vsub.s32 %v6053, %v6055
    %v6057 = vrot.slane %v6049, %v6056
    %v6059 = vunpack.c.l.s4 1983009808
    %v6060 = vunpack.c.0.s8 %v6059
    %v6061 = vlaneseq
    %v6062 = vshrl.u32 %v6061, 7
    %v6063 = vsub.s32 %v6060, %v6062
    %v6064 = vrot.slane %v6050, %v6063
    %v6065 = vcombine.low %v6041, %v6057
    %v6066 = vcombine.high %v6041, %v6057
    %v6068 = vunpack.c.l.s4 1934713408
    %v6069 = vunpack.c.0.s8 %v6068
    %v6070 = vlaneseq
    %v6071 = vshrl.u32 %v6070, 7
    %v6072 = vsub.s32 %v6069, %v6071
    %v6073 = vrot.slane %v6065, %v6072
    %v6075 = vunpack.c.l.s4 1934713408
    %v6076 = vunpack.c.0.s8 %v6075
    %v6077 = vlaneseq
    %v6078 = vshrl.u32 %v6077, 7
    %v6079 = vsub.s32 %v6076, %v6078
    %v6080 = vrot.slane %v6066, %v6079
    %v6081 = vcombine.low %v6048, %v6064
    %v6082 = vcombine.high %v6048, %v6064
    %v6084 = vunpack.c.l.s4 1934713408
    %v6085 = vunpack.c.0.s8 %v6084
    %v6086 = vlaneseq
    %v6087 = vshrl.u32 %v6086, 7
    %v6088 = vsub.s32 %v6085, %v6087
    %v6089 = vrot.slane %v6081, %v6088
    %v6091 = vunpack.c.l.s4 1934713408
    %v6092 = vunpack.c.0.s8 %v6091
    %v6093 = vlaneseq
    %v6094 = vshrl.u32 %v6093, 7
    %v6095 = vsub.s32 %v6092, %v6094
    %v6096 = vrot.slane %v6082, %v6095
    %v6097 = vcombine.high %v6073, 0.0
    %v6098 = vcombine.high %v6080, 0.0
    %v6099 = vcombine.high %v6089, 0.0
    %v6100 = vcombine.high %v6096, 0.0
    %v6101 = vpack.c.bf16 %v5689, %v5689
    %v6102 = vpack.c.bf16 %v5713, %v5713
    %v6103 = vpack.c.bf16 %v5696, %v5696
    %v6104 = vpack.c.bf16 %v5714, %v5714
    %v6105 = vpack.c.bf16 %v5705, %v5705
    %v6106 = vpack.c.bf16 %v5715, %v5715
    %v6107 = vpack.c.bf16 %v5712, %v5712
    %v6108 = vpack.c.bf16 %v5716, %v5716
    %v6109 = vpack.c.bf16 %v5845, %v5845
    %v6110 = vpack.c.bf16 %v5869, %v5869
    %v6111 = vpack.c.bf16 %v5852, %v5852
    %v6112 = vpack.c.bf16 %v5870, %v5870
    %v6113 = vpack.c.bf16 %v5861, %v5861
    %v6114 = vpack.c.bf16 %v5871, %v5871
    %v6115 = vpack.c.bf16 %v5868, %v5868
    %v6116 = vpack.c.bf16 %v5872, %v5872
    %v6117 = vcombine.low %v6109, %v6113
    %v6119 = vunpack.c.l.s4 1983009808
    %v6120 = vunpack.c.0.s8 %v6119
    %v6121 = vlaneseq
    %v6122 = vshrl.u32 %v6121, 7
    %v6123 = vsub.s32 %v6120, %v6122
    %v6124 = vrot.slane %v6117, %v6123
    %v6125 = vcombine.low %v6111, %v6115
    %v6127 = vunpack.c.l.s4 1983009808
    %v6128 = vunpack.c.0.s8 %v6127
    %v6129 = vlaneseq
    %v6130 = vshrl.u32 %v6129, 7
    %v6131 = vsub.s32 %v6128, %v6130
    %v6132 = vrot.slane %v6125, %v6131
    %v6133 = vcombine.low %v6124, %v6132
    %v6135 = vunpack.c.l.s4 1934713408
    %v6136 = vunpack.c.0.s8 %v6135
    %v6137 = vlaneseq
    %v6138 = vshrl.u32 %v6137, 7
    %v6139 = vsub.s32 %v6136, %v6138
    %v6140 = vrot.slane %v6133, %v6139
    %v6141 = vcombine.high %v6140, 0
    %v6142 = vcombine.low %v6110, %v6114
    %v6144 = vunpack.c.l.s4 1983009808
    %v6145 = vunpack.c.0.s8 %v6144
    %v6146 = vlaneseq
    %v6147 = vshrl.u32 %v6146, 7
    %v6148 = vsub.s32 %v6145, %v6147
    %v6149 = vrot.slane %v6142, %v6148
    %v6150 = vcombine.low %v6112, %v6116
    %v6152 = vunpack.c.l.s4 1983009808
    %v6153 = vunpack.c.0.s8 %v6152
    %v6154 = vlaneseq
    %v6155 = vshrl.u32 %v6154, 7
    %v6156 = vsub.s32 %v6153, %v6155
    %v6157 = vrot.slane %v6150, %v6156
    %v6158 = vcombine.low %v6149, %v6157
    %v6160 = vunpack.c.l.s4 1934713408
    %v6161 = vunpack.c.0.s8 %v6160
    %v6162 = vlaneseq
    %v6163 = vshrl.u32 %v6162, 7
    %v6164 = vsub.s32 %v6161, %v6163
    %v6165 = vrot.slane %v6158, %v6164
    %v6166 = vcombine.high %v6165, 0
    %v6169 = vpack.i.b16 %v6165, %v6140
    %v6170 = vshrl.u32 %v6140, 16
    %v6171 = vshrl.u32 %v6165, 16
    %v6172 = vpack.i.b16 %v6171, %v6170
    %v6175 = vpack.i.b16 %v6166, %v6141
    %v6176 = vshrl.u32 %v6141, 16
    %v6177 = vshrl.u32 %v6166, 16
    %v6178 = vpack.i.b16 %v6177, %v6176
    %6179 = vxpose.xlu0.c.b16.start [1/8] %v6101, 128
    %6180 = vxpose.xlu0.c.b16.cont [2/8] 0, 128
    %6181 = vxpose.xlu0.c.b16.cont [3/8] 0, 128
    %6182 = vxpose.xlu0.c.b16.cont [4/8] 0, 128
    %6183 = vxpose.xlu0.c.b16.cont [5/8] 0, 128
    %6184 = vxpose.xlu0.c.b16.cont [6/8] 0, 128
    %6185 = vxpose.xlu0.c.b16.cont [7/8] 0, 128
    %6186 = vxpose.xlu0.c.b16.end [8/8] 0, 128
    %v6187 = vpop.trf.xlu0
    %v6188 = vpop.trf.xlu0
    %v6189 = vpop.trf.xlu0
    %v6190 = vpop.trf.xlu0
    %v6191 = vpop.trf.xlu0
    %v6192 = vpop.trf.xlu0
    %v6193 = vpop.trf.xlu0
    %v6194 = vpop.trf.xlu0
    %6195 = vxpose.xlu0.c.b16.start [1/8] %v6102, 128
    %6196 = vxpose.xlu0.c.b16.cont [2/8] 0, 128
    %6197 = vxpose.xlu0.c.b16.cont [3/8] 0, 128
    %6198 = vxpose.xlu0.c.b16.cont [4/8] 0, 128
    %6199 = vxpose.xlu0.c.b16.cont [5/8] 0, 128
    %6200 = vxpose.xlu0.c.b16.cont [6/8] 0, 128
    %6201 = vxpose.xlu0.c.b16.cont [7/8] 0, 128
    %6202 = vxpose.xlu0.c.b16.end [8/8] 0, 128
    %v6203 = vpop.trf.xlu0
    %v6204 = vpop.trf.xlu0
    %v6205 = vpop.trf.xlu0
    %v6206 = vpop.trf.xlu0
    %v6207 = vpop.trf.xlu0
    %v6208 = vpop.trf.xlu0
    %v6209 = vpop.trf.xlu0
    %v6210 = vpop.trf.xlu0
    %6211 = vxpose.xlu0.c.b16.start [1/8] %v6103, 128
    %6212 = vxpose.xlu0.c.b16.cont [2/8] 0, 128
    %6213 = vxpose.xlu0.c.b16.cont [3/8] 0, 128
    %6214 = vxpose.xlu0.c.b16.cont [4/8] 0, 128
    %6215 = vxpose.xlu0.c.b16.cont [5/8] 0, 128
    %6216 = vxpose.xlu0.c.b16.cont [6/8] 0, 128
    %6217 = vxpose.xlu0.c.b16.cont [7/8] 0, 128
    %6218 = vxpose.xlu0.c.b16.end [8/8] 0, 128
    %v6219 = vpop.trf.xlu0
    %v6220 = vpop.trf.xlu0
    %v6221 = vpop.trf.xlu0
    %v6222 = vpop.trf.xlu0
    %v6223 = vpop.trf.xlu0
    %v6224 = vpop.trf.xlu0
    %v6225 = vpop.trf.xlu0
    %v6226 = vpop.trf.xlu0
    %6227 = vxpose.xlu0.c.b16.start [1/8] %v6104, 128
    %6228 = vxpose.xlu0.c.b16.cont [2/8] 0, 128
    %6229 = vxpose.xlu0.c.b16.cont [3/8] 0, 128
    %6230 = vxpose.xlu0.c.b16.cont [4/8] 0, 128
    %6231 = vxpose.xlu0.c.b16.cont [5/8] 0, 128
    %6232 = vxpose.xlu0.c.b16.cont [6/8] 0, 128
    %6233 = vxpose.xlu0.c.b16.cont [7/8] 0, 128
    %6234 = vxpose.xlu0.c.b16.end [8/8] 0, 128
    %v6235 = vpop.trf.xlu0
    %v6236 = vpop.trf.xlu0
    %v6237 = vpop.trf.xlu0
    %v6238 = vpop.trf.xlu0
    %v6239 = vpop.trf.xlu0
    %v6240 = vpop.trf.xlu0
    %v6241 = vpop.trf.xlu0
    %v6242 = vpop.trf.xlu0
    %6243 = vxpose.xlu0.c.b16.start [1/8] %v6105, 128
    %6244 = vxpose.xlu0.c.b16.cont [2/8] 0, 128
    %6245 = vxpose.xlu0.c.b16.cont [3/8] 0, 128
    %6246 = vxpose.xlu0.c.b16.cont [4/8] 0, 128
    %6247 = vxpose.xlu0.c.b16.cont [5/8] 0, 128
    %6248 = vxpose.xlu0.c.b16.cont [6/8] 0, 128
    %6249 = vxpose.xlu0.c.b16.cont [7/8] 0, 128
    %6250 = vxpose.xlu0.c.b16.end [8/8] 0, 128
    %v6251 = vpop.trf.xlu0
    %v6252 = vpop.trf.xlu0
    %v6253 = vpop.trf.xlu0
    %v6254 = vpop.trf.xlu0
    %v6255 = vpop.trf.xlu0
    %v6256 = vpop.trf.xlu0
    %v6257 = vpop.trf.xlu0
    %v6258 = vpop.trf.xlu0
    %6259 = vxpose.xlu0.c.b16.start [1/8] %v6106, 128
    %6260 = vxpose.xlu0.c.b16.cont [2/8] 0, 128
    %6261 = vxpose.xlu0.c.b16.cont [3/8] 0, 128
    %6262 = vxpose.xlu0.c.b16.cont [4/8] 0, 128
    %6263 = vxpose.xlu0.c.b16.cont [5/8] 0, 128
    %6264 = vxpose.xlu0.c.b16.cont [6/8] 0, 128
    %6265 = vxpose.xlu0.c.b16.cont [7/8] 0, 128
    %6266 = vxpose.xlu0.c.b16.end [8/8] 0, 128
    %v6267 = vpop.trf.xlu0
    %v6268 = vpop.trf.xlu0
    %v6269 = vpop.trf.xlu0
    %v6270 = vpop.trf.xlu0
    %v6271 = vpop.trf.xlu0
    %v6272 = vpop.trf.xlu0
    %v6273 = vpop.trf.xlu0
    %v6274 = vpop.trf.xlu0
    %6275 = vxpose.xlu0.c.b16.start [1/8] %v6107, 128
    %6276 = vxpose.xlu0.c.b16.cont [2/8] 0, 128
    %6277 = vxpose.xlu0.c.b16.cont [3/8] 0, 128
    %6278 = vxpose.xlu0.c.b16.cont [4/8] 0, 128
    %6279 = vxpose.xlu0.c.b16.cont [5/8] 0, 128
    %6280 = vxpose.xlu0.c.b16.cont [6/8] 0, 128
    %6281 = vxpose.xlu0.c.b16.cont [7/8] 0, 128
    %6282 = vxpose.xlu0.c.b16.end [8/8] 0, 128
    %v6283 = vpop.trf.xlu0
    %v6284 = vpop.trf.xlu0
    %v6285 = vpop.trf.xlu0
    %v6286 = vpop.trf.xlu0
    %v6287 = vpop.trf.xlu0
    %v6288 = vpop.trf.xlu0
    %v6289 = vpop.trf.xlu0
    %v6290 = vpop.trf.xlu0
    %6291 = vxpose.xlu0.c.b16.start [1/8] %v6108, 128
    %6292 = vxpose.xlu0.c.b16.cont [2/8] 0, 128
    %6293 = vxpose.xlu0.c.b16.cont [3/8] 0, 128
    %6294 = vxpose.xlu0.c.b16.cont [4/8] 0, 128
    %6295 = vxpose.xlu0.c.b16.cont [5/8] 0, 128
    %6296 = vxpose.xlu0.c.b16.cont [6/8] 0, 128
    %6297 = vxpose.xlu0.c.b16.cont [7/8] 0, 128
    %6298 = vxpose.xlu0.c.b16.end [8/8] 0, 128
    %v6299 = vpop.trf.xlu0
    %v6300 = vpop.trf.xlu0
    %v6301 = vpop.trf.xlu0
    %v6302 = vpop.trf.xlu0
    %v6303 = vpop.trf.xlu0
    %v6304 = vpop.trf.xlu0
    %v6305 = vpop.trf.xlu0
    %v6306 = vpop.trf.xlu0
    %v6307 = vcombine.low %v6187, %v6251
    %v6309 = vunpack.c.l.s4 1983009808
    %v6310 = vunpack.c.0.s8 %v6309
    %v6311 = vlaneseq
    %v6312 = vshrl.u32 %v6311, 7
    %v6313 = vsub.s32 %v6310, %v6312
    %v6314 = vrot.slane %v6307, %v6313
    %v6315 = vcombine.low %v6219, %v6283
    %v6317 = vunpack.c.l.s4 1983009808
    %v6318 = vunpack.c.0.s8 %v6317
    %v6319 = vlaneseq
    %v6320 = vshrl.u32 %v6319, 7
    %v6321 = vsub.s32 %v6318, %v6320
    %v6322 = vrot.slane %v6315, %v6321
    %v6323 = vcombine.low %v6314, %v6322
    %v6324 = vcombine.high %v6314, %v6322
    %v6326 = vunpack.c.l.s4 1934713408
    %v6327 = vunpack.c.0.s8 %v6326
    %v6328 = vlaneseq
    %v6329 = vshrl.u32 %v6328, 7
    %v6330 = vsub.s32 %v6327, %v6329
    %v6331 = vrot.slane %v6323, %v6330
    %v6333 = vunpack.c.l.s4 1934713408
    %v6334 = vunpack.c.0.s8 %v6333
    %v6335 = vlaneseq
    %v6336 = vshrl.u32 %v6335, 7
    %v6337 = vsub.s32 %v6334, %v6336
    %v6338 = vrot.slane %v6324, %v6337
    %v6339 = vcombine.high %v6331, 0
    %v6340 = vcombine.high %v6338, 0
    %v6341 = vcombine.low %v6203, %v6267
    %v6343 = vunpack.c.l.s4 1983009808
    %v6344 = vunpack.c.0.s8 %v6343
    %v6345 = vlaneseq
    %v6346 = vshrl.u32 %v6345, 7
    %v6347 = vsub.s32 %v6344, %v6346
    %v6348 = vrot.slane %v6341, %v6347
    %v6349 = vcombine.low %v6235, %v6299
    %v6351 = vunpack.c.l.s4 1983009808
    %v6352 = vunpack.c.0.s8 %v6351
    %v6353 = vlaneseq
    %v6354 = vshrl.u32 %v6353, 7
    %v6355 = vsub.s32 %v6352, %v6354
    %v6356 = vrot.slane %v6349, %v6355
    %v6357 = vcombine.low %v6348, %v6356
    %v6358 = vcombine.high %v6348, %v6356
    %v6360 = vunpack.c.l.s4 1934713408
    %v6361 = vunpack.c.0.s8 %v6360
    %v6362 = vlaneseq
    %v6363 = vshrl.u32 %v6362, 7
    %v6364 = vsub.s32 %v6361, %v6363
    %v6365 = vrot.slane %v6357, %v6364
    %v6367 = vunpack.c.l.s4 1934713408
    %v6368 = vunpack.c.0.s8 %v6367
    %v6369 = vlaneseq
    %v6370 = vshrl.u32 %v6369, 7
    %v6371 = vsub.s32 %v6368, %v6370
    %v6372 = vrot.slane %v6358, %v6371
    %v6373 = vcombine.high %v6365, 0
    %v6374 = vcombine.high %v6372, 0
    %v6377 = vpack.i.b16 %v6365, %v6331
    %v6379 = vshrl.u32 %v6331, 16
    %v6380 = vshrl.u32 %v6365, 16
    %v6381 = vpack.i.b16 %v6380, %v6379
    %v6385 = vpack.i.b16 %v6373, %v6339
    %v6387 = vshrl.u32 %v6339, 16
    %v6388 = vshrl.u32 %v6373, 16
    %v6389 = vpack.i.b16 %v6388, %v6387
    %v6393 = vpack.i.b16 %v6372, %v6338
    %v6395 = vshrl.u32 %v6338, 16
    %v6396 = vshrl.u32 %v6372, 16
    %v6397 = vpack.i.b16 %v6396, %v6395
    %v6401 = vpack.i.b16 %v6374, %v6340
    %v6403 = vshrl.u32 %v6340, 16
    %v6404 = vshrl.u32 %v6374, 16
    %v6405 = vpack.i.b16 %v6404, %v6403
    %6407 = vxpose.xlu0.c.b16.start [1/8] %v6377, 128
    %6408 = vxpose.xlu0.c.b16.cont [2/8] 0, 128
    %6409 = vxpose.xlu0.c.b16.cont [3/8] 0, 128
    %6410 = vxpose.xlu0.c.b16.cont [4/8] 0, 128
    %6411 = vxpose.xlu0.c.b16.cont [5/8] 0, 128
    %6412 = vxpose.xlu0.c.b16.cont [6/8] 0, 128
    %6413 = vxpose.xlu0.c.b16.cont [7/8] 0, 128
    %6414 = vxpose.xlu0.c.b16.end [8/8] 0, 128
    %v6415 = vpop.trf.xlu0
    %v6416 = vpop.trf.xlu0
    %v6417 = vpop.trf.xlu0
    %v6418 = vpop.trf.xlu0
    %v6419 = vpop.trf.xlu0
    %v6420 = vpop.trf.xlu0
    %v6421 = vpop.trf.xlu0
    %v6422 = vpop.trf.xlu0
    %6423 = vxpose.xlu0.c.b16.start [1/8] %v6381, 128
    %6424 = vxpose.xlu0.c.b16.cont [2/8] 0, 128
    %6425 = vxpose.xlu0.c.b16.cont [3/8] 0, 128
    %6426 = vxpose.xlu0.c.b16.cont [4/8] 0, 128
    %6427 = vxpose.xlu0.c.b16.cont [5/8] 0, 128
    %6428 = vxpose.xlu0.c.b16.cont [6/8] 0, 128
    %6429 = vxpose.xlu0.c.b16.cont [7/8] 0, 128
    %6430 = vxpose.xlu0.c.b16.end [8/8] 0, 128
    %v6431 = vpop.trf.xlu0
    %v6432 = vpop.trf.xlu0
    %v6433 = vpop.trf.xlu0
    %v6434 = vpop.trf.xlu0
    %v6435 = vpop.trf.xlu0
    %v6436 = vpop.trf.xlu0
    %v6437 = vpop.trf.xlu0
    %v6438 = vpop.trf.xlu0
    %6439 = vxpose.xlu0.c.b16.start [1/8] %v6385, 128
    %6440 = vxpose.xlu0.c.b16.cont [2/8] 0, 128
    %6441 = vxpose.xlu0.c.b16.cont [3/8] 0, 128
    %6442 = vxpose.xlu0.c.b16.cont [4/8] 0, 128
    %6443 = vxpose.xlu0.c.b16.cont [5/8] 0, 128
    %6444 = vxpose.xlu0.c.b16.cont [6/8] 0, 128
    %6445 = vxpose.xlu0.c.b16.cont [7/8] 0, 128
    %6446 = vxpose.xlu0.c.b16.end [8/8] 0, 128
    %v6447 = vpop.trf.xlu0
    %v6448 = vpop.trf.xlu0
    %v6449 = vpop.trf.xlu0
    %v6450 = vpop.trf.xlu0
    %v6451 = vpop.trf.xlu0
    %v6452 = vpop.trf.xlu0
    %v6453 = vpop.trf.xlu0
    %v6454 = vpop.trf.xlu0
    %6455 = vxpose.xlu0.c.b16.start [1/8] %v6389, 128
    %6456 = vxpose.xlu0.c.b16.cont [2/8] 0, 128
    %6457 = vxpose.xlu0.c.b16.cont [3/8] 0, 128
    %6458 = vxpose.xlu0.c.b16.cont [4/8] 0, 128
    %6459 = vxpose.xlu0.c.b16.cont [5/8] 0, 128
    %6460 = vxpose.xlu0.c.b16.cont [6/8] 0, 128
    %6461 = vxpose.xlu0.c.b16.cont [7/8] 0, 128
    %6462 = vxpose.xlu0.c.b16.end [8/8] 0, 128
    %v6463 = vpop.trf.xlu0
    %v6464 = vpop.trf.xlu0
    %v6465 = vpop.trf.xlu0
    %v6466 = vpop.trf.xlu0
    %v6467 = vpop.trf.xlu0
    %v6468 = vpop.trf.xlu0
    %v6469 = vpop.trf.xlu0
    %v6470 = vpop.trf.xlu0
    %6471 = vxpose.xlu0.c.b16.start [1/8] %v6393, 128
    %6472 = vxpose.xlu0.c.b16.cont [2/8] 0, 128
    %6473 = vxpose.xlu0.c.b16.cont [3/8] 0, 128
    %6474 = vxpose.xlu0.c.b16.cont [4/8] 0, 128
    %6475 = vxpose.xlu0.c.b16.cont [5/8] 0, 128
    %6476 = vxpose.xlu0.c.b16.cont [6/8] 0, 128
    %6477 = vxpose.xlu0.c.b16.cont [7/8] 0, 128
    %6478 = vxpose.xlu0.c.b16.end [8/8] 0, 128
    %v6479 = vpop.trf.xlu0
    %v6480 = vpop.trf.xlu0
    %v6481 = vpop.trf.xlu0
    %v6482 = vpop.trf.xlu0
    %v6483 = vpop.trf.xlu0
    %v6484 = vpop.trf.xlu0
    %v6485 = vpop.trf.xlu0
    %v6486 = vpop.trf.xlu0
    %6487 = vxpose.xlu0.c.b16.start [1/8] %v6397, 128
    %6488 = vxpose.xlu0.c.b16.cont [2/8] 0, 128
    %6489 = vxpose.xlu0.c.b16.cont [3/8] 0, 128
    %6490 = vxpose.xlu0.c.b16.cont [4/8] 0, 128
    %6491 = vxpose.xlu0.c.b16.cont [5/8] 0, 128
    %6492 = vxpose.xlu0.c.b16.cont [6/8] 0, 128
    %6493 = vxpose.xlu0.c.b16.cont [7/8] 0, 128
    %6494 = vxpose.xlu0.c.b16.end [8/8] 0, 128
    %v6495 = vpop.trf.xlu0
    %v6496 = vpop.trf.xlu0
    %v6497 = vpop.trf.xlu0
    %v6498 = vpop.trf.xlu0
    %v6499 = vpop.trf.xlu0
    %v6500 = vpop.trf.xlu0
    %v6501 = vpop.trf.xlu0
    %v6502 = vpop.trf.xlu0
    %6503 = vxpose.xlu0.c.b16.start [1/8] %v6401, 128
    %6504 = vxpose.xlu0.c.b16.cont [2/8] 0, 128
    %6505 = vxpose.xlu0.c.b16.cont [3/8] 0, 128
    %6506 = vxpose.xlu0.c.b16.cont [4/8] 0, 128
    %6507 = vxpose.xlu0.c.b16.cont [5/8] 0, 128
    %6508 = vxpose.xlu0.c.b16.cont [6/8] 0, 128
    %6509 = vxpose.xlu0.c.b16.cont [7/8] 0, 128
    %6510 = vxpose.xlu0.c.b16.end [8/8] 0, 128
    %v6511 = vpop.trf.xlu0
    %v6512 = vpop.trf.xlu0
    %v6513 = vpop.trf.xlu0
    %v6514 = vpop.trf.xlu0
    %v6515 = vpop.trf.xlu0
    %v6516 = vpop.trf.xlu0
    %v6517 = vpop.trf.xlu0
    %v6518 = vpop.trf.xlu0
    %6519 = vxpose.xlu0.c.b16.start [1/8] %v6405, 128
    %6520 = vxpose.xlu0.c.b16.cont [2/8] 0, 128
    %6521 = vxpose.xlu0.c.b16.cont [3/8] 0, 128
    %6522 = vxpose.xlu0.c.b16.cont [4/8] 0, 128
    %6523 = vxpose.xlu0.c.b16.cont [5/8] 0, 128
    %6524 = vxpose.xlu0.c.b16.cont [6/8] 0, 128
    %6525 = vxpose.xlu0.c.b16.cont [7/8] 0, 128
    %6526 = vxpose.xlu0.c.b16.end [8/8] 0, 128
    %v6527 = vpop.trf.xlu0
    %v6528 = vpop.trf.xlu0
    %v6529 = vpop.trf.xlu0
    %v6530 = vpop.trf.xlu0
    %v6531 = vpop.trf.xlu0
    %v6532 = vpop.trf.xlu0
    %v6533 = vpop.trf.xlu0
    %v6534 = vpop.trf.xlu0
    %v6535 = vcombine.low %v6415, %v6479
    %v6537 = vunpack.c.l.s4 1983009808
    %v6538 = vunpack.c.0.s8 %v6537
    %v6539 = vlaneseq
    %v6540 = vshrl.u32 %v6539, 7
    %v6541 = vsub.s32 %v6538, %v6540
    %v6542 = vrot.slane %v6535, %v6541
    %v6543 = vcombine.low %v6447, %v6511
    %v6545 = vunpack.c.l.s4 1983009808
    %v6546 = vunpack.c.0.s8 %v6545
    %v6547 = vlaneseq
    %v6548 = vshrl.u32 %v6547, 7
    %v6549 = vsub.s32 %v6546, %v6548
    %v6550 = vrot.slane %v6543, %v6549
    %v6551 = vcombine.low %v6542, %v6550
    %v6553 = vunpack.c.l.s4 1934713408
    %v6554 = vunpack.c.0.s8 %v6553
    %v6555 = vlaneseq
    %v6556 = vshrl.u32 %v6555, 7
    %v6557 = vsub.s32 %v6554, %v6556
    %v6558 = vrot.slane %v6551, %v6557
    %v6559 = vcombine.high %v6558, 0
    %v6560 = vcombine.low %v6431, %v6495
    %v6562 = vunpack.c.l.s4 1983009808
    %v6563 = vunpack.c.0.s8 %v6562
    %v6564 = vlaneseq
    %v6565 = vshrl.u32 %v6564, 7
    %v6566 = vsub.s32 %v6563, %v6565
    %v6567 = vrot.slane %v6560, %v6566
    %v6568 = vcombine.low %v6463, %v6527
    %v6570 = vunpack.c.l.s4 1983009808
    %v6571 = vunpack.c.0.s8 %v6570
    %v6572 = vlaneseq
    %v6573 = vshrl.u32 %v6572, 7
    %v6574 = vsub.s32 %v6571, %v6573
    %v6575 = vrot.slane %v6568, %v6574
    %v6576 = vcombine.low %v6567, %v6575
    %v6578 = vunpack.c.l.s4 1934713408
    %v6579 = vunpack.c.0.s8 %v6578
    %v6580 = vlaneseq
    %v6581 = vshrl.u32 %v6580, 7
    %v6582 = vsub.s32 %v6579, %v6581
    %v6583 = vrot.slane %v6576, %v6582
    %v6584 = vcombine.high %v6583, 0
    %v6587 = vpack.i.b16 %v6583, %v6558
    %v6588 = vshrl.u32 %v6558, 16
    %v6589 = vshrl.u32 %v6583, 16
    %v6590 = vpack.i.b16 %v6589, %v6588
    %v6593 = vpack.i.b16 %v6584, %v6559
    %v6594 = vshrl.u32 %v6559, 16
    %v6595 = vshrl.u32 %v6584, 16
    %v6596 = vpack.i.b16 %v6595, %v6594
    %v6598 = vsel %vm1152, %v6169, 0
    %v6601 = vsel %vm1156, %v6587, 0
    %6603 = vmatprep.subr.bf16.mxu0 0
    %6604 = vmatpush1.bf16.msra.mxu0 %v6601
    %6605 = vmatprep.subr.bf16.mxu0 0
    %6606 = vmatpush1.bf16.msra.mxu0 0
    %6607 = vmatprep.subr.bf16.mxu0 0
    %6608 = vmatpush1.bf16.msra.mxu0 0
    %6609 = vmatprep.subr.bf16.mxu0 0
    %6610 = vmatpush1.bf16.msra.mxu0 0
    %6611 = vmatprep.subr.bf16.mxu0 0
    %6612 = vmatpush1.bf16.msra.mxu0 0
    %6613 = vmatprep.subr.bf16.mxu0 0
    %6614 = vmatpush1.bf16.msra.mxu0 0
    %6615 = vmatprep.subr.bf16.mxu0 0
    %6616 = vmatpush1.bf16.msra.mxu0 0
    %6617 = vmatprep.subr.bf16.mxu0 0
    %6618 = vmatpush1.bf16.msra.mxu0 0
    %6619 = vmatprep.subr.bf16.mxu0 0
    %6620 = vmatpush1.bf16.msra.mxu0 0
    %6621 = vmatprep.subr.bf16.mxu0 0
    %6622 = vmatpush1.bf16.msra.mxu0 0
    %6623 = vmatprep.subr.bf16.mxu0 0
    %6624 = vmatpush1.bf16.msra.mxu0 0
    %6625 = vmatprep.subr.bf16.mxu0 0
    %6626 = vmatpush1.bf16.msra.mxu0 0
    %6627 = vmatprep.subr.bf16.mxu0 0
    %6628 = vmatpush1.bf16.msra.mxu0 0
    %6629 = vmatprep.subr.bf16.mxu0 0
    %6630 = vmatpush1.bf16.msra.mxu0 0
    %6631 = vmatprep.subr.bf16.mxu0 0
    %6632 = vmatpush1.bf16.msra.mxu0 0
    %6633 = vmatprep.subr.bf16.mxu0 0
    %6634 = vmatpush1.bf16.msra.mxu0 0
    %6635 = vmatprep.mubr.bf16.mxu0 0
    %6636 = vmatmul.mubr.bf16.gmra.mrb[0].mxu0 %v6598
    %v6637 = vpop.f32.mrb[0].mxu0
    %v6638 = vadd.f32 0.0, %v6637
    %v6639 = vpop.f32.mrb[0].mxu0
    %v6640 = vpop.f32.mrb[0].mxu0
    %v6641 = vpop.f32.mrb[0].mxu0
    %6642 = vdwg.mxu0
    %v6644 = vsel %vm1152, %v6172, 0
    %v6647 = vsel %vm1156, %v6590, 0
    %6649 = vmatprep.subr.bf16.mxu0 0
    %6650 = vmatpush1.bf16.msra.mxu0 %v6647
    %6651 = vmatprep.subr.bf16.mxu0 0
    %6652 = vmatpush1.bf16.msra.mxu0 0
    %6653 = vmatprep.subr.bf16.mxu0 0
    %6654 = vmatpush1.bf16.msra.mxu0 0
    %6655 = vmatprep.subr.bf16.mxu0 0
    %6656 = vmatpush1.bf16.msra.mxu0 0
    %6657 = vmatprep.subr.bf16.mxu0 0
    %6658 = vmatpush1.bf16.msra.mxu0 0
    %6659 = vmatprep.subr.bf16.mxu0 0
    %6660 = vmatpush1.bf16.msra.mxu0 0
    %6661 = vmatprep.subr.bf16.mxu0 0
    %6662 = vmatpush1.bf16.msra.mxu0 0
    %6663 = vmatprep.subr.bf16.mxu0 0
    %6664 = vmatpush1.bf16.msra.mxu0 0
    %6665 = vmatprep.subr.bf16.mxu0 0
    %6666 = vmatpush1.bf16.msra.mxu0 0
    %6667 = vmatprep.subr.bf16.mxu0 0
    %6668 = vmatpush1.bf16.msra.mxu0 0
    %6669 = vmatprep.subr.bf16.mxu0 0
    %6670 = vmatpush1.bf16.msra.mxu0 0
    %6671 = vmatprep.subr.bf16.mxu0 0
    %6672 = vmatpush1.bf16.msra.mxu0 0
    %6673 = vmatprep.subr.bf16.mxu0 0
    %6674 = vmatpush1.bf16.msra.mxu0 0
    %6675 = vmatprep.subr.bf16.mxu0 0
    %6676 = vmatpush1.bf16.msra.mxu0 0
    %6677 = vmatprep.subr.bf16.mxu0 0
    %6678 = vmatpush1.bf16.msra.mxu0 0
    %6679 = vmatprep.subr.bf16.mxu0 0
    %6680 = vmatpush1.bf16.msra.mxu0 0
    %6681 = vmatprep.mubr.bf16.mxu0 0
    %6682 = vmatmul.mubr.bf16.gmra.mrb[0].mxu0 %v6644
    %v6683 = vpop.f32.mrb[0].mxu0
    %v6684 = vadd.f32 0.0, %v6683
    %v6685 = vpop.f32.mrb[0].mxu0
    %v6686 = vpop.f32.mrb[0].mxu0
    %v6687 = vpop.f32.mrb[0].mxu0
    %6688 = vdwg.mxu0
    %v6690 = vsel %vm1152, %v6175, 0
    %v6693 = vsel %vm1156, %v6593, 0
    %6695 = vmatprep.subr.bf16.mxu0 0
    %6696 = vmatpush1.bf16.msra.mxu0 %v6693
    %6697 = vmatprep.subr.bf16.mxu0 0
    %6698 = vmatpush1.bf16.msra.mxu0 0
    %6699 = vmatprep.subr.bf16.mxu0 0
    %6700 = vmatpush1.bf16.msra.mxu0 0
    %6701 = vmatprep.subr.bf16.mxu0 0
    %6702 = vmatpush1.bf16.msra.mxu0 0
    %6703 = vmatprep.subr.bf16.mxu0 0
    %6704 = vmatpush1.bf16.msra.mxu0 0
    %6705 = vmatprep.subr.bf16.mxu0 0
    %6706 = vmatpush1.bf16.msra.mxu0 0
    %6707 = vmatprep.subr.bf16.mxu0 0
    %6708 = vmatpush1.bf16.msra.mxu0 0
    %6709 = vmatprep.subr.bf16.mxu0 0
    %6710 = vmatpush1.bf16.msra.mxu0 0
    %6711 = vmatprep.subr.bf16.mxu0 0
    %6712 = vmatpush1.bf16.msra.mxu0 0
    %6713 = vmatprep.subr.bf16.mxu0 0
    %6714 = vmatpush1.bf16.msra.mxu0 0
    %6715 = vmatprep.subr.bf16.mxu0 0
    %6716 = vmatpush1.bf16.msra.mxu0 0
    %6717 = vmatprep.subr.bf16.mxu0 0
    %6718 = vmatpush1.bf16.msra.mxu0 0
    %6719 = vmatprep.subr.bf16.mxu0 0
    %6720 = vmatpush1.bf16.msra.mxu0 0
    %6721 = vmatprep.subr.bf16.mxu0 0
    %6722 = vmatpush1.bf16.msra.mxu0 0
    %6723 = vmatprep.subr.bf16.mxu0 0
    %6724 = vmatpush1.bf16.msra.mxu0 0
    %6725 = vmatprep.subr.bf16.mxu0 0
    %6726 = vmatpush1.bf16.msra.mxu0 0
    %6727 = vmatprep.mubr.bf16.mxu0 0
    %6728 = vmatmul.mubr.bf16.gmra.mrb[0].mxu0 %v6690
    %v6729 = vpop.f32.mrb[0].mxu0
    %v6730 = vadd.f32 0.0, %v6729
    %v6731 = vpop.f32.mrb[0].mxu0
    %v6732 = vpop.f32.mrb[0].mxu0
    %v6733 = vpop.f32.mrb[0].mxu0
    %6734 = vdwg.mxu0
    %v6736 = vsel %vm1152, %v6178, 0
    %v6739 = vsel %vm1156, %v6596, 0
    %6741 = vmatprep.subr.bf16.mxu0 0
    %6742 = vmatpush1.bf16.msra.mxu0 %v6739
    %6743 = vmatprep.subr.bf16.mxu0 0
    %6744 = vmatpush1.bf16.msra.mxu0 0
    %6745 = vmatprep.subr.bf16.mxu0 0
    %6746 = vmatpush1.bf16.msra.mxu0 0
    %6747 = vmatprep.subr.bf16.mxu0 0
    %6748 = vmatpush1.bf16.msra.mxu0 0
    %6749 = vmatprep.subr.bf16.mxu0 0
    %6750 = vmatpush1.bf16.msra.mxu0 0
    %6751 = vmatprep.subr.bf16.mxu0 0
    %6752 = vmatpush1.bf16.msra.mxu0 0
    %6753 = vmatprep.subr.bf16.mxu0 0
    %6754 = vmatpush1.bf16.msra.mxu0 0
    %6755 = vmatprep.subr.bf16.mxu0 0
    %6756 = vmatpush1.bf16.msra.mxu0 0
    %6757 = vmatprep.subr.bf16.mxu0 0
    %6758 = vmatpush1.bf16.msra.mxu0 0
    %6759 = vmatprep.subr.bf16.mxu0 0
    %6760 = vmatpush1.bf16.msra.mxu0 0
    %6761 = vmatprep.subr.bf16.mxu0 0
    %6762 = vmatpush1.bf16.msra.mxu0 0
    %6763 = vmatprep.subr.bf16.mxu0 0
    %6764 = vmatpush1.bf16.msra.mxu0 0
    %6765 = vmatprep.subr.bf16.mxu0 0
    %6766 = vmatpush1.bf16.msra.mxu0 0
    %6767 = vmatprep.subr.bf16.mxu0 0
    %6768 = vmatpush1.bf16.msra.mxu0 0
    %6769 = vmatprep.subr.bf16.mxu0 0
    %6770 = vmatpush1.bf16.msra.mxu0 0
    %6771 = vmatprep.subr.bf16.mxu0 0
    %6772 = vmatpush1.bf16.msra.mxu0 0
    %6773 = vmatprep.mubr.bf16.mxu0 0
    %6774 = vmatmul.mubr.bf16.gmra.mrb[0].mxu0 %v6736
    %v6775 = vpop.f32.mrb[0].mxu0
    %v6776 = vadd.f32 0.0, %v6775
    %v6777 = vpop.f32.mrb[0].mxu0
    %v6778 = vpop.f32.mrb[0].mxu0
    %v6779 = vpop.f32.mrb[0].mxu0
    %6780 = vdwg.mxu0
    %6781 = vxpose.xlu0.b32.start [1/16] %v6638, 128
    %6782 = vxpose.xlu0.b32.cont [2/16] 0.0, 128
    %6783 = vxpose.xlu0.b32.cont [3/16] 0.0, 128
    %6784 = vxpose.xlu0.b32.cont [4/16] 0.0, 128
    %6785 = vxpose.xlu0.b32.cont [5/16] 0.0, 128
    %6786 = vxpose.xlu0.b32.cont [6/16] 0.0, 128
    %6787 = vxpose.xlu0.b32.cont [7/16] 0.0, 128
    %6788 = vxpose.xlu0.b32.cont [8/16] 0.0, 128
    %6789 = vxpose.xlu0.b32.cont [9/16] 0.0, 128
    %6790 = vxpose.xlu0.b32.cont [10/16] 0.0, 128
    %6791 = vxpose.xlu0.b32.cont [11/16] 0.0, 128
    %6792 = vxpose.xlu0.b32.cont [12/16] 0.0, 128
    %6793 = vxpose.xlu0.b32.cont [13/16] 0.0, 128
    %6794 = vxpose.xlu0.b32.cont [14/16] 0.0, 128
    %6795 = vxpose.xlu0.b32.cont [15/16] 0.0, 128
    %6796 = vxpose.xlu0.b32.end [16/16] 0.0, 128
    %v6797 = vpop.trf.xlu0
    %v6798 = vpop.trf.xlu0
    %v6799 = vpop.trf.xlu0
    %v6800 = vpop.trf.xlu0
    %v6801 = vpop.trf.xlu0
    %v6802 = vpop.trf.xlu0
    %v6803 = vpop.trf.xlu0
    %v6804 = vpop.trf.xlu0
    %v6805 = vpop.trf.xlu0
    %v6806 = vpop.trf.xlu0
    %v6807 = vpop.trf.xlu0
    %v6808 = vpop.trf.xlu0
    %v6809 = vpop.trf.xlu0
    %v6810 = vpop.trf.xlu0
    %v6811 = vpop.trf.xlu0
    %v6812 = vpop.trf.xlu0
    %6813 = vxpose.xlu0.b32.start [1/16] %v6684, 128
    %6814 = vxpose.xlu0.b32.cont [2/16] 0.0, 128
    %6815 = vxpose.xlu0.b32.cont [3/16] 0.0, 128
    %6816 = vxpose.xlu0.b32.cont [4/16] 0.0, 128
    %6817 = vxpose.xlu0.b32.cont [5/16] 0.0, 128
    %6818 = vxpose.xlu0.b32.cont [6/16] 0.0, 128
    %6819 = vxpose.xlu0.b32.cont [7/16] 0.0, 128
    %6820 = vxpose.xlu0.b32.cont [8/16] 0.0, 128
    %6821 = vxpose.xlu0.b32.cont [9/16] 0.0, 128
    %6822 = vxpose.xlu0.b32.cont [10/16] 0.0, 128
    %6823 = vxpose.xlu0.b32.cont [11/16] 0.0, 128
    %6824 = vxpose.xlu0.b32.cont [12/16] 0.0, 128
    %6825 = vxpose.xlu0.b32.cont [13/16] 0.0, 128
    %6826 = vxpose.xlu0.b32.cont [14/16] 0.0, 128
    %6827 = vxpose.xlu0.b32.cont [15/16] 0.0, 128
    %6828 = vxpose.xlu0.b32.end [16/16] 0.0, 128
    %v6829 = vpop.trf.xlu0
    %v6830 = vpop.trf.xlu0
    %v6831 = vpop.trf.xlu0
    %v6832 = vpop.trf.xlu0
    %v6833 = vpop.trf.xlu0
    %v6834 = vpop.trf.xlu0
    %v6835 = vpop.trf.xlu0
    %v6836 = vpop.trf.xlu0
    %v6837 = vpop.trf.xlu0
    %v6838 = vpop.trf.xlu0
    %v6839 = vpop.trf.xlu0
    %v6840 = vpop.trf.xlu0
    %v6841 = vpop.trf.xlu0
    %v6842 = vpop.trf.xlu0
    %v6843 = vpop.trf.xlu0
    %v6844 = vpop.trf.xlu0
    %6845 = vxpose.xlu0.b32.start [1/16] %v6730, 128
    %6846 = vxpose.xlu0.b32.cont [2/16] 0.0, 128
    %6847 = vxpose.xlu0.b32.cont [3/16] 0.0, 128
    %6848 = vxpose.xlu0.b32.cont [4/16] 0.0, 128
    %6849 = vxpose.xlu0.b32.cont [5/16] 0.0, 128
    %6850 = vxpose.xlu0.b32.cont [6/16] 0.0, 128
    %6851 = vxpose.xlu0.b32.cont [7/16] 0.0, 128
    %6852 = vxpose.xlu0.b32.cont [8/16] 0.0, 128
    %6853 = vxpose.xlu0.b32.cont [9/16] 0.0, 128
    %6854 = vxpose.xlu0.b32.cont [10/16] 0.0, 128
    %6855 = vxpose.xlu0.b32.cont [11/16] 0.0, 128
    %6856 = vxpose.xlu0.b32.cont [12/16] 0.0, 128
    %6857 = vxpose.xlu0.b32.cont [13/16] 0.0, 128
    %6858 = vxpose.xlu0.b32.cont [14/16] 0.0, 128
    %6859 = vxpose.xlu0.b32.cont [15/16] 0.0, 128
    %6860 = vxpose.xlu0.b32.end [16/16] 0.0, 128
    %v6861 = vpop.trf.xlu0
    %v6862 = vpop.trf.xlu0
    %v6863 = vpop.trf.xlu0
    %v6864 = vpop.trf.xlu0
    %v6865 = vpop.trf.xlu0
    %v6866 = vpop.trf.xlu0
    %v6867 = vpop.trf.xlu0
    %v6868 = vpop.trf.xlu0
    %v6869 = vpop.trf.xlu0
    %v6870 = vpop.trf.xlu0
    %v6871 = vpop.trf.xlu0
    %v6872 = vpop.trf.xlu0
    %v6873 = vpop.trf.xlu0
    %v6874 = vpop.trf.xlu0
    %v6875 = vpop.trf.xlu0
    %v6876 = vpop.trf.xlu0
    %6877 = vxpose.xlu0.b32.start [1/16] %v6776, 128
    %6878 = vxpose.xlu0.b32.cont [2/16] 0.0, 128
    %6879 = vxpose.xlu0.b32.cont [3/16] 0.0, 128
    %6880 = vxpose.xlu0.b32.cont [4/16] 0.0, 128
    %6881 = vxpose.xlu0.b32.cont [5/16] 0.0, 128
    %6882 = vxpose.xlu0.b32.cont [6/16] 0.0, 128
    %6883 = vxpose.xlu0.b32.cont [7/16] 0.0, 128
    %6884 = vxpose.xlu0.b32.cont [8/16] 0.0, 128
    %6885 = vxpose.xlu0.b32.cont [9/16] 0.0, 128
    %6886 = vxpose.xlu0.b32.cont [10/16] 0.0, 128
    %6887 = vxpose.xlu0.b32.cont [11/16] 0.0, 128
    %6888 = vxpose.xlu0.b32.cont [12/16] 0.0, 128
    %6889 = vxpose.xlu0.b32.cont [13/16] 0.0, 128
    %6890 = vxpose.xlu0.b32.cont [14/16] 0.0, 128
    %6891 = vxpose.xlu0.b32.cont [15/16] 0.0, 128
    %6892 = vxpose.xlu0.b32.end [16/16] 0.0, 128
    %v6893 = vpop.trf.xlu0
    %v6894 = vpop.trf.xlu0
    %v6895 = vpop.trf.xlu0
    %v6896 = vpop.trf.xlu0
    %v6897 = vpop.trf.xlu0
    %v6898 = vpop.trf.xlu0
    %v6899 = vpop.trf.xlu0
    %v6900 = vpop.trf.xlu0
    %v6901 = vpop.trf.xlu0
    %v6902 = vpop.trf.xlu0
    %v6903 = vpop.trf.xlu0
    %v6904 = vpop.trf.xlu0
    %v6905 = vpop.trf.xlu0
    %v6906 = vpop.trf.xlu0
    %v6907 = vpop.trf.xlu0
    %v6908 = vpop.trf.xlu0
    %v6909 = vcombine.low %v6797, %v6861
    %v6910 = vcombine.high %v6797, %v6861
    %v6912 = vunpack.c.l.s4 1983009808
    %v6913 = vunpack.c.0.s8 %v6912
    %v6914 = vlaneseq
    %v6915 = vshrl.u32 %v6914, 7
    %v6916 = vsub.s32 %v6913, %v6915
    %v6917 = vrot.slane %v6909, %v6916
    %v6919 = vunpack.c.l.s4 1983009808
    %v6920 = vunpack.c.0.s8 %v6919
    %v6921 = vlaneseq
    %v6922 = vshrl.u32 %v6921, 7
    %v6923 = vsub.s32 %v6920, %v6922
    %v6924 = vrot.slane %v6910, %v6923
    %v6925 = vcombine.low %v6829, %v6893
    %v6926 = vcombine.high %v6829, %v6893
    %v6928 = vunpack.c.l.s4 1983009808
    %v6929 = vunpack.c.0.s8 %v6928
    %v6930 = vlaneseq
    %v6931 = vshrl.u32 %v6930, 7
    %v6932 = vsub.s32 %v6929, %v6931
    %v6933 = vrot.slane %v6925, %v6932
    %v6935 = vunpack.c.l.s4 1983009808
    %v6936 = vunpack.c.0.s8 %v6935
    %v6937 = vlaneseq
    %v6938 = vshrl.u32 %v6937, 7
    %v6939 = vsub.s32 %v6936, %v6938
    %v6940 = vrot.slane %v6926, %v6939
    %v6941 = vcombine.low %v6917, %v6933
    %v6942 = vcombine.high %v6917, %v6933
    %v6944 = vunpack.c.l.s4 1934713408
    %v6945 = vunpack.c.0.s8 %v6944
    %v6946 = vlaneseq
    %v6947 = vshrl.u32 %v6946, 7
    %v6948 = vsub.s32 %v6945, %v6947
    %v6949 = vrot.slane %v6941, %v6948
    %v6951 = vunpack.c.l.s4 1934713408
    %v6952 = vunpack.c.0.s8 %v6951
    %v6953 = vlaneseq
    %v6954 = vshrl.u32 %v6953, 7
    %v6955 = vsub.s32 %v6952, %v6954
    %v6956 = vrot.slane %v6942, %v6955
    %v6957 = vcombine.low %v6924, %v6940
    %v6958 = vcombine.high %v6924, %v6940
    %v6960 = vunpack.c.l.s4 1934713408
    %v6961 = vunpack.c.0.s8 %v6960
    %v6962 = vlaneseq
    %v6963 = vshrl.u32 %v6962, 7
    %v6964 = vsub.s32 %v6961, %v6963
    %v6965 = vrot.slane %v6957, %v6964
    %v6967 = vunpack.c.l.s4 1934713408
    %v6968 = vunpack.c.0.s8 %v6967
    %v6969 = vlaneseq
    %v6970 = vshrl.u32 %v6969, 7
    %v6971 = vsub.s32 %v6968, %v6970
    %v6972 = vrot.slane %v6958, %v6971
    %v6973 = vcombine.high %v6949, 0.0
    %v6974 = vcombine.high %v6956, 0.0
    %v6975 = vcombine.high %v6965, 0.0
    %v6976 = vcombine.high %v6972, 0.0
    %v6977 = vsel %vm1534, %v6949, -inf
    %6978 = vmax.xlane.f32.xlu0 %v6977
    %v6979 = vpop.xlane.xlu0 %6978
    %v6980 = vsel %vm1534, %v6973, -inf
    %6981 = vmax.xlane.f32.xlu0 %v6980
    %v6982 = vpop.xlane.xlu0 %6981
    %v6983 = vsel %vm1534, %v6956, -inf
    %6984 = vmax.xlane.f32.xlu0 %v6983
    %v6985 = vpop.xlane.xlu0 %6984
    %v6986 = vsel %vm1534, %v6974, -inf
    %6987 = vmax.xlane.f32.xlu0 %v6986
    %v6988 = vpop.xlane.xlu0 %6987
    %v6989 = vsel %vm1534, %v6965, -inf
    %6990 = vmax.xlane.f32.xlu0 %v6989
    %v6991 = vpop.xlane.xlu0 %6990
    %v6992 = vsel %vm1534, %v6975, -inf
    %6993 = vmax.xlane.f32.xlu0 %v6992
    %v6994 = vpop.xlane.xlu0 %6993
    %v6995 = vsel %vm1534, %v6972, -inf
    %6996 = vmax.xlane.f32.xlu0 %v6995
    %v6997 = vpop.xlane.xlu0 %6996
    %v6998 = vsel %vm1534, %v6976, -inf
    %6999 = vmax.xlane.f32.xlu0 %v6998
    %v7000 = vpop.xlane.xlu0 %6999
    %v7001 = vsub.f32 %v6949, %v6979
    %v7002 = vsub.f32 %v6973, %v6982
    %v7003 = vsub.f32 %v6956, %v6985
    %v7004 = vsub.f32 %v6974, %v6988
    %v7005 = vsub.f32 %v6965, %v6991
    %v7006 = vsub.f32 %v6975, %v6994
    %v7007 = vsub.f32 %v6972, %v6997
    %v7008 = vsub.f32 %v6976, %v7000
    %v7009 = vmul.f32 %v7001, 1.442695
    %v7010 = vpow.pop %v7009
    %v7011 = vmul.f32 %v7002, 1.442695
    %v7012 = vpow.pop %v7011
    %v7013 = vmul.f32 %v7003, 1.442695
    %v7014 = vpow.pop %v7013
    %v7015 = vmul.f32 %v7004, 1.442695
    %v7016 = vpow.pop %v7015
    %v7017 = vmul.f32 %v7005, 1.442695
    %v7018 = vpow.pop %v7017
    %v7019 = vmul.f32 %v7006, 1.442695
    %v7020 = vpow.pop %v7019
    %v7021 = vmul.f32 %v7007, 1.442695
    %v7022 = vpow.pop %v7021
    %v7023 = vmul.f32 %v7008, 1.442695
    %v7024 = vpow.pop %v7023
    %v7025 = vsel %vm1534, %v7010, 0.0
    %7026 = vadd.xlane.f32.xlu0 %v7025
    %v7027 = vpop.xlane.xlu0 %7026
    %v7028 = vsel %vm1534, %v7012, 0.0
    %7029 = vadd.xlane.f32.xlu0 %v7028
    %v7030 = vpop.xlane.xlu0 %7029
    %v7031 = vsel %vm1534, %v7014, 0.0
    %7032 = vadd.xlane.f32.xlu0 %v7031
    %v7033 = vpop.xlane.xlu0 %7032
    %v7034 = vsel %vm1534, %v7016, 0.0
    %7035 = vadd.xlane.f32.xlu0 %v7034
    %v7036 = vpop.xlane.xlu0 %7035
    %v7037 = vsel %vm1534, %v7018, 0.0
    %7038 = vadd.xlane.f32.xlu0 %v7037
    %v7039 = vpop.xlane.xlu0 %7038
    %v7040 = vsel %vm1534, %v7020, 0.0
    %7041 = vadd.xlane.f32.xlu0 %v7040
    %v7042 = vpop.xlane.xlu0 %7041
    %v7043 = vsel %vm1534, %v7022, 0.0
    %7044 = vadd.xlane.f32.xlu0 %v7043
    %v7045 = vpop.xlane.xlu0 %7044
    %v7046 = vsel %vm1534, %v7024, 0.0
    %7047 = vadd.xlane.f32.xlu0 %v7046
    %v7048 = vpop.xlane.xlu0 %7047
    %v7049 = vrcp.pop %v7027
    %v7050 = vrcp.pop %v7030
    %v7051 = vrcp.pop %v7033
    %v7052 = vrcp.pop %v7036
    %v7053 = vrcp.pop %v7039
    %v7054 = vrcp.pop %v7042
    %v7055 = vrcp.pop %v7045
    %v7056 = vrcp.pop %v7048
    %v7057 = vmul.f32 %v7010, %v7049
    %v7058 = vmul.f32 %v7012, %v7050
    %v7059 = vmul.f32 %v7014, %v7051
    %v7060 = vmul.f32 %v7016, %v7052
    %v7061 = vmul.f32 %v7018, %v7053
    %v7062 = vmul.f32 %v7020, %v7054
    %v7063 = vmul.f32 %v7022, %v7055
    %v7064 = vmul.f32 %v7024, %v7056
    %v7065 = vpack.c.bf16 %v7057, %v7057
    %v7066 = vpack.c.bf16 %v7058, %v7058
    %v7067 = vpack.c.bf16 %v7059, %v7059
    %v7068 = vpack.c.bf16 %v7060, %v7060
    %v7069 = vpack.c.bf16 %v7061, %v7061
    %v7070 = vpack.c.bf16 %v7062, %v7062
    %v7071 = vpack.c.bf16 %v7063, %v7063
    %v7072 = vpack.c.bf16 %v7064, %v7064
    %v7073 = vpack.c.bf16 %v6005, %v6005
    %v7074 = vpack.c.bf16 %v6029, %v6029
    %v7075 = vpack.c.bf16 %v6012, %v6012
    %v7076 = vpack.c.bf16 %v6030, %v6030
    %v7077 = vpack.c.bf16 %v6021, %v6021
    %v7078 = vpack.c.bf16 %v6031, %v6031
    %v7079 = vpack.c.bf16 %v6028, %v6028
    %v7080 = vpack.c.bf16 %v6032, %v6032
    %7081 = vxpose.xlu0.c.b16.start [1/8] %v7073, 128
    %7082 = vxpose.xlu0.c.b16.cont [2/8] 0, 128
    %7083 = vxpose.xlu0.c.b16.cont [3/8] 0, 128
    %7084 = vxpose.xlu0.c.b16.cont [4/8] 0, 128
    %7085 = vxpose.xlu0.c.b16.cont [5/8] 0, 128
    %7086 = vxpose.xlu0.c.b16.cont [6/8] 0, 128
    %7087 = vxpose.xlu0.c.b16.cont [7/8] 0, 128
    %7088 = vxpose.xlu0.c.b16.end [8/8] 0, 128
    %v7089 = vpop.trf.xlu0
    %v7090 = vpop.trf.xlu0
    %v7091 = vpop.trf.xlu0
    %v7092 = vpop.trf.xlu0
    %v7093 = vpop.trf.xlu0
    %v7094 = vpop.trf.xlu0
    %v7095 = vpop.trf.xlu0
    %v7096 = vpop.trf.xlu0
    %7097 = vxpose.xlu0.c.b16.start [1/8] %v7074, 128
    %7098 = vxpose.xlu0.c.b16.cont [2/8] 0, 128
    %7099 = vxpose.xlu0.c.b16.cont [3/8] 0, 128
    %7100 = vxpose.xlu0.c.b16.cont [4/8] 0, 128
    %7101 = vxpose.xlu0.c.b16.cont [5/8] 0, 128
    %7102 = vxpose.xlu0.c.b16.cont [6/8] 0, 128
    %7103 = vxpose.xlu0.c.b16.cont [7/8] 0, 128
    %7104 = vxpose.xlu0.c.b16.end [8/8] 0, 128
    %v7105 = vpop.trf.xlu0
    %v7106 = vpop.trf.xlu0
    %v7107 = vpop.trf.xlu0
    %v7108 = vpop.trf.xlu0
    %v7109 = vpop.trf.xlu0
    %v7110 = vpop.trf.xlu0
    %v7111 = vpop.trf.xlu0
    %v7112 = vpop.trf.xlu0
    %7113 = vxpose.xlu0.c.b16.start [1/8] %v7075, 128
    %7114 = vxpose.xlu0.c.b16.cont [2/8] 0, 128
    %7115 = vxpose.xlu0.c.b16.cont [3/8] 0, 128
    %7116 = vxpose.xlu0.c.b16.cont [4/8] 0, 128
    %7117 = vxpose.xlu0.c.b16.cont [5/8] 0, 128
    %7118 = vxpose.xlu0.c.b16.cont [6/8] 0, 128
    %7119 = vxpose.xlu0.c.b16.cont [7/8] 0, 128
    %7120 = vxpose.xlu0.c.b16.end [8/8] 0, 128
    %v7121 = vpop.trf.xlu0
    %v7122 = vpop.trf.xlu0
    %v7123 = vpop.trf.xlu0
    %v7124 = vpop.trf.xlu0
    %v7125 = vpop.trf.xlu0
    %v7126 = vpop.trf.xlu0
    %v7127 = vpop.trf.xlu0
    %v7128 = vpop.trf.xlu0
    %7129 = vxpose.xlu0.c.b16.start [1/8] %v7076, 128
    %7130 = vxpose.xlu0.c.b16.cont [2/8] 0, 128
    %7131 = vxpose.xlu0.c.b16.cont [3/8] 0, 128
    %7132 = vxpose.xlu0.c.b16.cont [4/8] 0, 128
    %7133 = vxpose.xlu0.c.b16.cont [5/8] 0, 128
    %7134 = vxpose.xlu0.c.b16.cont [6/8] 0, 128
    %7135 = vxpose.xlu0.c.b16.cont [7/8] 0, 128
    %7136 = vxpose.xlu0.c.b16.end [8/8] 0, 128
    %v7137 = vpop.trf.xlu0
    %v7138 = vpop.trf.xlu0
    %v7139 = vpop.trf.xlu0
    %v7140 = vpop.trf.xlu0
    %v7141 = vpop.trf.xlu0
    %v7142 = vpop.trf.xlu0
    %v7143 = vpop.trf.xlu0
    %v7144 = vpop.trf.xlu0
    %7145 = vxpose.xlu0.c.b16.start [1/8] %v7077, 128
    %7146 = vxpose.xlu0.c.b16.cont [2/8] 0, 128
    %7147 = vxpose.xlu0.c.b16.cont [3/8] 0, 128
    %7148 = vxpose.xlu0.c.b16.cont [4/8] 0, 128
    %7149 = vxpose.xlu0.c.b16.cont [5/8] 0, 128
    %7150 = vxpose.xlu0.c.b16.cont [6/8] 0, 128
    %7151 = vxpose.xlu0.c.b16.cont [7/8] 0, 128
    %7152 = vxpose.xlu0.c.b16.end [8/8] 0, 128
    %v7153 = vpop.trf.xlu0
    %v7154 = vpop.trf.xlu0
    %v7155 = vpop.trf.xlu0
    %v7156 = vpop.trf.xlu0
    %v7157 = vpop.trf.xlu0
    %v7158 = vpop.trf.xlu0
    %v7159 = vpop.trf.xlu0
    %v7160 = vpop.trf.xlu0
    %7161 = vxpose.xlu0.c.b16.start [1/8] %v7078, 128
    %7162 = vxpose.xlu0.c.b16.cont [2/8] 0, 128
    %7163 = vxpose.xlu0.c.b16.cont [3/8] 0, 128
    %7164 = vxpose.xlu0.c.b16.cont [4/8] 0, 128
    %7165 = vxpose.xlu0.c.b16.cont [5/8] 0, 128
    %7166 = vxpose.xlu0.c.b16.cont [6/8] 0, 128
    %7167 = vxpose.xlu0.c.b16.cont [7/8] 0, 128
    %7168 = vxpose.xlu0.c.b16.end [8/8] 0, 128
    %v7169 = vpop.trf.xlu0
    %v7170 = vpop.trf.xlu0
    %v7171 = vpop.trf.xlu0
    %v7172 = vpop.trf.xlu0
    %v7173 = vpop.trf.xlu0
    %v7174 = vpop.trf.xlu0
    %v7175 = vpop.trf.xlu0
    %v7176 = vpop.trf.xlu0
    %7177 = vxpose.xlu0.c.b16.start [1/8] %v7079, 128
    %7178 = vxpose.xlu0.c.b16.cont [2/8] 0, 128
    %7179 = vxpose.xlu0.c.b16.cont [3/8] 0, 128
    %7180 = vxpose.xlu0.c.b16.cont [4/8] 0, 128
    %7181 = vxpose.xlu0.c.b16.cont [5/8] 0, 128
    %7182 = vxpose.xlu0.c.b16.cont [6/8] 0, 128
    %7183 = vxpose.xlu0.c.b16.cont [7/8] 0, 128
    %7184 = vxpose.xlu0.c.b16.end [8/8] 0, 128
    %v7185 = vpop.trf.xlu0
    %v7186 = vpop.trf.xlu0
    %v7187 = vpop.trf.xlu0
    %v7188 = vpop.trf.xlu0
    %v7189 = vpop.trf.xlu0
    %v7190 = vpop.trf.xlu0
    %v7191 = vpop.trf.xlu0
    %v7192 = vpop.trf.xlu0
    %7193 = vxpose.xlu0.c.b16.start [1/8] %v7080, 128
    %7194 = vxpose.xlu0.c.b16.cont [2/8] 0, 128
    %7195 = vxpose.xlu0.c.b16.cont [3/8] 0, 128
    %7196 = vxpose.xlu0.c.b16.cont [4/8] 0, 128
    %7197 = vxpose.xlu0.c.b16.cont [5/8] 0, 128
    %7198 = vxpose.xlu0.c.b16.cont [6/8] 0, 128
    %7199 = vxpose.xlu0.c.b16.cont [7/8] 0, 128
    %7200 = vxpose.xlu0.c.b16.end [8/8] 0, 128
    %v7201 = vpop.trf.xlu0
    %v7202 = vpop.trf.xlu0
    %v7203 = vpop.trf.xlu0
    %v7204 = vpop.trf.xlu0
    %v7205 = vpop.trf.xlu0
    %v7206 = vpop.trf.xlu0
    %v7207 = vpop.trf.xlu0
    %v7208 = vpop.trf.xlu0
    %v7209 = vcombine.low %v7089, %v7153
    %v7211 = vunpack.c.l.s4 1983009808
    %v7212 = vunpack.c.0.s8 %v7211
    %v7213 = vlaneseq
    %v7214 = vshrl.u32 %v7213, 7
    %v7215 = vsub.s32 %v7212, %v7214
    %v7216 = vrot.slane %v7209, %v7215
    %v7217 = vcombine.low %v7121, %v7185
    %v7219 = vunpack.c.l.s4 1983009808
    %v7220 = vunpack.c.0.s8 %v7219
    %v7221 = vlaneseq
    %v7222 = vshrl.u32 %v7221, 7
    %v7223 = vsub.s32 %v7220, %v7222
    %v7224 = vrot.slane %v7217, %v7223
    %v7225 = vcombine.low %v7216, %v7224
    %v7226 = vcombine.high %v7216, %v7224
    %v7228 = vunpack.c.l.s4 1934713408
    %v7229 = vunpack.c.0.s8 %v7228
    %v7230 = vlaneseq
    %v7231 = vshrl.u32 %v7230, 7
    %v7232 = vsub.s32 %v7229, %v7231
    %v7233 = vrot.slane %v7225, %v7232
    %v7235 = vunpack.c.l.s4 1934713408
    %v7236 = vunpack.c.0.s8 %v7235
    %v7237 = vlaneseq
    %v7238 = vshrl.u32 %v7237, 7
    %v7239 = vsub.s32 %v7236, %v7238
    %v7240 = vrot.slane %v7226, %v7239
    %v7241 = vcombine.high %v7233, 0
    %v7242 = vcombine.high %v7240, 0
    %v7243 = vcombine.low %v7105, %v7169
    %v7245 = vunpack.c.l.s4 1983009808
    %v7246 = vunpack.c.0.s8 %v7245
    %v7247 = vlaneseq
    %v7248 = vshrl.u32 %v7247, 7
    %v7249 = vsub.s32 %v7246, %v7248
    %v7250 = vrot.slane %v7243, %v7249
    %v7251 = vcombine.low %v7137, %v7201
    %v7253 = vunpack.c.l.s4 1983009808
    %v7254 = vunpack.c.0.s8 %v7253
    %v7255 = vlaneseq
    %v7256 = vshrl.u32 %v7255, 7
    %v7257 = vsub.s32 %v7254, %v7256
    %v7258 = vrot.slane %v7251, %v7257
    %v7259 = vcombine.low %v7250, %v7258
    %v7260 = vcombine.high %v7250, %v7258
    %v7262 = vunpack.c.l.s4 1934713408
    %v7263 = vunpack.c.0.s8 %v7262
    %v7264 = vlaneseq
    %v7265 = vshrl.u32 %v7264, 7
    %v7266 = vsub.s32 %v7263, %v7265
    %v7267 = vrot.slane %v7259, %v7266
    %v7269 = vunpack.c.l.s4 1934713408
    %v7270 = vunpack.c.0.s8 %v7269
    %v7271 = vlaneseq
    %v7272 = vshrl.u32 %v7271, 7
    %v7273 = vsub.s32 %v7270, %v7272
    %v7274 = vrot.slane %v7260, %v7273
    %v7275 = vcombine.high %v7267, 0
    %v7276 = vcombine.high %v7274, 0
    %v7279 = vpack.i.b16 %v7267, %v7233
    %v7281 = vshrl.u32 %v7233, 16
    %v7282 = vshrl.u32 %v7267, 16
    %v7283 = vpack.i.b16 %v7282, %v7281
    %v7287 = vpack.i.b16 %v7275, %v7241
    %v7289 = vshrl.u32 %v7241, 16
    %v7290 = vshrl.u32 %v7275, 16
    %v7291 = vpack.i.b16 %v7290, %v7289
    %v7295 = vpack.i.b16 %v7274, %v7240
    %v7297 = vshrl.u32 %v7240, 16
    %v7298 = vshrl.u32 %v7274, 16
    %v7299 = vpack.i.b16 %v7298, %v7297
    %v7303 = vpack.i.b16 %v7276, %v7242
    %v7305 = vshrl.u32 %v7242, 16
    %v7306 = vshrl.u32 %v7276, 16
    %v7307 = vpack.i.b16 %v7306, %v7305
    %7309 = vxpose.xlu0.c.b16.start [1/8] %v7279, 128
    %7310 = vxpose.xlu0.c.b16.cont [2/8] 0, 128
    %7311 = vxpose.xlu0.c.b16.cont [3/8] 0, 128
    %7312 = vxpose.xlu0.c.b16.cont [4/8] 0, 128
    %7313 = vxpose.xlu0.c.b16.cont [5/8] 0, 128
    %7314 = vxpose.xlu0.c.b16.cont [6/8] 0, 128
    %7315 = vxpose.xlu0.c.b16.cont [7/8] 0, 128
    %7316 = vxpose.xlu0.c.b16.end [8/8] 0, 128
    %v7317 = vpop.trf.xlu0
    %v7318 = vpop.trf.xlu0
    %v7319 = vpop.trf.xlu0
    %v7320 = vpop.trf.xlu0
    %v7321 = vpop.trf.xlu0
    %v7322 = vpop.trf.xlu0
    %v7323 = vpop.trf.xlu0
    %v7324 = vpop.trf.xlu0
    %7325 = vxpose.xlu0.c.b16.start [1/8] %v7283, 128
    %7326 = vxpose.xlu0.c.b16.cont [2/8] 0, 128
    %7327 = vxpose.xlu0.c.b16.cont [3/8] 0, 128
    %7328 = vxpose.xlu0.c.b16.cont [4/8] 0, 128
    %7329 = vxpose.xlu0.c.b16.cont [5/8] 0, 128
    %7330 = vxpose.xlu0.c.b16.cont [6/8] 0, 128
    %7331 = vxpose.xlu0.c.b16.cont [7/8] 0, 128
    %7332 = vxpose.xlu0.c.b16.end [8/8] 0, 128
    %v7333 = vpop.trf.xlu0
    %v7334 = vpop.trf.xlu0
    %v7335 = vpop.trf.xlu0
    %v7336 = vpop.trf.xlu0
    %v7337 = vpop.trf.xlu0
    %v7338 = vpop.trf.xlu0
    %v7339 = vpop.trf.xlu0
    %v7340 = vpop.trf.xlu0
    %7341 = vxpose.xlu0.c.b16.start [1/8] %v7287, 128
    %7342 = vxpose.xlu0.c.b16.cont [2/8] 0, 128
    %7343 = vxpose.xlu0.c.b16.cont [3/8] 0, 128
    %7344 = vxpose.xlu0.c.b16.cont [4/8] 0, 128
    %7345 = vxpose.xlu0.c.b16.cont [5/8] 0, 128
    %7346 = vxpose.xlu0.c.b16.cont [6/8] 0, 128
    %7347 = vxpose.xlu0.c.b16.cont [7/8] 0, 128
    %7348 = vxpose.xlu0.c.b16.end [8/8] 0, 128
    %v7349 = vpop.trf.xlu0
    %v7350 = vpop.trf.xlu0
    %v7351 = vpop.trf.xlu0
    %v7352 = vpop.trf.xlu0
    %v7353 = vpop.trf.xlu0
    %v7354 = vpop.trf.xlu0
    %v7355 = vpop.trf.xlu0
    %v7356 = vpop.trf.xlu0
    %7357 = vxpose.xlu0.c.b16.start [1/8] %v7291, 128
    %7358 = vxpose.xlu0.c.b16.cont [2/8] 0, 128
    %7359 = vxpose.xlu0.c.b16.cont [3/8] 0, 128
    %7360 = vxpose.xlu0.c.b16.cont [4/8] 0, 128
    %7361 = vxpose.xlu0.c.b16.cont [5/8] 0, 128
    %7362 = vxpose.xlu0.c.b16.cont [6/8] 0, 128
    %7363 = vxpose.xlu0.c.b16.cont [7/8] 0, 128
    %7364 = vxpose.xlu0.c.b16.end [8/8] 0, 128
    %v7365 = vpop.trf.xlu0
    %v7366 = vpop.trf.xlu0
    %v7367 = vpop.trf.xlu0
    %v7368 = vpop.trf.xlu0
    %v7369 = vpop.trf.xlu0
    %v7370 = vpop.trf.xlu0
    %v7371 = vpop.trf.xlu0
    %v7372 = vpop.trf.xlu0
    %7373 = vxpose.xlu0.c.b16.start [1/8] %v7295, 128
    %7374 = vxpose.xlu0.c.b16.cont [2/8] 0, 128
    %7375 = vxpose.xlu0.c.b16.cont [3/8] 0, 128
    %7376 = vxpose.xlu0.c.b16.cont [4/8] 0, 128
    %7377 = vxpose.xlu0.c.b16.cont [5/8] 0, 128
    %7378 = vxpose.xlu0.c.b16.cont [6/8] 0, 128
    %7379 = vxpose.xlu0.c.b16.cont [7/8] 0, 128
    %7380 = vxpose.xlu0.c.b16.end [8/8] 0, 128
    %v7381 = vpop.trf.xlu0
    %v7382 = vpop.trf.xlu0
    %v7383 = vpop.trf.xlu0
    %v7384 = vpop.trf.xlu0
    %v7385 = vpop.trf.xlu0
    %v7386 = vpop.trf.xlu0
    %v7387 = vpop.trf.xlu0
    %v7388 = vpop.trf.xlu0
    %7389 = vxpose.xlu0.c.b16.start [1/8] %v7299, 128
    %7390 = vxpose.xlu0.c.b16.cont [2/8] 0, 128
    %7391 = vxpose.xlu0.c.b16.cont [3/8] 0, 128
    %7392 = vxpose.xlu0.c.b16.cont [4/8] 0, 128
    %7393 = vxpose.xlu0.c.b16.cont [5/8] 0, 128
    %7394 = vxpose.xlu0.c.b16.cont [6/8] 0, 128
    %7395 = vxpose.xlu0.c.b16.cont [7/8] 0, 128
    %7396 = vxpose.xlu0.c.b16.end [8/8] 0, 128
    %v7397 = vpop.trf.xlu0
    %v7398 = vpop.trf.xlu0
    %v7399 = vpop.trf.xlu0
    %v7400 = vpop.trf.xlu0
    %v7401 = vpop.trf.xlu0
    %v7402 = vpop.trf.xlu0
    %v7403 = vpop.trf.xlu0
    %v7404 = vpop.trf.xlu0
    %7405 = vxpose.xlu0.c.b16.start [1/8] %v7303, 128
    %7406 = vxpose.xlu0.c.b16.cont [2/8] 0, 128
    %7407 = vxpose.xlu0.c.b16.cont [3/8] 0, 128
    %7408 = vxpose.xlu0.c.b16.cont [4/8] 0, 128
    %7409 = vxpose.xlu0.c.b16.cont [5/8] 0, 128
    %7410 = vxpose.xlu0.c.b16.cont [6/8] 0, 128
    %7411 = vxpose.xlu0.c.b16.cont [7/8] 0, 128
    %7412 = vxpose.xlu0.c.b16.end [8/8] 0, 128
    %v7413 = vpop.trf.xlu0
    %v7414 = vpop.trf.xlu0
    %v7415 = vpop.trf.xlu0
    %v7416 = vpop.trf.xlu0
    %v7417 = vpop.trf.xlu0
    %v7418 = vpop.trf.xlu0
    %v7419 = vpop.trf.xlu0
    %v7420 = vpop.trf.xlu0
    %7421 = vxpose.xlu0.c.b16.start [1/8] %v7307, 128
    %7422 = vxpose.xlu0.c.b16.cont [2/8] 0, 128
    %7423 = vxpose.xlu0.c.b16.cont [3/8] 0, 128
    %7424 = vxpose.xlu0.c.b16.cont [4/8] 0, 128
    %7425 = vxpose.xlu0.c.b16.cont [5/8] 0, 128
    %7426 = vxpose.xlu0.c.b16.cont [6/8] 0, 128
    %7427 = vxpose.xlu0.c.b16.cont [7/8] 0, 128
    %7428 = vxpose.xlu0.c.b16.end [8/8] 0, 128
    %v7429 = vpop.trf.xlu0
    %v7430 = vpop.trf.xlu0
    %v7431 = vpop.trf.xlu0
    %v7432 = vpop.trf.xlu0
    %v7433 = vpop.trf.xlu0
    %v7434 = vpop.trf.xlu0
    %v7435 = vpop.trf.xlu0
    %v7436 = vpop.trf.xlu0
    %v7437 = vcombine.low %v7317, %v7381
    %v7439 = vunpack.c.l.s4 1983009808
    %v7440 = vunpack.c.0.s8 %v7439
    %v7441 = vlaneseq
    %v7442 = vshrl.u32 %v7441, 7
    %v7443 = vsub.s32 %v7440, %v7442
    %v7444 = vrot.slane %v7437, %v7443
    %v7445 = vcombine.low %v7349, %v7413
    %v7447 = vunpack.c.l.s4 1983009808
    %v7448 = vunpack.c.0.s8 %v7447
    %v7449 = vlaneseq
    %v7450 = vshrl.u32 %v7449, 7
    %v7451 = vsub.s32 %v7448, %v7450
    %v7452 = vrot.slane %v7445, %v7451
    %v7453 = vcombine.low %v7444, %v7452
    %v7455 = vunpack.c.l.s4 1934713408
    %v7456 = vunpack.c.0.s8 %v7455
    %v7457 = vlaneseq
    %v7458 = vshrl.u32 %v7457, 7
    %v7459 = vsub.s32 %v7456, %v7458
    %v7460 = vrot.slane %v7453, %v7459
    %v7461 = vcombine.high %v7460, 0
    %v7462 = vcombine.low %v7333, %v7397
    %v7464 = vunpack.c.l.s4 1983009808
    %v7465 = vunpack.c.0.s8 %v7464
    %v7466 = vlaneseq
    %v7467 = vshrl.u32 %v7466, 7
    %v7468 = vsub.s32 %v7465, %v7467
    %v7469 = vrot.slane %v7462, %v7468
    %v7470 = vcombine.low %v7365, %v7429
    %v7472 = vunpack.c.l.s4 1983009808
    %v7473 = vunpack.c.0.s8 %v7472
    %v7474 = vlaneseq
    %v7475 = vshrl.u32 %v7474, 7
    %v7476 = vsub.s32 %v7473, %v7475
    %v7477 = vrot.slane %v7470, %v7476
    %v7478 = vcombine.low %v7469, %v7477
    %v7480 = vunpack.c.l.s4 1934713408
    %v7481 = vunpack.c.0.s8 %v7480
    %v7482 = vlaneseq
    %v7483 = vshrl.u32 %v7482, 7
    %v7484 = vsub.s32 %v7481, %v7483
    %v7485 = vrot.slane %v7478, %v7484
    %v7486 = vcombine.high %v7485, 0
    %v7489 = vpack.i.b16 %v7485, %v7460
    %v7490 = vshrl.u32 %v7460, 16
    %v7491 = vshrl.u32 %v7485, 16
    %v7492 = vpack.i.b16 %v7491, %v7490
    %v7495 = vpack.i.b16 %v7486, %v7461
    %v7496 = vshrl.u32 %v7461, 16
    %v7497 = vshrl.u32 %v7486, 16
    %v7498 = vpack.i.b16 %v7497, %v7496
    %7499 = vxpose.xlu0.c.b16.start [1/8] %v7065, 128
    %7500 = vxpose.xlu0.c.b16.cont [2/8] 0, 128
    %7501 = vxpose.xlu0.c.b16.cont [3/8] 0, 128
    %7502 = vxpose.xlu0.c.b16.cont [4/8] 0, 128
    %7503 = vxpose.xlu0.c.b16.cont [5/8] 0, 128
    %7504 = vxpose.xlu0.c.b16.cont [6/8] 0, 128
    %7505 = vxpose.xlu0.c.b16.cont [7/8] 0, 128
    %7506 = vxpose.xlu0.c.b16.end [8/8] 0, 128
    %v7507 = vpop.trf.xlu0
    %v7508 = vpop.trf.xlu0
    %v7509 = vpop.trf.xlu0
    %v7510 = vpop.trf.xlu0
    %v7511 = vpop.trf.xlu0
    %v7512 = vpop.trf.xlu0
    %v7513 = vpop.trf.xlu0
    %v7514 = vpop.trf.xlu0
    %7515 = vxpose.xlu0.c.b16.start [1/8] %v7066, 128
    %7516 = vxpose.xlu0.c.b16.cont [2/8] 0, 128
    %7517 = vxpose.xlu0.c.b16.cont [3/8] 0, 128
    %7518 = vxpose.xlu0.c.b16.cont [4/8] 0, 128
    %7519 = vxpose.xlu0.c.b16.cont [5/8] 0, 128
    %7520 = vxpose.xlu0.c.b16.cont [6/8] 0, 128
    %7521 = vxpose.xlu0.c.b16.cont [7/8] 0, 128
    %7522 = vxpose.xlu0.c.b16.end [8/8] 0, 128
    %v7523 = vpop.trf.xlu0
    %v7524 = vpop.trf.xlu0
    %v7525 = vpop.trf.xlu0
    %v7526 = vpop.trf.xlu0
    %v7527 = vpop.trf.xlu0
    %v7528 = vpop.trf.xlu0
    %v7529 = vpop.trf.xlu0
    %v7530 = vpop.trf.xlu0
    %7531 = vxpose.xlu0.c.b16.start [1/8] %v7067, 128
    %7532 = vxpose.xlu0.c.b16.cont [2/8] 0, 128
    %7533 = vxpose.xlu0.c.b16.cont [3/8] 0, 128
    %7534 = vxpose.xlu0.c.b16.cont [4/8] 0, 128
    %7535 = vxpose.xlu0.c.b16.cont [5/8] 0, 128
    %7536 = vxpose.xlu0.c.b16.cont [6/8] 0, 128
    %7537 = vxpose.xlu0.c.b16.cont [7/8] 0, 128
    %7538 = vxpose.xlu0.c.b16.end [8/8] 0, 128
    %v7539 = vpop.trf.xlu0
    %v7540 = vpop.trf.xlu0
    %v7541 = vpop.trf.xlu0
    %v7542 = vpop.trf.xlu0
    %v7543 = vpop.trf.xlu0
    %v7544 = vpop.trf.xlu0
    %v7545 = vpop.trf.xlu0
    %v7546 = vpop.trf.xlu0
    %7547 = vxpose.xlu0.c.b16.start [1/8] %v7068, 128
    %7548 = vxpose.xlu0.c.b16.cont [2/8] 0, 128
    %7549 = vxpose.xlu0.c.b16.cont [3/8] 0, 128
    %7550 = vxpose.xlu0.c.b16.cont [4/8] 0, 128
    %7551 = vxpose.xlu0.c.b16.cont [5/8] 0, 128
    %7552 = vxpose.xlu0.c.b16.cont [6/8] 0, 128
    %7553 = vxpose.xlu0.c.b16.cont [7/8] 0, 128
    %7554 = vxpose.xlu0.c.b16.end [8/8] 0, 128
    %v7555 = vpop.trf.xlu0
    %v7556 = vpop.trf.xlu0
    %v7557 = vpop.trf.xlu0
    %v7558 = vpop.trf.xlu0
    %v7559 = vpop.trf.xlu0
    %v7560 = vpop.trf.xlu0
    %v7561 = vpop.trf.xlu0
    %v7562 = vpop.trf.xlu0
    %7563 = vxpose.xlu0.c.b16.start [1/8] %v7069, 128
    %7564 = vxpose.xlu0.c.b16.cont [2/8] 0, 128
    %7565 = vxpose.xlu0.c.b16.cont [3/8] 0, 128
    %7566 = vxpose.xlu0.c.b16.cont [4/8] 0, 128
    %7567 = vxpose.xlu0.c.b16.cont [5/8] 0, 128
    %7568 = vxpose.xlu0.c.b16.cont [6/8] 0, 128
    %7569 = vxpose.xlu0.c.b16.cont [7/8] 0, 128
    %7570 = vxpose.xlu0.c.b16.end [8/8] 0, 128
    %v7571 = vpop.trf.xlu0
    %v7572 = vpop.trf.xlu0
    %v7573 = vpop.trf.xlu0
    %v7574 = vpop.trf.xlu0
    %v7575 = vpop.trf.xlu0
    %v7576 = vpop.trf.xlu0
    %v7577 = vpop.trf.xlu0
    %v7578 = vpop.trf.xlu0
    %7579 = vxpose.xlu0.c.b16.start [1/8] %v7070, 128
    %7580 = vxpose.xlu0.c.b16.cont [2/8] 0, 128
    %7581 = vxpose.xlu0.c.b16.cont [3/8] 0, 128
    %7582 = vxpose.xlu0.c.b16.cont [4/8] 0, 128
    %7583 = vxpose.xlu0.c.b16.cont [5/8] 0, 128
    %7584 = vxpose.xlu0.c.b16.cont [6/8] 0, 128
    %7585 = vxpose.xlu0.c.b16.cont [7/8] 0, 128
    %7586 = vxpose.xlu0.c.b16.end [8/8] 0, 128
    %v7587 = vpop.trf.xlu0
    %v7588 = vpop.trf.xlu0
    %v7589 = vpop.trf.xlu0
    %v7590 = vpop.trf.xlu0
    %v7591 = vpop.trf.xlu0
    %v7592 = vpop.trf.xlu0
    %v7593 = vpop.trf.xlu0
    %v7594 = vpop.trf.xlu0
    %7595 = vxpose.xlu0.c.b16.start [1/8] %v7071, 128
    %7596 = vxpose.xlu0.c.b16.cont [2/8] 0, 128
    %7597 = vxpose.xlu0.c.b16.cont [3/8] 0, 128
    %7598 = vxpose.xlu0.c.b16.cont [4/8] 0, 128
    %7599 = vxpose.xlu0.c.b16.cont [5/8] 0, 128
    %7600 = vxpose.xlu0.c.b16.cont [6/8] 0, 128
    %7601 = vxpose.xlu0.c.b16.cont [7/8] 0, 128
    %7602 = vxpose.xlu0.c.b16.end [8/8] 0, 128
    %v7603 = vpop.trf.xlu0
    %v7604 = vpop.trf.xlu0
    %v7605 = vpop.trf.xlu0
    %v7606 = vpop.trf.xlu0
    %v7607 = vpop.trf.xlu0
    %v7608 = vpop.trf.xlu0
    %v7609 = vpop.trf.xlu0
    %v7610 = vpop.trf.xlu0
    %7611 = vxpose.xlu0.c.b16.start [1/8] %v7072, 128
    %7612 = vxpose.xlu0.c.b16.cont [2/8] 0, 128
    %7613 = vxpose.xlu0.c.b16.cont [3/8] 0, 128
    %7614 = vxpose.xlu0.c.b16.cont [4/8] 0, 128
    %7615 = vxpose.xlu0.c.b16.cont [5/8] 0, 128
    %7616 = vxpose.xlu0.c.b16.cont [6/8] 0, 128
    %7617 = vxpose.xlu0.c.b16.cont [7/8] 0, 128
    %7618 = vxpose.xlu0.c.b16.end [8/8] 0, 128
    %v7619 = vpop.trf.xlu0
    %v7620 = vpop.trf.xlu0
    %v7621 = vpop.trf.xlu0
    %v7622 = vpop.trf.xlu0
    %v7623 = vpop.trf.xlu0
    %v7624 = vpop.trf.xlu0
    %v7625 = vpop.trf.xlu0
    %v7626 = vpop.trf.xlu0
    %v7627 = vcombine.low %v7507, %v7571
    %v7629 = vunpack.c.l.s4 1983009808
    %v7630 = vunpack.c.0.s8 %v7629
    %v7631 = vlaneseq
    %v7632 = vshrl.u32 %v7631, 7
    %v7633 = vsub.s32 %v7630, %v7632
    %v7634 = vrot.slane %v7627, %v7633
    %v7635 = vcombine.low %v7539, %v7603
    %v7637 = vunpack.c.l.s4 1983009808
    %v7638 = vunpack.c.0.s8 %v7637
    %v7639 = vlaneseq
    %v7640 = vshrl.u32 %v7639, 7
    %v7641 = vsub.s32 %v7638, %v7640
    %v7642 = vrot.slane %v7635, %v7641
    %v7643 = vcombine.low %v7634, %v7642
    %v7644 = vcombine.high %v7634, %v7642
    %v7646 = vunpack.c.l.s4 1934713408
    %v7647 = vunpack.c.0.s8 %v7646
    %v7648 = vlaneseq
    %v7649 = vshrl.u32 %v7648, 7
    %v7650 = vsub.s32 %v7647, %v7649
    %v7651 = vrot.slane %v7643, %v7650
    %v7653 = vunpack.c.l.s4 1934713408
    %v7654 = vunpack.c.0.s8 %v7653
    %v7655 = vlaneseq
    %v7656 = vshrl.u32 %v7655, 7
    %v7657 = vsub.s32 %v7654, %v7656
    %v7658 = vrot.slane %v7644, %v7657
    %v7659 = vcombine.high %v7651, 0
    %v7660 = vcombine.high %v7658, 0
    %v7661 = vcombine.low %v7523, %v7587
    %v7663 = vunpack.c.l.s4 1983009808
    %v7664 = vunpack.c.0.s8 %v7663
    %v7665 = vlaneseq
    %v7666 = vshrl.u32 %v7665, 7
    %v7667 = vsub.s32 %v7664, %v7666
    %v7668 = vrot.slane %v7661, %v7667
    %v7669 = vcombine.low %v7555, %v7619
    %v7671 = vunpack.c.l.s4 1983009808
    %v7672 = vunpack.c.0.s8 %v7671
    %v7673 = vlaneseq
    %v7674 = vshrl.u32 %v7673, 7
    %v7675 = vsub.s32 %v7672, %v7674
    %v7676 = vrot.slane %v7669, %v7675
    %v7677 = vcombine.low %v7668, %v7676
    %v7678 = vcombine.high %v7668, %v7676
    %v7680 = vunpack.c.l.s4 1934713408
    %v7681 = vunpack.c.0.s8 %v7680
    %v7682 = vlaneseq
    %v7683 = vshrl.u32 %v7682, 7
    %v7684 = vsub.s32 %v7681, %v7683
    %v7685 = vrot.slane %v7677, %v7684
    %v7687 = vunpack.c.l.s4 1934713408
    %v7688 = vunpack.c.0.s8 %v7687
    %v7689 = vlaneseq
    %v7690 = vshrl.u32 %v7689, 7
    %v7691 = vsub.s32 %v7688, %v7690
    %v7692 = vrot.slane %v7678, %v7691
    %v7693 = vcombine.high %v7685, 0
    %v7694 = vcombine.high %v7692, 0
    %v7697 = vpack.i.b16 %v7685, %v7651
    %v7699 = vshrl.u32 %v7651, 16
    %v7700 = vshrl.u32 %v7685, 16
    %v7701 = vpack.i.b16 %v7700, %v7699
    %v7705 = vpack.i.b16 %v7693, %v7659
    %v7707 = vshrl.u32 %v7659, 16
    %v7708 = vshrl.u32 %v7693, 16
    %v7709 = vpack.i.b16 %v7708, %v7707
    %v7713 = vpack.i.b16 %v7692, %v7658
    %v7715 = vshrl.u32 %v7658, 16
    %v7716 = vshrl.u32 %v7692, 16
    %v7717 = vpack.i.b16 %v7716, %v7715
    %v7721 = vpack.i.b16 %v7694, %v7660
    %v7723 = vshrl.u32 %v7660, 16
    %v7724 = vshrl.u32 %v7694, 16
    %v7725 = vpack.i.b16 %v7724, %v7723
    %7727 = vxpose.xlu0.c.b16.start [1/8] %v7697, 128
    %7728 = vxpose.xlu0.c.b16.cont [2/8] 0, 128
    %7729 = vxpose.xlu0.c.b16.cont [3/8] 0, 128
    %7730 = vxpose.xlu0.c.b16.cont [4/8] 0, 128
    %7731 = vxpose.xlu0.c.b16.cont [5/8] 0, 128
    %7732 = vxpose.xlu0.c.b16.cont [6/8] 0, 128
    %7733 = vxpose.xlu0.c.b16.cont [7/8] 0, 128
    %7734 = vxpose.xlu0.c.b16.end [8/8] 0, 128
    %v7735 = vpop.trf.xlu0
    %v7736 = vpop.trf.xlu0
    %v7737 = vpop.trf.xlu0
    %v7738 = vpop.trf.xlu0
    %v7739 = vpop.trf.xlu0
    %v7740 = vpop.trf.xlu0
    %v7741 = vpop.trf.xlu0
    %v7742 = vpop.trf.xlu0
    %7743 = vxpose.xlu0.c.b16.start [1/8] %v7701, 128
    %7744 = vxpose.xlu0.c.b16.cont [2/8] 0, 128
    %7745 = vxpose.xlu0.c.b16.cont [3/8] 0, 128
    %7746 = vxpose.xlu0.c.b16.cont [4/8] 0, 128
    %7747 = vxpose.xlu0.c.b16.cont [5/8] 0, 128
    %7748 = vxpose.xlu0.c.b16.cont [6/8] 0, 128
    %7749 = vxpose.xlu0.c.b16.cont [7/8] 0, 128
    %7750 = vxpose.xlu0.c.b16.end [8/8] 0, 128
    %v7751 = vpop.trf.xlu0
    %v7752 = vpop.trf.xlu0
    %v7753 = vpop.trf.xlu0
    %v7754 = vpop.trf.xlu0
    %v7755 = vpop.trf.xlu0
    %v7756 = vpop.trf.xlu0
    %v7757 = vpop.trf.xlu0
    %v7758 = vpop.trf.xlu0
    %7759 = vxpose.xlu0.c.b16.start [1/8] %v7705, 128
    %7760 = vxpose.xlu0.c.b16.cont [2/8] 0, 128
    %7761 = vxpose.xlu0.c.b16.cont [3/8] 0, 128
    %7762 = vxpose.xlu0.c.b16.cont [4/8] 0, 128
    %7763 = vxpose.xlu0.c.b16.cont [5/8] 0, 128
    %7764 = vxpose.xlu0.c.b16.cont [6/8] 0, 128
    %7765 = vxpose.xlu0.c.b16.cont [7/8] 0, 128
    %7766 = vxpose.xlu0.c.b16.end [8/8] 0, 128
    %v7767 = vpop.trf.xlu0
    %v7768 = vpop.trf.xlu0
    %v7769 = vpop.trf.xlu0
    %v7770 = vpop.trf.xlu0
    %v7771 = vpop.trf.xlu0
    %v7772 = vpop.trf.xlu0
    %v7773 = vpop.trf.xlu0
    %v7774 = vpop.trf.xlu0
    %7775 = vxpose.xlu0.c.b16.start [1/8] %v7709, 128
    %7776 = vxpose.xlu0.c.b16.cont [2/8] 0, 128
    %7777 = vxpose.xlu0.c.b16.cont [3/8] 0, 128
    %7778 = vxpose.xlu0.c.b16.cont [4/8] 0, 128
    %7779 = vxpose.xlu0.c.b16.cont [5/8] 0, 128
    %7780 = vxpose.xlu0.c.b16.cont [6/8] 0, 128
    %7781 = vxpose.xlu0.c.b16.cont [7/8] 0, 128
    %7782 = vxpose.xlu0.c.b16.end [8/8] 0, 128
    %v7783 = vpop.trf.xlu0
    %v7784 = vpop.trf.xlu0
    %v7785 = vpop.trf.xlu0
    %v7786 = vpop.trf.xlu0
    %v7787 = vpop.trf.xlu0
    %v7788 = vpop.trf.xlu0
    %v7789 = vpop.trf.xlu0
    %v7790 = vpop.trf.xlu0
    %7791 = vxpose.xlu0.c.b16.start [1/8] %v7713, 128
    %7792 = vxpose.xlu0.c.b16.cont [2/8] 0, 128
    %7793 = vxpose.xlu0.c.b16.cont [3/8] 0, 128
    %7794 = vxpose.xlu0.c.b16.cont [4/8] 0, 128
    %7795 = vxpose.xlu0.c.b16.cont [5/8] 0, 128
    %7796 = vxpose.xlu0.c.b16.cont [6/8] 0, 128
    %7797 = vxpose.xlu0.c.b16.cont [7/8] 0, 128
    %7798 = vxpose.xlu0.c.b16.end [8/8] 0, 128
    %v7799 = vpop.trf.xlu0
    %v7800 = vpop.trf.xlu0
    %v7801 = vpop.trf.xlu0
    %v7802 = vpop.trf.xlu0
    %v7803 = vpop.trf.xlu0
    %v7804 = vpop.trf.xlu0
    %v7805 = vpop.trf.xlu0
    %v7806 = vpop.trf.xlu0
    %7807 = vxpose.xlu0.c.b16.start [1/8] %v7717, 128
    %7808 = vxpose.xlu0.c.b16.cont [2/8] 0, 128
    %7809 = vxpose.xlu0.c.b16.cont [3/8] 0, 128
    %7810 = vxpose.xlu0.c.b16.cont [4/8] 0, 128
    %7811 = vxpose.xlu0.c.b16.cont [5/8] 0, 128
    %7812 = vxpose.xlu0.c.b16.cont [6/8] 0, 128
    %7813 = vxpose.xlu0.c.b16.cont [7/8] 0, 128
    %7814 = vxpose.xlu0.c.b16.end [8/8] 0, 128
    %v7815 = vpop.trf.xlu0
    %v7816 = vpop.trf.xlu0
    %v7817 = vpop.trf.xlu0
    %v7818 = vpop.trf.xlu0
    %v7819 = vpop.trf.xlu0
    %v7820 = vpop.trf.xlu0
    %v7821 = vpop.trf.xlu0
    %v7822 = vpop.trf.xlu0
    %7823 = vxpose.xlu0.c.b16.start [1/8] %v7721, 128
    %7824 = vxpose.xlu0.c.b16.cont [2/8] 0, 128
    %7825 = vxpose.xlu0.c.b16.cont [3/8] 0, 128
    %7826 = vxpose.xlu0.c.b16.cont [4/8] 0, 128
    %7827 = vxpose.xlu0.c.b16.cont [5/8] 0, 128
    %7828 = vxpose.xlu0.c.b16.cont [6/8] 0, 128
    %7829 = vxpose.xlu0.c.b16.cont [7/8] 0, 128
    %7830 = vxpose.xlu0.c.b16.end [8/8] 0, 128
    %v7831 = vpop.trf.xlu0
    %v7832 = vpop.trf.xlu0
    %v7833 = vpop.trf.xlu0
    %v7834 = vpop.trf.xlu0
    %v7835 = vpop.trf.xlu0
    %v7836 = vpop.trf.xlu0
    %v7837 = vpop.trf.xlu0
    %v7838 = vpop.trf.xlu0
    %7839 = vxpose.xlu0.c.b16.start [1/8] %v7725, 128
    %7840 = vxpose.xlu0.c.b16.cont [2/8] 0, 128
    %7841 = vxpose.xlu0.c.b16.cont [3/8] 0, 128
    %7842 = vxpose.xlu0.c.b16.cont [4/8] 0, 128
    %7843 = vxpose.xlu0.c.b16.cont [5/8] 0, 128
    %7844 = vxpose.xlu0.c.b16.cont [6/8] 0, 128
    %7845 = vxpose.xlu0.c.b16.cont [7/8] 0, 128
    %7846 = vxpose.xlu0.c.b16.end [8/8] 0, 128
    %v7847 = vpop.trf.xlu0
    %v7848 = vpop.trf.xlu0
    %v7849 = vpop.trf.xlu0
    %v7850 = vpop.trf.xlu0
    %v7851 = vpop.trf.xlu0
    %v7852 = vpop.trf.xlu0
    %v7853 = vpop.trf.xlu0
    %v7854 = vpop.trf.xlu0
    %v7855 = vcombine.low %v7735, %v7799
    %v7857 = vunpack.c.l.s4 1983009808
    %v7858 = vunpack.c.0.s8 %v7857
    %v7859 = vlaneseq
    %v7860 = vshrl.u32 %v7859, 7
    %v7861 = vsub.s32 %v7858, %v7860
    %v7862 = vrot.slane %v7855, %v7861
    %v7863 = vcombine.low %v7767, %v7831
    %v7865 = vunpack.c.l.s4 1983009808
    %v7866 = vunpack.c.0.s8 %v7865
    %v7867 = vlaneseq
    %v7868 = vshrl.u32 %v7867, 7
    %v7869 = vsub.s32 %v7866, %v7868
    %v7870 = vrot.slane %v7863, %v7869
    %v7871 = vcombine.low %v7862, %v7870
    %v7873 = vunpack.c.l.s4 1934713408
    %v7874 = vunpack.c.0.s8 %v7873
    %v7875 = vlaneseq
    %v7876 = vshrl.u32 %v7875, 7
    %v7877 = vsub.s32 %v7874, %v7876
    %v7878 = vrot.slane %v7871, %v7877
    %v7879 = vcombine.high %v7878, 0
    %v7880 = vcombine.low %v7751, %v7815
    %v7882 = vunpack.c.l.s4 1983009808
    %v7883 = vunpack.c.0.s8 %v7882
    %v7884 = vlaneseq
    %v7885 = vshrl.u32 %v7884, 7
    %v7886 = vsub.s32 %v7883, %v7885
    %v7887 = vrot.slane %v7880, %v7886
    %v7888 = vcombine.low %v7783, %v7847
    %v7890 = vunpack.c.l.s4 1983009808
    %v7891 = vunpack.c.0.s8 %v7890
    %v7892 = vlaneseq
    %v7893 = vshrl.u32 %v7892, 7
    %v7894 = vsub.s32 %v7891, %v7893
    %v7895 = vrot.slane %v7888, %v7894
    %v7896 = vcombine.low %v7887, %v7895
    %v7898 = vunpack.c.l.s4 1934713408
    %v7899 = vunpack.c.0.s8 %v7898
    %v7900 = vlaneseq
    %v7901 = vshrl.u32 %v7900, 7
    %v7902 = vsub.s32 %v7899, %v7901
    %v7903 = vrot.slane %v7896, %v7902
    %v7904 = vcombine.high %v7903, 0
    %v7907 = vpack.i.b16 %v7903, %v7878
    %v7908 = vshrl.u32 %v7878, 16
    %v7909 = vshrl.u32 %v7903, 16
    %v7910 = vpack.i.b16 %v7909, %v7908
    %v7913 = vpack.i.b16 %v7904, %v7879
    %v7914 = vshrl.u32 %v7879, 16
    %v7915 = vshrl.u32 %v7904, 16
    %v7916 = vpack.i.b16 %v7915, %v7914
    %v7918 = vsel %vm1152, %v7489, 0
    %v7921 = vsel %vm1156, %v7907, 0
    %7923 = vmatprep.subr.bf16.mxu0 0
    %7924 = vmatpush1.bf16.msra.mxu0 %v7921
    %7925 = vmatprep.subr.bf16.mxu0 0
    %7926 = vmatpush1.bf16.msra.mxu0 0
    %7927 = vmatprep.subr.bf16.mxu0 0
    %7928 = vmatpush1.bf16.msra.mxu0 0
    %7929 = vmatprep.subr.bf16.mxu0 0
    %7930 = vmatpush1.bf16.msra.mxu0 0
    %7931 = vmatprep.subr.bf16.mxu0 0
    %7932 = vmatpush1.bf16.msra.mxu0 0
    %7933 = vmatprep.subr.bf16.mxu0 0
    %7934 = vmatpush1.bf16.msra.mxu0 0
    %7935 = vmatprep.subr.bf16.mxu0 0
    %7936 = vmatpush1.bf16.msra.mxu0 0
    %7937 = vmatprep.subr.bf16.mxu0 0
    %7938 = vmatpush1.bf16.msra.mxu0 0
    %7939 = vmatprep.subr.bf16.mxu0 0
    %7940 = vmatpush1.bf16.msra.mxu0 0
    %7941 = vmatprep.subr.bf16.mxu0 0
    %7942 = vmatpush1.bf16.msra.mxu0 0
    %7943 = vmatprep.subr.bf16.mxu0 0
    %7944 = vmatpush1.bf16.msra.mxu0 0
    %7945 = vmatprep.subr.bf16.mxu0 0
    %7946 = vmatpush1.bf16.msra.mxu0 0
    %7947 = vmatprep.subr.bf16.mxu0 0
    %7948 = vmatpush1.bf16.msra.mxu0 0
    %7949 = vmatprep.subr.bf16.mxu0 0
    %7950 = vmatpush1.bf16.msra.mxu0 0
    %7951 = vmatprep.subr.bf16.mxu0 0
    %7952 = vmatpush1.bf16.msra.mxu0 0
    %7953 = vmatprep.subr.bf16.mxu0 0
    %7954 = vmatpush1.bf16.msra.mxu0 0
    %7955 = vmatprep.mubr.bf16.mxu0 0
    %7956 = vmatmul.mubr.bf16.gmra.mrb[0].mxu0 %v7918
    %v7957 = vpop.f32.mrb[0].mxu0
    %v7958 = vadd.f32 0.0, %v7957
    %v7959 = vpop.f32.mrb[0].mxu0
    %v7960 = vpop.f32.mrb[0].mxu0
    %v7961 = vpop.f32.mrb[0].mxu0
    %7962 = vdwg.mxu0
    %v7964 = vsel %vm1152, %v7492, 0
    %v7967 = vsel %vm1156, %v7910, 0
    %7969 = vmatprep.subr.bf16.mxu0 0
    %7970 = vmatpush1.bf16.msra.mxu0 %v7967
    %7971 = vmatprep.subr.bf16.mxu0 0
    %7972 = vmatpush1.bf16.msra.mxu0 0
    %7973 = vmatprep.subr.bf16.mxu0 0
    %7974 = vmatpush1.bf16.msra.mxu0 0
    %7975 = vmatprep.subr.bf16.mxu0 0
    %7976 = vmatpush1.bf16.msra.mxu0 0
    %7977 = vmatprep.subr.bf16.mxu0 0
    %7978 = vmatpush1.bf16.msra.mxu0 0
    %7979 = vmatprep.subr.bf16.mxu0 0
    %7980 = vmatpush1.bf16.msra.mxu0 0
    %7981 = vmatprep.subr.bf16.mxu0 0
    %7982 = vmatpush1.bf16.msra.mxu0 0
    %7983 = vmatprep.subr.bf16.mxu0 0
    %7984 = vmatpush1.bf16.msra.mxu0 0
    %7985 = vmatprep.subr.bf16.mxu0 0
    %7986 = vmatpush1.bf16.msra.mxu0 0
    %7987 = vmatprep.subr.bf16.mxu0 0
    %7988 = vmatpush1.bf16.msra.mxu0 0
    %7989 = vmatprep.subr.bf16.mxu0 0
    %7990 = vmatpush1.bf16.msra.mxu0 0
    %7991 = vmatprep.subr.bf16.mxu0 0
    %7992 = vmatpush1.bf16.msra.mxu0 0
    %7993 = vmatprep.subr.bf16.mxu0 0
    %7994 = vmatpush1.bf16.msra.mxu0 0
    %7995 = vmatprep.subr.bf16.mxu0 0
    %7996 = vmatpush1.bf16.msra.mxu0 0
    %7997 = vmatprep.subr.bf16.mxu0 0
    %7998 = vmatpush1.bf16.msra.mxu0 0
    %7999 = vmatprep.subr.bf16.mxu0 0
    %8000 = vmatpush1.bf16.msra.mxu0 0
    %8001 = vmatprep.mubr.bf16.mxu0 0
    %8002 = vmatmul.mubr.bf16.gmra.mrb[0].mxu0 %v7964
    %v8003 = vpop.f32.mrb[0].mxu0
    %v8004 = vadd.f32 0.0, %v8003
    %v8005 = vpop.f32.mrb[0].mxu0
    %v8006 = vpop.f32.mrb[0].mxu0
    %v8007 = vpop.f32.mrb[0].mxu0
    %8008 = vdwg.mxu0
    %v8010 = vsel %vm1152, %v7495, 0
    %v8013 = vsel %vm1156, %v7913, 0
    %8015 = vmatprep.subr.bf16.mxu0 0
    %8016 = vmatpush1.bf16.msra.mxu0 %v8013
    %8017 = vmatprep.subr.bf16.mxu0 0
    %8018 = vmatpush1.bf16.msra.mxu0 0
    %8019 = vmatprep.subr.bf16.mxu0 0
    %8020 = vmatpush1.bf16.msra.mxu0 0
    %8021 = vmatprep.subr.bf16.mxu0 0
    %8022 = vmatpush1.bf16.msra.mxu0 0
    %8023 = vmatprep.subr.bf16.mxu0 0
    %8024 = vmatpush1.bf16.msra.mxu0 0
    %8025 = vmatprep.subr.bf16.mxu0 0
    %8026 = vmatpush1.bf16.msra.mxu0 0
    %8027 = vmatprep.subr.bf16.mxu0 0
    %8028 = vmatpush1.bf16.msra.mxu0 0
    %8029 = vmatprep.subr.bf16.mxu0 0
    %8030 = vmatpush1.bf16.msra.mxu0 0
    %8031 = vmatprep.subr.bf16.mxu0 0
    %8032 = vmatpush1.bf16.msra.mxu0 0
    %8033 = vmatprep.subr.bf16.mxu0 0
    %8034 = vmatpush1.bf16.msra.mxu0 0
    %8035 = vmatprep.subr.bf16.mxu0 0
    %8036 = vmatpush1.bf16.msra.mxu0 0
    %8037 = vmatprep.subr.bf16.mxu0 0
    %8038 = vmatpush1.bf16.msra.mxu0 0
    %8039 = vmatprep.subr.bf16.mxu0 0
    %8040 = vmatpush1.bf16.msra.mxu0 0
    %8041 = vmatprep.subr.bf16.mxu0 0
    %8042 = vmatpush1.bf16.msra.mxu0 0
    %8043 = vmatprep.subr.bf16.mxu0 0
    %8044 = vmatpush1.bf16.msra.mxu0 0
    %8045 = vmatprep.subr.bf16.mxu0 0
    %8046 = vmatpush1.bf16.msra.mxu0 0
    %8047 = vmatprep.mubr.bf16.mxu0 0
    %8048 = vmatmul.mubr.bf16.gmra.mrb[0].mxu0 %v8010
    %v8049 = vpop.f32.mrb[0].mxu0
    %v8050 = vadd.f32 0.0, %v8049
    %v8051 = vpop.f32.mrb[0].mxu0
    %v8052 = vpop.f32.mrb[0].mxu0
    %v8053 = vpop.f32.mrb[0].mxu0
    %8054 = vdwg.mxu0
    %v8056 = vsel %vm1152, %v7498, 0
    %v8059 = vsel %vm1156, %v7916, 0
    %8061 = vmatprep.subr.bf16.mxu0 0
    %8062 = vmatpush1.bf16.msra.mxu0 %v8059
    %8063 = vmatprep.subr.bf16.mxu0 0
    %8064 = vmatpush1.bf16.msra.mxu0 0
    %8065 = vmatprep.subr.bf16.mxu0 0
    %8066 = vmatpush1.bf16.msra.mxu0 0
    %8067 = vmatprep.subr.bf16.mxu0 0
    %8068 = vmatpush1.bf16.msra.mxu0 0
    %8069 = vmatprep.subr.bf16.mxu0 0
    %8070 = vmatpush1.bf16.msra.mxu0 0
    %8071 = vmatprep.subr.bf16.mxu0 0
    %8072 = vmatpush1.bf16.msra.mxu0 0
    %8073 = vmatprep.subr.bf16.mxu0 0
    %8074 = vmatpush1.bf16.msra.mxu0 0
    %8075 = vmatprep.subr.bf16.mxu0 0
    %8076 = vmatpush1.bf16.msra.mxu0 0
    %8077 = vmatprep.subr.bf16.mxu0 0
    %8078 = vmatpush1.bf16.msra.mxu0 0
    %8079 = vmatprep.subr.bf16.mxu0 0
    %8080 = vmatpush1.bf16.msra.mxu0 0
    %8081 = vmatprep.subr.bf16.mxu0 0
    %8082 = vmatpush1.bf16.msra.mxu0 0
    %8083 = vmatprep.subr.bf16.mxu0 0
    %8084 = vmatpush1.bf16.msra.mxu0 0
    %8085 = vmatprep.subr.bf16.mxu0 0
    %8086 = vmatpush1.bf16.msra.mxu0 0
    %8087 = vmatprep.subr.bf16.mxu0 0
    %8088 = vmatpush1.bf16.msra.mxu0 0
    %8089 = vmatprep.subr.bf16.mxu0 0
    %8090 = vmatpush1.bf16.msra.mxu0 0
    %8091 = vmatprep.subr.bf16.mxu0 0
    %8092 = vmatpush1.bf16.msra.mxu0 0
    %8093 = vmatprep.mubr.bf16.mxu0 0
    %8094 = vmatmul.mubr.bf16.gmra.mrb[0].mxu0 %v8056
    %v8095 = vpop.f32.mrb[0].mxu0
    %v8096 = vadd.f32 0.0, %v8095
    %v8097 = vpop.f32.mrb[0].mxu0
    %v8098 = vpop.f32.mrb[0].mxu0
    %v8099 = vpop.f32.mrb[0].mxu0
    %8100 = vdwg.mxu0
    %8101 = vxpose.xlu0.b32.start [1/16] %v7958, 128
    %8102 = vxpose.xlu0.b32.cont [2/16] 0.0, 128
    %8103 = vxpose.xlu0.b32.cont [3/16] 0.0, 128
    %8104 = vxpose.xlu0.b32.cont [4/16] 0.0, 128
    %8105 = vxpose.xlu0.b32.cont [5/16] 0.0, 128
    %8106 = vxpose.xlu0.b32.cont [6/16] 0.0, 128
    %8107 = vxpose.xlu0.b32.cont [7/16] 0.0, 128
    %8108 = vxpose.xlu0.b32.cont [8/16] 0.0, 128
    %8109 = vxpose.xlu0.b32.cont [9/16] 0.0, 128
    %8110 = vxpose.xlu0.b32.cont [10/16] 0.0, 128
    %8111 = vxpose.xlu0.b32.cont [11/16] 0.0, 128
    %8112 = vxpose.xlu0.b32.cont [12/16] 0.0, 128
    %8113 = vxpose.xlu0.b32.cont [13/16] 0.0, 128
    %8114 = vxpose.xlu0.b32.cont [14/16] 0.0, 128
    %8115 = vxpose.xlu0.b32.cont [15/16] 0.0, 128
    %8116 = vxpose.xlu0.b32.end [16/16] 0.0, 128
    %v8117 = vpop.trf.xlu0
    %v8118 = vpop.trf.xlu0
    %v8119 = vpop.trf.xlu0
    %v8120 = vpop.trf.xlu0
    %v8121 = vpop.trf.xlu0
    %v8122 = vpop.trf.xlu0
    %v8123 = vpop.trf.xlu0
    %v8124 = vpop.trf.xlu0
    %v8125 = vpop.trf.xlu0
    %v8126 = vpop.trf.xlu0
    %v8127 = vpop.trf.xlu0
    %v8128 = vpop.trf.xlu0
    %v8129 = vpop.trf.xlu0
    %v8130 = vpop.trf.xlu0
    %v8131 = vpop.trf.xlu0
    %v8132 = vpop.trf.xlu0
    %8133 = vxpose.xlu0.b32.start [1/16] %v8004, 128
    %8134 = vxpose.xlu0.b32.cont [2/16] 0.0, 128
    %8135 = vxpose.xlu0.b32.cont [3/16] 0.0, 128
    %8136 = vxpose.xlu0.b32.cont [4/16] 0.0, 128
    %8137 = vxpose.xlu0.b32.cont [5/16] 0.0, 128
    %8138 = vxpose.xlu0.b32.cont [6/16] 0.0, 128
    %8139 = vxpose.xlu0.b32.cont [7/16] 0.0, 128
    %8140 = vxpose.xlu0.b32.cont [8/16] 0.0, 128
    %8141 = vxpose.xlu0.b32.cont [9/16] 0.0, 128
    %8142 = vxpose.xlu0.b32.cont [10/16] 0.0, 128
    %8143 = vxpose.xlu0.b32.cont [11/16] 0.0, 128
    %8144 = vxpose.xlu0.b32.cont [12/16] 0.0, 128
    %8145 = vxpose.xlu0.b32.cont [13/16] 0.0, 128
    %8146 = vxpose.xlu0.b32.cont [14/16] 0.0, 128
    %8147 = vxpose.xlu0.b32.cont [15/16] 0.0, 128
    %8148 = vxpose.xlu0.b32.end [16/16] 0.0, 128
    %v8149 = vpop.trf.xlu0
    %v8150 = vpop.trf.xlu0
    %v8151 = vpop.trf.xlu0
    %v8152 = vpop.trf.xlu0
    %v8153 = vpop.trf.xlu0
    %v8154 = vpop.trf.xlu0
    %v8155 = vpop.trf.xlu0
    %v8156 = vpop.trf.xlu0
    %v8157 = vpop.trf.xlu0
    %v8158 = vpop.trf.xlu0
    %v8159 = vpop.trf.xlu0
    %v8160 = vpop.trf.xlu0
    %v8161 = vpop.trf.xlu0
    %v8162 = vpop.trf.xlu0
    %v8163 = vpop.trf.xlu0
    %v8164 = vpop.trf.xlu0
    %8165 = vxpose.xlu0.b32.start [1/16] %v8050, 128
    %8166 = vxpose.xlu0.b32.cont [2/16] 0.0, 128
    %8167 = vxpose.xlu0.b32.cont [3/16] 0.0, 128
    %8168 = vxpose.xlu0.b32.cont [4/16] 0.0, 128
    %8169 = vxpose.xlu0.b32.cont [5/16] 0.0, 128
    %8170 = vxpose.xlu0.b32.cont [6/16] 0.0, 128
    %8171 = vxpose.xlu0.b32.cont [7/16] 0.0, 128
    %8172 = vxpose.xlu0.b32.cont [8/16] 0.0, 128
    %8173 = vxpose.xlu0.b32.cont [9/16] 0.0, 128
    %8174 = vxpose.xlu0.b32.cont [10/16] 0.0, 128
    %8175 = vxpose.xlu0.b32.cont [11/16] 0.0, 128
    %8176 = vxpose.xlu0.b32.cont [12/16] 0.0, 128
    %8177 = vxpose.xlu0.b32.cont [13/16] 0.0, 128
    %8178 = vxpose.xlu0.b32.cont [14/16] 0.0, 128
    %8179 = vxpose.xlu0.b32.cont [15/16] 0.0, 128
    %8180 = vxpose.xlu0.b32.end [16/16] 0.0, 128
    %v8181 = vpop.trf.xlu0
    %v8182 = vpop.trf.xlu0
    %v8183 = vpop.trf.xlu0
    %v8184 = vpop.trf.xlu0
    %v8185 = vpop.trf.xlu0
    %v8186 = vpop.trf.xlu0
    %v8187 = vpop.trf.xlu0
    %v8188 = vpop.trf.xlu0
    %v8189 = vpop.trf.xlu0
    %v8190 = vpop.trf.xlu0
    %v8191 = vpop.trf.xlu0
    %v8192 = vpop.trf.xlu0
    %v8193 = vpop.trf.xlu0
    %v8194 = vpop.trf.xlu0
    %v8195 = vpop.trf.xlu0
    %v8196 = vpop.trf.xlu0
    %8197 = vxpose.xlu0.b32.start [1/16] %v8096, 128
    %8198 = vxpose.xlu0.b32.cont [2/16] 0.0, 128
    %8199 = vxpose.xlu0.b32.cont [3/16] 0.0, 128
    %8200 = vxpose.xlu0.b32.cont [4/16] 0.0, 128
    %8201 = vxpose.xlu0.b32.cont [5/16] 0.0, 128
    %8202 = vxpose.xlu0.b32.cont [6/16] 0.0, 128
    %8203 = vxpose.xlu0.b32.cont [7/16] 0.0, 128
    %8204 = vxpose.xlu0.b32.cont [8/16] 0.0, 128
    %8205 = vxpose.xlu0.b32.cont [9/16] 0.0, 128
    %8206 = vxpose.xlu0.b32.cont [10/16] 0.0, 128
    %8207 = vxpose.xlu0.b32.cont [11/16] 0.0, 128
    %8208 = vxpose.xlu0.b32.cont [12/16] 0.0, 128
    %8209 = vxpose.xlu0.b32.cont [13/16] 0.0, 128
    %8210 = vxpose.xlu0.b32.cont [14/16] 0.0, 128
    %8211 = vxpose.xlu0.b32.cont [15/16] 0.0, 128
    %8212 = vxpose.xlu0.b32.end [16/16] 0.0, 128
    %v8213 = vpop.trf.xlu0
    %v8214 = vpop.trf.xlu0
    %v8215 = vpop.trf.xlu0
    %v8216 = vpop.trf.xlu0
    %v8217 = vpop.trf.xlu0
    %v8218 = vpop.trf.xlu0
    %v8219 = vpop.trf.xlu0
    %v8220 = vpop.trf.xlu0
    %v8221 = vpop.trf.xlu0
    %v8222 = vpop.trf.xlu0
    %v8223 = vpop.trf.xlu0
    %v8224 = vpop.trf.xlu0
    %v8225 = vpop.trf.xlu0
    %v8226 = vpop.trf.xlu0
    %v8227 = vpop.trf.xlu0
    %v8228 = vpop.trf.xlu0
    %v8229 = vcombine.low %v8117, %v8181
    %v8230 = vcombine.high %v8117, %v8181
    %v8232 = vunpack.c.l.s4 1983009808
    %v8233 = vunpack.c.0.s8 %v8232
    %v8234 = vlaneseq
    %v8235 = vshrl.u32 %v8234, 7
    %v8236 = vsub.s32 %v8233, %v8235
    %v8237 = vrot.slane %v8229, %v8236
    %v8239 = vunpack.c.l.s4 1983009808
    %v8240 = vunpack.c.0.s8 %v8239
    %v8241 = vlaneseq
    %v8242 = vshrl.u32 %v8241, 7
    %v8243 = vsub.s32 %v8240, %v8242
    %v8244 = vrot.slane %v8230, %v8243
    %v8245 = vcombine.low %v8149, %v8213
    %v8246 = vcombine.high %v8149, %v8213
    %v8248 = vunpack.c.l.s4 1983009808
    %v8249 = vunpack.c.0.s8 %v8248
    %v8250 = vlaneseq
    %v8251 = vshrl.u32 %v8250, 7
    %v8252 = vsub.s32 %v8249, %v8251
    %v8253 = vrot.slane %v8245, %v8252
    %v8255 = vunpack.c.l.s4 1983009808
    %v8256 = vunpack.c.0.s8 %v8255
    %v8257 = vlaneseq
    %v8258 = vshrl.u32 %v8257, 7
    %v8259 = vsub.s32 %v8256, %v8258
    %v8260 = vrot.slane %v8246, %v8259
    %v8261 = vcombine.low %v8237, %v8253
    %v8262 = vcombine.high %v8237, %v8253
    %v8264 = vunpack.c.l.s4 1934713408
    %v8265 = vunpack.c.0.s8 %v8264
    %v8266 = vlaneseq
    %v8267 = vshrl.u32 %v8266, 7
    %v8268 = vsub.s32 %v8265, %v8267
    %v8269 = vrot.slane %v8261, %v8268
    %v8271 = vunpack.c.l.s4 1934713408
    %v8272 = vunpack.c.0.s8 %v8271
    %v8273 = vlaneseq
    %v8274 = vshrl.u32 %v8273, 7
    %v8275 = vsub.s32 %v8272, %v8274
    %v8276 = vrot.slane %v8262, %v8275
    %v8277 = vcombine.low %v8244, %v8260
    %v8278 = vcombine.high %v8244, %v8260
    %v8280 = vunpack.c.l.s4 1934713408
    %v8281 = vunpack.c.0.s8 %v8280
    %v8282 = vlaneseq
    %v8283 = vshrl.u32 %v8282, 7
    %v8284 = vsub.s32 %v8281, %v8283
    %v8285 = vrot.slane %v8277, %v8284
    %v8287 = vunpack.c.l.s4 1934713408
    %v8288 = vunpack.c.0.s8 %v8287
    %v8289 = vlaneseq
    %v8290 = vshrl.u32 %v8289, 7
    %v8291 = vsub.s32 %v8288, %v8290
    %v8292 = vrot.slane %v8278, %v8291
    %v8293 = vcombine.high %v8269, 0.0
    %v8294 = vcombine.high %v8276, 0.0
    %v8295 = vcombine.high %v8285, 0.0
    %v8296 = vcombine.high %v8292, 0.0
    %v8297 = vcombine.low %v7057, %v7059
    %v8299 = vunpack.c.l.s4 1983009808
    %v8300 = vunpack.c.0.s8 %v8299
    %v8301 = vlaneseq
    %v8302 = vshrl.u32 %v8301, 7
    %v8303 = vsub.s32 %v8300, %v8302
    %v8304 = vrot.slane %v8297, %v8303
    %v8305 = vcombine.low %v7058, %v7060
    %v8307 = vunpack.c.l.s4 1983009808
    %v8308 = vunpack.c.0.s8 %v8307
    %v8309 = vlaneseq
    %v8310 = vshrl.u32 %v8309, 7
    %v8311 = vsub.s32 %v8308, %v8310
    %v8312 = vrot.slane %v8305, %v8311
    %v8313 = vcombine.low %v7061, %v7063
    %v8315 = vunpack.c.l.s4 1983009808
    %v8316 = vunpack.c.0.s8 %v8315
    %v8317 = vlaneseq
    %v8318 = vshrl.u32 %v8317, 7
    %v8319 = vsub.s32 %v8316, %v8318
    %v8320 = vrot.slane %v8313, %v8319
    %v8321 = vcombine.low %v7062, %v7064
    %v8323 = vunpack.c.l.s4 1983009808
    %v8324 = vunpack.c.0.s8 %v8323
    %v8325 = vlaneseq
    %v8326 = vshrl.u32 %v8325, 7
    %v8327 = vsub.s32 %v8324, %v8326
    %v8328 = vrot.slane %v8321, %v8327
    %v8329 = vcombine.low %v8304, %v8312
    %v8330 = vcombine.high %v8304, %v8312
    %v8332 = vunpack.c.l.s4 1934713408
    %v8333 = vunpack.c.0.s8 %v8332
    %v8334 = vlaneseq
    %v8335 = vshrl.u32 %v8334, 7
    %v8336 = vsub.s32 %v8333, %v8335
    %v8337 = vrot.slane %v8329, %v8336
    %v8339 = vunpack.c.l.s4 1934713408
    %v8340 = vunpack.c.0.s8 %v8339
    %v8341 = vlaneseq
    %v8342 = vshrl.u32 %v8341, 7
    %v8343 = vsub.s32 %v8340, %v8342
    %v8344 = vrot.slane %v8330, %v8343
    %v8345 = vcombine.low %v8320, %v8328
    %v8346 = vcombine.high %v8320, %v8328
    %v8348 = vunpack.c.l.s4 1934713408
    %v8349 = vunpack.c.0.s8 %v8348
    %v8350 = vlaneseq
    %v8351 = vshrl.u32 %v8350, 7
    %v8352 = vsub.s32 %v8349, %v8351
    %v8353 = vrot.slane %v8345, %v8352
    %v8355 = vunpack.c.l.s4 1934713408
    %v8356 = vunpack.c.0.s8 %v8355
    %v8357 = vlaneseq
    %v8358 = vshrl.u32 %v8357, 7
    %v8359 = vsub.s32 %v8356, %v8358
    %v8360 = vrot.slane %v8346, %v8359
    %v8361 = vcombine.low %v8337, %v8353
    %v8362 = vcombine.high %v8337, %v8353
    %v8363 = vcombine.low %v8344, %v8360
    %v8364 = vcombine.high %v8344, %v8360
    %8366 = vrot.lane.b32.xlu0 %v8362, 8
    %v8367 = vpop.permute.xlu0 %8366
    %8370 = vrot.lane.b32.xlu0 %v8363, 16
    %v8371 = vpop.permute.xlu0 %8370
    %8374 = vrot.lane.b32.xlu0 %v8364, 24
    %v8375 = vpop.permute.xlu0 %8374
    %v8377 = vsel %vm1152, %v8361, %v8367
    %v8378 = vsel %vm2936, %v8377, %v8371
    %v8379 = vsel %vm2938, %v8378, %v8375
    %8380 = vst.msk [vmem:[#allocation14] sm:$0xff] %vm135, %v8379
    %v8381 = vcombine.low %v8269, %v8276
    %v8383 = vunpack.c.l.s4 1983009808
    %v8384 = vunpack.c.0.s8 %v8383
    %v8385 = vlaneseq
    %v8386 = vshrl.u32 %v8385, 7
    %v8387 = vsub.s32 %v8384, %v8386
    %v8388 = vrot.slane %v8381, %v8387
    %v8389 = vcombine.low %v8293, %v8294
    %v8391 = vunpack.c.l.s4 1983009808
    %v8392 = vunpack.c.0.s8 %v8391
    %v8393 = vlaneseq
    %v8394 = vshrl.u32 %v8393, 7
    %v8395 = vsub.s32 %v8392, %v8394
    %v8396 = vrot.slane %v8389, %v8395
    %v8397 = vcombine.low %v8285, %v8292
    %v8399 = vunpack.c.l.s4 1983009808
    %v8400 = vunpack.c.0.s8 %v8399
    %v8401 = vlaneseq
    %v8402 = vshrl.u32 %v8401, 7
    %v8403 = vsub.s32 %v8400, %v8402
    %v8404 = vrot.slane %v8397, %v8403
    %v8405 = vcombine.low %v8295, %v8296
    %v8407 = vunpack.c.l.s4 1983009808
    %v8408 = vunpack.c.0.s8 %v8407
    %v8409 = vlaneseq
    %v8410 = vshrl.u32 %v8409, 7
    %v8411 = vsub.s32 %v8408, %v8410
    %v8412 = vrot.slane %v8405, %v8411
    %v8413 = vcombine.low %v8388, %v8396
    %v8414 = vcombine.high %v8388, %v8396
    %v8416 = vunpack.c.l.s4 1934713408
    %v8417 = vunpack.c.0.s8 %v8416
    %v8418 = vlaneseq
    %v8419 = vshrl.u32 %v8418, 7
    %v8420 = vsub.s32 %v8417, %v8419
    %v8421 = vrot.slane %v8413, %v8420
    %v8423 = vunpack.c.l.s4 1934713408
    %v8424 = vunpack.c.0.s8 %v8423
    %v8425 = vlaneseq
    %v8426 = vshrl.u32 %v8425, 7
    %v8427 = vsub.s32 %v8424, %v8426
    %v8428 = vrot.slane %v8414, %v8427
    %v8429 = vcombine.low %v8404, %v8412
    %v8430 = vcombine.high %v8404, %v8412
    %v8432 = vunpack.c.l.s4 1934713408
    %v8433 = vunpack.c.0.s8 %v8432
    %v8434 = vlaneseq
    %v8435 = vshrl.u32 %v8434, 7
    %v8436 = vsub.s32 %v8433, %v8435
    %v8437 = vrot.slane %v8429, %v8436
    %v8439 = vunpack.c.l.s4 1934713408
    %v8440 = vunpack.c.0.s8 %v8439
    %v8441 = vlaneseq
    %v8442 = vshrl.u32 %v8441, 7
    %v8443 = vsub.s32 %v8440, %v8442
    %v8444 = vrot.slane %v8430, %v8443
    %v8445 = vcombine.low %v8421, %v8437
    %v8446 = vcombine.high %v8421, %v8437
    %v8447 = vcombine.low %v8428, %v8444
    %v8448 = vcombine.high %v8428, %v8444
    %8450 = vrot.lane.b32.xlu0 %v8446, 8
    %v8451 = vpop.permute.xlu0 %8450
    %8454 = vrot.lane.b32.xlu0 %v8447, 16
    %v8455 = vpop.permute.xlu0 %8454
    %8458 = vrot.lane.b32.xlu0 %v8448, 24
    %v8459 = vpop.permute.xlu0 %8458
    %v8461 = vsel %vm1152, %v8445, %v8451
    %v8462 = vsel %vm2936, %v8461, %v8455
    %v8463 = vsel %vm2938, %v8462, %v8459
    %v8464 = vpack.c.bf16 %v5757, %v5757
    %v8465 = vpack.c.bf16 %v5781, %v5781
    %v8466 = vpack.c.bf16 %v5764, %v5764
    %v8467 = vpack.c.bf16 %v5782, %v5782
    %v8468 = vpack.c.bf16 %v5773, %v5773
    %v8469 = vpack.c.bf16 %v5783, %v5783
    %v8470 = vpack.c.bf16 %v5780, %v5780
    %v8471 = vpack.c.bf16 %v5784, %v5784
    %v8472 = vpack.c.bf16 %v5913, %v5913
    %v8473 = vpack.c.bf16 %v5937, %v5937
    %v8474 = vpack.c.bf16 %v5920, %v5920
    %v8475 = vpack.c.bf16 %v5938, %v5938
    %v8476 = vpack.c.bf16 %v5929, %v5929
    %v8477 = vpack.c.bf16 %v5939, %v5939
    %v8478 = vpack.c.bf16 %v5936, %v5936
    %v8479 = vpack.c.bf16 %v5940, %v5940
    %v8480 = vcombine.low %v8472, %v8476
    %v8482 = vunpack.c.l.s4 1983009808
    %v8483 = vunpack.c.0.s8 %v8482
    %v8484 = vlaneseq
    %v8485 = vshrl.u32 %v8484, 7
    %v8486 = vsub.s32 %v8483, %v8485
    %v8487 = vrot.slane %v8480, %v8486
    %v8488 = vcombine.low %v8474, %v8478
    %v8490 = vunpack.c.l.s4 1983009808
    %v8491 = vunpack.c.0.s8 %v8490
    %v8492 = vlaneseq
    %v8493 = vshrl.u32 %v8492, 7
    %v8494 = vsub.s32 %v8491, %v8493
    %v8495 = vrot.slane %v8488, %v8494
    %v8496 = vcombine.low %v8487, %v8495
    %v8498 = vunpack.c.l.s4 1934713408
    %v8499 = vunpack.c.0.s8 %v8498
    %v8500 = vlaneseq
    %v8501 = vshrl.u32 %v8500, 7
    %v8502 = vsub.s32 %v8499, %v8501
    %v8503 = vrot.slane %v8496, %v8502
    %v8504 = vcombine.high %v8503, 0
    %v8505 = vcombine.low %v8473, %v8477
    %v8507 = vunpack.c.l.s4 1983009808
    %v8508 = vunpack.c.0.s8 %v8507
    %v8509 = vlaneseq
    %v8510 = vshrl.u32 %v8509, 7
    %v8511 = vsub.s32 %v8508, %v8510
    %v8512 = vrot.slane %v8505, %v8511
    %v8513 = vcombine.low %v8475, %v8479
    %v8515 = vunpack.c.l.s4 1983009808
    %v8516 = vunpack.c.0.s8 %v8515
    %v8517 = vlaneseq
    %v8518 = vshrl.u32 %v8517, 7
    %v8519 = vsub.s32 %v8516, %v8518
    %v8520 = vrot.slane %v8513, %v8519
    %v8521 = vcombine.low %v8512, %v8520
    %v8523 = vunpack.c.l.s4 1934713408
    %v8524 = vunpack.c.0.s8 %v8523
    %v8525 = vlaneseq
    %v8526 = vshrl.u32 %v8525, 7
    %v8527 = vsub.s32 %v8524, %v8526
    %v8528 = vrot.slane %v8521, %v8527
    %v8529 = vcombine.high %v8528, 0
    %v8532 = vpack.i.b16 %v8528, %v8503
    %v8533 = vshrl.u32 %v8503, 16
    %v8534 = vshrl.u32 %v8528, 16
    %v8535 = vpack.i.b16 %v8534, %v8533
    %v8538 = vpack.i.b16 %v8529, %v8504
    %v8539 = vshrl.u32 %v8504, 16
    %v8540 = vshrl.u32 %v8529, 16
    %v8541 = vpack.i.b16 %v8540, %v8539
    %8542 = vxpose.xlu0.c.b16.start [1/8] %v8464, 128
    %8543 = vxpose.xlu0.c.b16.cont [2/8] 0, 128
    %8544 = vxpose.xlu0.c.b16.cont [3/8] 0, 128
    %8545 = vxpose.xlu0.c.b16.cont [4/8] 0, 128
    %8546 = vxpose.xlu0.c.b16.cont [5/8] 0, 128
    %8547 = vxpose.xlu0.c.b16.cont [6/8] 0, 128
    %8548 = vxpose.xlu0.c.b16.cont [7/8] 0, 128
    %8549 = vxpose.xlu0.c.b16.end [8/8] 0, 128
    %v8550 = vpop.trf.xlu0
    %v8551 = vpop.trf.xlu0
    %v8552 = vpop.trf.xlu0
    %v8553 = vpop.trf.xlu0
    %v8554 = vpop.trf.xlu0
    %v8555 = vpop.trf.xlu0
    %v8556 = vpop.trf.xlu0
    %v8557 = vpop.trf.xlu0
    %8558 = vxpose.xlu0.c.b16.start [1/8] %v8465, 128
    %8559 = vxpose.xlu0.c.b16.cont [2/8] 0, 128
    %8560 = vxpose.xlu0.c.b16.cont [3/8] 0, 128
    %8561 = vxpose.xlu0.c.b16.cont [4/8] 0, 128
    %8562 = vxpose.xlu0.c.b16.cont [5/8] 0, 128
    %8563 = vxpose.xlu0.c.b16.cont [6/8] 0, 128
    %8564 = vxpose.xlu0.c.b16.cont [7/8] 0, 128
    %8565 = vxpose.xlu0.c.b16.end [8/8] 0, 128
    %v8566 = vpop.trf.xlu0
    %v8567 = vpop.trf.xlu0
    %v8568 = vpop.trf.xlu0
    %v8569 = vpop.trf.xlu0
    %v8570 = vpop.trf.xlu0
    %v8571 = vpop.trf.xlu0
    %v8572 = vpop.trf.xlu0
    %v8573 = vpop.trf.xlu0
    %8574 = vxpose.xlu0.c.b16.start [1/8] %v8466, 128
    %8575 = vxpose.xlu0.c.b16.cont [2/8] 0, 128
    %8576 = vxpose.xlu0.c.b16.cont [3/8] 0, 128
    %8577 = vxpose.xlu0.c.b16.cont [4/8] 0, 128
    %8578 = vxpose.xlu0.c.b16.cont [5/8] 0, 128
    %8579 = vxpose.xlu0.c.b16.cont [6/8] 0, 128
    %8580 = vxpose.xlu0.c.b16.cont [7/8] 0, 128
    %8581 = vxpose.xlu0.c.b16.end [8/8] 0, 128
    %v8582 = vpop.trf.xlu0
    %v8583 = vpop.trf.xlu0
    %v8584 = vpop.trf.xlu0
    %v8585 = vpop.trf.xlu0
    %v8586 = vpop.trf.xlu0
    %v8587 = vpop.trf.xlu0
    %v8588 = vpop.trf.xlu0
    %v8589 = vpop.trf.xlu0
    %8590 = vxpose.xlu0.c.b16.start [1/8] %v8467, 128
    %8591 = vxpose.xlu0.c.b16.cont [2/8] 0, 128
    %8592 = vxpose.xlu0.c.b16.cont [3/8] 0, 128
    %8593 = vxpose.xlu0.c.b16.cont [4/8] 0, 128
    %8594 = vxpose.xlu0.c.b16.cont [5/8] 0, 128
    %8595 = vxpose.xlu0.c.b16.cont [6/8] 0, 128
    %8596 = vxpose.xlu0.c.b16.cont [7/8] 0, 128
    %8597 = vxpose.xlu0.c.b16.end [8/8] 0, 128
    %v8598 = vpop.trf.xlu0
    %v8599 = vpop.trf.xlu0
    %v8600 = vpop.trf.xlu0
    %v8601 = vpop.trf.xlu0
    %v8602 = vpop.trf.xlu0
    %v8603 = vpop.trf.xlu0
    %v8604 = vpop.trf.xlu0
    %v8605 = vpop.trf.xlu0
    %8606 = vxpose.xlu0.c.b16.start [1/8] %v8468, 128
    %8607 = vxpose.xlu0.c.b16.cont [2/8] 0, 128
    %8608 = vxpose.xlu0.c.b16.cont [3/8] 0, 128
    %8609 = vxpose.xlu0.c.b16.cont [4/8] 0, 128
    %8610 = vxpose.xlu0.c.b16.cont [5/8] 0, 128
    %8611 = vxpose.xlu0.c.b16.cont [6/8] 0, 128
    %8612 = vxpose.xlu0.c.b16.cont [7/8] 0, 128
    %8613 = vxpose.xlu0.c.b16.end [8/8] 0, 128
    %v8614 = vpop.trf.xlu0
    %v8615 = vpop.trf.xlu0
    %v8616 = vpop.trf.xlu0
    %v8617 = vpop.trf.xlu0
    %v8618 = vpop.trf.xlu0
    %v8619 = vpop.trf.xlu0
    %v8620 = vpop.trf.xlu0
    %v8621 = vpop.trf.xlu0
    %8622 = vxpose.xlu0.c.b16.start [1/8] %v8469, 128
    %8623 = vxpose.xlu0.c.b16.cont [2/8] 0, 128
    %8624 = vxpose.xlu0.c.b16.cont [3/8] 0, 128
    %8625 = vxpose.xlu0.c.b16.cont [4/8] 0, 128
    %8626 = vxpose.xlu0.c.b16.cont [5/8] 0, 128
    %8627 = vxpose.xlu0.c.b16.cont [6/8] 0, 128
    %8628 = vxpose.xlu0.c.b16.cont [7/8] 0, 128
    %8629 = vxpose.xlu0.c.b16.end [8/8] 0, 128
    %v8630 = vpop.trf.xlu0
    %v8631 = vpop.trf.xlu0
    %v8632 = vpop.trf.xlu0
    %v8633 = vpop.trf.xlu0
    %v8634 = vpop.trf.xlu0
    %v8635 = vpop.trf.xlu0
    %v8636 = vpop.trf.xlu0
    %v8637 = vpop.trf.xlu0
    %8638 = vxpose.xlu0.c.b16.start [1/8] %v8470, 128
    %8639 = vxpose.xlu0.c.b16.cont [2/8] 0, 128
    %8640 = vxpose.xlu0.c.b16.cont [3/8] 0, 128
    %8641 = vxpose.xlu0.c.b16.cont [4/8] 0, 128
    %8642 = vxpose.xlu0.c.b16.cont [5/8] 0, 128
    %8643 = vxpose.xlu0.c.b16.cont [6/8] 0, 128
    %8644 = vxpose.xlu0.c.b16.cont [7/8] 0, 128
    %8645 = vxpose.xlu0.c.b16.end [8/8] 0, 128
    %v8646 = vpop.trf.xlu0
    %v8647 = vpop.trf.xlu0
    %v8648 = vpop.trf.xlu0
    %v8649 = vpop.trf.xlu0
    %v8650 = vpop.trf.xlu0
    %v8651 = vpop.trf.xlu0
    %v8652 = vpop.trf.xlu0
    %v8653 = vpop.trf.xlu0
    %8654 = vxpose.xlu0.c.b16.start [1/8] %v8471, 128
    %8655 = vxpose.xlu0.c.b16.cont [2/8] 0, 128
    %8656 = vxpose.xlu0.c.b16.cont [3/8] 0, 128
    %8657 = vxpose.xlu0.c.b16.cont [4/8] 0, 128
    %8658 = vxpose.xlu0.c.b16.cont [5/8] 0, 128
    %8659 = vxpose.xlu0.c.b16.cont [6/8] 0, 128
    %8660 = vxpose.xlu0.c.b16.cont [7/8] 0, 128
    %8661 = vxpose.xlu0.c.b16.end [8/8] 0, 128
    %v8662 = vpop.trf.xlu0
    %v8663 = vpop.trf.xlu0
    %v8664 = vpop.trf.xlu0
    %v8665 = vpop.trf.xlu0
    %v8666 = vpop.trf.xlu0
    %v8667 = vpop.trf.xlu0
    %v8668 = vpop.trf.xlu0
    %v8669 = vpop.trf.xlu0
    %v8670 = vcombine.low %v8550, %v8614
    %v8672 = vunpack.c.l.s4 1983009808
    %v8673 = vunpack.c.0.s8 %v8672
    %v8674 = vlaneseq
    %v8675 = vshrl.u32 %v8674, 7
    %v8676 = vsub.s32 %v8673, %v8675
    %v8677 = vrot.slane %v8670, %v8676
    %v8678 = vcombine.low %v8582, %v8646
    %v8680 = vunpack.c.l.s4 1983009808
    %v8681 = vunpack.c.0.s8 %v8680
    %v8682 = vlaneseq
    %v8683 = vshrl.u32 %v8682, 7
    %v8684 = vsub.s32 %v8681, %v8683
    %v8685 = vrot.slane %v8678, %v8684
    %v8686 = vcombine.low %v8677, %v8685
    %v8687 = vcombine.high %v8677, %v8685
    %v8689 = vunpack.c.l.s4 1934713408
    %v8690 = vunpack.c.0.s8 %v8689
    %v8691 = vlaneseq
    %v8692 = vshrl.u32 %v8691, 7
    %v8693 = vsub.s32 %v8690, %v8692
    %v8694 = vrot.slane %v8686, %v8693
    %v8696 = vunpack.c.l.s4 1934713408
    %v8697 = vunpack.c.0.s8 %v8696
    %v8698 = vlaneseq
    %v8699 = vshrl.u32 %v8698, 7
    %v8700 = vsub.s32 %v8697, %v8699
    %v8701 = vrot.slane %v8687, %v8700
    %v8702 = vcombine.high %v8694, 0
    %v8703 = vcombine.high %v8701, 0
    %v8704 = vcombine.low %v8566, %v8630
    %v8706 = vunpack.c.l.s4 1983009808
    %v8707 = vunpack.c.0.s8 %v8706
    %v8708 = vlaneseq
    %v8709 = vshrl.u32 %v8708, 7
    %v8710 = vsub.s32 %v8707, %v8709
    %v8711 = vrot.slane %v8704, %v8710
    %v8712 = vcombine.low %v8598, %v8662
    %v8714 = vunpack.c.l.s4 1983009808
    %v8715 = vunpack.c.0.s8 %v8714
    %v8716 = vlaneseq
    %v8717 = vshrl.u32 %v8716, 7
    %v8718 = vsub.s32 %v8715, %v8717
    %v8719 = vrot.slane %v8712, %v8718
    %v8720 = vcombine.low %v8711, %v8719
    %v8721 = vcombine.high %v8711, %v8719
    %v8723 = vunpack.c.l.s4 1934713408
    %v8724 = vunpack.c.0.s8 %v8723
    %v8725 = vlaneseq
    %v8726 = vshrl.u32 %v8725, 7
    %v8727 = vsub.s32 %v8724, %v8726
    %v8728 = vrot.slane %v8720, %v8727
    %v8730 = vunpack.c.l.s4 1934713408
    %v8731 = vunpack.c.0.s8 %v8730
    %v8732 = vlaneseq
    %v8733 = vshrl.u32 %v8732, 7
    %v8734 = vsub.s32 %v8731, %v8733
    %v8735 = vrot.slane %v8721, %v8734
    %v8736 = vcombine.high %v8728, 0
    %v8737 = vcombine.high %v8735, 0
    %v8740 = vpack.i.b16 %v8728, %v8694
    %v8742 = vshrl.u32 %v8694, 16
    %v8743 = vshrl.u32 %v8728, 16
    %v8744 = vpack.i.b16 %v8743, %v8742
    %v8748 = vpack.i.b16 %v8736, %v8702
    %v8750 = vshrl.u32 %v8702, 16
    %v8751 = vshrl.u32 %v8736, 16
    %v8752 = vpack.i.b16 %v8751, %v8750
    %v8756 = vpack.i.b16 %v8735, %v8701
    %v8758 = vshrl.u32 %v8701, 16
    %v8759 = vshrl.u32 %v8735, 16
    %v8760 = vpack.i.b16 %v8759, %v8758
    %v8764 = vpack.i.b16 %v8737, %v8703
    %v8766 = vshrl.u32 %v8703, 16
    %v8767 = vshrl.u32 %v8737, 16
    %v8768 = vpack.i.b16 %v8767, %v8766
    %8770 = vxpose.xlu0.c.b16.start [1/8] %v8740, 128
    %8771 = vxpose.xlu0.c.b16.cont [2/8] 0, 128
    %8772 = vxpose.xlu0.c.b16.cont [3/8] 0, 128
    %8773 = vxpose.xlu0.c.b16.cont [4/8] 0, 128
    %8774 = vxpose.xlu0.c.b16.cont [5/8] 0, 128
    %8775 = vxpose.xlu0.c.b16.cont [6/8] 0, 128
    %8776 = vxpose.xlu0.c.b16.cont [7/8] 0, 128
    %8777 = vxpose.xlu0.c.b16.end [8/8] 0, 128
    %v8778 = vpop.trf.xlu0
    %v8779 = vpop.trf.xlu0
    %v8780 = vpop.trf.xlu0
    %v8781 = vpop.trf.xlu0
    %v8782 = vpop.trf.xlu0
    %v8783 = vpop.trf.xlu0
    %v8784 = vpop.trf.xlu0
    %v8785 = vpop.trf.xlu0
    %8786 = vxpose.xlu0.c.b16.start [1/8] %v8744, 128
    %8787 = vxpose.xlu0.c.b16.cont [2/8] 0, 128
    %8788 = vxpose.xlu0.c.b16.cont [3/8] 0, 128
    %8789 = vxpose.xlu0.c.b16.cont [4/8] 0, 128
    %8790 = vxpose.xlu0.c.b16.cont [5/8] 0, 128
    %8791 = vxpose.xlu0.c.b16.cont [6/8] 0, 128
    %8792 = vxpose.xlu0.c.b16.cont [7/8] 0, 128
    %8793 = vxpose.xlu0.c.b16.end [8/8] 0, 128
    %v8794 = vpop.trf.xlu0
    %v8795 = vpop.trf.xlu0
    %v8796 = vpop.trf.xlu0
    %v8797 = vpop.trf.xlu0
    %v8798 = vpop.trf.xlu0
    %v8799 = vpop.trf.xlu0
    %v8800 = vpop.trf.xlu0
    %v8801 = vpop.trf.xlu0
    %8802 = vxpose.xlu0.c.b16.start [1/8] %v8748, 128
    %8803 = vxpose.xlu0.c.b16.cont [2/8] 0, 128
    %8804 = vxpose.xlu0.c.b16.cont [3/8] 0, 128
    %8805 = vxpose.xlu0.c.b16.cont [4/8] 0, 128
    %8806 = vxpose.xlu0.c.b16.cont [5/8] 0, 128
    %8807 = vxpose.xlu0.c.b16.cont [6/8] 0, 128
    %8808 = vxpose.xlu0.c.b16.cont [7/8] 0, 128
    %8809 = vxpose.xlu0.c.b16.end [8/8] 0, 128
    %v8810 = vpop.trf.xlu0
    %v8811 = vpop.trf.xlu0
    %v8812 = vpop.trf.xlu0
    %v8813 = vpop.trf.xlu0
    %v8814 = vpop.trf.xlu0
    %v8815 = vpop.trf.xlu0
    %v8816 = vpop.trf.xlu0
    %v8817 = vpop.trf.xlu0
    %8818 = vxpose.xlu0.c.b16.start [1/8] %v8752, 128
    %8819 = vxpose.xlu0.c.b16.cont [2/8] 0, 128
    %8820 = vxpose.xlu0.c.b16.cont [3/8] 0, 128
    %8821 = vxpose.xlu0.c.b16.cont [4/8] 0, 128
    %8822 = vxpose.xlu0.c.b16.cont [5/8] 0, 128
    %8823 = vxpose.xlu0.c.b16.cont [6/8] 0, 128
    %8824 = vxpose.xlu0.c.b16.cont [7/8] 0, 128
    %8825 = vxpose.xlu0.c.b16.end [8/8] 0, 128
    %v8826 = vpop.trf.xlu0
    %v8827 = vpop.trf.xlu0
    %v8828 = vpop.trf.xlu0
    %v8829 = vpop.trf.xlu0
    %v8830 = vpop.trf.xlu0
    %v8831 = vpop.trf.xlu0
    %v8832 = vpop.trf.xlu0
    %v8833 = vpop.trf.xlu0
    %8834 = vxpose.xlu0.c.b16.start [1/8] %v8756, 128
    %8835 = vxpose.xlu0.c.b16.cont [2/8] 0, 128
    %8836 = vxpose.xlu0.c.b16.cont [3/8] 0, 128
    %8837 = vxpose.xlu0.c.b16.cont [4/8] 0, 128
    %8838 = vxpose.xlu0.c.b16.cont [5/8] 0, 128
    %8839 = vxpose.xlu0.c.b16.cont [6/8] 0, 128
    %8840 = vxpose.xlu0.c.b16.cont [7/8] 0, 128
    %8841 = vxpose.xlu0.c.b16.end [8/8] 0, 128
    %v8842 = vpop.trf.xlu0
    %v8843 = vpop.trf.xlu0
    %v8844 = vpop.trf.xlu0
    %v8845 = vpop.trf.xlu0
    %v8846 = vpop.trf.xlu0
    %v8847 = vpop.trf.xlu0
    %v8848 = vpop.trf.xlu0
    %v8849 = vpop.trf.xlu0
    %8850 = vxpose.xlu0.c.b16.start [1/8] %v8760, 128
    %8851 = vxpose.xlu0.c.b16.cont [2/8] 0, 128
    %8852 = vxpose.xlu0.c.b16.cont [3/8] 0, 128
    %8853 = vxpose.xlu0.c.b16.cont [4/8] 0, 128
    %8854 = vxpose.xlu0.c.b16.cont [5/8] 0, 128
    %8855 = vxpose.xlu0.c.b16.cont [6/8] 0, 128
    %8856 = vxpose.xlu0.c.b16.cont [7/8] 0, 128
    %8857 = vxpose.xlu0.c.b16.end [8/8] 0, 128
    %v8858 = vpop.trf.xlu0
    %v8859 = vpop.trf.xlu0
    %v8860 = vpop.trf.xlu0
    %v8861 = vpop.trf.xlu0
    %v8862 = vpop.trf.xlu0
    %v8863 = vpop.trf.xlu0
    %v8864 = vpop.trf.xlu0
    %v8865 = vpop.trf.xlu0
    %8866 = vxpose.xlu0.c.b16.start [1/8] %v8764, 128
    %8867 = vxpose.xlu0.c.b16.cont [2/8] 0, 128
    %8868 = vxpose.xlu0.c.b16.cont [3/8] 0, 128
    %8869 = vxpose.xlu0.c.b16.cont [4/8] 0, 128
    %8870 = vxpose.xlu0.c.b16.cont [5/8] 0, 128
    %8871 = vxpose.xlu0.c.b16.cont [6/8] 0, 128
    %8872 = vxpose.xlu0.c.b16.cont [7/8] 0, 128
    %8873 = vxpose.xlu0.c.b16.end [8/8] 0, 128
    %v8874 = vpop.trf.xlu0
    %v8875 = vpop.trf.xlu0
    %v8876 = vpop.trf.xlu0
    %v8877 = vpop.trf.xlu0
    %v8878 = vpop.trf.xlu0
    %v8879 = vpop.trf.xlu0
    %v8880 = vpop.trf.xlu0
    %v8881 = vpop.trf.xlu0
    %8882 = vxpose.xlu0.c.b16.start [1/8] %v8768, 128
    %8883 = vxpose.xlu0.c.b16.cont [2/8] 0, 128
    %8884 = vxpose.xlu0.c.b16.cont [3/8] 0, 128
    %8885 = vxpose.xlu0.c.b16.cont [4/8] 0, 128
    %8886 = vxpose.xlu0.c.b16.cont [5/8] 0, 128
    %8887 = vxpose.xlu0.c.b16.cont [6/8] 0, 128
    %8888 = vxpose.xlu0.c.b16.cont [7/8] 0, 128
    %8889 = vxpose.xlu0.c.b16.end [8/8] 0, 128
    %v8890 = vpop.trf.xlu0
    %v8891 = vpop.trf.xlu0
    %v8892 = vpop.trf.xlu0
    %v8893 = vpop.trf.xlu0
    %v8894 = vpop.trf.xlu0
    %v8895 = vpop.trf.xlu0
    %v8896 = vpop.trf.xlu0
    %v8897 = vpop.trf.xlu0
    %v8898 = vcombine.low %v8778, %v8842
    %v8900 = vunpack.c.l.s4 1983009808
    %v8901 = vunpack.c.0.s8 %v8900
    %v8902 = vlaneseq
    %v8903 = vshrl.u32 %v8902, 7
    %v8904 = vsub.s32 %v8901, %v8903
    %v8905 = vrot.slane %v8898, %v8904
    %v8906 = vcombine.low %v8810, %v8874
    %v8908 = vunpack.c.l.s4 1983009808
    %v8909 = vunpack.c.0.s8 %v8908
    %v8910 = vlaneseq
    %v8911 = vshrl.u32 %v8910, 7
    %v8912 = vsub.s32 %v8909, %v8911
    %v8913 = vrot.slane %v8906, %v8912
    %v8914 = vcombine.low %v8905, %v8913
    %v8916 = vunpack.c.l.s4 1934713408
    %v8917 = vunpack.c.0.s8 %v8916
    %v8918 = vlaneseq
    %v8919 = vshrl.u32 %v8918, 7
    %v8920 = vsub.s32 %v8917, %v8919
    %v8921 = vrot.slane %v8914, %v8920
    %v8922 = vcombine.high %v8921, 0
    %v8923 = vcombine.low %v8794, %v8858
    %v8925 = vunpack.c.l.s4 1983009808
    %v8926 = vunpack.c.0.s8 %v8925
    %v8927 = vlaneseq
    %v8928 = vshrl.u32 %v8927, 7
    %v8929 = vsub.s32 %v8926, %v8928
    %v8930 = vrot.slane %v8923, %v8929
    %v8931 = vcombine.low %v8826, %v8890
    %v8933 = vunpack.c.l.s4 1983009808
    %v8934 = vunpack.c.0.s8 %v8933
    %v8935 = vlaneseq
    %v8936 = vshrl.u32 %v8935, 7
    %v8937 = vsub.s32 %v8934, %v8936
    %v8938 = vrot.slane %v8931, %v8937
    %v8939 = vcombine.low %v8930, %v8938
    %v8941 = vunpack.c.l.s4 1934713408
    %v8942 = vunpack.c.0.s8 %v8941
    %v8943 = vlaneseq
    %v8944 = vshrl.u32 %v8943, 7
    %v8945 = vsub.s32 %v8942, %v8944
    %v8946 = vrot.slane %v8939, %v8945
    %v8947 = vcombine.high %v8946, 0
    %v8950 = vpack.i.b16 %v8946, %v8921
    %v8951 = vshrl.u32 %v8921, 16
    %v8952 = vshrl.u32 %v8946, 16
    %v8953 = vpack.i.b16 %v8952, %v8951
    %v8956 = vpack.i.b16 %v8947, %v8922
    %v8957 = vshrl.u32 %v8922, 16
    %v8958 = vshrl.u32 %v8947, 16
    %v8959 = vpack.i.b16 %v8958, %v8957
    %v8961 = vsel %vm1152, %v8532, 0
    %v8964 = vsel %vm1156, %v8950, 0
    %8966 = vmatprep.subr.bf16.mxu0 0
    %8967 = vmatpush1.bf16.msra.mxu0 %v8964
    %8968 = vmatprep.subr.bf16.mxu0 0
    %8969 = vmatpush1.bf16.msra.mxu0 0
    %8970 = vmatprep.subr.bf16.mxu0 0
    %8971 = vmatpush1.bf16.msra.mxu0 0
    %8972 = vmatprep.subr.bf16.mxu0 0
    %8973 = vmatpush1.bf16.msra.mxu0 0
    %8974 = vmatprep.subr.bf16.mxu0 0
    %8975 = vmatpush1.bf16.msra.mxu0 0
    %8976 = vmatprep.subr.bf16.mxu0 0
    %8977 = vmatpush1.bf16.msra.mxu0 0
    %8978 = vmatprep.subr.bf16.mxu0 0
    %8979 = vmatpush1.bf16.msra.mxu0 0
    %8980 = vmatprep.subr.bf16.mxu0 0
    %8981 = vmatpush1.bf16.msra.mxu0 0
    %8982 = vmatprep.subr.bf16.mxu0 0
    %8983 = vmatpush1.bf16.msra.mxu0 0
    %8984 = vmatprep.subr.bf16.mxu0 0
    %8985 = vmatpush1.bf16.msra.mxu0 0
    %8986 = vmatprep.subr.bf16.mxu0 0
    %8987 = vmatpush1.bf16.msra.mxu0 0
    %8988 = vmatprep.subr.bf16.mxu0 0
    %8989 = vmatpush1.bf16.msra.mxu0 0
    %8990 = vmatprep.subr.bf16.mxu0 0
    %8991 = vmatpush1.bf16.msra.mxu0 0
    %8992 = vmatprep.subr.bf16.mxu0 0
    %8993 = vmatpush1.bf16.msra.mxu0 0
    %8994 = vmatprep.subr.bf16.mxu0 0
    %8995 = vmatpush1.bf16.msra.mxu0 0
    %8996 = vmatprep.subr.bf16.mxu0 0
    %8997 = vmatpush1.bf16.msra.mxu0 0
    %8998 = vmatprep.mubr.bf16.mxu0 0
    %8999 = vmatmul.mubr.bf16.gmra.mrb[0].mxu0 %v8961
    %v9000 = vpop.f32.mrb[0].mxu0
    %v9001 = vadd.f32 0.0, %v9000
    %v9002 = vpop.f32.mrb[0].mxu0
    %v9003 = vpop.f32.mrb[0].mxu0
    %v9004 = vpop.f32.mrb[0].mxu0
    %9005 = vdwg.mxu0
    %v9007 = vsel %vm1152, %v8535, 0
    %v9010 = vsel %vm1156, %v8953, 0
    %9012 = vmatprep.subr.bf16.mxu0 0
    %9013 = vmatpush1.bf16.msra.mxu0 %v9010
    %9014 = vmatprep.subr.bf16.mxu0 0
    %9015 = vmatpush1.bf16.msra.mxu0 0
    %9016 = vmatprep.subr.bf16.mxu0 0
    %9017 = vmatpush1.bf16.msra.mxu0 0
    %9018 = vmatprep.subr.bf16.mxu0 0
    %9019 = vmatpush1.bf16.msra.mxu0 0
    %9020 = vmatprep.subr.bf16.mxu0 0
    %9021 = vmatpush1.bf16.msra.mxu0 0
    %9022 = vmatprep.subr.bf16.mxu0 0
    %9023 = vmatpush1.bf16.msra.mxu0 0
    %9024 = vmatprep.subr.bf16.mxu0 0
    %9025 = vmatpush1.bf16.msra.mxu0 0
    %9026 = vmatprep.subr.bf16.mxu0 0
    %9027 = vmatpush1.bf16.msra.mxu0 0
    %9028 = vmatprep.subr.bf16.mxu0 0
    %9029 = vmatpush1.bf16.msra.mxu0 0
    %9030 = vmatprep.subr.bf16.mxu0 0
    %9031 = vmatpush1.bf16.msra.mxu0 0
    %9032 = vmatprep.subr.bf16.mxu0 0
    %9033 = vmatpush1.bf16.msra.mxu0 0
    %9034 = vmatprep.subr.bf16.mxu0 0
    %9035 = vmatpush1.bf16.msra.mxu0 0
    %9036 = vmatprep.subr.bf16.mxu0 0
    %9037 = vmatpush1.bf16.msra.mxu0 0
    %9038 = vmatprep.subr.bf16.mxu0 0
    %9039 = vmatpush1.bf16.msra.mxu0 0
    %9040 = vmatprep.subr.bf16.mxu0 0
    %9041 = vmatpush1.bf16.msra.mxu0 0
    %9042 = vmatprep.subr.bf16.mxu0 0
    %9043 = vmatpush1.bf16.msra.mxu0 0
    %9044 = vmatprep.mubr.bf16.mxu0 0
    %9045 = vmatmul.mubr.bf16.gmra.mrb[0].mxu0 %v9007
    %v9046 = vpop.f32.mrb[0].mxu0
    %v9047 = vadd.f32 0.0, %v9046
    %v9048 = vpop.f32.mrb[0].mxu0
    %v9049 = vpop.f32.mrb[0].mxu0
    %v9050 = vpop.f32.mrb[0].mxu0
    %9051 = vdwg.mxu0
    %v9053 = vsel %vm1152, %v8538, 0
    %v9056 = vsel %vm1156, %v8956, 0
    %9058 = vmatprep.subr.bf16.mxu0 0
    %9059 = vmatpush1.bf16.msra.mxu0 %v9056
    %9060 = vmatprep.subr.bf16.mxu0 0
    %9061 = vmatpush1.bf16.msra.mxu0 0
    %9062 = vmatprep.subr.bf16.mxu0 0
    %9063 = vmatpush1.bf16.msra.mxu0 0
    %9064 = vmatprep.subr.bf16.mxu0 0
    %9065 = vmatpush1.bf16.msra.mxu0 0
    %9066 = vmatprep.subr.bf16.mxu0 0
    %9067 = vmatpush1.bf16.msra.mxu0 0
    %9068 = vmatprep.subr.bf16.mxu0 0
    %9069 = vmatpush1.bf16.msra.mxu0 0
    %9070 = vmatprep.subr.bf16.mxu0 0
    %9071 = vmatpush1.bf16.msra.mxu0 0
    %9072 = vmatprep.subr.bf16.mxu0 0
    %9073 = vmatpush1.bf16.msra.mxu0 0
    %9074 = vmatprep.subr.bf16.mxu0 0
    %9075 = vmatpush1.bf16.msra.mxu0 0
    %9076 = vmatprep.subr.bf16.mxu0 0
    %9077 = vmatpush1.bf16.msra.mxu0 0
    %9078 = vmatprep.subr.bf16.mxu0 0
    %9079 = vmatpush1.bf16.msra.mxu0 0
    %9080 = vmatprep.subr.bf16.mxu0 0
    %9081 = vmatpush1.bf16.msra.mxu0 0
    %9082 = vmatprep.subr.bf16.mxu0 0
    %9083 = vmatpush1.bf16.msra.mxu0 0
    %9084 = vmatprep.subr.bf16.mxu0 0
    %9085 = vmatpush1.bf16.msra.mxu0 0
    %9086 = vmatprep.subr.bf16.mxu0 0
    %9087 = vmatpush1.bf16.msra.mxu0 0
    %9088 = vmatprep.subr.bf16.mxu0 0
    %9089 = vmatpush1.bf16.msra.mxu0 0
    %9090 = vmatprep.mubr.bf16.mxu0 0
    %9091 = vmatmul.mubr.bf16.gmra.mrb[0].mxu0 %v9053
    %v9092 = vpop.f32.mrb[0].mxu0
    %v9093 = vadd.f32 0.0, %v9092
    %v9094 = vpop.f32.mrb[0].mxu0
    %v9095 = vpop.f32.mrb[0].mxu0
    %v9096 = vpop.f32.mrb[0].mxu0
    %9097 = vdwg.mxu0
    %v9099 = vsel %vm1152, %v8541, 0
    %v9102 = vsel %vm1156, %v8959, 0
    %9104 = vmatprep.subr.bf16.mxu0 0
    %9105 = vmatpush1.bf16.msra.mxu0 %v9102
    %9106 = vmatprep.subr.bf16.mxu0 0
    %9107 = vmatpush1.bf16.msra.mxu0 0
    %9108 = vmatprep.subr.bf16.mxu0 0
    %9109 = vmatpush1.bf16.msra.mxu0 0
    %9110 = vmatprep.subr.bf16.mxu0 0
    %9111 = vmatpush1.bf16.msra.mxu0 0
    %9112 = vmatprep.subr.bf16.mxu0 0
    %9113 = vmatpush1.bf16.msra.mxu0 0
    %9114 = vmatprep.subr.bf16.mxu0 0
    %9115 = vmatpush1.bf16.msra.mxu0 0
    %9116 = vmatprep.subr.bf16.mxu0 0
    %9117 = vmatpush1.bf16.msra.mxu0 0
    %9118 = vmatprep.subr.bf16.mxu0 0
    %9119 = vmatpush1.bf16.msra.mxu0 0
    %9120 = vmatprep.subr.bf16.mxu0 0
    %9121 = vmatpush1.bf16.msra.mxu0 0
    %9122 = vmatprep.subr.bf16.mxu0 0
    %9123 = vmatpush1.bf16.msra.mxu0 0
    %9124 = vmatprep.subr.bf16.mxu0 0
    %9125 = vmatpush1.bf16.msra.mxu0 0
    %9126 = vmatprep.subr.bf16.mxu0 0
    %9127 = vmatpush1.bf16.msra.mxu0 0
    %9128 = vmatprep.subr.bf16.mxu0 0
    %9129 = vmatpush1.bf16.msra.mxu0 0
    %9130 = vmatprep.subr.bf16.mxu0 0
    %9131 = vmatpush1.bf16.msra.mxu0 0
    %9132 = vmatprep.subr.bf16.mxu0 0
    %9133 = vmatpush1.bf16.msra.mxu0 0
    %9134 = vmatprep.subr.bf16.mxu0 0
    %9135 = vmatpush1.bf16.msra.mxu0 0
    %9136 = vmatprep.mubr.bf16.mxu0 0
    %9137 = vmatmul.mubr.bf16.gmra.mrb[0].mxu0 %v9099
    %v9138 = vpop.f32.mrb[0].mxu0
    %v9139 = vadd.f32 0.0, %v9138
    %v9140 = vpop.f32.mrb[0].mxu0
    %v9141 = vpop.f32.mrb[0].mxu0
    %v9142 = vpop.f32.mrb[0].mxu0
    %9143 = vdwg.mxu0
    %9144 = vxpose.xlu0.b32.start [1/16] %v9001, 128
    %9145 = vxpose.xlu0.b32.cont [2/16] 0.0, 128
    %9146 = vxpose.xlu0.b32.cont [3/16] 0.0, 128
    %9147 = vxpose.xlu0.b32.cont [4/16] 0.0, 128
    %9148 = vxpose.xlu0.b32.cont [5/16] 0.0, 128
    %9149 = vxpose.xlu0.b32.cont [6/16] 0.0, 128
    %9150 = vxpose.xlu0.b32.cont [7/16] 0.0, 128
    %9151 = vxpose.xlu0.b32.cont [8/16] 0.0, 128
    %9152 = vxpose.xlu0.b32.cont [9/16] 0.0, 128
    %9153 = vxpose.xlu0.b32.cont [10/16] 0.0, 128
    %9154 = vxpose.xlu0.b32.cont [11/16] 0.0, 128
    %9155 = vxpose.xlu0.b32.cont [12/16] 0.0, 128
    %9156 = vxpose.xlu0.b32.cont [13/16] 0.0, 128
    %9157 = vxpose.xlu0.b32.cont [14/16] 0.0, 128
    %9158 = vxpose.xlu0.b32.cont [15/16] 0.0, 128
    %9159 = vxpose.xlu0.b32.end [16/16] 0.0, 128
    %v9160 = vpop.trf.xlu0
    %v9161 = vpop.trf.xlu0
    %v9162 = vpop.trf.xlu0
    %v9163 = vpop.trf.xlu0
    %v9164 = vpop.trf.xlu0
    %v9165 = vpop.trf.xlu0
    %v9166 = vpop.trf.xlu0
    %v9167 = vpop.trf.xlu0
    %v9168 = vpop.trf.xlu0
    %v9169 = vpop.trf.xlu0
    %v9170 = vpop.trf.xlu0
    %v9171 = vpop.trf.xlu0
    %v9172 = vpop.trf.xlu0
    %v9173 = vpop.trf.xlu0
    %v9174 = vpop.trf.xlu0
    %v9175 = vpop.trf.xlu0
    %9176 = vxpose.xlu0.b32.start [1/16] %v9047, 128
    %9177 = vxpose.xlu0.b32.cont [2/16] 0.0, 128
    %9178 = vxpose.xlu0.b32.cont [3/16] 0.0, 128
    %9179 = vxpose.xlu0.b32.cont [4/16] 0.0, 128
    %9180 = vxpose.xlu0.b32.cont [5/16] 0.0, 128
    %9181 = vxpose.xlu0.b32.cont [6/16] 0.0, 128
    %9182 = vxpose.xlu0.b32.cont [7/16] 0.0, 128
    %9183 = vxpose.xlu0.b32.cont [8/16] 0.0, 128
    %9184 = vxpose.xlu0.b32.cont [9/16] 0.0, 128
    %9185 = vxpose.xlu0.b32.cont [10/16] 0.0, 128
    %9186 = vxpose.xlu0.b32.cont [11/16] 0.0, 128
    %9187 = vxpose.xlu0.b32.cont [12/16] 0.0, 128
    %9188 = vxpose.xlu0.b32.cont [13/16] 0.0, 128
    %9189 = vxpose.xlu0.b32.cont [14/16] 0.0, 128
    %9190 = vxpose.xlu0.b32.cont [15/16] 0.0, 128
    %9191 = vxpose.xlu0.b32.end [16/16] 0.0, 128
    %v9192 = vpop.trf.xlu0
    %v9193 = vpop.trf.xlu0
    %v9194 = vpop.trf.xlu0
    %v9195 = vpop.trf.xlu0
    %v9196 = vpop.trf.xlu0
    %v9197 = vpop.trf.xlu0
    %v9198 = vpop.trf.xlu0
    %v9199 = vpop.trf.xlu0
    %v9200 = vpop.trf.xlu0
    %v9201 = vpop.trf.xlu0
    %v9202 = vpop.trf.xlu0
    %v9203 = vpop.trf.xlu0
    %v9204 = vpop.trf.xlu0
    %v9205 = vpop.trf.xlu0
    %v9206 = vpop.trf.xlu0
    %v9207 = vpop.trf.xlu0
    %9208 = vxpose.xlu0.b32.start [1/16] %v9093, 128
    %9209 = vxpose.xlu0.b32.cont [2/16] 0.0, 128
    %9210 = vxpose.xlu0.b32.cont [3/16] 0.0, 128
    %9211 = vxpose.xlu0.b32.cont [4/16] 0.0, 128
    %9212 = vxpose.xlu0.b32.cont [5/16] 0.0, 128
    %9213 = vxpose.xlu0.b32.cont [6/16] 0.0, 128
    %9214 = vxpose.xlu0.b32.cont [7/16] 0.0, 128
    %9215 = vxpose.xlu0.b32.cont [8/16] 0.0, 128
    %9216 = vxpose.xlu0.b32.cont [9/16] 0.0, 128
    %9217 = vxpose.xlu0.b32.cont [10/16] 0.0, 128
    %9218 = vxpose.xlu0.b32.cont [11/16] 0.0, 128
    %9219 = vxpose.xlu0.b32.cont [12/16] 0.0, 128
    %9220 = vxpose.xlu0.b32.cont [13/16] 0.0, 128
    %9221 = vxpose.xlu0.b32.cont [14/16] 0.0, 128
    %9222 = vxpose.xlu0.b32.cont [15/16] 0.0, 128
    %9223 = vxpose.xlu0.b32.end [16/16] 0.0, 128
    %v9224 = vpop.trf.xlu0
    %v9225 = vpop.trf.xlu0
    %v9226 = vpop.trf.xlu0
    %v9227 = vpop.trf.xlu0
    %v9228 = vpop.trf.xlu0
    %v9229 = vpop.trf.xlu0
    %v9230 = vpop.trf.xlu0
    %v9231 = vpop.trf.xlu0
    %v9232 = vpop.trf.xlu0
    %v9233 = vpop.trf.xlu0
    %v9234 = vpop.trf.xlu0
    %v9235 = vpop.trf.xlu0
    %v9236 = vpop.trf.xlu0
    %v9237 = vpop.trf.xlu0
    %v9238 = vpop.trf.xlu0
    %v9239 = vpop.trf.xlu0
    %9240 = vxpose.xlu0.b32.start [1/16] %v9139, 128
    %9241 = vxpose.xlu0.b32.cont [2/16] 0.0, 128
    %9242 = vxpose.xlu0.b32.cont [3/16] 0.0, 128
    %9243 = vxpose.xlu0.b32.cont [4/16] 0.0, 128
    %9244 = vxpose.xlu0.b32.cont [5/16] 0.0, 128
    %9245 = vxpose.xlu0.b32.cont [6/16] 0.0, 128
    %9246 = vxpose.xlu0.b32.cont [7/16] 0.0, 128
    %9247 = vxpose.xlu0.b32.cont [8/16] 0.0, 128
    %9248 = vxpose.xlu0.b32.cont [9/16] 0.0, 128
    %9249 = vxpose.xlu0.b32.cont [10/16] 0.0, 128
    %9250 = vxpose.xlu0.b32.cont [11/16] 0.0, 128
    %9251 = vxpose.xlu0.b32.cont [12/16] 0.0, 128
    %9252 = vxpose.xlu0.b32.cont [13/16] 0.0, 128
    %9253 = vxpose.xlu0.b32.cont [14/16] 0.0, 128
    %9254 = vxpose.xlu0.b32.cont [15/16] 0.0, 128
    %9255 = vxpose.xlu0.b32.end [16/16] 0.0, 128
    %v9256 = vpop.trf.xlu0
    %v9257 = vpop.trf.xlu0
    %v9258 = vpop.trf.xlu0
    %v9259 = vpop.trf.xlu0
    %v9260 = vpop.trf.xlu0
    %v9261 = vpop.trf.xlu0
    %v9262 = vpop.trf.xlu0
    %v9263 = vpop.trf.xlu0
    %v9264 = vpop.trf.xlu0
    %v9265 = vpop.trf.xlu0
    %v9266 = vpop.trf.xlu0
    %v9267 = vpop.trf.xlu0
    %v9268 = vpop.trf.xlu0
    %v9269 = vpop.trf.xlu0
    %v9270 = vpop.trf.xlu0
    %v9271 = vpop.trf.xlu0
    %v9272 = vcombine.low %v9160, %v9224
    %v9273 = vcombine.high %v9160, %v9224
    %v9275 = vunpack.c.l.s4 1983009808
    %v9276 = vunpack.c.0.s8 %v9275
    %v9277 = vlaneseq
    %v9278 = vshrl.u32 %v9277, 7
    %v9279 = vsub.s32 %v9276, %v9278
    %v9280 = vrot.slane %v9272, %v9279
    %v9282 = vunpack.c.l.s4 1983009808
    %v9283 = vunpack.c.0.s8 %v9282
    %v9284 = vlaneseq
    %v9285 = vshrl.u32 %v9284, 7
    %v9286 = vsub.s32 %v9283, %v9285
    %v9287 = vrot.slane %v9273, %v9286
    %v9288 = vcombine.low %v9192, %v9256
    %v9289 = vcombine.high %v9192, %v9256
    %v9291 = vunpack.c.l.s4 1983009808
    %v9292 = vunpack.c.0.s8 %v9291
    %v9293 = vlaneseq
    %v9294 = vshrl.u32 %v9293, 7
    %v9295 = vsub.s32 %v9292, %v9294
    %v9296 = vrot.slane %v9288, %v9295
    %v9298 = vunpack.c.l.s4 1983009808
    %v9299 = vunpack.c.0.s8 %v9298
    %v9300 = vlaneseq
    %v9301 = vshrl.u32 %v9300, 7
    %v9302 = vsub.s32 %v9299, %v9301
    %v9303 = vrot.slane %v9289, %v9302
    %v9304 = vcombine.low %v9280, %v9296
    %v9305 = vcombine.high %v9280, %v9296
    %v9307 = vunpack.c.l.s4 1934713408
    %v9308 = vunpack.c.0.s8 %v9307
    %v9309 = vlaneseq
    %v9310 = vshrl.u32 %v9309, 7
    %v9311 = vsub.s32 %v9308, %v9310
    %v9312 = vrot.slane %v9304, %v9311
    %v9314 = vunpack.c.l.s4 1934713408
    %v9315 = vunpack.c.0.s8 %v9314
    %v9316 = vlaneseq
    %v9317 = vshrl.u32 %v9316, 7
    %v9318 = vsub.s32 %v9315, %v9317
    %v9319 = vrot.slane %v9305, %v9318
    %v9320 = vcombine.low %v9287, %v9303
    %v9321 = vcombine.high %v9287, %v9303
    %v9323 = vunpack.c.l.s4 1934713408
    %v9324 = vunpack.c.0.s8 %v9323
    %v9325 = vlaneseq
    %v9326 = vshrl.u32 %v9325, 7
    %v9327 = vsub.s32 %v9324, %v9326
    %v9328 = vrot.slane %v9320, %v9327
    %v9330 = vunpack.c.l.s4 1934713408
    %v9331 = vunpack.c.0.s8 %v9330
    %v9332 = vlaneseq
    %v9333 = vshrl.u32 %v9332, 7
    %v9334 = vsub.s32 %v9331, %v9333
    %v9335 = vrot.slane %v9321, %v9334
    %v9336 = vcombine.high %v9312, 0.0
    %v9337 = vcombine.high %v9319, 0.0
    %v9338 = vcombine.high %v9328, 0.0
    %v9339 = vcombine.high %v9335, 0.0
    %v9340 = vsel %vm1534, %v9312, -inf
    %9341 = vmax.xlane.f32.xlu0 %v9340
    %v9342 = vpop.xlane.xlu0 %9341
    %v9343 = vsel %vm1534, %v9336, -inf
    %9344 = vmax.xlane.f32.xlu0 %v9343
    %v9345 = vpop.xlane.xlu0 %9344
    %v9346 = vsel %vm1534, %v9319, -inf
    %9347 = vmax.xlane.f32.xlu0 %v9346
    %v9348 = vpop.xlane.xlu0 %9347
    %v9349 = vsel %vm1534, %v9337, -inf
    %9350 = vmax.xlane.f32.xlu0 %v9349
    %v9351 = vpop.xlane.xlu0 %9350
    %v9352 = vsel %vm1534, %v9328, -inf
    %9353 = vmax.xlane.f32.xlu0 %v9352
    %v9354 = vpop.xlane.xlu0 %9353
    %v9355 = vsel %vm1534, %v9338, -inf
    %9356 = vmax.xlane.f32.xlu0 %v9355
    %v9357 = vpop.xlane.xlu0 %9356
    %v9358 = vsel %vm1534, %v9335, -inf
    %9359 = vmax.xlane.f32.xlu0 %v9358
    %v9360 = vpop.xlane.xlu0 %9359
    %v9361 = vsel %vm1534, %v9339, -inf
    %9362 = vmax.xlane.f32.xlu0 %v9361
    %v9363 = vpop.xlane.xlu0 %9362
    %v9364 = vsub.f32 %v9312, %v9342
    %v9365 = vsub.f32 %v9336, %v9345
    %v9366 = vsub.f32 %v9319, %v9348
    %v9367 = vsub.f32 %v9337, %v9351
    %v9368 = vsub.f32 %v9328, %v9354
    %v9369 = vsub.f32 %v9338, %v9357
    %v9370 = vsub.f32 %v9335, %v9360
    %v9371 = vsub.f32 %v9339, %v9363
    %v9372 = vmul.f32 %v9364, 1.442695
    %v9373 = vpow.pop %v9372
    %v9374 = vmul.f32 %v9365, 1.442695
    %v9375 = vpow.pop %v9374
    %v9376 = vmul.f32 %v9366, 1.442695
    %v9377 = vpow.pop %v9376
    %v9378 = vmul.f32 %v9367, 1.442695
    %v9379 = vpow.pop %v9378
    %v9380 = vmul.f32 %v9368, 1.442695
    %v9381 = vpow.pop %v9380
    %v9382 = vmul.f32 %v9369, 1.442695
    %v9383 = vpow.pop %v9382
    %v9384 = vmul.f32 %v9370, 1.442695
    %v9385 = vpow.pop %v9384
    %v9386 = vmul.f32 %v9371, 1.442695
    %v9387 = vpow.pop %v9386
    %v9388 = vsel %vm1534, %v9373, 0.0
    %9389 = vadd.xlane.f32.xlu0 %v9388
    %v9390 = vpop.xlane.xlu0 %9389
    %v9391 = vsel %vm1534, %v9375, 0.0
    %9392 = vadd.xlane.f32.xlu0 %v9391
    %v9393 = vpop.xlane.xlu0 %9392
    %v9394 = vsel %vm1534, %v9377, 0.0
    %9395 = vadd.xlane.f32.xlu0 %v9394
    %v9396 = vpop.xlane.xlu0 %9395
    %v9397 = vsel %vm1534, %v9379, 0.0
    %9398 = vadd.xlane.f32.xlu0 %v9397
    %v9399 = vpop.xlane.xlu0 %9398
    %v9400 = vsel %vm1534, %v9381, 0.0
    %9401 = vadd.xlane.f32.xlu0 %v9400
    %v9402 = vpop.xlane.xlu0 %9401
    %v9403 = vsel %vm1534, %v9383, 0.0
    %9404 = vadd.xlane.f32.xlu0 %v9403
    %v9405 = vpop.xlane.xlu0 %9404
    %v9406 = vsel %vm1534, %v9385, 0.0
    %9407 = vadd.xlane.f32.xlu0 %v9406
    %v9408 = vpop.xlane.xlu0 %9407
    %v9409 = vsel %vm1534, %v9387, 0.0
    %9410 = vadd.xlane.f32.xlu0 %v9409
    %v9411 = vpop.xlane.xlu0 %9410
    %v9412 = vrcp.pop %v9390
    %v9413 = vrcp.pop %v9393
    %v9414 = vrcp.pop %v9396
    %v9415 = vrcp.pop %v9399
    %v9416 = vrcp.pop %v9402
    %v9417 = vrcp.pop %v9405
    %v9418 = vrcp.pop %v9408
    %v9419 = vrcp.pop %v9411
    %v9420 = vmul.f32 %v9373, %v9412
    %v9421 = vmul.f32 %v9375, %v9413
    %v9422 = vmul.f32 %v9377, %v9414
    %v9423 = vmul.f32 %v9379, %v9415
    %v9424 = vmul.f32 %v9381, %v9416
    %v9425 = vmul.f32 %v9383, %v9417
    %v9426 = vmul.f32 %v9385, %v9418
    %v9427 = vmul.f32 %v9387, %v9419
    %v9428 = vpack.c.bf16 %v9420, %v9420
    %v9429 = vpack.c.bf16 %v9421, %v9421
    %v9430 = vpack.c.bf16 %v9422, %v9422
    %v9431 = vpack.c.bf16 %v9423, %v9423
    %v9432 = vpack.c.bf16 %v9424, %v9424
    %v9433 = vpack.c.bf16 %v9425, %v9425
    %v9434 = vpack.c.bf16 %v9426, %v9426
    %v9435 = vpack.c.bf16 %v9427, %v9427
    %v9436 = vpack.c.bf16 %v6073, %v6073
    %v9437 = vpack.c.bf16 %v6097, %v6097
    %v9438 = vpack.c.bf16 %v6080, %v6080
    %v9439 = vpack.c.bf16 %v6098, %v6098
    %v9440 = vpack.c.bf16 %v6089, %v6089
    %v9441 = vpack.c.bf16 %v6099, %v6099
    %v9442 = vpack.c.bf16 %v6096, %v6096
    %v9443 = vpack.c.bf16 %v6100, %v6100
    %9444 = vxpose.xlu0.c.b16.start [1/8] %v9436, 128
    %9445 = vxpose.xlu0.c.b16.cont [2/8] 0, 128
    %9446 = vxpose.xlu0.c.b16.cont [3/8] 0, 128
    %9447 = vxpose.xlu0.c.b16.cont [4/8] 0, 128
    %9448 = vxpose.xlu0.c.b16.cont [5/8] 0, 128
    %9449 = vxpose.xlu0.c.b16.cont [6/8] 0, 128
    %9450 = vxpose.xlu0.c.b16.cont [7/8] 0, 128
    %9451 = vxpose.xlu0.c.b16.end [8/8] 0, 128
    %v9452 = vpop.trf.xlu0
    %v9453 = vpop.trf.xlu0
    %v9454 = vpop.trf.xlu0
    %v9455 = vpop.trf.xlu0
    %v9456 = vpop.trf.xlu0
    %v9457 = vpop.trf.xlu0
    %v9458 = vpop.trf.xlu0
    %v9459 = vpop.trf.xlu0
    %9460 = vxpose.xlu0.c.b16.start [1/8] %v9437, 128
    %9461 = vxpose.xlu0.c.b16.cont [2/8] 0, 128
    %9462 = vxpose.xlu0.c.b16.cont [3/8] 0, 128
    %9463 = vxpose.xlu0.c.b16.cont [4/8] 0, 128
    %9464 = vxpose.xlu0.c.b16.cont [5/8] 0, 128
    %9465 = vxpose.xlu0.c.b16.cont [6/8] 0, 128
    %9466 = vxpose.xlu0.c.b16.cont [7/8] 0, 128
    %9467 = vxpose.xlu0.c.b16.end [8/8] 0, 128
    %v9468 = vpop.trf.xlu0
    %v9469 = vpop.trf.xlu0
    %v9470 = vpop.trf.xlu0
    %v9471 = vpop.trf.xlu0
    %v9472 = vpop.trf.xlu0
    %v9473 = vpop.trf.xlu0
    %v9474 = vpop.trf.xlu0
    %v9475 = vpop.trf.xlu0
    %9476 = vxpose.xlu0.c.b16.start [1/8] %v9438, 128
    %9477 = vxpose.xlu0.c.b16.cont [2/8] 0, 128
    %9478 = vxpose.xlu0.c.b16.cont [3/8] 0, 128
    %9479 = vxpose.xlu0.c.b16.cont [4/8] 0, 128
    %9480 = vxpose.xlu0.c.b16.cont [5/8] 0, 128
    %9481 = vxpose.xlu0.c.b16.cont [6/8] 0, 128
    %9482 = vxpose.xlu0.c.b16.cont [7/8] 0, 128
    %9483 = vxpose.xlu0.c.b16.end [8/8] 0, 128
    %v9484 = vpop.trf.xlu0
    %v9485 = vpop.trf.xlu0
    %v9486 = vpop.trf.xlu0
    %v9487 = vpop.trf.xlu0
    %v9488 = vpop.trf.xlu0
    %v9489 = vpop.trf.xlu0
    %v9490 = vpop.trf.xlu0
    %v9491 = vpop.trf.xlu0
    %9492 = vxpose.xlu0.c.b16.start [1/8] %v9439, 128
    %9493 = vxpose.xlu0.c.b16.cont [2/8] 0, 128
    %9494 = vxpose.xlu0.c.b16.cont [3/8] 0, 128
    %9495 = vxpose.xlu0.c.b16.cont [4/8] 0, 128
    %9496 = vxpose.xlu0.c.b16.cont [5/8] 0, 128
    %9497 = vxpose.xlu0.c.b16.cont [6/8] 0, 128
    %9498 = vxpose.xlu0.c.b16.cont [7/8] 0, 128
    %9499 = vxpose.xlu0.c.b16.end [8/8] 0, 128
    %v9500 = vpop.trf.xlu0
    %v9501 = vpop.trf.xlu0
    %v9502 = vpop.trf.xlu0
    %v9503 = vpop.trf.xlu0
    %v9504 = vpop.trf.xlu0
    %v9505 = vpop.trf.xlu0
    %v9506 = vpop.trf.xlu0
    %v9507 = vpop.trf.xlu0
    %9508 = vxpose.xlu0.c.b16.start [1/8] %v9440, 128
    %9509 = vxpose.xlu0.c.b16.cont [2/8] 0, 128
    %9510 = vxpose.xlu0.c.b16.cont [3/8] 0, 128
    %9511 = vxpose.xlu0.c.b16.cont [4/8] 0, 128
    %9512 = vxpose.xlu0.c.b16.cont [5/8] 0, 128
    %9513 = vxpose.xlu0.c.b16.cont [6/8] 0, 128
    %9514 = vxpose.xlu0.c.b16.cont [7/8] 0, 128
    %9515 = vxpose.xlu0.c.b16.end [8/8] 0, 128
    %v9516 = vpop.trf.xlu0
    %v9517 = vpop.trf.xlu0
    %v9518 = vpop.trf.xlu0
    %v9519 = vpop.trf.xlu0
    %v9520 = vpop.trf.xlu0
    %v9521 = vpop.trf.xlu0
    %v9522 = vpop.trf.xlu0
    %v9523 = vpop.trf.xlu0
    %9524 = vxpose.xlu0.c.b16.start [1/8] %v9441, 128
    %9525 = vxpose.xlu0.c.b16.cont [2/8] 0, 128
    %9526 = vxpose.xlu0.c.b16.cont [3/8] 0, 128
    %9527 = vxpose.xlu0.c.b16.cont [4/8] 0, 128
    %9528 = vxpose.xlu0.c.b16.cont [5/8] 0, 128
    %9529 = vxpose.xlu0.c.b16.cont [6/8] 0, 128
    %9530 = vxpose.xlu0.c.b16.cont [7/8] 0, 128
    %9531 = vxpose.xlu0.c.b16.end [8/8] 0, 128
    %v9532 = vpop.trf.xlu0
    %v9533 = vpop.trf.xlu0
    %v9534 = vpop.trf.xlu0
    %v9535 = vpop.trf.xlu0
    %v9536 = vpop.trf.xlu0
    %v9537 = vpop.trf.xlu0
    %v9538 = vpop.trf.xlu0
    %v9539 = vpop.trf.xlu0
    %9540 = vxpose.xlu0.c.b16.start [1/8] %v9442, 128
    %9541 = vxpose.xlu0.c.b16.cont [2/8] 0, 128
    %9542 = vxpose.xlu0.c.b16.cont [3/8] 0, 128
    %9543 = vxpose.xlu0.c.b16.cont [4/8] 0, 128
    %9544 = vxpose.xlu0.c.b16.cont [5/8] 0, 128
    %9545 = vxpose.xlu0.c.b16.cont [6/8] 0, 128
    %9546 = vxpose.xlu0.c.b16.cont [7/8] 0, 128
    %9547 = vxpose.xlu0.c.b16.end [8/8] 0, 128
    %v9548 = vpop.trf.xlu0
    %v9549 = vpop.trf.xlu0
    %v9550 = vpop.trf.xlu0
    %v9551 = vpop.trf.xlu0
    %v9552 = vpop.trf.xlu0
    %v9553 = vpop.trf.xlu0
    %v9554 = vpop.trf.xlu0
    %v9555 = vpop.trf.xlu0
    %9556 = vxpose.xlu0.c.b16.start [1/8] %v9443, 128
    %9557 = vxpose.xlu0.c.b16.cont [2/8] 0, 128
    %9558 = vxpose.xlu0.c.b16.cont [3/8] 0, 128
    %9559 = vxpose.xlu0.c.b16.cont [4/8] 0, 128
    %9560 = vxpose.xlu0.c.b16.cont [5/8] 0, 128
    %9561 = vxpose.xlu0.c.b16.cont [6/8] 0, 128
    %9562 = vxpose.xlu0.c.b16.cont [7/8] 0, 128
    %9563 = vxpose.xlu0.c.b16.end [8/8] 0, 128
    %v9564 = vpop.trf.xlu0
    %v9565 = vpop.trf.xlu0
    %v9566 = vpop.trf.xlu0
    %v9567 = vpop.trf.xlu0
    %v9568 = vpop.trf.xlu0
    %v9569 = vpop.trf.xlu0
    %v9570 = vpop.trf.xlu0
    %v9571 = vpop.trf.xlu0
    %v9572 = vcombine.low %v9452, %v9516
    %v9574 = vunpack.c.l.s4 1983009808
    %v9575 = vunpack.c.0.s8 %v9574
    %v9576 = vlaneseq
    %v9577 = vshrl.u32 %v9576, 7
    %v9578 = vsub.s32 %v9575, %v9577
    %v9579 = vrot.slane %v9572, %v9578
    %v9580 = vcombine.low %v9484, %v9548
    %v9582 = vunpack.c.l.s4 1983009808
    %v9583 = vunpack.c.0.s8 %v9582
    %v9584 = vlaneseq
    %v9585 = vshrl.u32 %v9584, 7
    %v9586 = vsub.s32 %v9583, %v9585
    %v9587 = vrot.slane %v9580, %v9586
    %v9588 = vcombine.low %v9579, %v9587
    %v9589 = vcombine.high %v9579, %v9587
    %v9591 = vunpack.c.l.s4 1934713408
    %v9592 = vunpack.c.0.s8 %v9591
    %v9593 = vlaneseq
    %v9594 = vshrl.u32 %v9593, 7
    %v9595 = vsub.s32 %v9592, %v9594
    %v9596 = vrot.slane %v9588, %v9595
    %v9598 = vunpack.c.l.s4 1934713408
    %v9599 = vunpack.c.0.s8 %v9598
    %v9600 = vlaneseq
    %v9601 = vshrl.u32 %v9600, 7
    %v9602 = vsub.s32 %v9599, %v9601
    %v9603 = vrot.slane %v9589, %v9602
    %v9604 = vcombine.high %v9596, 0
    %v9605 = vcombine.high %v9603, 0
    %v9606 = vcombine.low %v9468, %v9532
    %v9608 = vunpack.c.l.s4 1983009808
    %v9609 = vunpack.c.0.s8 %v9608
    %v9610 = vlaneseq
    %v9611 = vshrl.u32 %v9610, 7
    %v9612 = vsub.s32 %v9609, %v9611
    %v9613 = vrot.slane %v9606, %v9612
    %v9614 = vcombine.low %v9500, %v9564
    %v9616 = vunpack.c.l.s4 1983009808
    %v9617 = vunpack.c.0.s8 %v9616
    %v9618 = vlaneseq
    %v9619 = vshrl.u32 %v9618, 7
    %v9620 = vsub.s32 %v9617, %v9619
    %v9621 = vrot.slane %v9614, %v9620
    %v9622 = vcombine.low %v9613, %v9621
    %v9623 = vcombine.high %v9613, %v9621
    %v9625 = vunpack.c.l.s4 1934713408
    %v9626 = vunpack.c.0.s8 %v9625
    %v9627 = vlaneseq
    %v9628 = vshrl.u32 %v9627, 7
    %v9629 = vsub.s32 %v9626, %v9628
    %v9630 = vrot.slane %v9622, %v9629
    %v9632 = vunpack.c.l.s4 1934713408
    %v9633 = vunpack.c.0.s8 %v9632
    %v9634 = vlaneseq
    %v9635 = vshrl.u32 %v9634, 7
    %v9636 = vsub.s32 %v9633, %v9635
    %v9637 = vrot.slane %v9623, %v9636
    %v9638 = vcombine.high %v9630, 0
    %v9639 = vcombine.high %v9637, 0
    %v9642 = vpack.i.b16 %v9630, %v9596
    %v9644 = vshrl.u32 %v9596, 16
    %v9645 = vshrl.u32 %v9630, 16
    %v9646 = vpack.i.b16 %v9645, %v9644
    %v9650 = vpack.i.b16 %v9638, %v9604
    %v9652 = vshrl.u32 %v9604, 16
    %v9653 = vshrl.u32 %v9638, 16
    %v9654 = vpack.i.b16 %v9653, %v9652
    %v9658 = vpack.i.b16 %v9637, %v9603
    %v9660 = vshrl.u32 %v9603, 16
    %v9661 = vshrl.u32 %v9637, 16
    %v9662 = vpack.i.b16 %v9661, %v9660
    %v9666 = vpack.i.b16 %v9639, %v9605
    %v9668 = vshrl.u32 %v9605, 16
    %v9669 = vshrl.u32 %v9639, 16
    %v9670 = vpack.i.b16 %v9669, %v9668
    %9672 = vxpose.xlu0.c.b16.start [1/8] %v9642, 128
    %9673 = vxpose.xlu0.c.b16.cont [2/8] 0, 128
    %9674 = vxpose.xlu0.c.b16.cont [3/8] 0, 128
    %9675 = vxpose.xlu0.c.b16.cont [4/8] 0, 128
    %9676 = vxpose.xlu0.c.b16.cont [5/8] 0, 128
    %9677 = vxpose.xlu0.c.b16.cont [6/8] 0, 128
    %9678 = vxpose.xlu0.c.b16.cont [7/8] 0, 128
    %9679 = vxpose.xlu0.c.b16.end [8/8] 0, 128
    %v9680 = vpop.trf.xlu0
    %v9681 = vpop.trf.xlu0
    %v9682 = vpop.trf.xlu0
    %v9683 = vpop.trf.xlu0
    %v9684 = vpop.trf.xlu0
    %v9685 = vpop.trf.xlu0
    %v9686 = vpop.trf.xlu0
    %v9687 = vpop.trf.xlu0
    %9688 = vxpose.xlu0.c.b16.start [1/8] %v9646, 128
    %9689 = vxpose.xlu0.c.b16.cont [2/8] 0, 128
    %9690 = vxpose.xlu0.c.b16.cont [3/8] 0, 128
    %9691 = vxpose.xlu0.c.b16.cont [4/8] 0, 128
    %9692 = vxpose.xlu0.c.b16.cont [5/8] 0, 128
    %9693 = vxpose.xlu0.c.b16.cont [6/8] 0, 128
    %9694 = vxpose.xlu0.c.b16.cont [7/8] 0, 128
    %9695 = vxpose.xlu0.c.b16.end [8/8] 0, 128
    %v9696 = vpop.trf.xlu0
    %v9697 = vpop.trf.xlu0
    %v9698 = vpop.trf.xlu0
    %v9699 = vpop.trf.xlu0
    %v9700 = vpop.trf.xlu0
    %v9701 = vpop.trf.xlu0
    %v9702 = vpop.trf.xlu0
    %v9703 = vpop.trf.xlu0
    %9704 = vxpose.xlu0.c.b16.start [1/8] %v9650, 128
    %9705 = vxpose.xlu0.c.b16.cont [2/8] 0, 128
    %9706 = vxpose.xlu0.c.b16.cont [3/8] 0, 128
    %9707 = vxpose.xlu0.c.b16.cont [4/8] 0, 128
    %9708 = vxpose.xlu0.c.b16.cont [5/8] 0, 128
    %9709 = vxpose.xlu0.c.b16.cont [6/8] 0, 128
    %9710 = vxpose.xlu0.c.b16.cont [7/8] 0, 128
    %9711 = vxpose.xlu0.c.b16.end [8/8] 0, 128
    %v9712 = vpop.trf.xlu0
    %v9713 = vpop.trf.xlu0
    %v9714 = vpop.trf.xlu0
    %v9715 = vpop.trf.xlu0
    %v9716 = vpop.trf.xlu0
    %v9717 = vpop.trf.xlu0
    %v9718 = vpop.trf.xlu0
    %v9719 = vpop.trf.xlu0
    %9720 = vxpose.xlu0.c.b16.start [1/8] %v9654, 128
    %9721 = vxpose.xlu0.c.b16.cont [2/8] 0, 128
    %9722 = vxpose.xlu0.c.b16.cont [3/8] 0, 128
    %9723 = vxpose.xlu0.c.b16.cont [4/8] 0, 128
    %9724 = vxpose.xlu0.c.b16.cont [5/8] 0, 128
    %9725 = vxpose.xlu0.c.b16.cont [6/8] 0, 128
    %9726 = vxpose.xlu0.c.b16.cont [7/8] 0, 128
    %9727 = vxpose.xlu0.c.b16.end [8/8] 0, 128
    %v9728 = vpop.trf.xlu0
    %v9729 = vpop.trf.xlu0
    %v9730 = vpop.trf.xlu0
    %v9731 = vpop.trf.xlu0
    %v9732 = vpop.trf.xlu0
    %v9733 = vpop.trf.xlu0
    %v9734 = vpop.trf.xlu0
    %v9735 = vpop.trf.xlu0
    %9736 = vxpose.xlu0.c.b16.start [1/8] %v9658, 128
    %9737 = vxpose.xlu0.c.b16.cont [2/8] 0, 128
    %9738 = vxpose.xlu0.c.b16.cont [3/8] 0, 128
    %9739 = vxpose.xlu0.c.b16.cont [4/8] 0, 128
    %9740 = vxpose.xlu0.c.b16.cont [5/8] 0, 128
    %9741 = vxpose.xlu0.c.b16.cont [6/8] 0, 128
    %9742 = vxpose.xlu0.c.b16.cont [7/8] 0, 128
    %9743 = vxpose.xlu0.c.b16.end [8/8] 0, 128
    %v9744 = vpop.trf.xlu0
    %v9745 = vpop.trf.xlu0
    %v9746 = vpop.trf.xlu0
    %v9747 = vpop.trf.xlu0
    %v9748 = vpop.trf.xlu0
    %v9749 = vpop.trf.xlu0
    %v9750 = vpop.trf.xlu0
    %v9751 = vpop.trf.xlu0
    %9752 = vxpose.xlu0.c.b16.start [1/8] %v9662, 128
    %9753 = vxpose.xlu0.c.b16.cont [2/8] 0, 128
    %9754 = vxpose.xlu0.c.b16.cont [3/8] 0, 128
    %9755 = vxpose.xlu0.c.b16.cont [4/8] 0, 128
    %9756 = vxpose.xlu0.c.b16.cont [5/8] 0, 128
    %9757 = vxpose.xlu0.c.b16.cont [6/8] 0, 128
    %9758 = vxpose.xlu0.c.b16.cont [7/8] 0, 128
    %9759 = vxpose.xlu0.c.b16.end [8/8] 0, 128
    %v9760 = vpop.trf.xlu0
    %v9761 = vpop.trf.xlu0
    %v9762 = vpop.trf.xlu0
    %v9763 = vpop.trf.xlu0
    %v9764 = vpop.trf.xlu0
    %v9765 = vpop.trf.xlu0
    %v9766 = vpop.trf.xlu0
    %v9767 = vpop.trf.xlu0
    %9768 = vxpose.xlu0.c.b16.start [1/8] %v9666, 128
    %9769 = vxpose.xlu0.c.b16.cont [2/8] 0, 128
    %9770 = vxpose.xlu0.c.b16.cont [3/8] 0, 128
    %9771 = vxpose.xlu0.c.b16.cont [4/8] 0, 128
    %9772 = vxpose.xlu0.c.b16.cont [5/8] 0, 128
    %9773 = vxpose.xlu0.c.b16.cont [6/8] 0, 128
    %9774 = vxpose.xlu0.c.b16.cont [7/8] 0, 128
    %9775 = vxpose.xlu0.c.b16.end [8/8] 0, 128
    %v9776 = vpop.trf.xlu0
    %v9777 = vpop.trf.xlu0
    %v9778 = vpop.trf.xlu0
    %v9779 = vpop.trf.xlu0
    %v9780 = vpop.trf.xlu0
    %v9781 = vpop.trf.xlu0
    %v9782 = vpop.trf.xlu0
    %v9783 = vpop.trf.xlu0
    %9784 = vxpose.xlu0.c.b16.start [1/8] %v9670, 128
    %9785 = vxpose.xlu0.c.b16.cont [2/8] 0, 128
    %9786 = vxpose.xlu0.c.b16.cont [3/8] 0, 128
    %9787 = vxpose.xlu0.c.b16.cont [4/8] 0, 128
    %9788 = vxpose.xlu0.c.b16.cont [5/8] 0, 128
    %9789 = vxpose.xlu0.c.b16.cont [6/8] 0, 128
    %9790 = vxpose.xlu0.c.b16.cont [7/8] 0, 128
    %9791 = vxpose.xlu0.c.b16.end [8/8] 0, 128
    %v9792 = vpop.trf.xlu0
    %v9793 = vpop.trf.xlu0
    %v9794 = vpop.trf.xlu0
    %v9795 = vpop.trf.xlu0
    %v9796 = vpop.trf.xlu0
    %v9797 = vpop.trf.xlu0
    %v9798 = vpop.trf.xlu0
    %v9799 = vpop.trf.xlu0
    %v9800 = vcombine.low %v9680, %v9744
    %v9802 = vunpack.c.l.s4 1983009808
    %v9803 = vunpack.c.0.s8 %v9802
    %v9804 = vlaneseq
    %v9805 = vshrl.u32 %v9804, 7
    %v9806 = vsub.s32 %v9803, %v9805
    %v9807 = vrot.slane %v9800, %v9806
    %v9808 = vcombine.low %v9712, %v9776
    %v9810 = vunpack.c.l.s4 1983009808
    %v9811 = vunpack.c.0.s8 %v9810
    %v9812 = vlaneseq
    %v9813 = vshrl.u32 %v9812, 7
    %v9814 = vsub.s32 %v9811, %v9813
    %v9815 = vrot.slane %v9808, %v9814
    %v9816 = vcombine.low %v9807, %v9815
    %v9818 = vunpack.c.l.s4 1934713408
    %v9819 = vunpack.c.0.s8 %v9818
    %v9820 = vlaneseq
    %v9821 = vshrl.u32 %v9820, 7
    %v9822 = vsub.s32 %v9819, %v9821
    %v9823 = vrot.slane %v9816, %v9822
    %v9824 = vcombine.high %v9823, 0
    %v9825 = vcombine.low %v9696, %v9760
    %v9827 = vunpack.c.l.s4 1983009808
    %v9828 = vunpack.c.0.s8 %v9827
    %v9829 = vlaneseq
    %v9830 = vshrl.u32 %v9829, 7
    %v9831 = vsub.s32 %v9828, %v9830
    %v9832 = vrot.slane %v9825, %v9831
    %v9833 = vcombine.low %v9728, %v9792
    %v9835 = vunpack.c.l.s4 1983009808
    %v9836 = vunpack.c.0.s8 %v9835
    %v9837 = vlaneseq
    %v9838 = vshrl.u32 %v9837, 7
    %v9839 = vsub.s32 %v9836, %v9838
    %v9840 = vrot.slane %v9833, %v9839
    %v9841 = vcombine.low %v9832, %v9840
    %v9843 = vunpack.c.l.s4 1934713408
    %v9844 = vunpack.c.0.s8 %v9843
    %v9845 = vlaneseq
    %v9846 = vshrl.u32 %v9845, 7
    %v9847 = vsub.s32 %v9844, %v9846
    %v9848 = vrot.slane %v9841, %v9847
    %v9849 = vcombine.high %v9848, 0
    %v9852 = vpack.i.b16 %v9848, %v9823
    %v9853 = vshrl.u32 %v9823, 16
    %v9854 = vshrl.u32 %v9848, 16
    %v9855 = vpack.i.b16 %v9854, %v9853
    %v9858 = vpack.i.b16 %v9849, %v9824
    %v9859 = vshrl.u32 %v9824, 16
    %v9860 = vshrl.u32 %v9849, 16
    %v9861 = vpack.i.b16 %v9860, %v9859
    %9862 = vxpose.xlu0.c.b16.start [1/8] %v9428, 128
    %9863 = vxpose.xlu0.c.b16.cont [2/8] 0, 128
    %9864 = vxpose.xlu0.c.b16.cont [3/8] 0, 128
    %9865 = vxpose.xlu0.c.b16.cont [4/8] 0, 128
    %9866 = vxpose.xlu0.c.b16.cont [5/8] 0, 128
    %9867 = vxpose.xlu0.c.b16.cont [6/8] 0, 128
    %9868 = vxpose.xlu0.c.b16.cont [7/8] 0, 128
    %9869 = vxpose.xlu0.c.b16.end [8/8] 0, 128
    %v9870 = vpop.trf.xlu0
    %v9871 = vpop.trf.xlu0
    %v9872 = vpop.trf.xlu0
    %v9873 = vpop.trf.xlu0
    %v9874 = vpop.trf.xlu0
    %v9875 = vpop.trf.xlu0
    %v9876 = vpop.trf.xlu0
    %v9877 = vpop.trf.xlu0
    %9878 = vxpose.xlu0.c.b16.start [1/8] %v9429, 128
    %9879 = vxpose.xlu0.c.b16.cont [2/8] 0, 128
    %9880 = vxpose.xlu0.c.b16.cont [3/8] 0, 128
    %9881 = vxpose.xlu0.c.b16.cont [4/8] 0, 128
    %9882 = vxpose.xlu0.c.b16.cont [5/8] 0, 128
    %9883 = vxpose.xlu0.c.b16.cont [6/8] 0, 128
    %9884 = vxpose.xlu0.c.b16.cont [7/8] 0, 128
    %9885 = vxpose.xlu0.c.b16.end [8/8] 0, 128
    %v9886 = vpop.trf.xlu0
    %v9887 = vpop.trf.xlu0
    %v9888 = vpop.trf.xlu0
    %v9889 = vpop.trf.xlu0
    %v9890 = vpop.trf.xlu0
    %v9891 = vpop.trf.xlu0
    %v9892 = vpop.trf.xlu0
    %v9893 = vpop.trf.xlu0
    %9894 = vxpose.xlu0.c.b16.start [1/8] %v9430, 128
    %9895 = vxpose.xlu0.c.b16.cont [2/8] 0, 128
    %9896 = vxpose.xlu0.c.b16.cont [3/8] 0, 128
    %9897 = vxpose.xlu0.c.b16.cont [4/8] 0, 128
    %9898 = vxpose.xlu0.c.b16.cont [5/8] 0, 128
    %9899 = vxpose.xlu0.c.b16.cont [6/8] 0, 128
    %9900 = vxpose.xlu0.c.b16.cont [7/8] 0, 128
    %9901 = vxpose.xlu0.c.b16.end [8/8] 0, 128
    %v9902 = vpop.trf.xlu0
    %v9903 = vpop.trf.xlu0
    %v9904 = vpop.trf.xlu0
    %v9905 = vpop.trf.xlu0
    %v9906 = vpop.trf.xlu0
    %v9907 = vpop.trf.xlu0
    %v9908 = vpop.trf.xlu0
    %v9909 = vpop.trf.xlu0
    %9910 = vxpose.xlu0.c.b16.start [1/8] %v9431, 128
    %9911 = vxpose.xlu0.c.b16.cont [2/8] 0, 128
    %9912 = vxpose.xlu0.c.b16.cont [3/8] 0, 128
    %9913 = vxpose.xlu0.c.b16.cont [4/8] 0, 128
    %9914 = vxpose.xlu0.c.b16.cont [5/8] 0, 128
    %9915 = vxpose.xlu0.c.b16.cont [6/8] 0, 128
    %9916 = vxpose.xlu0.c.b16.cont [7/8] 0, 128
    %9917 = vxpose.xlu0.c.b16.end [8/8] 0, 128
    %v9918 = vpop.trf.xlu0
    %v9919 = vpop.trf.xlu0
    %v9920 = vpop.trf.xlu0
    %v9921 = vpop.trf.xlu0
    %v9922 = vpop.trf.xlu0
    %v9923 = vpop.trf.xlu0
    %v9924 = vpop.trf.xlu0
    %v9925 = vpop.trf.xlu0
    %9926 = vxpose.xlu0.c.b16.start [1/8] %v9432, 128
    %9927 = vxpose.xlu0.c.b16.cont [2/8] 0, 128
    %9928 = vxpose.xlu0.c.b16.cont [3/8] 0, 128
    %9929 = vxpose.xlu0.c.b16.cont [4/8] 0, 128
    %9930 = vxpose.xlu0.c.b16.cont [5/8] 0, 128
    %9931 = vxpose.xlu0.c.b16.cont [6/8] 0, 128
    %9932 = vxpose.xlu0.c.b16.cont [7/8] 0, 128
    %9933 = vxpose.xlu0.c.b16.end [8/8] 0, 128
    %v9934 = vpop.trf.xlu0
    %v9935 = vpop.trf.xlu0
    %v9936 = vpop.trf.xlu0
    %v9937 = vpop.trf.xlu0
    %v9938 = vpop.trf.xlu0
    %v9939 = vpop.trf.xlu0
    %v9940 = vpop.trf.xlu0
    %v9941 = vpop.trf.xlu0
    %9942 = vxpose.xlu0.c.b16.start [1/8] %v9433, 128
    %9943 = vxpose.xlu0.c.b16.cont [2/8] 0, 128
    %9944 = vxpose.xlu0.c.b16.cont [3/8] 0, 128
    %9945 = vxpose.xlu0.c.b16.cont [4/8] 0, 128
    %9946 = vxpose.xlu0.c.b16.cont [5/8] 0, 128
    %9947 = vxpose.xlu0.c.b16.cont [6/8] 0, 128
    %9948 = vxpose.xlu0.c.b16.cont [7/8] 0, 128
    %9949 = vxpose.xlu0.c.b16.end [8/8] 0, 128
    %v9950 = vpop.trf.xlu0
    %v9951 = vpop.trf.xlu0
    %v9952 = vpop.trf.xlu0
    %v9953 = vpop.trf.xlu0
    %v9954 = vpop.trf.xlu0
    %v9955 = vpop.trf.xlu0
    %v9956 = vpop.trf.xlu0
    %v9957 = vpop.trf.xlu0
    %9958 = vxpose.xlu0.c.b16.start [1/8] %v9434, 128
    %9959 = vxpose.xlu0.c.b16.cont [2/8] 0, 128
    %9960 = vxpose.xlu0.c.b16.cont [3/8] 0, 128
    %9961 = vxpose.xlu0.c.b16.cont [4/8] 0, 128
    %9962 = vxpose.xlu0.c.b16.cont [5/8] 0, 128
    %9963 = vxpose.xlu0.c.b16.cont [6/8] 0, 128
    %9964 = vxpose.xlu0.c.b16.cont [7/8] 0, 128
    %9965 = vxpose.xlu0.c.b16.end [8/8] 0, 128
    %v9966 = vpop.trf.xlu0
    %v9967 = vpop.trf.xlu0
    %v9968 = vpop.trf.xlu0
    %v9969 = vpop.trf.xlu0
    %v9970 = vpop.trf.xlu0
    %v9971 = vpop.trf.xlu0
    %v9972 = vpop.trf.xlu0
    %v9973 = vpop.trf.xlu0
    %9974 = vxpose.xlu0.c.b16.start [1/8] %v9435, 128
    %9975 = vxpose.xlu0.c.b16.cont [2/8] 0, 128
    %9976 = vxpose.xlu0.c.b16.cont [3/8] 0, 128
    %9977 = vxpose.xlu0.c.b16.cont [4/8] 0, 128
    %9978 = vxpose.xlu0.c.b16.cont [5/8] 0, 128
    %9979 = vxpose.xlu0.c.b16.cont [6/8] 0, 128
    %9980 = vxpose.xlu0.c.b16.cont [7/8] 0, 128
    %9981 = vxpose.xlu0.c.b16.end [8/8] 0, 128
    %v9982 = vpop.trf.xlu0
    %v9983 = vpop.trf.xlu0
    %v9984 = vpop.trf.xlu0
    %v9985 = vpop.trf.xlu0
    %v9986 = vpop.trf.xlu0
    %v9987 = vpop.trf.xlu0
    %v9988 = vpop.trf.xlu0
    %v9989 = vpop.trf.xlu0
    %v9990 = vcombine.low %v9870, %v9934
    %v9992 = vunpack.c.l.s4 1983009808
    %v9993 = vunpack.c.0.s8 %v9992
    %v9994 = vlaneseq
    %v9995 = vshrl.u32 %v9994, 7
    %v9996 = vsub.s32 %v9993, %v9995
    %v9997 = vrot.slane %v9990, %v9996
    %v9998 = vcombine.low %v9902, %v9966
    %v10000 = vunpack.c.l.s4 1983009808
    %v10001 = vunpack.c.0.s8 %v10000
    %v10002 = vlaneseq
    %v10003 = vshrl.u32 %v10002, 7
    %v10004 = vsub.s32 %v10001, %v10003
    %v10005 = vrot.slane %v9998, %v10004
    %v10006 = vcombine.low %v9997, %v10005
    %v10007 = vcombine.high %v9997, %v10005
    %v10009 = vunpack.c.l.s4 1934713408
    %v10010 = vunpack.c.0.s8 %v10009
    %v10011 = vlaneseq
    %v10012 = vshrl.u32 %v10011, 7
    %v10013 = vsub.s32 %v10010, %v10012
    %v10014 = vrot.slane %v10006, %v10013
    %v10016 = vunpack.c.l.s4 1934713408
    %v10017 = vunpack.c.0.s8 %v10016
    %v10018 = vlaneseq
    %v10019 = vshrl.u32 %v10018, 7
    %v10020 = vsub.s32 %v10017, %v10019
    %v10021 = vrot.slane %v10007, %v10020
    %v10022 = vcombine.high %v10014, 0
    %v10023 = vcombine.high %v10021, 0
    %v10024 = vcombine.low %v9886, %v9950
    %v10026 = vunpack.c.l.s4 1983009808
    %v10027 = vunpack.c.0.s8 %v10026
    %v10028 = vlaneseq
    %v10029 = vshrl.u32 %v10028, 7
    %v10030 = vsub.s32 %v10027, %v10029
    %v10031 = vrot.slane %v10024, %v10030
    %v10032 = vcombine.low %v9918, %v9982
    %v10034 = vunpack.c.l.s4 1983009808
    %v10035 = vunpack.c.0.s8 %v10034
    %v10036 = vlaneseq
    %v10037 = vshrl.u32 %v10036, 7
    %v10038 = vsub.s32 %v10035, %v10037
    %v10039 = vrot.slane %v10032, %v10038
    %v10040 = vcombine.low %v10031, %v10039
    %v10041 = vcombine.high %v10031, %v10039
    %v10043 = vunpack.c.l.s4 1934713408
    %v10044 = vunpack.c.0.s8 %v10043
    %v10045 = vlaneseq
    %v10046 = vshrl.u32 %v10045, 7
    %v10047 = vsub.s32 %v10044, %v10046
    %v10048 = vrot.slane %v10040, %v10047
    %v10050 = vunpack.c.l.s4 1934713408
    %v10051 = vunpack.c.0.s8 %v10050
    %v10052 = vlaneseq
    %v10053 = vshrl.u32 %v10052, 7
    %v10054 = vsub.s32 %v10051, %v10053
    %v10055 = vrot.slane %v10041, %v10054
    %v10056 = vcombine.high %v10048, 0
    %v10057 = vcombine.high %v10055, 0
    %v10060 = vpack.i.b16 %v10048, %v10014
    %v10062 = vshrl.u32 %v10014, 16
    %v10063 = vshrl.u32 %v10048, 16
    %v10064 = vpack.i.b16 %v10063, %v10062
    %v10068 = vpack.i.b16 %v10056, %v10022
    %v10070 = vshrl.u32 %v10022, 16
    %v10071 = vshrl.u32 %v10056, 16
    %v10072 = vpack.i.b16 %v10071, %v10070
    %v10076 = vpack.i.b16 %v10055, %v10021
    %v10078 = vshrl.u32 %v10021, 16
    %v10079 = vshrl.u32 %v10055, 16
    %v10080 = vpack.i.b16 %v10079, %v10078
    %v10084 = vpack.i.b16 %v10057, %v10023
    %v10086 = vshrl.u32 %v10023, 16
    %v10087 = vshrl.u32 %v10057, 16
    %v10088 = vpack.i.b16 %v10087, %v10086
    %10090 = vxpose.xlu0.c.b16.start [1/8] %v10060, 128
    %10091 = vxpose.xlu0.c.b16.cont [2/8] 0, 128
    %10092 = vxpose.xlu0.c.b16.cont [3/8] 0, 128
    %10093 = vxpose.xlu0.c.b16.cont [4/8] 0, 128
    %10094 = vxpose.xlu0.c.b16.cont [5/8] 0, 128
    %10095 = vxpose.xlu0.c.b16.cont [6/8] 0, 128
    %10096 = vxpose.xlu0.c.b16.cont [7/8] 0, 128
    %10097 = vxpose.xlu0.c.b16.end [8/8] 0, 128
    %v10098 = vpop.trf.xlu0
    %v10099 = vpop.trf.xlu0
    %v10100 = vpop.trf.xlu0
    %v10101 = vpop.trf.xlu0
    %v10102 = vpop.trf.xlu0
    %v10103 = vpop.trf.xlu0
    %v10104 = vpop.trf.xlu0
    %v10105 = vpop.trf.xlu0
    %10106 = vxpose.xlu0.c.b16.start [1/8] %v10064, 128
    %10107 = vxpose.xlu0.c.b16.cont [2/8] 0, 128
    %10108 = vxpose.xlu0.c.b16.cont [3/8] 0, 128
    %10109 = vxpose.xlu0.c.b16.cont [4/8] 0, 128
    %10110 = vxpose.xlu0.c.b16.cont [5/8] 0, 128
    %10111 = vxpose.xlu0.c.b16.cont [6/8] 0, 128
    %10112 = vxpose.xlu0.c.b16.cont [7/8] 0, 128
    %10113 = vxpose.xlu0.c.b16.end [8/8] 0, 128
    %v10114 = vpop.trf.xlu0
    %v10115 = vpop.trf.xlu0
    %v10116 = vpop.trf.xlu0
    %v10117 = vpop.trf.xlu0
    %v10118 = vpop.trf.xlu0
    %v10119 = vpop.trf.xlu0
    %v10120 = vpop.trf.xlu0
    %v10121 = vpop.trf.xlu0
    %10122 = vxpose.xlu0.c.b16.start [1/8] %v10068, 128
    %10123 = vxpose.xlu0.c.b16.cont [2/8] 0, 128
    %10124 = vxpose.xlu0.c.b16.cont [3/8] 0, 128
    %10125 = vxpose.xlu0.c.b16.cont [4/8] 0, 128
    %10126 = vxpose.xlu0.c.b16.cont [5/8] 0, 128
    %10127 = vxpose.xlu0.c.b16.cont [6/8] 0, 128
    %10128 = vxpose.xlu0.c.b16.cont [7/8] 0, 128
    %10129 = vxpose.xlu0.c.b16.end [8/8] 0, 128
    %v10130 = vpop.trf.xlu0
    %v10131 = vpop.trf.xlu0
    %v10132 = vpop.trf.xlu0
    %v10133 = vpop.trf.xlu0
    %v10134 = vpop.trf.xlu0
    %v10135 = vpop.trf.xlu0
    %v10136 = vpop.trf.xlu0
    %v10137 = vpop.trf.xlu0
    %10138 = vxpose.xlu0.c.b16.start [1/8] %v10072, 128
    %10139 = vxpose.xlu0.c.b16.cont [2/8] 0, 128
    %10140 = vxpose.xlu0.c.b16.cont [3/8] 0, 128
    %10141 = vxpose.xlu0.c.b16.cont [4/8] 0, 128
    %10142 = vxpose.xlu0.c.b16.cont [5/8] 0, 128
    %10143 = vxpose.xlu0.c.b16.cont [6/8] 0, 128
    %10144 = vxpose.xlu0.c.b16.cont [7/8] 0, 128
    %10145 = vxpose.xlu0.c.b16.end [8/8] 0, 128
    %v10146 = vpop.trf.xlu0
    %v10147 = vpop.trf.xlu0
    %v10148 = vpop.trf.xlu0
    %v10149 = vpop.trf.xlu0
    %v10150 = vpop.trf.xlu0
    %v10151 = vpop.trf.xlu0
    %v10152 = vpop.trf.xlu0
    %v10153 = vpop.trf.xlu0
    %10154 = vxpose.xlu0.c.b16.start [1/8] %v10076, 128
    %10155 = vxpose.xlu0.c.b16.cont [2/8] 0, 128
    %10156 = vxpose.xlu0.c.b16.cont [3/8] 0, 128
    %10157 = vxpose.xlu0.c.b16.cont [4/8] 0, 128
    %10158 = vxpose.xlu0.c.b16.cont [5/8] 0, 128
    %10159 = vxpose.xlu0.c.b16.cont [6/8] 0, 128
    %10160 = vxpose.xlu0.c.b16.cont [7/8] 0, 128
    %10161 = vxpose.xlu0.c.b16.end [8/8] 0, 128
    %v10162 = vpop.trf.xlu0
    %v10163 = vpop.trf.xlu0
    %v10164 = vpop.trf.xlu0
    %v10165 = vpop.trf.xlu0
    %v10166 = vpop.trf.xlu0
    %v10167 = vpop.trf.xlu0
    %v10168 = vpop.trf.xlu0
    %v10169 = vpop.trf.xlu0
    %10170 = vxpose.xlu0.c.b16.start [1/8] %v10080, 128
    %10171 = vxpose.xlu0.c.b16.cont [2/8] 0, 128
    %10172 = vxpose.xlu0.c.b16.cont [3/8] 0, 128
    %10173 = vxpose.xlu0.c.b16.cont [4/8] 0, 128
    %10174 = vxpose.xlu0.c.b16.cont [5/8] 0, 128
    %10175 = vxpose.xlu0.c.b16.cont [6/8] 0, 128
    %10176 = vxpose.xlu0.c.b16.cont [7/8] 0, 128
    %10177 = vxpose.xlu0.c.b16.end [8/8] 0, 128
    %v10178 = vpop.trf.xlu0
    %v10179 = vpop.trf.xlu0
    %v10180 = vpop.trf.xlu0
    %v10181 = vpop.trf.xlu0
    %v10182 = vpop.trf.xlu0
    %v10183 = vpop.trf.xlu0
    %v10184 = vpop.trf.xlu0
    %v10185 = vpop.trf.xlu0
    %10186 = vxpose.xlu0.c.b16.start [1/8] %v10084, 128
    %10187 = vxpose.xlu0.c.b16.cont [2/8] 0, 128
    %10188 = vxpose.xlu0.c.b16.cont [3/8] 0, 128
    %10189 = vxpose.xlu0.c.b16.cont [4/8] 0, 128
    %10190 = vxpose.xlu0.c.b16.cont [5/8] 0, 128
    %10191 = vxpose.xlu0.c.b16.cont [6/8] 0, 128
    %10192 = vxpose.xlu0.c.b16.cont [7/8] 0, 128
    %10193 = vxpose.xlu0.c.b16.end [8/8] 0, 128
    %v10194 = vpop.trf.xlu0
    %v10195 = vpop.trf.xlu0
    %v10196 = vpop.trf.xlu0
    %v10197 = vpop.trf.xlu0
    %v10198 = vpop.trf.xlu0
    %v10199 = vpop.trf.xlu0
    %v10200 = vpop.trf.xlu0
    %v10201 = vpop.trf.xlu0
    %10202 = vxpose.xlu0.c.b16.start [1/8] %v10088, 128
    %10203 = vxpose.xlu0.c.b16.cont [2/8] 0, 128
    %10204 = vxpose.xlu0.c.b16.cont [3/8] 0, 128
    %10205 = vxpose.xlu0.c.b16.cont [4/8] 0, 128
    %10206 = vxpose.xlu0.c.b16.cont [5/8] 0, 128
    %10207 = vxpose.xlu0.c.b16.cont [6/8] 0, 128
    %10208 = vxpose.xlu0.c.b16.cont [7/8] 0, 128
    %10209 = vxpose.xlu0.c.b16.end [8/8] 0, 128
    %v10210 = vpop.trf.xlu0
    %v10211 = vpop.trf.xlu0
    %v10212 = vpop.trf.xlu0
    %v10213 = vpop.trf.xlu0
    %v10214 = vpop.trf.xlu0
    %v10215 = vpop.trf.xlu0
    %v10216 = vpop.trf.xlu0
    %v10217 = vpop.trf.xlu0
    %v10218 = vcombine.low %v10098, %v10162
    %v10220 = vunpack.c.l.s4 1983009808
    %v10221 = vunpack.c.0.s8 %v10220
    %v10222 = vlaneseq
    %v10223 = vshrl.u32 %v10222, 7
    %v10224 = vsub.s32 %v10221, %v10223
    %v10225 = vrot.slane %v10218, %v10224
    %v10226 = vcombine.low %v10130, %v10194
    %v10228 = vunpack.c.l.s4 1983009808
    %v10229 = vunpack.c.0.s8 %v10228
    %v10230 = vlaneseq
    %v10231 = vshrl.u32 %v10230, 7
    %v10232 = vsub.s32 %v10229, %v10231
    %v10233 = vrot.slane %v10226, %v10232
    %v10234 = vcombine.low %v10225, %v10233
    %v10236 = vunpack.c.l.s4 1934713408
    %v10237 = vunpack.c.0.s8 %v10236
    %v10238 = vlaneseq
    %v10239 = vshrl.u32 %v10238, 7
    %v10240 = vsub.s32 %v10237, %v10239
    %v10241 = vrot.slane %v10234, %v10240
    %v10242 = vcombine.high %v10241, 0
    %v10243 = vcombine.low %v10114, %v10178
    %v10245 = vunpack.c.l.s4 1983009808
    %v10246 = vunpack.c.0.s8 %v10245
    %v10247 = vlaneseq
    %v10248 = vshrl.u32 %v10247, 7
    %v10249 = vsub.s32 %v10246, %v10248
    %v10250 = vrot.slane %v10243, %v10249
    %v10251 = vcombine.low %v10146, %v10210
    %v10253 = vunpack.c.l.s4 1983009808
    %v10254 = vunpack.c.0.s8 %v10253
    %v10255 = vlaneseq
    %v10256 = vshrl.u32 %v10255, 7
    %v10257 = vsub.s32 %v10254, %v10256
    %v10258 = vrot.slane %v10251, %v10257
    %v10259 = vcombine.low %v10250, %v10258
    %v10261 = vunpack.c.l.s4 1934713408
    %v10262 = vunpack.c.0.s8 %v10261
    %v10263 = vlaneseq
    %v10264 = vshrl.u32 %v10263, 7
    %v10265 = vsub.s32 %v10262, %v10264
    %v10266 = vrot.slane %v10259, %v10265
    %v10267 = vcombine.high %v10266, 0
    %v10270 = vpack.i.b16 %v10266, %v10241
    %v10271 = vshrl.u32 %v10241, 16
    %v10272 = vshrl.u32 %v10266, 16
    %v10273 = vpack.i.b16 %v10272, %v10271
    %v10276 = vpack.i.b16 %v10267, %v10242
    %v10277 = vshrl.u32 %v10242, 16
    %v10278 = vshrl.u32 %v10267, 16
    %v10279 = vpack.i.b16 %v10278, %v10277
    %v10281 = vsel %vm1152, %v9852, 0
    %v10284 = vsel %vm1156, %v10270, 0
    %10286 = vmatprep.subr.bf16.mxu0 0
    %10287 = vmatpush1.bf16.msra.mxu0 %v10284
    %10288 = vmatprep.subr.bf16.mxu0 0
    %10289 = vmatpush1.bf16.msra.mxu0 0
    %10290 = vmatprep.subr.bf16.mxu0 0
    %10291 = vmatpush1.bf16.msra.mxu0 0
    %10292 = vmatprep.subr.bf16.mxu0 0
    %10293 = vmatpush1.bf16.msra.mxu0 0
    %10294 = vmatprep.subr.bf16.mxu0 0
    %10295 = vmatpush1.bf16.msra.mxu0 0
    %10296 = vmatprep.subr.bf16.mxu0 0
    %10297 = vmatpush1.bf16.msra.mxu0 0
    %10298 = vmatprep.subr.bf16.mxu0 0
    %10299 = vmatpush1.bf16.msra.mxu0 0
    %10300 = vmatprep.subr.bf16.mxu0 0
    %10301 = vmatpush1.bf16.msra.mxu0 0
    %10302 = vmatprep.subr.bf16.mxu0 0
    %10303 = vmatpush1.bf16.msra.mxu0 0
    %10304 = vmatprep.subr.bf16.mxu0 0
    %10305 = vmatpush1.bf16.msra.mxu0 0
    %10306 = vmatprep.subr.bf16.mxu0 0
    %10307 = vmatpush1.bf16.msra.mxu0 0
    %10308 = vmatprep.subr.bf16.mxu0 0
    %10309 = vmatpush1.bf16.msra.mxu0 0
    %10310 = vmatprep.subr.bf16.mxu0 0
    %10311 = vmatpush1.bf16.msra.mxu0 0
    %10312 = vmatprep.subr.bf16.mxu0 0
    %10313 = vmatpush1.bf16.msra.mxu0 0
    %10314 = vmatprep.subr.bf16.mxu0 0
    %10315 = vmatpush1.bf16.msra.mxu0 0
    %10316 = vmatprep.subr.bf16.mxu0 0
    %10317 = vmatpush1.bf16.msra.mxu0 0
    %10318 = vmatprep.mubr.bf16.mxu0 0
    %10319 = vmatmul.mubr.bf16.gmra.mrb[0].mxu0 %v10281
    %v10320 = vpop.f32.mrb[0].mxu0
    %v10321 = vadd.f32 0.0, %v10320
    %v10322 = vpop.f32.mrb[0].mxu0
    %v10323 = vpop.f32.mrb[0].mxu0
    %v10324 = vpop.f32.mrb[0].mxu0
    %10325 = vdwg.mxu0
    %v10327 = vsel %vm1152, %v9855, 0
    %v10330 = vsel %vm1156, %v10273, 0
    %10332 = vmatprep.subr.bf16.mxu0 0
    %10333 = vmatpush1.bf16.msra.mxu0 %v10330
    %10334 = vmatprep.subr.bf16.mxu0 0
    %10335 = vmatpush1.bf16.msra.mxu0 0
    %10336 = vmatprep.subr.bf16.mxu0 0
    %10337 = vmatpush1.bf16.msra.mxu0 0
    %10338 = vmatprep.subr.bf16.mxu0 0
    %10339 = vmatpush1.bf16.msra.mxu0 0
    %10340 = vmatprep.subr.bf16.mxu0 0
    %10341 = vmatpush1.bf16.msra.mxu0 0
    %10342 = vmatprep.subr.bf16.mxu0 0
    %10343 = vmatpush1.bf16.msra.mxu0 0
    %10344 = vmatprep.subr.bf16.mxu0 0
    %10345 = vmatpush1.bf16.msra.mxu0 0
    %10346 = vmatprep.subr.bf16.mxu0 0
    %10347 = vmatpush1.bf16.msra.mxu0 0
    %10348 = vmatprep.subr.bf16.mxu0 0
    %10349 = vmatpush1.bf16.msra.mxu0 0
    %10350 = vmatprep.subr.bf16.mxu0 0
    %10351 = vmatpush1.bf16.msra.mxu0 0
    %10352 = vmatprep.subr.bf16.mxu0 0
    %10353 = vmatpush1.bf16.msra.mxu0 0
    %10354 = vmatprep.subr.bf16.mxu0 0
    %10355 = vmatpush1.bf16.msra.mxu0 0
    %10356 = vmatprep.subr.bf16.mxu0 0
    %10357 = vmatpush1.bf16.msra.mxu0 0
    %10358 = vmatprep.subr.bf16.mxu0 0
    %10359 = vmatpush1.bf16.msra.mxu0 0
    %10360 = vmatprep.subr.bf16.mxu0 0
    %10361 = vmatpush1.bf16.msra.mxu0 0
    %10362 = vmatprep.subr.bf16.mxu0 0
    %10363 = vmatpush1.bf16.msra.mxu0 0
    %10364 = vmatprep.mubr.bf16.mxu0 0
    %10365 = vmatmul.mubr.bf16.gmra.mrb[0].mxu0 %v10327
    %v10366 = vpop.f32.mrb[0].mxu0
    %v10367 = vadd.f32 0.0, %v10366
    %v10368 = vpop.f32.mrb[0].mxu0
    %v10369 = vpop.f32.mrb[0].mxu0
    %v10370 = vpop.f32.mrb[0].mxu0
    %10371 = vdwg.mxu0
    %v10373 = vsel %vm1152, %v9858, 0
    %v10376 = vsel %vm1156, %v10276, 0
    %10378 = vmatprep.subr.bf16.mxu0 0
    %10379 = vmatpush1.bf16.msra.mxu0 %v10376
    %10380 = vmatprep.subr.bf16.mxu0 0
    %10381 = vmatpush1.bf16.msra.mxu0 0
    %10382 = vmatprep.subr.bf16.mxu0 0
    %10383 = vmatpush1.bf16.msra.mxu0 0
    %10384 = vmatprep.subr.bf16.mxu0 0
    %10385 = vmatpush1.bf16.msra.mxu0 0
    %10386 = vmatprep.subr.bf16.mxu0 0
    %10387 = vmatpush1.bf16.msra.mxu0 0
    %10388 = vmatprep.subr.bf16.mxu0 0
    %10389 = vmatpush1.bf16.msra.mxu0 0
    %10390 = vmatprep.subr.bf16.mxu0 0
    %10391 = vmatpush1.bf16.msra.mxu0 0
    %10392 = vmatprep.subr.bf16.mxu0 0
    %10393 = vmatpush1.bf16.msra.mxu0 0
    %10394 = vmatprep.subr.bf16.mxu0 0
    %10395 = vmatpush1.bf16.msra.mxu0 0
    %10396 = vmatprep.subr.bf16.mxu0 0
    %10397 = vmatpush1.bf16.msra.mxu0 0
    %10398 = vmatprep.subr.bf16.mxu0 0
    %10399 = vmatpush1.bf16.msra.mxu0 0
    %10400 = vmatprep.subr.bf16.mxu0 0
    %10401 = vmatpush1.bf16.msra.mxu0 0
    %10402 = vmatprep.subr.bf16.mxu0 0
    %10403 = vmatpush1.bf16.msra.mxu0 0
    %10404 = vmatprep.subr.bf16.mxu0 0
    %10405 = vmatpush1.bf16.msra.mxu0 0
    %10406 = vmatprep.subr.bf16.mxu0 0
    %10407 = vmatpush1.bf16.msra.mxu0 0
    %10408 = vmatprep.subr.bf16.mxu0 0
    %10409 = vmatpush1.bf16.msra.mxu0 0
    %10410 = vmatprep.mubr.bf16.mxu0 0
    %10411 = vmatmul.mubr.bf16.gmra.mrb[0].mxu0 %v10373
    %v10412 = vpop.f32.mrb[0].mxu0
    %v10413 = vadd.f32 0.0, %v10412
    %v10414 = vpop.f32.mrb[0].mxu0
    %v10415 = vpop.f32.mrb[0].mxu0
    %v10416 = vpop.f32.mrb[0].mxu0
    %10417 = vdwg.mxu0
    %v10419 = vsel %vm1152, %v9861, 0
    %v10422 = vsel %vm1156, %v10279, 0
    %10424 = vmatprep.subr.bf16.mxu0 0
    %10425 = vmatpush1.bf16.msra.mxu0 %v10422
    %10426 = vmatprep.subr.bf16.mxu0 0
    %10427 = vmatpush1.bf16.msra.mxu0 0
    %10428 = vmatprep.subr.bf16.mxu0 0
    %10429 = vmatpush1.bf16.msra.mxu0 0
    %10430 = vmatprep.subr.bf16.mxu0 0
    %10431 = vmatpush1.bf16.msra.mxu0 0
    %10432 = vmatprep.subr.bf16.mxu0 0
    %10433 = vmatpush1.bf16.msra.mxu0 0
    %10434 = vmatprep.subr.bf16.mxu0 0
    %10435 = vmatpush1.bf16.msra.mxu0 0
    %10436 = vmatprep.subr.bf16.mxu0 0
    %10437 = vmatpush1.bf16.msra.mxu0 0
    %10438 = vmatprep.subr.bf16.mxu0 0
    %10439 = vmatpush1.bf16.msra.mxu0 0
    %10440 = vmatprep.subr.bf16.mxu0 0
    %10441 = vmatpush1.bf16.msra.mxu0 0
    %10442 = vmatprep.subr.bf16.mxu0 0
    %10443 = vmatpush1.bf16.msra.mxu0 0
    %10444 = vmatprep.subr.bf16.mxu0 0
    %10445 = vmatpush1.bf16.msra.mxu0 0
    %10446 = vmatprep.subr.bf16.mxu0 0
    %10447 = vmatpush1.bf16.msra.mxu0 0
    %10448 = vmatprep.subr.bf16.mxu0 0
    %10449 = vmatpush1.bf16.msra.mxu0 0
    %10450 = vmatprep.subr.bf16.mxu0 0
    %10451 = vmatpush1.bf16.msra.mxu0 0
    %10452 = vmatprep.subr.bf16.mxu0 0
    %10453 = vmatpush1.bf16.msra.mxu0 0
    %10454 = vmatprep.subr.bf16.mxu0 0
    %10455 = vmatpush1.bf16.msra.mxu0 0
    %10456 = vmatprep.mubr.bf16.mxu0 0
    %10457 = vmatmul.mubr.bf16.gmra.mrb[0].mxu0 %v10419
    %v10458 = vpop.f32.mrb[0].mxu0
    %v10459 = vadd.f32 0.0, %v10458
    %v10460 = vpop.f32.mrb[0].mxu0
    %v10461 = vpop.f32.mrb[0].mxu0
    %v10462 = vpop.f32.mrb[0].mxu0
    %10463 = vdwg.mxu0
    %10464 = vxpose.xlu0.b32.start [1/16] %v10321, 128
    %10465 = vxpose.xlu0.b32.cont [2/16] 0.0, 128
    %10466 = vxpose.xlu0.b32.cont [3/16] 0.0, 128
    %10467 = vxpose.xlu0.b32.cont [4/16] 0.0, 128
    %10468 = vxpose.xlu0.b32.cont [5/16] 0.0, 128
    %10469 = vxpose.xlu0.b32.cont [6/16] 0.0, 128
    %10470 = vxpose.xlu0.b32.cont [7/16] 0.0, 128
    %10471 = vxpose.xlu0.b32.cont [8/16] 0.0, 128
    %10472 = vxpose.xlu0.b32.cont [9/16] 0.0, 128
    %10473 = vxpose.xlu0.b32.cont [10/16] 0.0, 128
    %10474 = vxpose.xlu0.b32.cont [11/16] 0.0, 128
    %10475 = vxpose.xlu0.b32.cont [12/16] 0.0, 128
    %10476 = vxpose.xlu0.b32.cont [13/16] 0.0, 128
    %10477 = vxpose.xlu0.b32.cont [14/16] 0.0, 128
    %10478 = vxpose.xlu0.b32.cont [15/16] 0.0, 128
    %10479 = vxpose.xlu0.b32.end [16/16] 0.0, 128
    %v10480 = vpop.trf.xlu0
    %v10481 = vpop.trf.xlu0
    %v10482 = vpop.trf.xlu0
    %v10483 = vpop.trf.xlu0
    %v10484 = vpop.trf.xlu0
    %v10485 = vpop.trf.xlu0
    %v10486 = vpop.trf.xlu0
    %v10487 = vpop.trf.xlu0
    %v10488 = vpop.trf.xlu0
    %v10489 = vpop.trf.xlu0
    %v10490 = vpop.trf.xlu0
    %v10491 = vpop.trf.xlu0
    %v10492 = vpop.trf.xlu0
    %v10493 = vpop.trf.xlu0
    %v10494 = vpop.trf.xlu0
    %v10495 = vpop.trf.xlu0
    %10496 = vxpose.xlu0.b32.start [1/16] %v10367, 128
    %10497 = vxpose.xlu0.b32.cont [2/16] 0.0, 128
    %10498 = vxpose.xlu0.b32.cont [3/16] 0.0, 128
    %10499 = vxpose.xlu0.b32.cont [4/16] 0.0, 128
    %10500 = vxpose.xlu0.b32.cont [5/16] 0.0, 128
    %10501 = vxpose.xlu0.b32.cont [6/16] 0.0, 128
    %10502 = vxpose.xlu0.b32.cont [7/16] 0.0, 128
    %10503 = vxpose.xlu0.b32.cont [8/16] 0.0, 128
    %10504 = vxpose.xlu0.b32.cont [9/16] 0.0, 128
    %10505 = vxpose.xlu0.b32.cont [10/16] 0.0, 128
    %10506 = vxpose.xlu0.b32.cont [11/16] 0.0, 128
    %10507 = vxpose.xlu0.b32.cont [12/16] 0.0, 128
    %10508 = vxpose.xlu0.b32.cont [13/16] 0.0, 128
    %10509 = vxpose.xlu0.b32.cont [14/16] 0.0, 128
    %10510 = vxpose.xlu0.b32.cont [15/16] 0.0, 128
    %10511 = vxpose.xlu0.b32.end [16/16] 0.0, 128
    %v10512 = vpop.trf.xlu0
    %v10513 = vpop.trf.xlu0
    %v10514 = vpop.trf.xlu0
    %v10515 = vpop.trf.xlu0
    %v10516 = vpop.trf.xlu0
    %v10517 = vpop.trf.xlu0
    %v10518 = vpop.trf.xlu0
    %v10519 = vpop.trf.xlu0
    %v10520 = vpop.trf.xlu0
    %v10521 = vpop.trf.xlu0
    %v10522 = vpop.trf.xlu0
    %v10523 = vpop.trf.xlu0
    %v10524 = vpop.trf.xlu0
    %v10525 = vpop.trf.xlu0
    %v10526 = vpop.trf.xlu0
    %v10527 = vpop.trf.xlu0
    %10528 = vxpose.xlu0.b32.start [1/16] %v10413, 128
    %10529 = vxpose.xlu0.b32.cont [2/16] 0.0, 128
    %10530 = vxpose.xlu0.b32.cont [3/16] 0.0, 128
    %10531 = vxpose.xlu0.b32.cont [4/16] 0.0, 128
    %10532 = vxpose.xlu0.b32.cont [5/16] 0.0, 128
    %10533 = vxpose.xlu0.b32.cont [6/16] 0.0, 128
    %10534 = vxpose.xlu0.b32.cont [7/16] 0.0, 128
    %10535 = vxpose.xlu0.b32.cont [8/16] 0.0, 128
    %10536 = vxpose.xlu0.b32.cont [9/16] 0.0, 128
    %10537 = vxpose.xlu0.b32.cont [10/16] 0.0, 128
    %10538 = vxpose.xlu0.b32.cont [11/16] 0.0, 128
    %10539 = vxpose.xlu0.b32.cont [12/16] 0.0, 128
    %10540 = vxpose.xlu0.b32.cont [13/16] 0.0, 128
    %10541 = vxpose.xlu0.b32.cont [14/16] 0.0, 128
    %10542 = vxpose.xlu0.b32.cont [15/16] 0.0, 128
    %10543 = vxpose.xlu0.b32.end [16/16] 0.0, 128
    %v10544 = vpop.trf.xlu0
    %v10545 = vpop.trf.xlu0
    %v10546 = vpop.trf.xlu0
    %v10547 = vpop.trf.xlu0
    %v10548 = vpop.trf.xlu0
    %v10549 = vpop.trf.xlu0
    %v10550 = vpop.trf.xlu0
    %v10551 = vpop.trf.xlu0
    %v10552 = vpop.trf.xlu0
    %v10553 = vpop.trf.xlu0
    %v10554 = vpop.trf.xlu0
    %v10555 = vpop.trf.xlu0
    %v10556 = vpop.trf.xlu0
    %v10557 = vpop.trf.xlu0
    %v10558 = vpop.trf.xlu0
    %v10559 = vpop.trf.xlu0
    %10560 = vxpose.xlu0.b32.start [1/16] %v10459, 128
    %10561 = vxpose.xlu0.b32.cont [2/16] 0.0, 128
    %10562 = vxpose.xlu0.b32.cont [3/16] 0.0, 128
    %10563 = vxpose.xlu0.b32.cont [4/16] 0.0, 128
    %10564 = vxpose.xlu0.b32.cont [5/16] 0.0, 128
    %10565 = vxpose.xlu0.b32.cont [6/16] 0.0, 128
    %10566 = vxpose.xlu0.b32.cont [7/16] 0.0, 128
    %10567 = vxpose.xlu0.b32.cont [8/16] 0.0, 128
    %10568 = vxpose.xlu0.b32.cont [9/16] 0.0, 128
    %10569 = vxpose.xlu0.b32.cont [10/16] 0.0, 128
    %10570 = vxpose.xlu0.b32.cont [11/16] 0.0, 128
    %10571 = vxpose.xlu0.b32.cont [12/16] 0.0, 128
    %10572 = vxpose.xlu0.b32.cont [13/16] 0.0, 128
    %10573 = vxpose.xlu0.b32.cont [14/16] 0.0, 128
    %10574 = vxpose.xlu0.b32.cont [15/16] 0.0, 128
    %10575 = vxpose.xlu0.b32.end [16/16] 0.0, 128
    %v10576 = vpop.trf.xlu0
    %v10577 = vpop.trf.xlu0
    %v10578 = vpop.trf.xlu0
    %v10579 = vpop.trf.xlu0
    %v10580 = vpop.trf.xlu0
    %v10581 = vpop.trf.xlu0
    %v10582 = vpop.trf.xlu0
    %v10583 = vpop.trf.xlu0
    %v10584 = vpop.trf.xlu0
    %v10585 = vpop.trf.xlu0
    %v10586 = vpop.trf.xlu0
    %v10587 = vpop.trf.xlu0
    %v10588 = vpop.trf.xlu0
    %v10589 = vpop.trf.xlu0
    %v10590 = vpop.trf.xlu0
    %v10591 = vpop.trf.xlu0
    %v10592 = vcombine.low %v10480, %v10544
    %v10593 = vcombine.high %v10480, %v10544
    %v10595 = vunpack.c.l.s4 1983009808
    %v10596 = vunpack.c.0.s8 %v10595
    %v10597 = vlaneseq
    %v10598 = vshrl.u32 %v10597, 7
    %v10599 = vsub.s32 %v10596, %v10598
    %v10600 = vrot.slane %v10592, %v10599
    %v10602 = vunpack.c.l.s4 1983009808
    %v10603 = vunpack.c.0.s8 %v10602
    %v10604 = vlaneseq
    %v10605 = vshrl.u32 %v10604, 7
    %v10606 = vsub.s32 %v10603, %v10605
    %v10607 = vrot.slane %v10593, %v10606
    %v10608 = vcombine.low %v10512, %v10576
    %v10609 = vcombine.high %v10512, %v10576
    %v10611 = vunpack.c.l.s4 1983009808
    %v10612 = vunpack.c.0.s8 %v10611
    %v10613 = vlaneseq
    %v10614 = vshrl.u32 %v10613, 7
    %v10615 = vsub.s32 %v10612, %v10614
    %v10616 = vrot.slane %v10608, %v10615
    %v10618 = vunpack.c.l.s4 1983009808
    %v10619 = vunpack.c.0.s8 %v10618
    %v10620 = vlaneseq
    %v10621 = vshrl.u32 %v10620, 7
    %v10622 = vsub.s32 %v10619, %v10621
    %v10623 = vrot.slane %v10609, %v10622
    %v10624 = vcombine.low %v10600, %v10616
    %v10625 = vcombine.high %v10600, %v10616
    %v10627 = vunpack.c.l.s4 1934713408
    %v10628 = vunpack.c.0.s8 %v10627
    %v10629 = vlaneseq
    %v10630 = vshrl.u32 %v10629, 7
    %v10631 = vsub.s32 %v10628, %v10630
    %v10632 = vrot.slane %v10624, %v10631
    %v10634 = vunpack.c.l.s4 1934713408
    %v10635 = vunpack.c.0.s8 %v10634
    %v10636 = vlaneseq
    %v10637 = vshrl.u32 %v10636, 7
    %v10638 = vsub.s32 %v10635, %v10637
    %v10639 = vrot.slane %v10625, %v10638
    %v10640 = vcombine.low %v10607, %v10623
    %v10641 = vcombine.high %v10607, %v10623
    %v10643 = vunpack.c.l.s4 1934713408
    %v10644 = vunpack.c.0.s8 %v10643
    %v10645 = vlaneseq
    %v10646 = vshrl.u32 %v10645, 7
    %v10647 = vsub.s32 %v10644, %v10646
    %v10648 = vrot.slane %v10640, %v10647
    %v10650 = vunpack.c.l.s4 1934713408
    %v10651 = vunpack.c.0.s8 %v10650
    %v10652 = vlaneseq
    %v10653 = vshrl.u32 %v10652, 7
    %v10654 = vsub.s32 %v10651, %v10653
    %v10655 = vrot.slane %v10641, %v10654
    %v10656 = vcombine.high %v10632, 0.0
    %v10657 = vcombine.high %v10639, 0.0
    %v10658 = vcombine.high %v10648, 0.0
    %v10659 = vcombine.high %v10655, 0.0
    %v10660 = vcombine.low %v9420, %v9422
    %v10662 = vunpack.c.l.s4 1983009808
    %v10663 = vunpack.c.0.s8 %v10662
    %v10664 = vlaneseq
    %v10665 = vshrl.u32 %v10664, 7
    %v10666 = vsub.s32 %v10663, %v10665
    %v10667 = vrot.slane %v10660, %v10666
    %v10668 = vcombine.low %v9421, %v9423
    %v10670 = vunpack.c.l.s4 1983009808
    %v10671 = vunpack.c.0.s8 %v10670
    %v10672 = vlaneseq
    %v10673 = vshrl.u32 %v10672, 7
    %v10674 = vsub.s32 %v10671, %v10673
    %v10675 = vrot.slane %v10668, %v10674
    %v10676 = vcombine.low %v9424, %v9426
    %v10678 = vunpack.c.l.s4 1983009808
    %v10679 = vunpack.c.0.s8 %v10678
    %v10680 = vlaneseq
    %v10681 = vshrl.u32 %v10680, 7
    %v10682 = vsub.s32 %v10679, %v10681
    %v10683 = vrot.slane %v10676, %v10682
    %v10684 = vcombine.low %v9425, %v9427
    %v10686 = vunpack.c.l.s4 1983009808
    %v10687 = vunpack.c.0.s8 %v10686
    %v10688 = vlaneseq
    %v10689 = vshrl.u32 %v10688, 7
    %v10690 = vsub.s32 %v10687, %v10689
    %v10691 = vrot.slane %v10684, %v10690
    %v10692 = vcombine.low %v10667, %v10675
    %v10693 = vcombine.high %v10667, %v10675
    %v10695 = vunpack.c.l.s4 1934713408
    %v10696 = vunpack.c.0.s8 %v10695
    %v10697 = vlaneseq
    %v10698 = vshrl.u32 %v10697, 7
    %v10699 = vsub.s32 %v10696, %v10698
    %v10700 = vrot.slane %v10692, %v10699
    %v10702 = vunpack.c.l.s4 1934713408
    %v10703 = vunpack.c.0.s8 %v10702
    %v10704 = vlaneseq
    %v10705 = vshrl.u32 %v10704, 7
    %v10706 = vsub.s32 %v10703, %v10705
    %v10707 = vrot.slane %v10693, %v10706
    %v10708 = vcombine.low %v10683, %v10691
    %v10709 = vcombine.high %v10683, %v10691
    %v10711 = vunpack.c.l.s4 1934713408
    %v10712 = vunpack.c.0.s8 %v10711
    %v10713 = vlaneseq
    %v10714 = vshrl.u32 %v10713, 7
    %v10715 = vsub.s32 %v10712, %v10714
    %v10716 = vrot.slane %v10708, %v10715
    %v10718 = vunpack.c.l.s4 1934713408
    %v10719 = vunpack.c.0.s8 %v10718
    %v10720 = vlaneseq
    %v10721 = vshrl.u32 %v10720, 7
    %v10722 = vsub.s32 %v10719, %v10721
    %v10723 = vrot.slane %v10709, %v10722
    %v10724 = vcombine.low %v10700, %v10716
    %v10725 = vcombine.high %v10700, %v10716
    %v10726 = vcombine.low %v10707, %v10723
    %v10727 = vcombine.high %v10707, %v10723
    %10729 = vrot.lane.b32.xlu0 %v10725, 8
    %v10730 = vpop.permute.xlu0 %10729
    %10733 = vrot.lane.b32.xlu0 %v10726, 16
    %v10734 = vpop.permute.xlu0 %10733
    %10737 = vrot.lane.b32.xlu0 %v10727, 24
    %v10738 = vpop.permute.xlu0 %10737
    %v10740 = vsel %vm1152, %v10724, %v10730
    %v10741 = vsel %vm2936, %v10740, %v10734
    %v10742 = vsel %vm2938, %v10741, %v10738
    %s10743 = scalar_lea.vmem [#allocation14], 8
    %10744 = vst.msk [vmem:[%s10743] sm:$0xff] %vm135, %v10742
    %v10745 = vcombine.low %v10632, %v10639
    %v10747 = vunpack.c.l.s4 1983009808
    %v10748 = vunpack.c.0.s8 %v10747
    %v10749 = vlaneseq
    %v10750 = vshrl.u32 %v10749, 7
    %v10751 = vsub.s32 %v10748, %v10750
    %v10752 = vrot.slane %v10745, %v10751
    %v10753 = vcombine.low %v10656, %v10657
    %v10755 = vunpack.c.l.s4 1983009808
    %v10756 = vunpack.c.0.s8 %v10755
    %v10757 = vlaneseq
    %v10758 = vshrl.u32 %v10757, 7
    %v10759 = vsub.s32 %v10756, %v10758
    %v10760 = vrot.slane %v10753, %v10759
    %v10761 = vcombine.low %v10648, %v10655
    %v10763 = vunpack.c.l.s4 1983009808
    %v10764 = vunpack.c.0.s8 %v10763
    %v10765 = vlaneseq
    %v10766 = vshrl.u32 %v10765, 7
    %v10767 = vsub.s32 %v10764, %v10766
    %v10768 = vrot.slane %v10761, %v10767
    %v10769 = vcombine.low %v10658, %v10659
    %v10771 = vunpack.c.l.s4 1983009808
    %v10772 = vunpack.c.0.s8 %v10771
    %v10773 = vlaneseq
    %v10774 = vshrl.u32 %v10773, 7
    %v10775 = vsub.s32 %v10772, %v10774
    %v10776 = vrot.slane %v10769, %v10775
    %v10777 = vcombine.low %v10752, %v10760
    %v10778 = vcombine.high %v10752, %v10760
    %v10780 = vunpack.c.l.s4 1934713408
    %v10781 = vunpack.c.0.s8 %v10780
    %v10782 = vlaneseq
    %v10783 = vshrl.u32 %v10782, 7
    %v10784 = vsub.s32 %v10781, %v10783
    %v10785 = vrot.slane %v10777, %v10784
    %v10787 = vunpack.c.l.s4 1934713408
    %v10788 = vunpack.c.0.s8 %v10787
    %v10789 = vlaneseq
    %v10790 = vshrl.u32 %v10789, 7
    %v10791 = vsub.s32 %v10788, %v10790
    %v10792 = vrot.slane %v10778, %v10791
    %v10793 = vcombine.low %v10768, %v10776
    %v10794 = vcombine.high %v10768, %v10776
    %v10796 = vunpack.c.l.s4 1934713408
    %v10797 = vunpack.c.0.s8 %v10796
    %v10798 = vlaneseq
    %v10799 = vshrl.u32 %v10798, 7
    %v10800 = vsub.s32 %v10797, %v10799
    %v10801 = vrot.slane %v10793, %v10800
    %v10803 = vunpack.c.l.s4 1934713408
    %v10804 = vunpack.c.0.s8 %v10803
    %v10805 = vlaneseq
    %v10806 = vshrl.u32 %v10805, 7
    %v10807 = vsub.s32 %v10804, %v10806
    %v10808 = vrot.slane %v10794, %v10807
    %v10809 = vcombine.low %v10785, %v10801
    %v10810 = vcombine.high %v10785, %v10801
    %v10811 = vcombine.low %v10792, %v10808
    %v10812 = vcombine.high %v10792, %v10808
    %10814 = vrot.lane.b32.xlu0 %v10810, 8
    %v10815 = vpop.permute.xlu0 %10814
    %10818 = vrot.lane.b32.xlu0 %v10811, 16
    %v10819 = vpop.permute.xlu0 %10818
    %10822 = vrot.lane.b32.xlu0 %v10812, 24
    %v10823 = vpop.permute.xlu0 %10822
    %v10825 = vsel %vm1152, %v10809, %v10815
    %v10826 = vsel %vm2936, %v10825, %v10819
    %v10827 = vsel %vm2938, %v10826, %v10823
    %v10828 = vpack.c.bf16 %v10827, %v8463
    %v10829 = vld [vmem:[#allocation8] sm:$0xf]
    %v10830 = vld [vmem:[#allocation8 + $0x4] sm:$0xf]
    %v10831 = vld [vmem:[#allocation8 + $0x8] sm:$0xf]
    %v10832 = vld [vmem:[#allocation8 + $0xc] sm:$0xf]
    %v10833 = vld [vmem:[%s9 + $0x6] sm:$0x1]
    %v10834 = vlaneseq
    %v10835 = vshrl.u32 %v10834, 7
    %v10836 = vsub.s32 0, %v10835
    %v10837 = vrot.slane %v10833, %v10836
    %v10842 = vunpack.c.l.b16 %v10829
    %v10843 = vunpack.c.l.b16 %v10830
    %v10844 = vunpack.c.l.b16 %v10831
    %v10845 = vunpack.c.l.b16 %v10832
    %v10846 = vpack.c.b16 %v10843, %v10842
    %v10847 = vpack.c.b16 %v10845, %v10844
    %v10851 = vsel %vm135, %v10828, 0
    %10853 = vmatprep.subr.bf16.mxu0 0
    %10854 = vmatpush1.bf16.msra.mxu0 %v10846
    %10855 = vmatprep.subr.bf16.mxu0 0
    %10856 = vmatpush1.bf16.msra.mxu0 %v10847
    %10857 = vmatprep.subr.bf16.mxu0 0
    %10858 = vmatpush1.bf16.msra.mxu0 0
    %10859 = vmatprep.subr.bf16.mxu0 0
    %10860 = vmatpush1.bf16.msra.mxu0 0
    %10861 = vmatprep.subr.bf16.mxu0 0
    %10862 = vmatpush1.bf16.msra.mxu0 0
    %10863 = vmatprep.subr.bf16.mxu0 0
    %10864 = vmatpush1.bf16.msra.mxu0 0
    %10865 = vmatprep.subr.bf16.mxu0 0
    %10866 = vmatpush1.bf16.msra.mxu0 0
    %10867 = vmatprep.subr.bf16.mxu0 0
    %10868 = vmatpush1.bf16.msra.mxu0 0
    %10869 = vmatprep.subr.bf16.mxu0 0
    %10870 = vmatpush1.bf16.msra.mxu0 0
    %10871 = vmatprep.subr.bf16.mxu0 0
    %10872 = vmatpush1.bf16.msra.mxu0 0
    %10873 = vmatprep.subr.bf16.mxu0 0
    %10874 = vmatpush1.bf16.msra.mxu0 0
    %10875 = vmatprep.subr.bf16.mxu0 0
    %10876 = vmatpush1.bf16.msra.mxu0 0
    %10877 = vmatprep.subr.bf16.mxu0 0
    %10878 = vmatpush1.bf16.msra.mxu0 0
    %10879 = vmatprep.subr.bf16.mxu0 0
    %10880 = vmatpush1.bf16.msra.mxu0 0
    %10881 = vmatprep.subr.bf16.mxu0 0
    %10882 = vmatpush1.bf16.msra.mxu0 0
    %10883 = vmatprep.subr.bf16.mxu0 0
    %10884 = vmatpush1.bf16.msra.mxu0 0
    %10885 = vmatprep.mubr.bf16.mxu0 0
    %10886 = vmatmul.mubr.bf16.gmra.mrb[0].mxu0 %v10851
    %v10887 = vpop.f32.mrb[0].mxu0
    %v10888 = vadd.f32 %v10837, %v10887
    %v10889 = vpop.f32.mrb[0].mxu0
    %v10890 = vpop.f32.mrb[0].mxu0
    %v10891 = vadd.f32 %v10837, %v10890
    %v10892 = vpop.f32.mrb[0].mxu0
    %10893 = vdwg.mxu0
    %v10894 = vadd.f32 %v10888, %v5495
    %v10895 = vadd.f32 %v10891, %v5496
    %v10896 = vld [vmem:[%s9 + $0x7] sm:$0x1]
    %v10897 = vld [vmem:[%s9 + $0x8] sm:$0x1]
    %v10898 = vsel %vm135, %v10894, 0.0
    %10899 = vadd.xlane.f32.xlu0 %v10898
    %v10900 = vpop.xlane.xlu0 %10899
    %v10901 = vsel %vm135, %v10895, 0.0
    %10902 = vadd.xlane.f32.xlu0 %v10901
    %v10903 = vpop.xlane.xlu0 %10902
    %v10904 = vmul.f32 %v10900, %v5464
    %v10905 = vmul.f32 %v10903, %v5464
    %v10906 = vsub.f32 %v10894, %v10904
    %v10907 = vsub.f32 %v10895, %v10905
    %v10908 = vmul.f32 %v10906, %v10906
    %v10909 = vmul.f32 %v10907, %v10907
    %v10910 = vsel %vm135, %v10908, 0.0
    %10911 = vadd.xlane.f32.xlu0 %v10910
    %v10912 = vpop.xlane.xlu0 %10911
    %v10913 = vsel %vm135, %v10909, 0.0
    %10914 = vadd.xlane.f32.xlu0 %v10913
    %v10915 = vpop.xlane.xlu0 %10914
    %v10916 = vmul.f32 %v10912, %v5464
    %v10917 = vmul.f32 %v10915, %v5464
    %v10918 = vadd.f32 %v10916, 1e-05
    %v10919 = vadd.f32 %v10917, 1e-05
    %v10920 = vrsqrt.pop %v10918
    %v10921 = vrsqrt.pop %v10919
    %v10922 = vmul.f32 %v10906, %v10920
    %v10923 = vmul.f32 %v10907, %v10921
    %v10924 = vlaneseq
    %v10925 = vshrl.u32 %v10924, 7
    %v10926 = vsub.s32 0, %v10925
    %v10927 = vrot.slane %v10896, %v10926
    %v10928 = vmul.f32 %v10922, %v10927
    %v10929 = vmul.f32 %v10923, %v10927
    %v10930 = vlaneseq
    %v10931 = vshrl.u32 %v10930, 7
    %v10932 = vsub.s32 0, %v10931
    %v10933 = vrot.slane %v10897, %v10932
    %v10934 = vadd.f32 %v10928, %v10933
    %v10935 = vadd.f32 %v10929, %v10933
    %v10936 = vpack.c.bf16 %v10935, %v10934
    %v10937 = vld [vmem:[#allocation10] sm:$0xf]
    %v10938 = vld [vmem:[#allocation10 + $0x4] sm:$0xf]
    %v10939 = vld [vmem:[#allocation10 + $0x8] sm:$0xf]
    %v10940 = vld [vmem:[#allocation10 + $0xc] sm:$0xf]
    %v10941 = vld [vmem:[%s9 + $0x9] sm:$0x1]
    %v10942 = vlaneseq
    %v10943 = vshrl.u32 %v10942, 7
    %v10944 = vsub.s32 0, %v10943
    %v10945 = vrot.slane %v10941, %v10944
    %v10950 = vunpack.c.l.b16 %v10937
    %v10951 = vunpack.c.l.b16 %v10938
    %v10952 = vunpack.c.l.b16 %v10939
    %v10953 = vunpack.c.l.b16 %v10940
    %v10954 = vpack.c.b16 %v10951, %v10950
    %v10955 = vpack.c.b16 %v10953, %v10952
    %v10959 = vsel %vm135, %v10936, 0
    %10961 = vmatprep.subr.bf16.mxu0 0
    %10962 = vmatpush1.bf16.msra.mxu0 %v10954
    %10963 = vmatprep.subr.bf16.mxu0 0
    %10964 = vmatpush1.bf16.msra.mxu0 %v10955
    %10965 = vmatprep.subr.bf16.mxu0 0
    %10966 = vmatpush1.bf16.msra.mxu0 0
    %10967 = vmatprep.subr.bf16.mxu0 0
    %10968 = vmatpush1.bf16.msra.mxu0 0
    %10969 = vmatprep.subr.bf16.mxu0 0
    %10970 = vmatpush1.bf16.msra.mxu0 0
    %10971 = vmatprep.subr.bf16.mxu0 0
    %10972 = vmatpush1.bf16.msra.mxu0 0
    %10973 = vmatprep.subr.bf16.mxu0 0
    %10974 = vmatpush1.bf16.msra.mxu0 0
    %10975 = vmatprep.subr.bf16.mxu0 0
    %10976 = vmatpush1.bf16.msra.mxu0 0
    %10977 = vmatprep.subr.bf16.mxu0 0
    %10978 = vmatpush1.bf16.msra.mxu0 0
    %10979 = vmatprep.subr.bf16.mxu0 0
    %10980 = vmatpush1.bf16.msra.mxu0 0
    %10981 = vmatprep.subr.bf16.mxu0 0
    %10982 = vmatpush1.bf16.msra.mxu0 0
    %10983 = vmatprep.subr.bf16.mxu0 0
    %10984 = vmatpush1.bf16.msra.mxu0 0
    %10985 = vmatprep.subr.bf16.mxu0 0
    %10986 = vmatpush1.bf16.msra.mxu0 0
    %10987 = vmatprep.subr.bf16.mxu0 0
    %10988 = vmatpush1.bf16.msra.mxu0 0
    %10989 = vmatprep.subr.bf16.mxu0 0
    %10990 = vmatpush1.bf16.msra.mxu0 0
    %10991 = vmatprep.subr.bf16.mxu0 0
    %10992 = vmatpush1.bf16.msra.mxu0 0
    %10993 = vmatprep.mubr.bf16.mxu0 0
    %10994 = vmatmul.mubr.bf16.gmra.mrb[0].mxu0 %v10959
    %v10995 = vpop.f32.mrb[0].mxu0
    %v10996 = vadd.f32 %v10945, %v10995
    %v10997 = vpop.f32.mrb[0].mxu0
    %v10998 = vpop.f32.mrb[0].mxu0
    %v10999 = vadd.f32 %v10945, %v10998
    %v11000 = vpop.f32.mrb[0].mxu0
    %11001 = vdwg.mxu0
    %v11002 = vmul.f32 %v10996, 0.5
    %v11003 = vmul.f32 %v10999, 0.5
    %v11004 = vmul.f32 %v10996, 0.044715
    %v11005 = vmul.f32 %v10999, 0.044715
    %v11006 = vmul.f32 %v11004, %v10996
    %v11007 = vmul.f32 %v11005, %v10999
    %v11008 = vmul.f32 %v11006, %v10996
    %v11009 = vmul.f32 %v11007, %v10999
    %v11010 = vadd.f32 %v10996, %v11008
    %v11011 = vadd.f32 %v10999, %v11009
    %v11012 = vmul.f32 %v11010, 0.7978846
    %v11013 = vmul.f32 %v11011, 0.7978846
    %v11014 = vtanh.pop %v11012
    %v11015 = vtanh.pop %v11013
    %v11016 = vadd.f32 %v11014, 1.0
    %v11017 = vadd.f32 %v11015, 1.0
    %v11018 = vmul.f32 %v11002, %v11016
    %v11019 = vmul.f32 %v11003, %v11017
    %v11020 = vpack.c.bf16 %v11019, %v11018
    %v11021 = vld [vmem:[%s8] sm:$0xf]
    %v11022 = vld [vmem:[%s8 + $0x4] sm:$0xf]
    %v11023 = vld [vmem:[%s8 + $0x8] sm:$0xf]
    %v11024 = vld [vmem:[%s8 + $0xc] sm:$0xf]
    %v11025 = vld [vmem:[%s8 + $0x10] sm:$0xf]
    %v11026 = vld [vmem:[%s8 + $0x14] sm:$0xf]
    %v11027 = vld [vmem:[%s8 + $0x18] sm:$0xf]
    %v11028 = vld [vmem:[%s8 + $0x1c] sm:$0xf]
    %v11029 = vld [vmem:[%s9 + $0xa] sm:$0x1]
    %v11030 = vlaneseq
    %v11031 = vshrl.u32 %v11030, 7
    %v11032 = vsub.s32 0, %v11031
    %v11033 = vrot.slane %v11029, %v11032
    %v11042 = vunpack.c.l.b16 %v11021
    %v11043 = vunpack.c.l.b16 %v11022
    %v11044 = vunpack.c.l.b16 %v11023
    %v11045 = vunpack.c.l.b16 %v11024
    %v11046 = vunpack.c.l.b16 %v11025
    %v11047 = vunpack.c.l.b16 %v11026
    %v11048 = vunpack.c.l.b16 %v11027
    %v11049 = vunpack.c.l.b16 %v11028
    %v11050 = vpack.c.b16 %v11043, %v11042
    %v11051 = vpack.c.b16 %v11045, %v11044
    %v11052 = vpack.c.b16 %v11047, %v11046
    %v11053 = vpack.c.b16 %v11049, %v11048
    %vm11058 = vcmask 523264
    %v11060 = vsel %vm11058, %v11020, 0
    %11062 = vmatprep.subr.bf16.mxu0 0
    %11063 = vmatpush1.bf16.msra.mxu0 %v11050
    %11064 = vmatprep.subr.bf16.mxu0 0
    %11065 = vmatpush1.bf16.msra.mxu0 %v11051
    %11066 = vmatprep.subr.bf16.mxu0 0
    %11067 = vmatpush1.bf16.msra.mxu0 %v11052
    %11068 = vmatprep.subr.bf16.mxu0 0
    %11069 = vmatpush1.bf16.msra.mxu0 %v11053
    %11070 = vmatprep.subr.bf16.mxu0 0
    %11071 = vmatpush1.bf16.msra.mxu0 0
    %11072 = vmatprep.subr.bf16.mxu0 0
    %11073 = vmatpush1.bf16.msra.mxu0 0
    %11074 = vmatprep.subr.bf16.mxu0 0
    %11075 = vmatpush1.bf16.msra.mxu0 0
    %11076 = vmatprep.subr.bf16.mxu0 0
    %11077 = vmatpush1.bf16.msra.mxu0 0
    %11078 = vmatprep.subr.bf16.mxu0 0
    %11079 = vmatpush1.bf16.msra.mxu0 0
    %11080 = vmatprep.subr.bf16.mxu0 0
    %11081 = vmatpush1.bf16.msra.mxu0 0
    %11082 = vmatprep.subr.bf16.mxu0 0
    %11083 = vmatpush1.bf16.msra.mxu0 0
    %11084 = vmatprep.subr.bf16.mxu0 0
    %11085 = vmatpush1.bf16.msra.mxu0 0
    %11086 = vmatprep.subr.bf16.mxu0 0
    %11087 = vmatpush1.bf16.msra.mxu0 0
    %11088 = vmatprep.subr.bf16.mxu0 0
    %11089 = vmatpush1.bf16.msra.mxu0 0
    %11090 = vmatprep.subr.bf16.mxu0 0
    %11091 = vmatpush1.bf16.msra.mxu0 0
    %11092 = vmatprep.subr.bf16.mxu0 0
    %11093 = vmatpush1.bf16.msra.mxu0 0
    %11094 = vmatprep.mubr.bf16.mxu0 0
    %11095 = vmatmul.mubr.bf16.gmra.mrb[0].mxu0 %v11060
    %v11096 = vpop.f32.mrb[0].mxu0
    %v11097 = vadd.f32 %v11033, %v11096
    %v11098 = vpop.f32.mrb[0].mxu0
    %v11099 = vpop.f32.mrb[0].mxu0
    %v11100 = vadd.f32 %v11033, %v11099
    %v11101 = vpop.f32.mrb[0].mxu0
    %11102 = vdwg.mxu0
    %v11103 = vadd.f32 %v11097, %v10934
    %v11104 = vadd.f32 %v11100, %v10935
    %v11105 = vld [vmem:[%s9 + $0xb] sm:$0x1]
    %v11106 = vld [vmem:[%s9 + $0xc] sm:$0x1]
    %v11107 = vsel %vm135, %v11103, 0.0
    %11108 = vadd.xlane.f32.xlu0 %v11107
    %v11109 = vpop.xlane.xlu0 %11108
    %v11110 = vsel %vm135, %v11104, 0.0
    %11111 = vadd.xlane.f32.xlu0 %v11110
    %v11112 = vpop.xlane.xlu0 %11111
    %v11113 = vmul.f32 %v11109, %v5464
    %v11114 = vmul.f32 %v11112, %v5464
    %v11115 = vsub.f32 %v11103, %v11113
    %v11116 = vsub.f32 %v11104, %v11114
    %v11117 = vmul.f32 %v11115, %v11115
    %v11118 = vmul.f32 %v11116, %v11116
    %v11119 = vsel %vm135, %v11117, 0.0
    %11120 = vadd.xlane.f32.xlu0 %v11119
    %v11121 = vpop.xlane.xlu0 %11120
    %v11122 = vsel %vm135, %v11118, 0.0
    %11123 = vadd.xlane.f32.xlu0 %v11122
    %v11124 = vpop.xlane.xlu0 %11123
    %v11125 = vmul.f32 %v11121, %v5464
    %v11126 = vmul.f32 %v11124, %v5464
    %v11127 = vadd.f32 %v11125, 1e-05
    %v11128 = vadd.f32 %v11126, 1e-05
    %v11129 = vrsqrt.pop %v11127
    %v11130 = vrsqrt.pop %v11128
    %v11131 = vmul.f32 %v11115, %v11129
    %v11132 = vmul.f32 %v11116, %v11130
    %v11133 = vlaneseq
    %v11134 = vshrl.u32 %v11133, 7
    %v11135 = vsub.s32 0, %v11134
    %v11136 = vrot.slane %v11105, %v11135
    %v11137 = vmul.f32 %v11131, %v11136
    %v11138 = vmul.f32 %v11132, %v11136
    %v11139 = vlaneseq
    %v11140 = vshrl.u32 %v11139, 7
    %v11141 = vsub.s32 0, %v11140
    %v11142 = vrot.slane %v11106, %v11141
    %v11143 = vadd.f32 %v11137, %v11142
    %v11144 = vadd.f32 %v11138, %v11142
    %11145 = vst.msk [vmem:[#allocation11] sm:$0xff] %vm135, %v11143
    %11146 = vst.msk [vmem:[#allocation11 + $0x8] sm:$0xff] %vm135, %v11144
    // Predicated region
    $region62: #{tpu_custom_call.1} parent=1 // pred_check
      _
    $region63: #{tpu_custom_call.1} parent=1 // pred_check_branch
      %11148 = sbr.rel (0) target = $region65
    $region64: #{tpu_custom_call.1} parent=1 // pred_region
      %s11150 = ssub.s32 256, 256
      %11151 = vsyncadd [#allocation4], %s11150
      %s11152 = sshll.u32 [#allocation11], 4
      %s11153 = int_to_ptr.vmem [resolvable:$true] %s11152
      %11158 = dma.vmem_to_hbm [thread:$0]  %s11153, 256, %s10, [#allocation4], 128, 128, 8
    $region65: #{tpu_custom_call.1} parent=1 // pred_fallthru
      _
    // Predicated region
    $region66: #{tpu_custom_call.1} parent=1 // pred_check
      _
    $region67: #{tpu_custom_call.1} parent=1 // pred_check_branch
      %11160 = sbr.rel (0) target = $region69
    $region68: #{tpu_custom_call.1} parent=1 // pred_region
      %s11162 = ssub.s32 256, 256
      %11163 = vsyncadd [#allocation13], %s11162
      %s11164 = sshll.u32 [#allocation12], 4
      %s11165 = int_to_ptr.vmem [resolvable:$true] %s11164
      %11170 = dma.vmem_to_hbm [thread:$0]  %s11165, 256, %s11, [#allocation13], 128, 128, 8
    $region69: #{tpu_custom_call.1} parent=1 // pred_fallthru
      _
    // Predicated region
    $region70: #{tpu_custom_call.1} parent=1 // pred_check
      _
    $region71: #{tpu_custom_call.1} parent=1 // pred_check_branch
      %11172 = sbr.rel (0) target = $region73
    $region72: #{tpu_custom_call.1} parent=1 // pred_region
      %s11174 = ssub.s32 256, 256
      %11175 = vsyncadd [#allocation13], %s11174
      %s11176 = sshll.u32 [#allocation14], 4
      %s11177 = int_to_ptr.vmem [resolvable:$true] %s11176
      %11182 = dma.vmem_to_hbm [thread:$0]  %s11177, 256, %s12, [#allocation13], 128, 128, 8
    $region73: #{tpu_custom_call.1} parent=1 // pred_fallthru
      _
    // Predicated region
    $region74: #{tpu_custom_call.1} parent=1 // pred_check
      _
    $region75: #{tpu_custom_call.1} parent=1 // pred_check_branch
      %11184 = sbr.rel (0) target = $region77
    $region76: #{tpu_custom_call.1} parent=1 // pred_region
      %11185 = dma.done [#allocation4], 256
    $region77: #{tpu_custom_call.1} parent=1 // pred_fallthru
      _
    // Predicated region
    $region78: #{tpu_custom_call.1} parent=1 // pred_check
      _
    $region79: #{tpu_custom_call.1} parent=1 // pred_check_branch
      %11187 = sbr.rel (0) target = $region81
    $region80: #{tpu_custom_call.1} parent=1 // pred_region
      %11188 = dma.done [#allocation13], 256
    $region81: #{tpu_custom_call.1} parent=1 // pred_fallthru
      _
    // Predicated region
    $region82: #{tpu_custom_call.1} parent=1 // pred_check
      _
    $region83: #{tpu_custom_call.1} parent=1 // pred_check_branch
      %11190 = sbr.rel (0) target = $region85
    $region84: #{tpu_custom_call.1} parent=1 // pred_region
      %11191 = dma.done [#allocation13], 256
    $region85: #{tpu_custom_call.1} parent=1 // pred_fallthru
      _
    %11192 = vsyncpa [#allocation3], 1
    %11193 = vsyncpa [#allocation6], 1
    %11194 = vsyncpa [#allocation9], 1
    %11195 = vsyncpa [#allocation4], 1
    %11196 = vsyncpa [#allocation13], 1

</llo_original>
